<compile_context>
chip_gen: v6e
topology: v6e:2x2x1
jax: 0.10.0
libtpu: 0.0.40
codegen_flags: <defaults>
</compile_context>

<pallas_src>
import numpy as np
import jax
import jax.numpy as jnp
from jax.experimental import pallas as pl
from jax.experimental.pallas import tpu as pltpu

NUM_LAYERS = 8
INPUT_SIZE = 2
HIDDEN = 1000
HP = 1024          # hidden padded to a multiple of 128
NGATE = 3          # GRU gates in PyTorch order: r, z, n
GHP = NGATE * HP   # fused gate width (3072)


def gru_flowtron_kernel(gi0_ref, h_ref, wih_ref, whh_ref, bs_ref, fcw_ref, fcb_ref,
                        hout_ref, flow_ref, xc_ref):
    l = pl.program_id(0)

    # The layer-input carry is only meaningful for l >= 1 (it holds the previous
    # layer's new hidden state).  Zero it at l == 0 so the (discarded) input-path
    # matmul below is well defined.
    @pl.when(l == 0)
    def _():
        xc_ref[...] = jnp.zeros_like(xc_ref)

    h = h_ref[...]                       # (1, HP)  f32, previous hidden of layer l
    x = xc_ref[...]                      # (1, HP)  f32, layer input (l >= 1)

    b_ih = bs_ref[0:1, :]                # (1, 3*HP)
    b_hh = bs_ref[1:2, :]
    s_ih = bs_ref[2:3, :]                # per-output-column int8 dequant scales
    s_hh = bs_ref[3:4, :]

    # Fused 3-gate matvecs.  int8 weights are cast to bf16 (exact for |q| <= 127) and
    # fed to the MXU with f32 accumulation; the per-column scale is applied to the
    # tiny (1, 3*HP) result instead of the (HP, 3*HP) matrix.
    gh = jnp.dot(h.astype(jnp.bfloat16), whh_ref[...].astype(jnp.bfloat16),
                 preferred_element_type=jnp.float32) * s_hh + b_hh
    gi_deep = jnp.dot(x.astype(jnp.bfloat16), wih_ref[...].astype(jnp.bfloat16),
                      preferred_element_type=jnp.float32) * s_ih + b_ih
    # Layer 0's input path ((1,2)@(2,3000)) is precomputed in the wrapper; the dummy
    # matmul above at l == 0 (zeros @ W) is discarded here.
    gi = jnp.where(l == 0, gi0_ref[...], gi_deep)

    r = jax.nn.sigmoid(gi[:, 0:HP] + gh[:, 0:HP])
    z = jax.nn.sigmoid(gi[:, HP:2 * HP] + gh[:, HP:2 * HP])
    n = jnp.tanh(gi[:, 2 * HP:3 * HP] + r * gh[:, 2 * HP:3 * HP])
    h_new = (1.0 - z) * n + z * h

    hout_ref[...] = h_new
    xc_ref[...] = h_new                  # becomes the next layer's input

    # Final linear head (gruToFlow) on the last layer's output.
    @pl.when(l == pl.num_programs(0) - 1)
    def _():
        flow_ref[...] = (jnp.sum(h_new * fcw_ref[...], axis=-1, keepdims=True)
                         + fcb_ref[...])


def gru_flowtron_forward(inp, hiddens, wih0, bih0, wih_q, whh_q, bs_p, fcw_p, fcb_p):
    # Layer-0 input path: (1,2)@(2,3*HIDDEN) is tiny — compute it in plain XLA instead
    # of streaming a fully padded (1024,3072) weight block through the kernel.
    gi0 = (jnp.dot(inp.reshape(1, INPUT_SIZE), wih0.T,
                   precision=jax.lax.Precision.HIGHEST) + bih0)          # (1, 3*HIDDEN)
    gi0_p = jnp.pad(gi0.reshape(NGATE, HIDDEN),
                    ((0, 0), (0, HP - HIDDEN))).reshape(1, GHP)          # (1, 3*HP)

    h_p = jnp.pad(hiddens, ((0, 0), (0, 0), (0, HP - HIDDEN)))           # (L, 1, HP)

    hout_p, flow = pl.pallas_call(
        gru_flowtron_kernel,
        out_shape=(
            jax.ShapeDtypeStruct((NUM_LAYERS, 1, HP), jnp.float32),
            jax.ShapeDtypeStruct((1, 1), jnp.float32),
        ),
        grid_spec=pltpu.PrefetchScalarGridSpec(
            num_scalar_prefetch=0,
            grid=(NUM_LAYERS,),
            in_specs=[
                pl.BlockSpec((1, GHP), lambda l: (0, 0)),                      # gi0
                pl.BlockSpec((None, 1, HP), lambda l: (l, 0, 0)),              # h
                # W_ih holds layers 1..7 only; layer 0 maps to the same block as
                # layer 1, so the step-0 DMA is shared (no extra traffic).
                pl.BlockSpec((None, HP, GHP),
                             lambda l: (jnp.maximum(l - 1, 0), 0, 0)),         # W_ih (int8)
                pl.BlockSpec((None, HP, GHP), lambda l: (l, 0, 0)),            # W_hh (int8)
                pl.BlockSpec((None, 4, GHP), lambda l: (l, 0, 0)),             # [b;b;s;s]
                pl.BlockSpec((1, HP), lambda l: (0, 0)),                       # fc weight
                pl.BlockSpec((1, 1), lambda l: (0, 0)),                        # fc bias
            ],
            out_specs=[
                pl.BlockSpec((None, 1, HP), lambda l: (l, 0, 0)),              # h'
                pl.BlockSpec((1, 1), lambda l: (0, 0)),                        # flow
            ],
            scratch_shapes=[
                pltpu.VMEM((1, HP), jnp.float32),       # layer-input carry
            ],
        ),
        compiler_params=pltpu.CompilerParams(
            dimension_semantics=("arbitrary",),         # xc carry => serial over layers
            # ~12.6 MiB of double-buffered int8 weight blocks + ~12.6 MiB of transient
            # bf16 casts: needs more than v5e's 16 MiB default scoped limit, but sits
            # comfortably below v7x's 64 MiB physical VMEM.
            vmem_limit_bytes=40 * 1024 * 1024,
        ),
        cost_estimate=pl.CostEstimate(
            flops=101_000_000, bytes_accessed=48_000_000, transcendentals=25_000),
    )(gi0_p, h_p, wih_q, whh_q, bs_p, fcw_p, fcb_p)

    flow_out = flow.reshape(1, 1, 1)                    # matches PyTorch `flow` (1,1,1)
    hiddens_prime = hout_p[:, :, :HIDDEN]               # matches `hiddensPrime` (8,1,1000)
    return flow_out, hiddens_prime


def init_params(key):
    """Deterministic synthetic params, PyTorch-default uniform(-1/sqrt(H), 1/sqrt(H))."""
    k = 1.0 / np.sqrt(HIDDEN)
    params = {"wih": [], "whh": [], "bih": [], "bhh": []}
    for l in range(NUM_LAYERS):
        in_sz = INPUT_SIZE if l == 0 else HIDDEN
        key, k1, k2, k3, k4 = jax.random.split(key, 5)
        params["wih"].append(jax.random.uniform(k1, (3 * HIDDEN, in_sz), jnp.float32, -k, k))
        params["whh"].append(jax.random.uniform(k2, (3 * HIDDEN, HIDDEN), jnp.float32, -k, k))
        params["bih"].append(jax.random.uniform(k3, (3 * HIDDEN,), jnp.float32, -k, k))
        params["bhh"].append(jax.random.uniform(k4, (3 * HIDDEN,), jnp.float32, -k, k))
    key, kf1, kf2 = jax.random.split(key, 3)
    params["fcw"] = jax.random.uniform(kf1, (1, HIDDEN), jnp.float32, -k, k)
    params["fcb"] = jax.random.uniform(kf2, (1,), jnp.float32, -k, k)
    return params


def quantize_per_col(w):
    """w: (K, N) f32 -> (int8 (K, N), f32 (N,)) with w ~= q * s (per output column)."""
    amax = np.max(np.abs(w), axis=0)
    s = np.maximum(amax, 1e-12) / 127.0
    q = np.clip(np.rint(w / s), -127, 127).astype(np.int8)
    return q, s.astype(np.float32)


def pack_params(params):
    """Pad + transpose + int8-quantize PyTorch-layout GRU params into the kernel layout.

    Pad rows/columns are left exactly zero (weights, biases) so padded lanes stay zero
    through the recurrence — the correctness invariant the kernel relies on.
    """
    wih_q = np.zeros((NUM_LAYERS - 1, HP, GHP), np.int8)      # layers 1..7 only
    whh_q = np.zeros((NUM_LAYERS, HP, GHP), np.int8)
    bs_p = np.zeros((NUM_LAYERS, 4, GHP), np.float32)         # [b_ih, b_hh, s_ih, s_hh]
    for l in range(NUM_LAYERS):
        wih = np.asarray(params["wih"][l])
        whh = np.asarray(params["whh"][l])
        bih = np.asarray(params["bih"][l])
        bhh = np.asarray(params["bhh"][l])
        for g in range(NGATE):
            c0 = g * HP
            sl = slice(g * HIDDEN, (g + 1) * HIDDEN)
            qh, sh = quantize_per_col(whh[sl, :].T)            # (in, out) layout
            whh_q[l, :HIDDEN, c0:c0 + HIDDEN] = qh
            bs_p[l, 0, c0:c0 + HIDDEN] = bih[sl]
            bs_p[l, 1, c0:c0 + HIDDEN] = bhh[sl]
            bs_p[l, 3, c0:c0 + HIDDEN] = sh
            if l > 0:
                qi, si = quantize_per_col(wih[sl, :].T)
                wih_q[l - 1, :HIDDEN, c0:c0 + HIDDEN] = qi
                bs_p[l, 2, c0:c0 + HIDDEN] = si
            # layer 0's s_ih row is never used (gi_deep is discarded at l == 0).
    fcw_p = np.zeros((1, HP), np.float32)
    fcw_p[0, :HIDDEN] = np.asarray(params["fcw"])[0]
    fcb_p = np.asarray(params["fcb"]).reshape(1, 1).astype(np.float32)

    wih0 = jnp.asarray(params["wih"][0])          # (3*HIDDEN, 2)  f32, used in wrapper
    bih0 = jnp.asarray(params["bih"][0])          # (3*HIDDEN,)    f32
    return (wih0, bih0,
            jnp.asarray(wih_q),                   # int8 weights: ~4x less HBM traffic
            jnp.asarray(whh_q),
            jnp.asarray(bs_p), jnp.asarray(fcw_p), jnp.asarray(fcb_p))


def reference_forward(inp, hiddens, params):
    """Pure-JAX reference matching PyTorch nn.GRU (eval) + Linear for one step (f32)."""
    P = jax.lax.Precision.HIGHEST
    layer_in = inp.reshape(1, -1)                      # (1, 2) == input.view(1, 1, -1)
    new_h = []
    for l in range(NUM_LAYERS):
        h = hiddens[l]                                 # (1, HIDDEN)
        gi = jnp.dot(layer_in, params["wih"][l].T, precision=P) + params["bih"][l]
        gh = jnp.dot(h, params["whh"][l].T, precision=P) + params["bhh"][l]
        r = jax.nn.sigmoid(gi[:, :HIDDEN] + gh[:, :HIDDEN])
        z = jax.nn.sigmoid(gi[:, HIDDEN:2 * HIDDEN] + gh[:, HIDDEN:2 * HIDDEN])
        n = jnp.tanh(gi[:, 2 * HIDDEN:] + r * gh[:, 2 * HIDDEN:])
        h_new = (1.0 - z) * n + z * h
        new_h.append(h_new)
        layer_in = h_new
    flow = jnp.dot(layer_in, params["fcw"].T, precision=P) + params["fcb"]
    return flow.reshape(1, 1, 1), jnp.stack(new_h, axis=0)


if __name__ == "__main__":
    key = jax.random.PRNGKey(0)
    key, k_in, k_h, k_p = jax.random.split(key, 4)

    # Module-implied shapes: input has 2 scalars (viewed as (1,1,2)); hiddens is (8,1,1000).
    inp = jax.random.normal(k_in, (INPUT_SIZE,), jnp.float32)
    hiddens = jax.random.normal(k_h, (NUM_LAYERS, 1, HIDDEN), jnp.float32) * 0.1

    params = init_params(k_p)
    packed = pack_params(params)

    fwd = jax.jit(gru_flowtron_forward)
    flow_out, hiddens_prime = fwd(inp, hiddens, *packed)
    jax.block_until_ready((flow_out, hiddens_prime))

    # Tolerance accounts for int8 weight quantization (per-column scales) plus bf16
    # activation casts feeding the MXU (f32 accumulation everywhere); observed error
    # is O(1e-3) for these magnitudes and compounds over the 8-layer recurrence.
    flow_ref, hiddens_ref = reference_forward(inp, hiddens, params)
    np.testing.assert_allclose(np.asarray(flow_out), np.asarray(flow_ref),
                               rtol=2e-2, atol=2e-2)
    np.testing.assert_allclose(np.asarray(hiddens_prime), np.asarray(hiddens_ref),
                               rtol=2e-2, atol=2e-2)

    print("KERNEL_OK")
</pallas_src>

<mosaic_0001>
module attributes {stable_mosaic.version = 11 : i64} {
  func.func @gru_flowtron_kernel(%arg0: i32, %arg1: memref<1x3072xf32, #tpu.memory_space<vmem>>, %arg2: memref<1x1x1024xf32, #tpu.memory_space<vmem>>, %arg3: memref<1x1024x3072xi8, #tpu.memory_space<vmem>>, %arg4: memref<1x1024x3072xi8, #tpu.memory_space<vmem>>, %arg5: memref<1x4x3072xf32, #tpu.memory_space<vmem>>, %arg6: memref<1x1024xf32, #tpu.memory_space<vmem>>, %arg7: memref<1x1xf32, #tpu.memory_space<vmem>>, %arg8: memref<1x1x1024xf32, #tpu.memory_space<vmem>>, %arg9: memref<1x1xf32, #tpu.memory_space<vmem>>, %arg10: memref<1x1024xf32, #tpu.memory_space<vmem>>) attributes {dimension_semantics = [#tpu.dimension_semantics<arbitrary>], iteration_bounds = array<i64: 8>, scalar_prefetch = 0 : i64, scratch_operands = 1 : i64, tpu.core_type = #tpu.core_type<tc>, window_params = [{pipeline_mode = #tpu.pipeline_mode<synchronous>, transform_indices = @transform_0, window_bounds = array<i64: 1, 3072>}, {transform_indices = @transform_1, window_bounds = array<i64: 1, 1, 1024>}, {transform_indices = @transform_2, window_bounds = array<i64: 1, 1024, 3072>}, {transform_indices = @transform_3, window_bounds = array<i64: 1, 1024, 3072>}, {transform_indices = @transform_4, window_bounds = array<i64: 1, 4, 3072>}, {pipeline_mode = #tpu.pipeline_mode<synchronous>, transform_indices = @transform_5, window_bounds = array<i64: 1, 1024>}, {pipeline_mode = #tpu.pipeline_mode<synchronous>, transform_indices = @transform_6, window_bounds = array<i64: 1, 1>}, {transform_indices = @transform_7, window_bounds = array<i64: 1, 1, 1024>}, {pipeline_mode = #tpu.pipeline_mode<synchronous>, transform_indices = @transform_8, window_bounds = array<i64: 1, 1>}]} {
    %c0_i32 = arith.constant 0 : i32
    %0 = arith.cmpi eq, %arg0, %c0_i32 : i32
    %1 = arith.extui %0 : i1 to i32
    %c0_i32_0 = arith.constant 0 : i32
    %2 = arith.cmpi ne, %1, %c0_i32_0 : i32
    scf.if %2 {
      %cst_33 = arith.constant 0.000000e+00 : f32
      %64 = vector.broadcast %cst_33 : f32 to vector<1x1024xf32>
      %c0_34 = arith.constant 0 : index
      %c0_35 = arith.constant 0 : index
      %65 = vector.load %arg10[%c0_34, %c0_35] : memref<1x1024xf32, #tpu.memory_space<vmem>>, vector<1x1024xf32>
      tpu.vector_store %arg10[%c0_34, %c0_35], %64 {strides = array<i32>} : memref<1x1024xf32, #tpu.memory_space<vmem>>, vector<1x1024xf32>,
    } else {
    }
    %c0 = arith.constant 0 : index
    %c0_1 = arith.constant 0 : index
    %c0_2 = arith.constant 0 : index
    %3 = vector.load %arg2[%c0, %c0_1, %c0_2] : memref<1x1x1024xf32, #tpu.memory_space<vmem>>, vector<1x1x1024xf32>
    %4 = vector.shape_cast %3 : vector<1x1x1024xf32> to vector<1x1024xf32>
    %c0_3 = arith.constant 0 : index
    %c0_4 = arith.constant 0 : index
    %5 = vector.load %arg10[%c0_3, %c0_4] : memref<1x1024xf32, #tpu.memory_space<vmem>>, vector<1x1024xf32>
    %c0_5 = arith.constant 0 : index
    %c0_6 = arith.constant 0 : index
    %c0_7 = arith.constant 0 : index
    %6 = vector.load %arg5[%c0_5, %c0_6, %c0_7] : memref<1x4x3072xf32, #tpu.memory_space<vmem>>, vector<1x1x3072xf32>
    %7 = vector.shape_cast %6 : vector<1x1x3072xf32> to vector<1x3072xf32>
    %c0_8 = arith.constant 0 : index
    %c1 = arith.constant 1 : index
    %c0_9 = arith.constant 0 : index
    %8 = vector.load %arg5[%c0_8, %c1, %c0_9] : memref<1x4x3072xf32, #tpu.memory_space<vmem>>, vector<1x1x3072xf32>
    %9 = vector.shape_cast %8 : vector<1x1x3072xf32> to vector<1x3072xf32>
    %c0_10 = arith.constant 0 : index
    %c2 = arith.constant 2 : index
    %c0_11 = arith.constant 0 : index
    %10 = vector.load %arg5[%c0_10, %c2, %c0_11] : memref<1x4x3072xf32, #tpu.memory_space<vmem>>, vector<1x1x3072xf32>
    %11 = vector.shape_cast %10 : vector<1x1x3072xf32> to vector<1x3072xf32>
    %c0_12 = arith.constant 0 : index
    %c3 = arith.constant 3 : index
    %c0_13 = arith.constant 0 : index
    %12 = vector.load %arg5[%c0_12, %c3, %c0_13] : memref<1x4x3072xf32, #tpu.memory_space<vmem>>, vector<1x1x3072xf32>
    %13 = vector.shape_cast %12 : vector<1x1x3072xf32> to vector<1x3072xf32>
    %14 = arith.truncf %4 : vector<1x1024xf32> to vector<1x1024xbf16>
    %c0_14 = arith.constant 0 : index
    %c0_15 = arith.constant 0 : index
    %c0_16 = arith.constant 0 : index
    %15 = vector.load %arg4[%c0_14, %c0_15, %c0_16] : memref<1x1024x3072xi8, #tpu.memory_space<vmem>>, vector<1x1024x3072xi8>
    %16 = vector.shape_cast %15 : vector<1x1024x3072xi8> to vector<1024x3072xi8>
    %17 = arith.sitofp %16 : vector<1024x3072xi8> to vector<1024x3072xbf16>
    %cst = arith.constant dense<0.000000e+00> : vector<1x3072xf32>
    %18 = tpu.matmul %14, %17, %cst {dimension_numbers = #tpu.dot_dimension_numbers<[1], [0], [0], [1], [0, 0, 1, 1], [], []>} : vector<1x1024xbf16>, vector<1024x3072xbf16>, vector<1x3072xf32> -> vector<1x3072xf32>
    %19 = arith.mulf %18, %13 : vector<1x3072xf32>
    %20 = arith.addf %19, %9 : vector<1x3072xf32>
    %21 = arith.truncf %5 : vector<1x1024xf32> to vector<1x1024xbf16>
    %c0_17 = arith.constant 0 : index
    %c0_18 = arith.constant 0 : index
    %c0_19 = arith.constant 0 : index
    %22 = vector.load %arg3[%c0_17, %c0_18, %c0_19] : memref<1x1024x3072xi8, #tpu.memory_space<vmem>>, vector<1x1024x3072xi8>
    %23 = vector.shape_cast %22 : vector<1x1024x3072xi8> to vector<1024x3072xi8>
    %24 = arith.sitofp %23 : vector<1024x3072xi8> to vector<1024x3072xbf16>
    %cst_20 = arith.constant dense<0.000000e+00> : vector<1x3072xf32>
    %25 = tpu.matmul %21, %24, %cst_20 {dimension_numbers = #tpu.dot_dimension_numbers<[1], [0], [0], [1], [0, 0, 1, 1], [], []>} : vector<1x1024xbf16>, vector<1024x3072xbf16>, vector<1x3072xf32> -> vector<1x3072xf32>
    %26 = arith.mulf %25, %11 : vector<1x3072xf32>
    %27 = arith.addf %26, %7 : vector<1x3072xf32>
    %c0_i32_21 = arith.constant 0 : i32
    %28 = arith.cmpi eq, %arg0, %c0_i32_21 : i32
    %c0_22 = arith.constant 0 : index
    %c0_23 = arith.constant 0 : index
    %29 = vector.load %arg1[%c0_22, %c0_23] : memref<1x3072xf32, #tpu.memory_space<vmem>>, vector<1x3072xf32>
    %30 = arith.select %28, %29, %27 : vector<1x3072xf32>
    %31 = vector.extract_strided_slice %30 {offsets = [0, 0], sizes = [1, 1024], strides = [1, 1]} : vector<1x3072xf32> to vector<1x1024xf32>
    %32 = vector.extract_strided_slice %20 {offsets = [0, 0], sizes = [1, 1024], strides = [1, 1]} : vector<1x3072xf32> to vector<1x1024xf32>
    %33 = arith.addf %31, %32 : vector<1x1024xf32>
    %34 = arith.negf %33 : vector<1x1024xf32>
    %35 = math.exp %34 : vector<1x1024xf32>
    %cst_24 = arith.constant 1.000000e+00 : f32
    %36 = vector.broadcast %cst_24 : f32 to vector<1x1024xf32>
    %37 = arith.addf %36, %35 : vector<1x1024xf32>
    %38 = arith.divf %36, %37 : vector<1x1024xf32>
    %39 = vector.extract_strided_slice %30 {offsets = [0, 1024], sizes = [1, 1024], strides = [1, 1]} : vector<1x3072xf32> to vector<1x1024xf32>
    %40 = vector.extract_strided_slice %20 {offsets = [0, 1024], sizes = [1, 1024], strides = [1, 1]} : vector<1x3072xf32> to vector<1x1024xf32>
    %41 = arith.addf %39, %40 : vector<1x1024xf32>
    %42 = arith.negf %41 : vector<1x1024xf32>
    %43 = math.exp %42 : vector<1x1024xf32>
    %cst_25 = arith.constant 1.000000e+00 : f32
    %44 = vector.broadcast %cst_25 : f32 to vector<1x1024xf32>
    %45 = arith.addf %44, %43 : vector<1x1024xf32>
    %46 = arith.divf %44, %45 : vector<1x1024xf32>
    %47 = vector.extract_strided_slice %30 {offsets = [0, 2048], sizes = [1, 1024], strides = [1, 1]} : vector<1x3072xf32> to vector<1x1024xf32>
    %48 = vector.extract_strided_slice %20 {offsets = [0, 2048], sizes = [1, 1024], strides = [1, 1]} : vector<1x3072xf32> to vector<1x1024xf32>
    %49 = arith.mulf %38, %48 : vector<1x1024xf32>
    %50 = arith.addf %47, %49 : vector<1x1024xf32>
    %51 = math.tanh %50 : vector<1x1024xf32>
    %cst_26 = arith.constant 1.000000e+00 : f32
    %52 = vector.broadcast %cst_26 : f32 to vector<1x1024xf32>
    %53 = arith.subf %52, %46 : vector<1x1024xf32>
    %54 = arith.mulf %53, %51 : vector<1x1024xf32>
    %55 = arith.mulf %46, %4 : vector<1x1024xf32>
    %56 = arith.addf %54, %55 : vector<1x1024xf32>
    %c0_27 = arith.constant 0 : index
    %c0_28 = arith.constant 0 : index
    %c0_29 = arith.constant 0 : index
    %57 = vector.load %arg8[%c0_27, %c0_28, %c0_29] : memref<1x1x1024xf32, #tpu.memory_space<vmem>>, vector<1x1x1024xf32>
    %58 = vector.shape_cast %57 : vector<1x1x1024xf32> to vector<1x1024xf32>
    %59 = vector.shape_cast %56 : vector<1x1024xf32> to vector<1x1x1024xf32>
    tpu.vector_store %arg8[%c0_27, %c0_28, %c0_29], %59 {strides = array<i32>} : memref<1x1x1024xf32, #tpu.memory_space<vmem>>, vector<1x1x1024xf32>,
    %c0_30 = arith.constant 0 : index
    %c0_31 = arith.constant 0 : index
    %60 = vector.load %arg10[%c0_30, %c0_31] : memref<1x1024xf32, #tpu.memory_space<vmem>>, vector<1x1024xf32>
    tpu.vector_store %arg10[%c0_30, %c0_31], %56 {strides = array<i32>} : memref<1x1024xf32, #tpu.memory_space<vmem>>, vector<1x1024xf32>,
    %c7_i32 = arith.constant 7 : i32
    %61 = arith.cmpi eq, %arg0, %c7_i32 : i32
    %62 = arith.extui %61 : i1 to i32
    %c0_i32_32 = arith.constant 0 : i32
    %63 = arith.cmpi ne, %62, %c0_i32_32 : i32
    scf.if %63 {
      %c0_33 = arith.constant 0 : index
      %c0_34 = arith.constant 0 : index
      %64 = vector.load %arg6[%c0_33, %c0_34] : memref<1x1024xf32, #tpu.memory_space<vmem>>, vector<1x1024xf32>
      %65 = arith.mulf %56, %64 : vector<1x1024xf32>
      %cst_35 = arith.constant dense<0.000000e+00> : vector<1xf32>
      %66 = vector.multi_reduction <add>, %65, %cst_35 [1] : vector<1x1024xf32> to vector<1xf32>
      %67 = vector.shape_cast %66 : vector<1xf32> to vector<1x1xf32>
      %c0_36 = arith.constant 0 : index
      %c0_37 = arith.constant 0 : index
      %68 = vector.load %arg7[%c0_36, %c0_37] : memref<1x1xf32, #tpu.memory_space<vmem>>, vector<1x1xf32>
      %69 = arith.addf %67, %68 : vector<1x1xf32>
      %c0_38 = arith.constant 0 : index
      %c0_39 = arith.constant 0 : index
      %70 = vector.load %arg9[%c0_38, %c0_39] : memref<1x1xf32, #tpu.memory_space<vmem>>, vector<1x1xf32>
      tpu.vector_store %arg9[%c0_38, %c0_39], %69 {strides = array<i32>} : memref<1x1xf32, #tpu.memory_space<vmem>>, vector<1x1xf32>,
    } else {
    }
    return
  }
  func.func @transform_0(%arg0: i32) -> (i32, i32) {
    %c0_i32 = arith.constant 0 : i32
    %c0_i32_0 = arith.constant 0 : i32
    %c0_i32_1 = arith.constant 0 : i32
    return %c0_i32, %c0_i32_0 : i32, i32
  }
  func.func @transform_1(%arg0: i32) -> (i32, i32, i32) {
    %c0_i32 = arith.constant 0 : i32
    %c0_i32_0 = arith.constant 0 : i32
    %c0_i32_1 = arith.constant 0 : i32
    return %arg0, %c0_i32, %c0_i32_0 : i32, i32, i32
  }
  func.func @transform_2(%arg0: i32) -> (i32, i32, i32) {
    %c1_i32 = arith.constant 1 : i32
    %0 = arith.subi %arg0, %c1_i32 : i32
    %c0_i32 = arith.constant 0 : i32
    %1 = arith.maxsi %0, %c0_i32 : i32
    %c0_i32_0 = arith.constant 0 : i32
    %c0_i32_1 = arith.constant 0 : i32
    %c0_i32_2 = arith.constant 0 : i32
    return %1, %c0_i32_0, %c0_i32_1 : i32, i32, i32
  }
  func.func @transform_3(%arg0: i32) -> (i32, i32, i32) {
    %c0_i32 = arith.constant 0 : i32
    %c0_i32_0 = arith.constant 0 : i32
    %c0_i32_1 = arith.constant 0 : i32
    return %arg0, %c0_i32, %c0_i32_0 : i32, i32, i32
  }
  func.func @transform_4(%arg0: i32) -> (i32, i32, i32) {
    %c0_i32 = arith.constant 0 : i32
    %c0_i32_0 = arith.constant 0 : i32
    %c0_i32_1 = arith.constant 0 : i32
    return %arg0, %c0_i32, %c0_i32_0 : i32, i32, i32
  }
  func.func @transform_5(%arg0: i32) -> (i32, i32) {
    %c0_i32 = arith.constant 0 : i32
    %c0_i32_0 = arith.constant 0 : i32
    %c0_i32_1 = arith.constant 0 : i32
    return %c0_i32, %c0_i32_0 : i32, i32
  }
  func.func @transform_6(%arg0: i32) -> (i32, i32) {
    %c0_i32 = arith.constant 0 : i32
    %c0_i32_0 = arith.constant 0 : i32
    %c0_i32_1 = arith.constant 0 : i32
    return %c0_i32, %c0_i32_0 : i32, i32
  }
  func.func @transform_7(%arg0: i32) -> (i32, i32, i32) {
    %c0_i32 = arith.constant 0 : i32
    %c0_i32_0 = arith.constant 0 : i32
    %c0_i32_1 = arith.constant 0 : i32
    return %arg0, %c0_i32, %c0_i32_0 : i32, i32, i32
  }
  func.func @transform_8(%arg0: i32) -> (i32, i32) {
    %c0_i32 = arith.constant 0 : i32
    %c0_i32_0 = arith.constant 0 : i32
    %c0_i32_1 = arith.constant 0 : i32
    return %c0_i32, %c0_i32_0 : i32, i32
  }
}

</mosaic_0001>

<llo_original>
// kernel: gru_flowtron_forward.1
$region0: #{gru_flowtron_forward.1}
  #allocation0 [shape = 'u32[]', space=smem, size = 0x4, offset = 0x4, fixed_abs, tag = 'smem constant byte address 0x4 - core index']
  #allocation1 [shape = 'u32[144,128]{1,0:T(1,128)}', space=vmem, size = 0x12000, scoped, tag = 'internal scratch']
  #allocation2 [shape = 'f32[1,1024]{1,0:T(1,128)}', space=vmem, size = 0x1000, scoped, tag = 'scratch operand']
  #allocation3 [shape = 'f32[1,1]{1,0:T(1,128)S(1)}', space=vmem, size = 0x200, scoped, tag = 'scoped memory for gru_flowtron_forward.1']
  %s0 = inlined_call_operand.vmem [shape: f32[1,3072], index: 0, kind: input, shape index: {}]
  %s1 = inlined_call_operand.vmem [shape: f32[8,1,1024], index: 1, kind: input, shape index: {}]
  %s2 = inlined_call_operand.hbm [shape: s8[7,1024,3072], index: 2, kind: input, shape index: {}]
  %s3 = inlined_call_operand.hbm [shape: s8[8,1024,3072], index: 3, kind: input, shape index: {}]
  %s4 = inlined_call_operand.hbm [shape: f32[8,4,3072], index: 4, kind: input, shape index: {}]
  %s5 = inlined_call_operand.hbm [shape: f32[1,1024], index: 5, kind: input, shape index: {}]
  %s6 = inlined_call_operand.<no memory space> [shape: f32[1,1], index: 6, kind: input, shape index: {}]
  %s7 = inlined_call_operand.hbm [shape: f32[8,1,1024], index: 7, kind: output, shape index: {0}]
  %s8 = inlined_call_operand.hbm [shape: f32[1,1], index: 8, kind: output, shape index: {1}]
  %9 = xla_tuple %s7, %s8
  %s10 = sld [smem:[#allocation0]]
  $region93: #{gru_flowtron_forward.1} parent=0
    _
  %s12 = ssub.s32 1, %s10
  %s13 = scalar_select 0, %s12, %s10
  %v14 = vstv %s6
  %15 = vst [vmem:[#allocation3] sm:$0x1] %v14
  $region1: #{gru_flowtron_forward.1} parent=0
    #allocation4 [shape = 'u8[6291456]{0}', space=vmem, size = 0x600000, scoped, tag = 'input window, operand 2']
    #allocation5 [shape = 's32[2]{0}', space=sflag, size = 0x8, scoped, tag = 'scoped memory for gru_flowtron_forward.1']
    #allocation6 [shape = 's32[2]{0}', space=sflag, size = 0x8, scoped, tag = 'scoped memory for gru_flowtron_forward.1']
    #allocation7 [shape = 'u8[6291456]{0}', space=vmem, size = 0x600000, scoped, tag = 'input window, operand 3']
    #allocation8 [shape = 's32[2]{0}', space=sflag, size = 0x8, scoped, tag = 'scoped memory for gru_flowtron_forward.1']
    #allocation9 [shape = 'u8[98304]{0}', space=vmem, size = 0x18000, scoped, tag = 'input window, operand 4']
    #allocation10 [shape = 'u8[4096]{0}', space=vmem, size = 0x1000, scoped, tag = 'input window, operand 5, single buffered']
    #allocation11 [shape = 's32[1]{0}', space=sflag, size = 0x4, scoped, tag = 'scoped memory for gru_flowtron_forward.1']
    #allocation12 [shape = 'u8[8192]{0}', space=vmem, size = 0x2000, scoped, tag = 'output window, operand 0']
    #allocation13 [shape = 'u8[512]{0}', space=vmem, size = 0x400, scoped, tag = 'output window, operand 1, single buffered']
    #allocation14 [shape = 's32[1]{0}', space=sflag, size = 0x4, scoped, tag = 'scoped memory for gru_flowtron_forward.1']
    %16 = vsyncpa [#allocation5], 0
    %s17 = scalar_lea.sflag [#allocation5], 1
    %18 = vsyncpa %s17, 0
    %19 = vsyncpa [#allocation8], 0
    %s20 = scalar_lea.sflag [#allocation8], 1
    %21 = vsyncpa %s20, 0
    %22 = vsyncpa [#allocation11], 0
    %23 = vsyncpa [#allocation6], 0
    %s24 = scalar_lea.sflag [#allocation6], 1
    %25 = vsyncpa %s24, 0
    %26 = vsyncpa [#allocation14], 0
    loop: start=0, step=1, limit=10
    $region2: #{gru_flowtron_forward.1} parent=1 // loop_pre_header
      _
    $region3: #{gru_flowtron_forward.1} parent=1 // loop_header
      %s28 = sphi 0, %s32
      %p29 = scmp.ge.s32.totalorder %s28, 10
      %s36 = sphi 0, %s36
      %s38 = sphi 0, %s36
      %s39 = sphi 0, %s38
      %s53 = sphi 0, %s39
      %s59 = sphi 0, %s61
      %s62 = sphi 0, %s59
      %s63 = sphi 0, %s62
      %s79 = sphi 0, %s63
      %s91 = sphi 0, %s93
      %s94 = sphi 0, %s91
      %s95 = sphi 0, %s94
      %s111 = sphi 0, %s95
      %s117 = sphi 0, %s119
      %s120 = sphi 0, %s117
      %s121 = sphi 0, %s120
      %s137 = sphi 0, %s121
      %s143 = sphi 0, %s145
      %s146 = sphi 0, %s143
      %s147 = sphi 0, %s146
      %s163 = sphi 0, %s147
      %s167 = sphi 0, %s167
      %s169 = sphi 0, %s167
      %s170 = sphi 0, %s169
      %s184 = sphi 0, %s170
      %s188 = sphi 0, %s188
      %s190 = sphi 0, %s188
      %s191 = sphi 0, %s190
      %s205 = sphi 0, %s191
      %s211 = sphi 0, %s213
      %s214 = sphi 0, %s211
      %s215 = sphi 0, %s214
      %s231 = sphi 0, %s215
      %s235 = sphi 0, %s235
      %s237 = sphi 0, %s235
      %s238 = sphi 0, %s237
      %s252 = sphi 0, %s238
    $region4: #{gru_flowtron_forward.1} parent=1 // loop_header_branch
      %31 = sbr.rel (%p29) target = $region8
    $region5: #{gru_flowtron_forward.1} parent=1 // loop_body
      %s33 = ssub.s32 %s28, 1
      %s34 = ssub.s32 %s28, 2
      %s35 = sadd.s32 %s28, 1
      %s37 = sadd.s32 %s36, 1
      %p40 = scmp.eq.s32.totalorder %s28, 7
      %p41 = scmp.ne.s32.totalorder %s36, %s38
      %p42 = scmp.eq.s32.totalorder %s28, 0
      %p43 = por %p41, %p42
      %p44 = scmp.ne.s32.totalorder %s36, %s38
      %p45 = scmp.eq.s32.totalorder %s33, 7
      %p46 = por %p44, %p45
      %p47 = scmp.ne.s32.totalorder %s38, %s39
      %p48 = scmp.eq.s32.totalorder %s33, 0
      %p49 = por %p47, %p48
      %p50 = scmp.ne.s32.totalorder %s38, %s39
      %p51 = scmp.eq.s32.totalorder %s34, 7
      %p52 = por %p50, %p51
      %p54 = scmp.ne.s32.totalorder %s39, %s53
      %p55 = scmp.eq.s32.totalorder %s34, 0
      %p56 = por %p54, %p55
      %s57 = ssub.s32 %s28, %s35
      %p58 = scmp.eq.s32.totalorder %s57, 0
      %s60 = sadd.s32 %s59, 1
      %s61 = scalar_select %p58, %s59, %s60
      %p64 = pneg %p58
      %p65 = scmp.eq.s32.totalorder %s28, 7
      %p66 = por %p64, %p65
      %p67 = scmp.ne.s32.totalorder %s59, %s62
      %p68 = scmp.eq.s32.totalorder %s28, 0
      %p69 = por %p67, %p68
      %p70 = scmp.ne.s32.totalorder %s59, %s62
      %p71 = scmp.eq.s32.totalorder %s33, 7
      %p72 = por %p70, %p71
      %p73 = scmp.ne.s32.totalorder %s62, %s63
      %p74 = scmp.eq.s32.totalorder %s33, 0
      %p75 = por %p73, %p74
      %p76 = scmp.ne.s32.totalorder %s62, %s63
      %p77 = scmp.eq.s32.totalorder %s34, 7
      %p78 = por %p76, %p77
      %p80 = scmp.ne.s32.totalorder %s63, %s79
      %p81 = scmp.eq.s32.totalorder %s34, 0
      %p82 = por %p80, %p81
      %s83 = ssub.s32 %s28, 1
      %p84 = scmp.gt.s32.totalorder %s83, 0
      %s85 = scalar_select %p84, %s83, 0
      %s86 = ssub.s32 %s35, 1
      %p87 = scmp.gt.s32.totalorder %s86, 0
      %s88 = scalar_select %p87, %s86, 0
      %s89 = ssub.s32 %s85, %s88
      %p90 = scmp.eq.s32.totalorder %s89, 0
      %s92 = sadd.s32 %s91, 1
      %s93 = scalar_select %p90, %s91, %s92
      %p96 = pneg %p90
      %p97 = scmp.eq.s32.totalorder %s28, 7
      %p98 = por %p96, %p97
      %p99 = scmp.ne.s32.totalorder %s91, %s94
      %p100 = scmp.eq.s32.totalorder %s28, 0
      %p101 = por %p99, %p100
      %p102 = scmp.ne.s32.totalorder %s91, %s94
      %p103 = scmp.eq.s32.totalorder %s33, 7
      %p104 = por %p102, %p103
      %p105 = scmp.ne.s32.totalorder %s94, %s95
      %p106 = scmp.eq.s32.totalorder %s33, 0
      %p107 = por %p105, %p106
      %p108 = scmp.ne.s32.totalorder %s94, %s95
      %p109 = scmp.eq.s32.totalorder %s34, 7
      %p110 = por %p108, %p109
      %p112 = scmp.ne.s32.totalorder %s95, %s111
      %p113 = scmp.eq.s32.totalorder %s34, 0
      %p114 = por %p112, %p113
      %s115 = ssub.s32 %s28, %s35
      %p116 = scmp.eq.s32.totalorder %s115, 0
      %s118 = sadd.s32 %s117, 1
      %s119 = scalar_select %p116, %s117, %s118
      %p122 = pneg %p116
      %p123 = scmp.eq.s32.totalorder %s28, 7
      %p124 = por %p122, %p123
      %p125 = scmp.ne.s32.totalorder %s117, %s120
      %p126 = scmp.eq.s32.totalorder %s28, 0
      %p127 = por %p125, %p126
      %p128 = scmp.ne.s32.totalorder %s117, %s120
      %p129 = scmp.eq.s32.totalorder %s33, 7
      %p130 = por %p128, %p129
      %p131 = scmp.ne.s32.totalorder %s120, %s121
      %p132 = scmp.eq.s32.totalorder %s33, 0
      %p133 = por %p131, %p132
      %p134 = scmp.ne.s32.totalorder %s120, %s121
      %p135 = scmp.eq.s32.totalorder %s34, 7
      %p136 = por %p134, %p135
      %p138 = scmp.ne.s32.totalorder %s121, %s137
      %p139 = scmp.eq.s32.totalorder %s34, 0
      %p140 = por %p138, %p139
      %s141 = ssub.s32 %s28, %s35
      %p142 = scmp.eq.s32.totalorder %s141, 0
      %s144 = sadd.s32 %s143, 1
      %s145 = scalar_select %p142, %s143, %s144
      %p148 = pneg %p142
      %p149 = scmp.eq.s32.totalorder %s28, 7
      %p150 = por %p148, %p149
      %p151 = scmp.ne.s32.totalorder %s143, %s146
      %p152 = scmp.eq.s32.totalorder %s28, 0
      %p153 = por %p151, %p152
      %p154 = scmp.ne.s32.totalorder %s143, %s146
      %p155 = scmp.eq.s32.totalorder %s33, 7
      %p156 = por %p154, %p155
      %p157 = scmp.ne.s32.totalorder %s146, %s147
      %p158 = scmp.eq.s32.totalorder %s33, 0
      %p159 = por %p157, %p158
      %p160 = scmp.ne.s32.totalorder %s146, %s147
      %p161 = scmp.eq.s32.totalorder %s34, 7
      %p162 = por %p160, %p161
      %p164 = scmp.ne.s32.totalorder %s147, %s163
      %p165 = scmp.eq.s32.totalorder %s34, 0
      %p166 = por %p164, %p165
      %s168 = sadd.s32 %s167, 1
      %p171 = scmp.eq.s32.totalorder %s28, 7
      %p172 = scmp.ne.s32.totalorder %s167, %s169
      %p173 = scmp.eq.s32.totalorder %s28, 0
      %p174 = por %p172, %p173
      %p175 = scmp.ne.s32.totalorder %s167, %s169
      %p176 = scmp.eq.s32.totalorder %s33, 7
      %p177 = por %p175, %p176
      %p178 = scmp.ne.s32.totalorder %s169, %s170
      %p179 = scmp.eq.s32.totalorder %s33, 0
      %p180 = por %p178, %p179
      %p181 = scmp.ne.s32.totalorder %s169, %s170
      %p182 = scmp.eq.s32.totalorder %s34, 7
      %p183 = por %p181, %p182
      %p185 = scmp.ne.s32.totalorder %s170, %s184
      %p186 = scmp.eq.s32.totalorder %s34, 0
      %p187 = por %p185, %p186
      %s189 = sadd.s32 %s188, 1
      %p192 = scmp.eq.s32.totalorder %s28, 7
      %p193 = scmp.ne.s32.totalorder %s188, %s190
      %p194 = scmp.eq.s32.totalorder %s28, 0
      %p195 = por %p193, %p194
      %p196 = scmp.ne.s32.totalorder %s188, %s190
      %p197 = scmp.eq.s32.totalorder %s33, 7
      %p198 = por %p196, %p197
      %p199 = scmp.ne.s32.totalorder %s190, %s191
      %p200 = scmp.eq.s32.totalorder %s33, 0
      %p201 = por %p199, %p200
      %p202 = scmp.ne.s32.totalorder %s190, %s191
      %p203 = scmp.eq.s32.totalorder %s34, 7
      %p204 = por %p202, %p203
      %p206 = scmp.ne.s32.totalorder %s191, %s205
      %p207 = scmp.eq.s32.totalorder %s34, 0
      %p208 = por %p206, %p207
      %s209 = ssub.s32 %s28, %s35
      %p210 = scmp.eq.s32.totalorder %s209, 0
      %s212 = sadd.s32 %s211, 1
      %s213 = scalar_select %p210, %s211, %s212
      %p216 = pneg %p210
      %p217 = scmp.eq.s32.totalorder %s28, 7
      %p218 = por %p216, %p217
      %p219 = scmp.ne.s32.totalorder %s211, %s214
      %p220 = scmp.eq.s32.totalorder %s28, 0
      %p221 = por %p219, %p220
      %p222 = scmp.ne.s32.totalorder %s211, %s214
      %p223 = scmp.eq.s32.totalorder %s33, 7
      %p224 = por %p222, %p223
      %p225 = scmp.ne.s32.totalorder %s214, %s215
      %p226 = scmp.eq.s32.totalorder %s33, 0
      %p227 = por %p225, %p226
      %p228 = scmp.ne.s32.totalorder %s214, %s215
      %p229 = scmp.eq.s32.totalorder %s34, 7
      %p230 = por %p228, %p229
      %p232 = scmp.ne.s32.totalorder %s215, %s231
      %p233 = scmp.eq.s32.totalorder %s34, 0
      %p234 = por %p232, %p233
      %s236 = sadd.s32 %s235, 1
      %p239 = scmp.eq.s32.totalorder %s28, 7
      %p240 = scmp.ne.s32.totalorder %s235, %s237
      %p241 = scmp.eq.s32.totalorder %s28, 0
      %p242 = por %p240, %p241
      %p243 = scmp.ne.s32.totalorder %s235, %s237
      %p244 = scmp.eq.s32.totalorder %s33, 7
      %p245 = por %p243, %p244
      %p246 = scmp.ne.s32.totalorder %s237, %s238
      %p247 = scmp.eq.s32.totalorder %s33, 0
      %p248 = por %p246, %p247
      %p249 = scmp.ne.s32.totalorder %s237, %s238
      %p250 = scmp.eq.s32.totalorder %s34, 7
      %p251 = por %p249, %p250
      %p253 = scmp.ne.s32.totalorder %s238, %s252
      %p254 = scmp.eq.s32.totalorder %s34, 0
      %p255 = por %p253, %p254
      %p256 = scmp.le.s32.totalorder 1, %s28
      %p257 = scmp.lt.s32.totalorder %s28, 9
      %p258 = pnand %p256, %p257
      %p259 = pneg %p258
      // Predicated region
      $region9: #{gru_flowtron_forward.1} parent=5 // pred_check
        _
      $region10: #{gru_flowtron_forward.1} parent=5 // pred_check_branch
        %261 = sbr.rel (%p258) target = $region12
      $region11: #{gru_flowtron_forward.1} parent=5 // pred_region
        %s262 = ssub.s32 %s28, 1
        // Predicated region
        $region13: #{gru_flowtron_forward.1} parent=11 // pred_check
          %p263 = pneg %p49
        $region14: #{gru_flowtron_forward.1} parent=11 // pred_check_branch
          %265 = sbr.rel (%p263) target = $region16
        $region15: #{gru_flowtron_forward.1} parent=11 // pred_region
          _
        $region16: #{gru_flowtron_forward.1} parent=11 // pred_fallthru
          _
        // Predicated region
        $region17: #{gru_flowtron_forward.1} parent=11 // pred_check
          %p266 = pneg %p180
        $region18: #{gru_flowtron_forward.1} parent=11 // pred_check_branch
          %268 = sbr.rel (%p266) target = $region20
        $region19: #{gru_flowtron_forward.1} parent=11 // pred_region
          %s270 = ssub.s32 128, 128
          %271 = vsyncadd [#allocation11], %s270
          %s273 = sshll.u32 [#allocation10], 4
          %s274 = int_to_ptr.vmem [resolvable:$true] %s273
          %276 = dma.hbm_to_vmem [thread:$0]  %s5, 128, %s274, [#allocation11]
        $region20: #{gru_flowtron_forward.1} parent=11 // pred_fallthru
          _
        // Predicated region
        $region21: #{gru_flowtron_forward.1} parent=11 // pred_check
          %p277 = pneg %p201
        $region22: #{gru_flowtron_forward.1} parent=11 // pred_check_branch
          %279 = sbr.rel (%p277) target = $region24
        $region23: #{gru_flowtron_forward.1} parent=11 // pred_region
          _
        $region24: #{gru_flowtron_forward.1} parent=11 // pred_fallthru
          _
      $region12: #{gru_flowtron_forward.1} parent=5 // pred_fallthru
        _
      %p280 = scmp.lt.s32.totalorder %s28, 8
      // Predicated region
      $region25: #{gru_flowtron_forward.1} parent=5 // pred_check
        %p281 = pneg %p280
      $region26: #{gru_flowtron_forward.1} parent=5 // pred_check_branch
        %283 = sbr.rel (%p281) target = $region28
      $region27: #{gru_flowtron_forward.1} parent=5 // pred_region
        // Predicated region
        $region29: #{gru_flowtron_forward.1} parent=27 // pred_check
          %p284 = pneg %p69
        $region30: #{gru_flowtron_forward.1} parent=27 // pred_check_branch
          %286 = sbr.rel (%p284) target = $region32
        $region31: #{gru_flowtron_forward.1} parent=27 // pred_region
          %p287 = scmp.lt.s32.totalorder %s28, 7
          %s288 = scalar_select %p287, %s28, 7
          %s289 = smul.addr %s288, 8
          %s290 = scalar_lea.vmem %s1, %s289
        $region32: #{gru_flowtron_forward.1} parent=27 // pred_fallthru
          _
        // Predicated region
        $region33: #{gru_flowtron_forward.1} parent=27 // pred_check
          %p291 = pneg %p101
        $region34: #{gru_flowtron_forward.1} parent=27 // pred_check_branch
          %293 = sbr.rel (%p291) target = $region36
        $region35: #{gru_flowtron_forward.1} parent=27 // pred_region
          %s294 = sand.u32 %s91, 1
          %s295 = scalar_lea.sflag [#allocation5], %s294
          %s296 = sand.u32 %s91, 1
          %s297 = smul.addr %s296, 6144
          %s298 = scalar_lea.vmem [#allocation4], %s297
          %s299 = ssub.s32 %s28, 1
          %p300 = scmp.gt.s32.totalorder %s299, 0
          %s301 = scalar_select %p300, %s299, 0
          %s303 = ssub.s32 98304, 98304
          %304 = vsyncadd %s295, %s303
          %s305 = smul.addr %s301, 768
          %s306 = smul.addr %s305, 128
          %s307 = scalar_lea.hbm %s2, %s306
          %s308 = sshll.u32 %s298, 4
          %s309 = int_to_ptr.vmem [resolvable:$true] %s308
          %314 = dma.hbm_to_vmem [thread:$0]  %s307, 98304, %s309, %s295, 3072, 3072, 192
        $region36: #{gru_flowtron_forward.1} parent=27 // pred_fallthru
          _
        // Predicated region
        $region37: #{gru_flowtron_forward.1} parent=27 // pred_check
          %p315 = pneg %p127
        $region38: #{gru_flowtron_forward.1} parent=27 // pred_check_branch
          %317 = sbr.rel (%p315) target = $region40
        $region39: #{gru_flowtron_forward.1} parent=27 // pred_region
          %s318 = sand.u32 %s28, 1
          %s319 = scalar_lea.sflag [#allocation8], %s318
          %s320 = sand.u32 %s117, 1
          %s321 = smul.addr %s320, 6144
          %s322 = scalar_lea.vmem [#allocation7], %s321
          %s324 = ssub.s32 98304, 98304
          %325 = vsyncadd %s319, %s324
          %s326 = smul.addr %s28, 768
          %s327 = smul.addr %s326, 128
          %s328 = scalar_lea.hbm %s3, %s327
          %s329 = sshll.u32 %s322, 4
          %s330 = int_to_ptr.vmem [resolvable:$true] %s329
          %335 = dma.hbm_to_vmem [thread:$0]  %s328, 98304, %s330, %s319, 3072, 3072, 192
        $region40: #{gru_flowtron_forward.1} parent=27 // pred_fallthru
          _
        // Predicated region
        $region41: #{gru_flowtron_forward.1} parent=27 // pred_check
          %p336 = pneg %p153
        $region42: #{gru_flowtron_forward.1} parent=27 // pred_check_branch
          %338 = sbr.rel (%p336) target = $region44
        $region43: #{gru_flowtron_forward.1} parent=27 // pred_region
          %s339 = sand.u32 %s28, 1
          %s340 = scalar_lea.sflag [#allocation8], %s339
          %s341 = sand.u32 %s143, 1
          %s342 = smul.addr %s341, 96
          %s343 = scalar_lea.vmem [#allocation9], %s342
          %s345 = ssub.s32 1536, 1536
          %346 = vsyncadd %s340, %s345
          %s347 = smul.addr %s28, 24
          %s348 = smul.addr %s347, 64
          %s349 = scalar_lea.hbm %s4, %s348
          %s351 = sshll.u32 %s343, 4
          %s352 = int_to_ptr.vmem [resolvable:$true] %s351
          %354 = dma.hbm_to_vmem [thread:$0]  %s349, 1536, %s352, %s340
        $region44: #{gru_flowtron_forward.1} parent=27 // pred_fallthru
          _
      $region28: #{gru_flowtron_forward.1} parent=5 // pred_fallthru
        _
      %p355 = scmp.le.s32.totalorder 1, %s28
      %p356 = scmp.lt.s32.totalorder %s28, 9
      %p357 = pnand %p355, %p356
      %p358 = pneg %p357
      // Predicated region
      $region45: #{gru_flowtron_forward.1} parent=5 // pred_check
        _
      $region46: #{gru_flowtron_forward.1} parent=5 // pred_check_branch
        %360 = sbr.rel (%p357) target = $region48
      $region47: #{gru_flowtron_forward.1} parent=5 // pred_region
        %s361 = ssub.s32 %s28, 1
        %s362 = sand.u32 %s94, 1
        %s363 = scalar_lea.sflag [#allocation5], %s362
        %s364 = sand.u32 %s94, 1
        %s365 = smul.addr %s364, 6144
        %s366 = scalar_lea.vmem [#allocation4], %s365
        // Predicated region
        $region49: #{gru_flowtron_forward.1} parent=47 // pred_check
          %p367 = pneg %p107
        $region50: #{gru_flowtron_forward.1} parent=47 // pred_check_branch
          %369 = sbr.rel (%p367) target = $region52
        $region51: #{gru_flowtron_forward.1} parent=47 // pred_region
          %370 = dma.done %s363, 98304
        $region52: #{gru_flowtron_forward.1} parent=47 // pred_fallthru
          _
        %s371 = sand.u32 %s33, 1
        %s372 = scalar_lea.sflag [#allocation8], %s371
        %s373 = sand.u32 %s120, 1
        %s374 = smul.addr %s373, 6144
        %s375 = scalar_lea.vmem [#allocation7], %s374
        // Predicated region
        $region53: #{gru_flowtron_forward.1} parent=47 // pred_check
          %p376 = pneg %p133
        $region54: #{gru_flowtron_forward.1} parent=47 // pred_check_branch
          %378 = sbr.rel (%p376) target = $region56
        $region55: #{gru_flowtron_forward.1} parent=47 // pred_region
          %379 = dma.done %s372, 98304
        $region56: #{gru_flowtron_forward.1} parent=47 // pred_fallthru
          _
        %s380 = sand.u32 %s33, 1
        %s381 = scalar_lea.sflag [#allocation8], %s380
        %s382 = sand.u32 %s146, 1
        %s383 = smul.addr %s382, 96
        %s384 = scalar_lea.vmem [#allocation9], %s383
        // Predicated region
        $region57: #{gru_flowtron_forward.1} parent=47 // pred_check
          %p385 = pneg %p159
        $region58: #{gru_flowtron_forward.1} parent=47 // pred_check_branch
          %387 = sbr.rel (%p385) target = $region60
        $region59: #{gru_flowtron_forward.1} parent=47 // pred_region
          %388 = dma.done %s381, 1536
        $region60: #{gru_flowtron_forward.1} parent=47 // pred_fallthru
          _
        // Predicated region
        $region61: #{gru_flowtron_forward.1} parent=47 // pred_check
          %p389 = pneg %p180
        $region62: #{gru_flowtron_forward.1} parent=47 // pred_check_branch
          %391 = sbr.rel (%p389) target = $region64
        $region63: #{gru_flowtron_forward.1} parent=47 // pred_region
          %392 = dma.done [#allocation11], 128
        $region64: #{gru_flowtron_forward.1} parent=47 // pred_fallthru
          _
        %p393 = pneg %p49
        %p394 = pneg %p46
        %p395 = scmp.lt.s32.totalorder %s33, 7
        %s396 = scalar_select %p395, %s33, 7
        %s397 = smul.addr %s396, 8
        %s398 = scalar_lea.vmem %s1, %s397
        %p399 = pneg %p75
        %p400 = pneg %p72
        %s401 = sand.u32 %s94, 1
        %s402 = scalar_lea.sflag [#allocation5], %s401
        %s403 = sand.u32 %s94, 1
        %s404 = smul.addr %s403, 6144
        %s405 = scalar_lea.vmem [#allocation4], %s404
        %p406 = pneg %p107
        %p407 = pneg %p104
        %s408 = sand.u32 %s33, 1
        %s409 = scalar_lea.sflag [#allocation8], %s408
        %s410 = sand.u32 %s120, 1
        %s411 = smul.addr %s410, 6144
        %s412 = scalar_lea.vmem [#allocation7], %s411
        %p413 = pneg %p133
        %p414 = pneg %p130
        %s415 = sand.u32 %s33, 1
        %s416 = scalar_lea.sflag [#allocation8], %s415
        %s417 = sand.u32 %s146, 1
        %s418 = smul.addr %s417, 96
        %s419 = scalar_lea.vmem [#allocation9], %s418
        %p420 = pneg %p159
        %p421 = pneg %p156
        %p422 = pneg %p180
        %p423 = pneg %p177
        %p424 = pneg %p201
        %p425 = pneg %p198
        %p426 = pneg %p227
        %p427 = pneg %p224
        %s428 = sand.u32 %s214, 1
        %s429 = scalar_lea.sflag [#allocation6], %s428
        %s430 = sand.u32 %s214, 1
        %s431 = smul.addr %s430, 8
        %s432 = scalar_lea.vmem [#allocation12], %s431
        %p433 = pneg %p248
        %p434 = pneg %p245
        %p435 = scmp.lt.s32.totalorder %s33, 7
        %s436 = scalar_select %p435, %s33, 7
        %s437 = smul.addr %s436, 8
        %s438 = scalar_lea.vmem %s1, %s437
        %s439 = ssub.s32 %s33, 1
        %p440 = scmp.gt.s32.totalorder %s439, 0
        %s441 = scalar_select %p440, %s439, 0
        %p442 = scmp.eq.s32.totalorder %s33, 0
        // Predicated region
        $region65: #{gru_flowtron_forward.1} parent=47 // pred_check
          %p443 = pneg %p442
        $region66: #{gru_flowtron_forward.1} parent=47 // pred_check_branch
          %445 = sbr.rel (%p443) target = $region68
        $region67: #{gru_flowtron_forward.1} parent=47 // pred_region
          %446 = vst [vmem:[#allocation2] sm:$0xff] 0.0
        $region68: #{gru_flowtron_forward.1} parent=47 // pred_fallthru
          _
        %v447 = vld [vmem:[%s438] sm:$0xff]
        %v448 = vld [vmem:[#allocation2] sm:$0xff]
        %v449 = vld [vmem:[%s384] ss:$4 sm:$0xff]
        %s450 = scalar_lea.vmem %s384, 32 [#allocation9]
        %v451 = vld [vmem:[%s450] ss:$4 sm:$0xff]
        %s452 = scalar_lea.vmem %s384, 64 [#allocation9]
        %v453 = vld [vmem:[%s452] ss:$4 sm:$0xff]
        %s454 = scalar_lea.vmem %s384, 1 [#allocation9]
        %v455 = vld [vmem:[%s454] ss:$4 sm:$0xff]
        %s456 = scalar_lea.vmem %s384, 33 [#allocation9]
        %v457 = vld [vmem:[%s456] ss:$4 sm:$0xff]
        %s458 = scalar_lea.vmem %s384, 65 [#allocation9]
        %v459 = vld [vmem:[%s458] ss:$4 sm:$0xff]
        %s460 = scalar_lea.vmem %s384, 2 [#allocation9]
        %v461 = vld [vmem:[%s460] ss:$4 sm:$0xff]
        %s462 = scalar_lea.vmem %s384, 34 [#allocation9]
        %v463 = vld [vmem:[%s462] ss:$4 sm:$0xff]
        %s464 = scalar_lea.vmem %s384, 66 [#allocation9]
        %v465 = vld [vmem:[%s464] ss:$4 sm:$0xff]
        %s466 = scalar_lea.vmem %s384, 3 [#allocation9]
        %v467 = vld [vmem:[%s466] ss:$4 sm:$0xff]
        %s468 = scalar_lea.vmem %s384, 35 [#allocation9]
        %v469 = vld [vmem:[%s468] ss:$4 sm:$0xff]
        %s470 = scalar_lea.vmem %s384, 67 [#allocation9]
        %v471 = vld [vmem:[%s470] ss:$4 sm:$0xff]
        %v473 = vlaneseq
        %v474 = vshrl.u32 %v473, 7
        %v475 = vsub.s32 0, %v474
        %v476 = vrot.slane %v447, %v475
        %v477 = vlaneseq
        %v478 = vshrl.u32 %v477, 7
        %v479 = vsub.s32 1, %v478
        %v480 = vrot.slane %v447, %v479
        %v481 = vlaneseq
        %v482 = vshrl.u32 %v481, 7
        %v483 = vsub.s32 2, %v482
        %v484 = vrot.slane %v447, %v483
        %v485 = vlaneseq
        %v486 = vshrl.u32 %v485, 7
        %v487 = vsub.s32 3, %v486
        %v488 = vrot.slane %v447, %v487
        %v489 = vlaneseq
        %v490 = vshrl.u32 %v489, 7
        %v491 = vsub.s32 4, %v490
        %v492 = vrot.slane %v447, %v491
        %v493 = vlaneseq
        %v494 = vshrl.u32 %v493, 7
        %v495 = vsub.s32 5, %v494
        %v496 = vrot.slane %v447, %v495
        %v497 = vlaneseq
        %v498 = vshrl.u32 %v497, 7
        %v499 = vsub.s32 6, %v498
        %v500 = vrot.slane %v447, %v499
        %v501 = vlaneseq
        %v502 = vshrl.u32 %v501, 7
        %v503 = vsub.s32 7, %v502
        %v504 = vrot.slane %v447, %v503
        %v513 = vpack.c.bf16 %v476, %v476
        %v514 = vpack.c.bf16 %v480, %v480
        %v515 = vpack.c.bf16 %v484, %v484
        %v516 = vpack.c.bf16 %v488, %v488
        %v517 = vpack.c.bf16 %v492, %v492
        %v518 = vpack.c.bf16 %v496, %v496
        %v519 = vpack.c.bf16 %v500, %v500
        %v520 = vpack.c.bf16 %v504, %v504
        %v521 = vld [vmem:[%s375] sm:$0xff]
        %v522 = vld [vmem:[%s375 + $0x8] sm:$0xff]
        %v523 = vld [vmem:[%s375 + $0x10] sm:$0xff]
        %v524 = vld [vmem:[%s375 + $0x18] sm:$0xff]
        %v525 = vld [vmem:[%s375 + $0x20] sm:$0xff]
        %v526 = vld [vmem:[%s375 + $0x28] sm:$0xff]
        %v527 = vld [vmem:[%s375 + $0x30] sm:$0xff]
        %v528 = vld [vmem:[%s375 + $0x38] sm:$0xff]
        %v529 = vld [vmem:[%s375 + $0x40] sm:$0xff]
        %v530 = vld [vmem:[%s375 + $0x48] sm:$0xff]
        %v531 = vld [vmem:[%s375 + $0x50] sm:$0xff]
        %v532 = vld [vmem:[%s375 + $0x58] sm:$0xff]
        %v533 = vld [vmem:[%s375 + $0x60] sm:$0xff]
        %v534 = vld [vmem:[%s375 + $0x68] sm:$0xff]
        %v535 = vld [vmem:[%s375 + $0x70] sm:$0xff]
        %v536 = vld [vmem:[%s375 + $0x78] sm:$0xff]
        %v537 = vld [vmem:[%s375 + $0x80] sm:$0xff]
        %v538 = vld [vmem:[%s375 + $0x88] sm:$0xff]
        %v539 = vld [vmem:[%s375 + $0x90] sm:$0xff]
        %v540 = vld [vmem:[%s375 + $0x98] sm:$0xff]
        %v541 = vld [vmem:[%s375 + $0xa0] sm:$0xff]
        %v542 = vld [vmem:[%s375 + $0xa8] sm:$0xff]
        %v543 = vld [vmem:[%s375 + $0xb0] sm:$0xff]
        %v544 = vld [vmem:[%s375 + $0xb8] sm:$0xff]
        %v545 = vld [vmem:[%s375 + $0xc0] sm:$0xff]
        %v546 = vld [vmem:[%s375 + $0xc8] sm:$0xff]
        %v547 = vld [vmem:[%s375 + $0xd0] sm:$0xff]
        %v548 = vld [vmem:[%s375 + $0xd8] sm:$0xff]
        %v549 = vld [vmem:[%s375 + $0xe0] sm:$0xff]
        %v550 = vld [vmem:[%s375 + $0xe8] sm:$0xff]
        %v551 = vld [vmem:[%s375 + $0xf0] sm:$0xff]
        %v552 = vld [vmem:[%s375 + $0xf8] sm:$0xff]
        %v553 = vld [vmem:[%s375 + $0x100] sm:$0xff]
        %v554 = vld [vmem:[%s375 + $0x108] sm:$0xff]
        %v555 = vld [vmem:[%s375 + $0x110] sm:$0xff]
        %v556 = vld [vmem:[%s375 + $0x118] sm:$0xff]
        %v557 = vld [vmem:[%s375 + $0x120] sm:$0xff]
        %v558 = vld [vmem:[%s375 + $0x128] sm:$0xff]
        %v559 = vld [vmem:[%s375 + $0x130] sm:$0xff]
        %v560 = vld [vmem:[%s375 + $0x138] sm:$0xff]
        %v561 = vld [vmem:[%s375 + $0x140] sm:$0xff]
        %v562 = vld [vmem:[%s375 + $0x148] sm:$0xff]
        %v563 = vld [vmem:[%s375 + $0x150] sm:$0xff]
        %v564 = vld [vmem:[%s375 + $0x158] sm:$0xff]
        %v565 = vld [vmem:[%s375 + $0x160] sm:$0xff]
        %v566 = vld [vmem:[%s375 + $0x168] sm:$0xff]
        %v567 = vld [vmem:[%s375 + $0x170] sm:$0xff]
        %v568 = vld [vmem:[%s375 + $0x178] sm:$0xff]
        %v569 = vld [vmem:[%s375 + $0x180] sm:$0xff]
        %v570 = vld [vmem:[%s375 + $0x188] sm:$0xff]
        %v571 = vld [vmem:[%s375 + $0x190] sm:$0xff]
        %v572 = vld [vmem:[%s375 + $0x198] sm:$0xff]
        %v573 = vld [vmem:[%s375 + $0x1a0] sm:$0xff]
        %v574 = vld [vmem:[%s375 + $0x1a8] sm:$0xff]
        %v575 = vld [vmem:[%s375 + $0x1b0] sm:$0xff]
        %v576 = vld [vmem:[%s375 + $0x1b8] sm:$0xff]
        %v577 = vld [vmem:[%s375 + $0x1c0] sm:$0xff]
        %v578 = vld [vmem:[%s375 + $0x1c8] sm:$0xff]
        %v579 = vld [vmem:[%s375 + $0x1d0] sm:$0xff]
        %v580 = vld [vmem:[%s375 + $0x1d8] sm:$0xff]
        %v581 = vld [vmem:[%s375 + $0x1e0] sm:$0xff]
        %v582 = vld [vmem:[%s375 + $0x1e8] sm:$0xff]
        %v583 = vld [vmem:[%s375 + $0x1f0] sm:$0xff]
        %v584 = vld [vmem:[%s375 + $0x1f8] sm:$0xff]
        %v585 = vld [vmem:[%s375 + $0x200] sm:$0xff]
        %v586 = vld [vmem:[%s375 + $0x208] sm:$0xff]
        %v587 = vld [vmem:[%s375 + $0x210] sm:$0xff]
        %v588 = vld [vmem:[%s375 + $0x218] sm:$0xff]
        %v589 = vld [vmem:[%s375 + $0x220] sm:$0xff]
        %v590 = vld [vmem:[%s375 + $0x228] sm:$0xff]
        %v591 = vld [vmem:[%s375 + $0x230] sm:$0xff]
        %v592 = vld [vmem:[%s375 + $0x238] sm:$0xff]
        %v593 = vld [vmem:[%s375 + $0x240] sm:$0xff]
        %v594 = vld [vmem:[%s375 + $0x248] sm:$0xff]
        %v595 = vld [vmem:[%s375 + $0x250] sm:$0xff]
        %v596 = vld [vmem:[%s375 + $0x258] sm:$0xff]
        %v597 = vld [vmem:[%s375 + $0x260] sm:$0xff]
        %v598 = vld [vmem:[%s375 + $0x268] sm:$0xff]
        %v599 = vld [vmem:[%s375 + $0x270] sm:$0xff]
        %v600 = vld [vmem:[%s375 + $0x278] sm:$0xff]
        %v601 = vld [vmem:[%s375 + $0x280] sm:$0xff]
        %v602 = vld [vmem:[%s375 + $0x288] sm:$0xff]
        %v603 = vld [vmem:[%s375 + $0x290] sm:$0xff]
        %v604 = vld [vmem:[%s375 + $0x298] sm:$0xff]
        %v605 = vld [vmem:[%s375 + $0x2a0] sm:$0xff]
        %v606 = vld [vmem:[%s375 + $0x2a8] sm:$0xff]
        %v607 = vld [vmem:[%s375 + $0x2b0] sm:$0xff]
        %v608 = vld [vmem:[%s375 + $0x2b8] sm:$0xff]
        %v609 = vld [vmem:[%s375 + $0x2c0] sm:$0xff]
        %v610 = vld [vmem:[%s375 + $0x2c8] sm:$0xff]
        %v611 = vld [vmem:[%s375 + $0x2d0] sm:$0xff]
        %v612 = vld [vmem:[%s375 + $0x2d8] sm:$0xff]
        %v613 = vld [vmem:[%s375 + $0x2e0] sm:$0xff]
        %v614 = vld [vmem:[%s375 + $0x2e8] sm:$0xff]
        %v615 = vld [vmem:[%s375 + $0x2f0] sm:$0xff]
        %v616 = vld [vmem:[%s375 + $0x2f8] sm:$0xff]
        %v617 = vld [vmem:[%s375 + $0x300] sm:$0xff]
        %v618 = vld [vmem:[%s375 + $0x308] sm:$0xff]
        %v619 = vld [vmem:[%s375 + $0x310] sm:$0xff]
        %v620 = vld [vmem:[%s375 + $0x318] sm:$0xff]
        %v621 = vld [vmem:[%s375 + $0x320] sm:$0xff]
        %v622 = vld [vmem:[%s375 + $0x328] sm:$0xff]
        %v623 = vld [vmem:[%s375 + $0x330] sm:$0xff]
        %v624 = vld [vmem:[%s375 + $0x338] sm:$0xff]
        %v625 = vld [vmem:[%s375 + $0x340] sm:$0xff]
        %v626 = vld [vmem:[%s375 + $0x348] sm:$0xff]
        %v627 = vld [vmem:[%s375 + $0x350] sm:$0xff]
        %v628 = vld [vmem:[%s375 + $0x358] sm:$0xff]
        %v629 = vld [vmem:[%s375 + $0x360] sm:$0xff]
        %v630 = vld [vmem:[%s375 + $0x368] sm:$0xff]
        %v631 = vld [vmem:[%s375 + $0x370] sm:$0xff]
        %v632 = vld [vmem:[%s375 + $0x378] sm:$0xff]
        %v633 = vld [vmem:[%s375 + $0x380] sm:$0xff]
        %v634 = vld [vmem:[%s375 + $0x388] sm:$0xff]
        %v635 = vld [vmem:[%s375 + $0x390] sm:$0xff]
        %v636 = vld [vmem:[%s375 + $0x398] sm:$0xff]
        %v637 = vld [vmem:[%s375 + $0x3a0] sm:$0xff]
        %v638 = vld [vmem:[%s375 + $0x3a8] sm:$0xff]
        %v639 = vld [vmem:[%s375 + $0x3b0] sm:$0xff]
        %v640 = vld [vmem:[%s375 + $0x3b8] sm:$0xff]
        %v641 = vld [vmem:[%s375 + $0x3c0] sm:$0xff]
        %v642 = vld [vmem:[%s375 + $0x3c8] sm:$0xff]
        %v643 = vld [vmem:[%s375 + $0x3d0] sm:$0xff]
        %v644 = vld [vmem:[%s375 + $0x3d8] sm:$0xff]
        %v645 = vld [vmem:[%s375 + $0x3e0] sm:$0xff]
        %v646 = vld [vmem:[%s375 + $0x3e8] sm:$0xff]
        %v647 = vld [vmem:[%s375 + $0x3f0] sm:$0xff]
        %v648 = vld [vmem:[%s375 + $0x3f8] sm:$0xff]
        %v649 = vld [vmem:[%s375 + $0x400] sm:$0xff]
        %v650 = vld [vmem:[%s375 + $0x408] sm:$0xff]
        %v651 = vld [vmem:[%s375 + $0x410] sm:$0xff]
        %v652 = vld [vmem:[%s375 + $0x418] sm:$0xff]
        %v653 = vld [vmem:[%s375 + $0x420] sm:$0xff]
        %v654 = vld [vmem:[%s375 + $0x428] sm:$0xff]
        %v655 = vld [vmem:[%s375 + $0x430] sm:$0xff]
        %v656 = vld [vmem:[%s375 + $0x438] sm:$0xff]
        %v657 = vld [vmem:[%s375 + $0x440] sm:$0xff]
        %v658 = vld [vmem:[%s375 + $0x448] sm:$0xff]
        %v659 = vld [vmem:[%s375 + $0x450] sm:$0xff]
        %v660 = vld [vmem:[%s375 + $0x458] sm:$0xff]
        %v661 = vld [vmem:[%s375 + $0x460] sm:$0xff]
        %v662 = vld [vmem:[%s375 + $0x468] sm:$0xff]
        %v663 = vld [vmem:[%s375 + $0x470] sm:$0xff]
        %v664 = vld [vmem:[%s375 + $0x478] sm:$0xff]
        %v665 = vld [vmem:[%s375 + $0x480] sm:$0xff]
        %v666 = vld [vmem:[%s375 + $0x488] sm:$0xff]
        %v667 = vld [vmem:[%s375 + $0x490] sm:$0xff]
        %v668 = vld [vmem:[%s375 + $0x498] sm:$0xff]
        %v669 = vld [vmem:[%s375 + $0x4a0] sm:$0xff]
        %v670 = vld [vmem:[%s375 + $0x4a8] sm:$0xff]
        %v671 = vld [vmem:[%s375 + $0x4b0] sm:$0xff]
        %v672 = vld [vmem:[%s375 + $0x4b8] sm:$0xff]
        %v673 = vld [vmem:[%s375 + $0x4c0] sm:$0xff]
        %v674 = vld [vmem:[%s375 + $0x4c8] sm:$0xff]
        %v675 = vld [vmem:[%s375 + $0x4d0] sm:$0xff]
        %v676 = vld [vmem:[%s375 + $0x4d8] sm:$0xff]
        %v677 = vld [vmem:[%s375 + $0x4e0] sm:$0xff]
        %v678 = vld [vmem:[%s375 + $0x4e8] sm:$0xff]
        %v679 = vld [vmem:[%s375 + $0x4f0] sm:$0xff]
        %v680 = vld [vmem:[%s375 + $0x4f8] sm:$0xff]
        %v681 = vld [vmem:[%s375 + $0x500] sm:$0xff]
        %v682 = vld [vmem:[%s375 + $0x508] sm:$0xff]
        %v683 = vld [vmem:[%s375 + $0x510] sm:$0xff]
        %v684 = vld [vmem:[%s375 + $0x518] sm:$0xff]
        %v685 = vld [vmem:[%s375 + $0x520] sm:$0xff]
        %v686 = vld [vmem:[%s375 + $0x528] sm:$0xff]
        %v687 = vld [vmem:[%s375 + $0x530] sm:$0xff]
        %v688 = vld [vmem:[%s375 + $0x538] sm:$0xff]
        %v689 = vld [vmem:[%s375 + $0x540] sm:$0xff]
        %v690 = vld [vmem:[%s375 + $0x548] sm:$0xff]
        %v691 = vld [vmem:[%s375 + $0x550] sm:$0xff]
        %v692 = vld [vmem:[%s375 + $0x558] sm:$0xff]
        %v693 = vld [vmem:[%s375 + $0x560] sm:$0xff]
        %v694 = vld [vmem:[%s375 + $0x568] sm:$0xff]
        %v695 = vld [vmem:[%s375 + $0x570] sm:$0xff]
        %v696 = vld [vmem:[%s375 + $0x578] sm:$0xff]
        %v697 = vld [vmem:[%s375 + $0x580] sm:$0xff]
        %v698 = vld [vmem:[%s375 + $0x588] sm:$0xff]
        %v699 = vld [vmem:[%s375 + $0x590] sm:$0xff]
        %v700 = vld [vmem:[%s375 + $0x598] sm:$0xff]
        %v701 = vld [vmem:[%s375 + $0x5a0] sm:$0xff]
        %v702 = vld [vmem:[%s375 + $0x5a8] sm:$0xff]
        %v703 = vld [vmem:[%s375 + $0x5b0] sm:$0xff]
        %v704 = vld [vmem:[%s375 + $0x5b8] sm:$0xff]
        %v705 = vld [vmem:[%s375 + $0x5c0] sm:$0xff]
        %v706 = vld [vmem:[%s375 + $0x5c8] sm:$0xff]
        %v707 = vld [vmem:[%s375 + $0x5d0] sm:$0xff]
        %v708 = vld [vmem:[%s375 + $0x5d8] sm:$0xff]
        %v709 = vld [vmem:[%s375 + $0x5e0] sm:$0xff]
        %v710 = vld [vmem:[%s375 + $0x5e8] sm:$0xff]
        %v711 = vld [vmem:[%s375 + $0x5f0] sm:$0xff]
        %v712 = vld [vmem:[%s375 + $0x5f8] sm:$0xff]
        %v713 = vld [vmem:[%s375 + $0x600] sm:$0xff]
        %v714 = vld [vmem:[%s375 + $0x608] sm:$0xff]
        %v715 = vld [vmem:[%s375 + $0x610] sm:$0xff]
        %v716 = vld [vmem:[%s375 + $0x618] sm:$0xff]
        %v717 = vld [vmem:[%s375 + $0x620] sm:$0xff]
        %v718 = vld [vmem:[%s375 + $0x628] sm:$0xff]
        %v719 = vld [vmem:[%s375 + $0x630] sm:$0xff]
        %v720 = vld [vmem:[%s375 + $0x638] sm:$0xff]
        %v721 = vld [vmem:[%s375 + $0x640] sm:$0xff]
        %v722 = vld [vmem:[%s375 + $0x648] sm:$0xff]
        %v723 = vld [vmem:[%s375 + $0x650] sm:$0xff]
        %v724 = vld [vmem:[%s375 + $0x658] sm:$0xff]
        %v725 = vld [vmem:[%s375 + $0x660] sm:$0xff]
        %v726 = vld [vmem:[%s375 + $0x668] sm:$0xff]
        %v727 = vld [vmem:[%s375 + $0x670] sm:$0xff]
        %v728 = vld [vmem:[%s375 + $0x678] sm:$0xff]
        %v729 = vld [vmem:[%s375 + $0x680] sm:$0xff]
        %v730 = vld [vmem:[%s375 + $0x688] sm:$0xff]
        %v731 = vld [vmem:[%s375 + $0x690] sm:$0xff]
        %v732 = vld [vmem:[%s375 + $0x698] sm:$0xff]
        %v733 = vld [vmem:[%s375 + $0x6a0] sm:$0xff]
        %v734 = vld [vmem:[%s375 + $0x6a8] sm:$0xff]
        %v735 = vld [vmem:[%s375 + $0x6b0] sm:$0xff]
        %v736 = vld [vmem:[%s375 + $0x6b8] sm:$0xff]
        %v737 = vld [vmem:[%s375 + $0x6c0] sm:$0xff]
        %v738 = vld [vmem:[%s375 + $0x6c8] sm:$0xff]
        %v739 = vld [vmem:[%s375 + $0x6d0] sm:$0xff]
        %v740 = vld [vmem:[%s375 + $0x6d8] sm:$0xff]
        %v741 = vld [vmem:[%s375 + $0x6e0] sm:$0xff]
        %v742 = vld [vmem:[%s375 + $0x6e8] sm:$0xff]
        %v743 = vld [vmem:[%s375 + $0x6f0] sm:$0xff]
        %v744 = vld [vmem:[%s375 + $0x6f8] sm:$0xff]
        %v745 = vld [vmem:[%s375 + $0x700] sm:$0xff]
        %v746 = vld [vmem:[%s375 + $0x708] sm:$0xff]
        %v747 = vld [vmem:[%s375 + $0x710] sm:$0xff]
        %v748 = vld [vmem:[%s375 + $0x718] sm:$0xff]
        %v749 = vld [vmem:[%s375 + $0x720] sm:$0xff]
        %v750 = vld [vmem:[%s375 + $0x728] sm:$0xff]
        %v751 = vld [vmem:[%s375 + $0x730] sm:$0xff]
        %v752 = vld [vmem:[%s375 + $0x738] sm:$0xff]
        %v753 = vld [vmem:[%s375 + $0x740] sm:$0xff]
        %v754 = vld [vmem:[%s375 + $0x748] sm:$0xff]
        %v755 = vld [vmem:[%s375 + $0x750] sm:$0xff]
        %v756 = vld [vmem:[%s375 + $0x758] sm:$0xff]
        %v757 = vld [vmem:[%s375 + $0x760] sm:$0xff]
        %v758 = vld [vmem:[%s375 + $0x768] sm:$0xff]
        %v759 = vld [vmem:[%s375 + $0x770] sm:$0xff]
        %v760 = vld [vmem:[%s375 + $0x778] sm:$0xff]
        %v761 = vld [vmem:[%s375 + $0x780] sm:$0xff]
        %v762 = vld [vmem:[%s375 + $0x788] sm:$0xff]
        %v763 = vld [vmem:[%s375 + $0x790] sm:$0xff]
        %v764 = vld [vmem:[%s375 + $0x798] sm:$0xff]
        %v765 = vld [vmem:[%s375 + $0x7a0] sm:$0xff]
        %v766 = vld [vmem:[%s375 + $0x7a8] sm:$0xff]
        %v767 = vld [vmem:[%s375 + $0x7b0] sm:$0xff]
        %v768 = vld [vmem:[%s375 + $0x7b8] sm:$0xff]
        %v769 = vld [vmem:[%s375 + $0x7c0] sm:$0xff]
        %v770 = vld [vmem:[%s375 + $0x7c8] sm:$0xff]
        %v771 = vld [vmem:[%s375 + $0x7d0] sm:$0xff]
        %v772 = vld [vmem:[%s375 + $0x7d8] sm:$0xff]
        %v773 = vld [vmem:[%s375 + $0x7e0] sm:$0xff]
        %v774 = vld [vmem:[%s375 + $0x7e8] sm:$0xff]
        %v775 = vld [vmem:[%s375 + $0x7f0] sm:$0xff]
        %v776 = vld [vmem:[%s375 + $0x7f8] sm:$0xff]
        %v777 = vld [vmem:[%s375 + $0x800] sm:$0xff]
        %v778 = vld [vmem:[%s375 + $0x808] sm:$0xff]
        %v779 = vld [vmem:[%s375 + $0x810] sm:$0xff]
        %v780 = vld [vmem:[%s375 + $0x818] sm:$0xff]
        %v781 = vld [vmem:[%s375 + $0x820] sm:$0xff]
        %v782 = vld [vmem:[%s375 + $0x828] sm:$0xff]
        %v783 = vld [vmem:[%s375 + $0x830] sm:$0xff]
        %v784 = vld [vmem:[%s375 + $0x838] sm:$0xff]
        %v785 = vld [vmem:[%s375 + $0x840] sm:$0xff]
        %v786 = vld [vmem:[%s375 + $0x848] sm:$0xff]
        %v787 = vld [vmem:[%s375 + $0x850] sm:$0xff]
        %v788 = vld [vmem:[%s375 + $0x858] sm:$0xff]
        %v789 = vld [vmem:[%s375 + $0x860] sm:$0xff]
        %v790 = vld [vmem:[%s375 + $0x868] sm:$0xff]
        %v791 = vld [vmem:[%s375 + $0x870] sm:$0xff]
        %v792 = vld [vmem:[%s375 + $0x878] sm:$0xff]
        %v793 = vld [vmem:[%s375 + $0x880] sm:$0xff]
        %v794 = vld [vmem:[%s375 + $0x888] sm:$0xff]
        %v795 = vld [vmem:[%s375 + $0x890] sm:$0xff]
        %v796 = vld [vmem:[%s375 + $0x898] sm:$0xff]
        %v797 = vld [vmem:[%s375 + $0x8a0] sm:$0xff]
        %v798 = vld [vmem:[%s375 + $0x8a8] sm:$0xff]
        %v799 = vld [vmem:[%s375 + $0x8b0] sm:$0xff]
        %v800 = vld [vmem:[%s375 + $0x8b8] sm:$0xff]
        %v801 = vld [vmem:[%s375 + $0x8c0] sm:$0xff]
        %v802 = vld [vmem:[%s375 + $0x8c8] sm:$0xff]
        %v803 = vld [vmem:[%s375 + $0x8d0] sm:$0xff]
        %v804 = vld [vmem:[%s375 + $0x8d8] sm:$0xff]
        %v805 = vld [vmem:[%s375 + $0x8e0] sm:$0xff]
        %v806 = vld [vmem:[%s375 + $0x8e8] sm:$0xff]
        %v807 = vld [vmem:[%s375 + $0x8f0] sm:$0xff]
        %v808 = vld [vmem:[%s375 + $0x8f8] sm:$0xff]
        %v809 = vld [vmem:[%s375 + $0x900] sm:$0xff]
        %v810 = vld [vmem:[%s375 + $0x908] sm:$0xff]
        %v811 = vld [vmem:[%s375 + $0x910] sm:$0xff]
        %v812 = vld [vmem:[%s375 + $0x918] sm:$0xff]
        %v813 = vld [vmem:[%s375 + $0x920] sm:$0xff]
        %v814 = vld [vmem:[%s375 + $0x928] sm:$0xff]
        %v815 = vld [vmem:[%s375 + $0x930] sm:$0xff]
        %v816 = vld [vmem:[%s375 + $0x938] sm:$0xff]
        %v817 = vld [vmem:[%s375 + $0x940] sm:$0xff]
        %v818 = vld [vmem:[%s375 + $0x948] sm:$0xff]
        %v819 = vld [vmem:[%s375 + $0x950] sm:$0xff]
        %v820 = vld [vmem:[%s375 + $0x958] sm:$0xff]
        %v821 = vld [vmem:[%s375 + $0x960] sm:$0xff]
        %v822 = vld [vmem:[%s375 + $0x968] sm:$0xff]
        %v823 = vld [vmem:[%s375 + $0x970] sm:$0xff]
        %v824 = vld [vmem:[%s375 + $0x978] sm:$0xff]
        %v825 = vld [vmem:[%s375 + $0x980] sm:$0xff]
        %v826 = vld [vmem:[%s375 + $0x988] sm:$0xff]
        %v827 = vld [vmem:[%s375 + $0x990] sm:$0xff]
        %v828 = vld [vmem:[%s375 + $0x998] sm:$0xff]
        %v829 = vld [vmem:[%s375 + $0x9a0] sm:$0xff]
        %v830 = vld [vmem:[%s375 + $0x9a8] sm:$0xff]
        %v831 = vld [vmem:[%s375 + $0x9b0] sm:$0xff]
        %v832 = vld [vmem:[%s375 + $0x9b8] sm:$0xff]
        %v833 = vld [vmem:[%s375 + $0x9c0] sm:$0xff]
        %v834 = vld [vmem:[%s375 + $0x9c8] sm:$0xff]
        %v835 = vld [vmem:[%s375 + $0x9d0] sm:$0xff]
        %v836 = vld [vmem:[%s375 + $0x9d8] sm:$0xff]
        %v837 = vld [vmem:[%s375 + $0x9e0] sm:$0xff]
        %v838 = vld [vmem:[%s375 + $0x9e8] sm:$0xff]
        %v839 = vld [vmem:[%s375 + $0x9f0] sm:$0xff]
        %v840 = vld [vmem:[%s375 + $0x9f8] sm:$0xff]
        %v841 = vld [vmem:[%s375 + $0xa00] sm:$0xff]
        %v842 = vld [vmem:[%s375 + $0xa08] sm:$0xff]
        %v843 = vld [vmem:[%s375 + $0xa10] sm:$0xff]
        %v844 = vld [vmem:[%s375 + $0xa18] sm:$0xff]
        %v845 = vld [vmem:[%s375 + $0xa20] sm:$0xff]
        %v846 = vld [vmem:[%s375 + $0xa28] sm:$0xff]
        %v847 = vld [vmem:[%s375 + $0xa30] sm:$0xff]
        %v848 = vld [vmem:[%s375 + $0xa38] sm:$0xff]
        %v849 = vld [vmem:[%s375 + $0xa40] sm:$0xff]
        %v850 = vld [vmem:[%s375 + $0xa48] sm:$0xff]
        %v851 = vld [vmem:[%s375 + $0xa50] sm:$0xff]
        %v852 = vld [vmem:[%s375 + $0xa58] sm:$0xff]
        %v853 = vld [vmem:[%s375 + $0xa60] sm:$0xff]
        %v854 = vld [vmem:[%s375 + $0xa68] sm:$0xff]
        %v855 = vld [vmem:[%s375 + $0xa70] sm:$0xff]
        %v856 = vld [vmem:[%s375 + $0xa78] sm:$0xff]
        %v857 = vld [vmem:[%s375 + $0xa80] sm:$0xff]
        %v858 = vld [vmem:[%s375 + $0xa88] sm:$0xff]
        %v859 = vld [vmem:[%s375 + $0xa90] sm:$0xff]
        %v860 = vld [vmem:[%s375 + $0xa98] sm:$0xff]
        %v861 = vld [vmem:[%s375 + $0xaa0] sm:$0xff]
        %v862 = vld [vmem:[%s375 + $0xaa8] sm:$0xff]
        %v863 = vld [vmem:[%s375 + $0xab0] sm:$0xff]
        %v864 = vld [vmem:[%s375 + $0xab8] sm:$0xff]
        %v865 = vld [vmem:[%s375 + $0xac0] sm:$0xff]
        %v866 = vld [vmem:[%s375 + $0xac8] sm:$0xff]
        %v867 = vld [vmem:[%s375 + $0xad0] sm:$0xff]
        %v868 = vld [vmem:[%s375 + $0xad8] sm:$0xff]
        %v869 = vld [vmem:[%s375 + $0xae0] sm:$0xff]
        %v870 = vld [vmem:[%s375 + $0xae8] sm:$0xff]
        %v871 = vld [vmem:[%s375 + $0xaf0] sm:$0xff]
        %v872 = vld [vmem:[%s375 + $0xaf8] sm:$0xff]
        %v873 = vld [vmem:[%s375 + $0xb00] sm:$0xff]
        %v874 = vld [vmem:[%s375 + $0xb08] sm:$0xff]
        %v875 = vld [vmem:[%s375 + $0xb10] sm:$0xff]
        %v876 = vld [vmem:[%s375 + $0xb18] sm:$0xff]
        %v877 = vld [vmem:[%s375 + $0xb20] sm:$0xff]
        %v878 = vld [vmem:[%s375 + $0xb28] sm:$0xff]
        %v879 = vld [vmem:[%s375 + $0xb30] sm:$0xff]
        %v880 = vld [vmem:[%s375 + $0xb38] sm:$0xff]
        %v881 = vld [vmem:[%s375 + $0xb40] sm:$0xff]
        %v882 = vld [vmem:[%s375 + $0xb48] sm:$0xff]
        %v883 = vld [vmem:[%s375 + $0xb50] sm:$0xff]
        %v884 = vld [vmem:[%s375 + $0xb58] sm:$0xff]
        %v885 = vld [vmem:[%s375 + $0xb60] sm:$0xff]
        %v886 = vld [vmem:[%s375 + $0xb68] sm:$0xff]
        %v887 = vld [vmem:[%s375 + $0xb70] sm:$0xff]
        %v888 = vld [vmem:[%s375 + $0xb78] sm:$0xff]
        %v889 = vld [vmem:[%s375 + $0xb80] sm:$0xff]
        %v890 = vld [vmem:[%s375 + $0xb88] sm:$0xff]
        %v891 = vld [vmem:[%s375 + $0xb90] sm:$0xff]
        %v892 = vld [vmem:[%s375 + $0xb98] sm:$0xff]
        %v893 = vld [vmem:[%s375 + $0xba0] sm:$0xff]
        %v894 = vld [vmem:[%s375 + $0xba8] sm:$0xff]
        %v895 = vld [vmem:[%s375 + $0xbb0] sm:$0xff]
        %v896 = vld [vmem:[%s375 + $0xbb8] sm:$0xff]
        %v897 = vld [vmem:[%s375 + $0xbc0] sm:$0xff]
        %v898 = vld [vmem:[%s375 + $0xbc8] sm:$0xff]
        %v899 = vld [vmem:[%s375 + $0xbd0] sm:$0xff]
        %v900 = vld [vmem:[%s375 + $0xbd8] sm:$0xff]
        %v901 = vld [vmem:[%s375 + $0xbe0] sm:$0xff]
        %v902 = vld [vmem:[%s375 + $0xbe8] sm:$0xff]
        %v903 = vld [vmem:[%s375 + $0xbf0] sm:$0xff]
        %v904 = vld [vmem:[%s375 + $0xbf8] sm:$0xff]
        %v905 = vld [vmem:[%s375 + $0xc00] sm:$0xff]
        %v906 = vld [vmem:[%s375 + $0xc08] sm:$0xff]
        %v907 = vld [vmem:[%s375 + $0xc10] sm:$0xff]
        %v908 = vld [vmem:[%s375 + $0xc18] sm:$0xff]
        %v909 = vld [vmem:[%s375 + $0xc20] sm:$0xff]
        %v910 = vld [vmem:[%s375 + $0xc28] sm:$0xff]
        %v911 = vld [vmem:[%s375 + $0xc30] sm:$0xff]
        %v912 = vld [vmem:[%s375 + $0xc38] sm:$0xff]
        %v913 = vld [vmem:[%s375 + $0xc40] sm:$0xff]
        %v914 = vld [vmem:[%s375 + $0xc48] sm:$0xff]
        %v915 = vld [vmem:[%s375 + $0xc50] sm:$0xff]
        %v916 = vld [vmem:[%s375 + $0xc58] sm:$0xff]
        %v917 = vld [vmem:[%s375 + $0xc60] sm:$0xff]
        %v918 = vld [vmem:[%s375 + $0xc68] sm:$0xff]
        %v919 = vld [vmem:[%s375 + $0xc70] sm:$0xff]
        %v920 = vld [vmem:[%s375 + $0xc78] sm:$0xff]
        %v921 = vld [vmem:[%s375 + $0xc80] sm:$0xff]
        %v922 = vld [vmem:[%s375 + $0xc88] sm:$0xff]
        %v923 = vld [vmem:[%s375 + $0xc90] sm:$0xff]
        %v924 = vld [vmem:[%s375 + $0xc98] sm:$0xff]
        %v925 = vld [vmem:[%s375 + $0xca0] sm:$0xff]
        %v926 = vld [vmem:[%s375 + $0xca8] sm:$0xff]
        %v927 = vld [vmem:[%s375 + $0xcb0] sm:$0xff]
        %v928 = vld [vmem:[%s375 + $0xcb8] sm:$0xff]
        %v929 = vld [vmem:[%s375 + $0xcc0] sm:$0xff]
        %v930 = vld [vmem:[%s375 + $0xcc8] sm:$0xff]
        %v931 = vld [vmem:[%s375 + $0xcd0] sm:$0xff]
        %v932 = vld [vmem:[%s375 + $0xcd8] sm:$0xff]
        %v933 = vld [vmem:[%s375 + $0xce0] sm:$0xff]
        %v934 = vld [vmem:[%s375 + $0xce8] sm:$0xff]
        %v935 = vld [vmem:[%s375 + $0xcf0] sm:$0xff]
        %v936 = vld [vmem:[%s375 + $0xcf8] sm:$0xff]
        %v937 = vld [vmem:[%s375 + $0xd00] sm:$0xff]
        %v938 = vld [vmem:[%s375 + $0xd08] sm:$0xff]
        %v939 = vld [vmem:[%s375 + $0xd10] sm:$0xff]
        %v940 = vld [vmem:[%s375 + $0xd18] sm:$0xff]
        %v941 = vld [vmem:[%s375 + $0xd20] sm:$0xff]
        %v942 = vld [vmem:[%s375 + $0xd28] sm:$0xff]
        %v943 = vld [vmem:[%s375 + $0xd30] sm:$0xff]
        %v944 = vld [vmem:[%s375 + $0xd38] sm:$0xff]
        %v945 = vld [vmem:[%s375 + $0xd40] sm:$0xff]
        %v946 = vld [vmem:[%s375 + $0xd48] sm:$0xff]
        %v947 = vld [vmem:[%s375 + $0xd50] sm:$0xff]
        %v948 = vld [vmem:[%s375 + $0xd58] sm:$0xff]
        %v949 = vld [vmem:[%s375 + $0xd60] sm:$0xff]
        %v950 = vld [vmem:[%s375 + $0xd68] sm:$0xff]
        %v951 = vld [vmem:[%s375 + $0xd70] sm:$0xff]
        %v952 = vld [vmem:[%s375 + $0xd78] sm:$0xff]
        %v953 = vld [vmem:[%s375 + $0xd80] sm:$0xff]
        %v954 = vld [vmem:[%s375 + $0xd88] sm:$0xff]
        %v955 = vld [vmem:[%s375 + $0xd90] sm:$0xff]
        %v956 = vld [vmem:[%s375 + $0xd98] sm:$0xff]
        %v957 = vld [vmem:[%s375 + $0xda0] sm:$0xff]
        %v958 = vld [vmem:[%s375 + $0xda8] sm:$0xff]
        %v959 = vld [vmem:[%s375 + $0xdb0] sm:$0xff]
        %v960 = vld [vmem:[%s375 + $0xdb8] sm:$0xff]
        %v961 = vld [vmem:[%s375 + $0xdc0] sm:$0xff]
        %v962 = vld [vmem:[%s375 + $0xdc8] sm:$0xff]
        %v963 = vld [vmem:[%s375 + $0xdd0] sm:$0xff]
        %v964 = vld [vmem:[%s375 + $0xdd8] sm:$0xff]
        %v965 = vld [vmem:[%s375 + $0xde0] sm:$0xff]
        %v966 = vld [vmem:[%s375 + $0xde8] sm:$0xff]
        %v967 = vld [vmem:[%s375 + $0xdf0] sm:$0xff]
        %v968 = vld [vmem:[%s375 + $0xdf8] sm:$0xff]
        %v969 = vld [vmem:[%s375 + $0xe00] sm:$0xff]
        %v970 = vld [vmem:[%s375 + $0xe08] sm:$0xff]
        %v971 = vld [vmem:[%s375 + $0xe10] sm:$0xff]
        %v972 = vld [vmem:[%s375 + $0xe18] sm:$0xff]
        %v973 = vld [vmem:[%s375 + $0xe20] sm:$0xff]
        %v974 = vld [vmem:[%s375 + $0xe28] sm:$0xff]
        %v975 = vld [vmem:[%s375 + $0xe30] sm:$0xff]
        %v976 = vld [vmem:[%s375 + $0xe38] sm:$0xff]
        %v977 = vld [vmem:[%s375 + $0xe40] sm:$0xff]
        %v978 = vld [vmem:[%s375 + $0xe48] sm:$0xff]
        %v979 = vld [vmem:[%s375 + $0xe50] sm:$0xff]
        %v980 = vld [vmem:[%s375 + $0xe58] sm:$0xff]
        %v981 = vld [vmem:[%s375 + $0xe60] sm:$0xff]
        %v982 = vld [vmem:[%s375 + $0xe68] sm:$0xff]
        %v983 = vld [vmem:[%s375 + $0xe70] sm:$0xff]
        %v984 = vld [vmem:[%s375 + $0xe78] sm:$0xff]
        %v985 = vld [vmem:[%s375 + $0xe80] sm:$0xff]
        %v986 = vld [vmem:[%s375 + $0xe88] sm:$0xff]
        %v987 = vld [vmem:[%s375 + $0xe90] sm:$0xff]
        %v988 = vld [vmem:[%s375 + $0xe98] sm:$0xff]
        %v989 = vld [vmem:[%s375 + $0xea0] sm:$0xff]
        %v990 = vld [vmem:[%s375 + $0xea8] sm:$0xff]
        %v991 = vld [vmem:[%s375 + $0xeb0] sm:$0xff]
        %v992 = vld [vmem:[%s375 + $0xeb8] sm:$0xff]
        %v993 = vld [vmem:[%s375 + $0xec0] sm:$0xff]
        %v994 = vld [vmem:[%s375 + $0xec8] sm:$0xff]
        %v995 = vld [vmem:[%s375 + $0xed0] sm:$0xff]
        %v996 = vld [vmem:[%s375 + $0xed8] sm:$0xff]
        %v997 = vld [vmem:[%s375 + $0xee0] sm:$0xff]
        %v998 = vld [vmem:[%s375 + $0xee8] sm:$0xff]
        %v999 = vld [vmem:[%s375 + $0xef0] sm:$0xff]
        %v1000 = vld [vmem:[%s375 + $0xef8] sm:$0xff]
        %v1001 = vld [vmem:[%s375 + $0xf00] sm:$0xff]
        %v1002 = vld [vmem:[%s375 + $0xf08] sm:$0xff]
        %v1003 = vld [vmem:[%s375 + $0xf10] sm:$0xff]
        %v1004 = vld [vmem:[%s375 + $0xf18] sm:$0xff]
        %v1005 = vld [vmem:[%s375 + $0xf20] sm:$0xff]
        %v1006 = vld [vmem:[%s375 + $0xf28] sm:$0xff]
        %v1007 = vld [vmem:[%s375 + $0xf30] sm:$0xff]
        %v1008 = vld [vmem:[%s375 + $0xf38] sm:$0xff]
        %v1009 = vld [vmem:[%s375 + $0xf40] sm:$0xff]
        %v1010 = vld [vmem:[%s375 + $0xf48] sm:$0xff]
        %v1011 = vld [vmem:[%s375 + $0xf50] sm:$0xff]
        %v1012 = vld [vmem:[%s375 + $0xf58] sm:$0xff]
        %v1013 = vld [vmem:[%s375 + $0xf60] sm:$0xff]
        %v1014 = vld [vmem:[%s375 + $0xf68] sm:$0xff]
        %v1015 = vld [vmem:[%s375 + $0xf70] sm:$0xff]
        %v1016 = vld [vmem:[%s375 + $0xf78] sm:$0xff]
        %v1017 = vld [vmem:[%s375 + $0xf80] sm:$0xff]
        %v1018 = vld [vmem:[%s375 + $0xf88] sm:$0xff]
        %v1019 = vld [vmem:[%s375 + $0xf90] sm:$0xff]
        %v1020 = vld [vmem:[%s375 + $0xf98] sm:$0xff]
        %v1021 = vld [vmem:[%s375 + $0xfa0] sm:$0xff]
        %v1022 = vld [vmem:[%s375 + $0xfa8] sm:$0xff]
        %v1023 = vld [vmem:[%s375 + $0xfb0] sm:$0xff]
        %v1024 = vld [vmem:[%s375 + $0xfb8] sm:$0xff]
        %v1025 = vld [vmem:[%s375 + $0xfc0] sm:$0xff]
        %v1026 = vld [vmem:[%s375 + $0xfc8] sm:$0xff]
        %v1027 = vld [vmem:[%s375 + $0xfd0] sm:$0xff]
        %v1028 = vld [vmem:[%s375 + $0xfd8] sm:$0xff]
        %v1029 = vld [vmem:[%s375 + $0xfe0] sm:$0xff]
        %v1030 = vld [vmem:[%s375 + $0xfe8] sm:$0xff]
        %v1031 = vld [vmem:[%s375 + $0xff0] sm:$0xff]
        %v1032 = vld [vmem:[%s375 + $0xff8] sm:$0xff]
        %v1033 = vld [vmem:[%s375 + $0x1000] sm:$0xff]
        %v1034 = vld [vmem:[%s375 + $0x1008] sm:$0xff]
        %v1035 = vld [vmem:[%s375 + $0x1010] sm:$0xff]
        %v1036 = vld [vmem:[%s375 + $0x1018] sm:$0xff]
        %v1037 = vld [vmem:[%s375 + $0x1020] sm:$0xff]
        %v1038 = vld [vmem:[%s375 + $0x1028] sm:$0xff]
        %v1039 = vld [vmem:[%s375 + $0x1030] sm:$0xff]
        %v1040 = vld [vmem:[%s375 + $0x1038] sm:$0xff]
        %v1041 = vld [vmem:[%s375 + $0x1040] sm:$0xff]
        %v1042 = vld [vmem:[%s375 + $0x1048] sm:$0xff]
        %v1043 = vld [vmem:[%s375 + $0x1050] sm:$0xff]
        %v1044 = vld [vmem:[%s375 + $0x1058] sm:$0xff]
        %v1045 = vld [vmem:[%s375 + $0x1060] sm:$0xff]
        %v1046 = vld [vmem:[%s375 + $0x1068] sm:$0xff]
        %v1047 = vld [vmem:[%s375 + $0x1070] sm:$0xff]
        %v1048 = vld [vmem:[%s375 + $0x1078] sm:$0xff]
        %v1049 = vld [vmem:[%s375 + $0x1080] sm:$0xff]
        %v1050 = vld [vmem:[%s375 + $0x1088] sm:$0xff]
        %v1051 = vld [vmem:[%s375 + $0x1090] sm:$0xff]
        %v1052 = vld [vmem:[%s375 + $0x1098] sm:$0xff]
        %v1053 = vld [vmem:[%s375 + $0x10a0] sm:$0xff]
        %v1054 = vld [vmem:[%s375 + $0x10a8] sm:$0xff]
        %v1055 = vld [vmem:[%s375 + $0x10b0] sm:$0xff]
        %v1056 = vld [vmem:[%s375 + $0x10b8] sm:$0xff]
        %v1057 = vld [vmem:[%s375 + $0x10c0] sm:$0xff]
        %v1058 = vld [vmem:[%s375 + $0x10c8] sm:$0xff]
        %v1059 = vld [vmem:[%s375 + $0x10d0] sm:$0xff]
        %v1060 = vld [vmem:[%s375 + $0x10d8] sm:$0xff]
        %v1061 = vld [vmem:[%s375 + $0x10e0] sm:$0xff]
        %v1062 = vld [vmem:[%s375 + $0x10e8] sm:$0xff]
        %v1063 = vld [vmem:[%s375 + $0x10f0] sm:$0xff]
        %v1064 = vld [vmem:[%s375 + $0x10f8] sm:$0xff]
        %v1065 = vld [vmem:[%s375 + $0x1100] sm:$0xff]
        %v1066 = vld [vmem:[%s375 + $0x1108] sm:$0xff]
        %v1067 = vld [vmem:[%s375 + $0x1110] sm:$0xff]
        %v1068 = vld [vmem:[%s375 + $0x1118] sm:$0xff]
        %v1069 = vld [vmem:[%s375 + $0x1120] sm:$0xff]
        %v1070 = vld [vmem:[%s375 + $0x1128] sm:$0xff]
        %v1071 = vld [vmem:[%s375 + $0x1130] sm:$0xff]
        %v1072 = vld [vmem:[%s375 + $0x1138] sm:$0xff]
        %v1073 = vld [vmem:[%s375 + $0x1140] sm:$0xff]
        %v1074 = vld [vmem:[%s375 + $0x1148] sm:$0xff]
        %v1075 = vld [vmem:[%s375 + $0x1150] sm:$0xff]
        %v1076 = vld [vmem:[%s375 + $0x1158] sm:$0xff]
        %v1077 = vld [vmem:[%s375 + $0x1160] sm:$0xff]
        %v1078 = vld [vmem:[%s375 + $0x1168] sm:$0xff]
        %v1079 = vld [vmem:[%s375 + $0x1170] sm:$0xff]
        %v1080 = vld [vmem:[%s375 + $0x1178] sm:$0xff]
        %v1081 = vld [vmem:[%s375 + $0x1180] sm:$0xff]
        %v1082 = vld [vmem:[%s375 + $0x1188] sm:$0xff]
        %v1083 = vld [vmem:[%s375 + $0x1190] sm:$0xff]
        %v1084 = vld [vmem:[%s375 + $0x1198] sm:$0xff]
        %v1085 = vld [vmem:[%s375 + $0x11a0] sm:$0xff]
        %v1086 = vld [vmem:[%s375 + $0x11a8] sm:$0xff]
        %v1087 = vld [vmem:[%s375 + $0x11b0] sm:$0xff]
        %v1088 = vld [vmem:[%s375 + $0x11b8] sm:$0xff]
        %v1089 = vld [vmem:[%s375 + $0x11c0] sm:$0xff]
        %v1090 = vld [vmem:[%s375 + $0x11c8] sm:$0xff]
        %v1091 = vld [vmem:[%s375 + $0x11d0] sm:$0xff]
        %v1092 = vld [vmem:[%s375 + $0x11d8] sm:$0xff]
        %v1093 = vld [vmem:[%s375 + $0x11e0] sm:$0xff]
        %v1094 = vld [vmem:[%s375 + $0x11e8] sm:$0xff]
        %v1095 = vld [vmem:[%s375 + $0x11f0] sm:$0xff]
        %v1096 = vld [vmem:[%s375 + $0x11f8] sm:$0xff]
        %v1097 = vld [vmem:[%s375 + $0x1200] sm:$0xff]
        %v1098 = vld [vmem:[%s375 + $0x1208] sm:$0xff]
        %v1099 = vld [vmem:[%s375 + $0x1210] sm:$0xff]
        %v1100 = vld [vmem:[%s375 + $0x1218] sm:$0xff]
        %v1101 = vld [vmem:[%s375 + $0x1220] sm:$0xff]
        %v1102 = vld [vmem:[%s375 + $0x1228] sm:$0xff]
        %v1103 = vld [vmem:[%s375 + $0x1230] sm:$0xff]
        %v1104 = vld [vmem:[%s375 + $0x1238] sm:$0xff]
        %v1105 = vld [vmem:[%s375 + $0x1240] sm:$0xff]
        %v1106 = vld [vmem:[%s375 + $0x1248] sm:$0xff]
        %v1107 = vld [vmem:[%s375 + $0x1250] sm:$0xff]
        %v1108 = vld [vmem:[%s375 + $0x1258] sm:$0xff]
        %v1109 = vld [vmem:[%s375 + $0x1260] sm:$0xff]
        %v1110 = vld [vmem:[%s375 + $0x1268] sm:$0xff]
        %v1111 = vld [vmem:[%s375 + $0x1270] sm:$0xff]
        %v1112 = vld [vmem:[%s375 + $0x1278] sm:$0xff]
        %v1113 = vld [vmem:[%s375 + $0x1280] sm:$0xff]
        %v1114 = vld [vmem:[%s375 + $0x1288] sm:$0xff]
        %v1115 = vld [vmem:[%s375 + $0x1290] sm:$0xff]
        %v1116 = vld [vmem:[%s375 + $0x1298] sm:$0xff]
        %v1117 = vld [vmem:[%s375 + $0x12a0] sm:$0xff]
        %v1118 = vld [vmem:[%s375 + $0x12a8] sm:$0xff]
        %v1119 = vld [vmem:[%s375 + $0x12b0] sm:$0xff]
        %v1120 = vld [vmem:[%s375 + $0x12b8] sm:$0xff]
        %v1121 = vld [vmem:[%s375 + $0x12c0] sm:$0xff]
        %v1122 = vld [vmem:[%s375 + $0x12c8] sm:$0xff]
        %v1123 = vld [vmem:[%s375 + $0x12d0] sm:$0xff]
        %v1124 = vld [vmem:[%s375 + $0x12d8] sm:$0xff]
        %v1125 = vld [vmem:[%s375 + $0x12e0] sm:$0xff]
        %v1126 = vld [vmem:[%s375 + $0x12e8] sm:$0xff]
        %v1127 = vld [vmem:[%s375 + $0x12f0] sm:$0xff]
        %v1128 = vld [vmem:[%s375 + $0x12f8] sm:$0xff]
        %v1129 = vld [vmem:[%s375 + $0x1300] sm:$0xff]
        %v1130 = vld [vmem:[%s375 + $0x1308] sm:$0xff]
        %v1131 = vld [vmem:[%s375 + $0x1310] sm:$0xff]
        %v1132 = vld [vmem:[%s375 + $0x1318] sm:$0xff]
        %v1133 = vld [vmem:[%s375 + $0x1320] sm:$0xff]
        %v1134 = vld [vmem:[%s375 + $0x1328] sm:$0xff]
        %v1135 = vld [vmem:[%s375 + $0x1330] sm:$0xff]
        %v1136 = vld [vmem:[%s375 + $0x1338] sm:$0xff]
        %v1137 = vld [vmem:[%s375 + $0x1340] sm:$0xff]
        %v1138 = vld [vmem:[%s375 + $0x1348] sm:$0xff]
        %v1139 = vld [vmem:[%s375 + $0x1350] sm:$0xff]
        %v1140 = vld [vmem:[%s375 + $0x1358] sm:$0xff]
        %v1141 = vld [vmem:[%s375 + $0x1360] sm:$0xff]
        %v1142 = vld [vmem:[%s375 + $0x1368] sm:$0xff]
        %v1143 = vld [vmem:[%s375 + $0x1370] sm:$0xff]
        %v1144 = vld [vmem:[%s375 + $0x1378] sm:$0xff]
        %v1145 = vld [vmem:[%s375 + $0x1380] sm:$0xff]
        %v1146 = vld [vmem:[%s375 + $0x1388] sm:$0xff]
        %v1147 = vld [vmem:[%s375 + $0x1390] sm:$0xff]
        %v1148 = vld [vmem:[%s375 + $0x1398] sm:$0xff]
        %v1149 = vld [vmem:[%s375 + $0x13a0] sm:$0xff]
        %v1150 = vld [vmem:[%s375 + $0x13a8] sm:$0xff]
        %v1151 = vld [vmem:[%s375 + $0x13b0] sm:$0xff]
        %v1152 = vld [vmem:[%s375 + $0x13b8] sm:$0xff]
        %v1153 = vld [vmem:[%s375 + $0x13c0] sm:$0xff]
        %v1154 = vld [vmem:[%s375 + $0x13c8] sm:$0xff]
        %v1155 = vld [vmem:[%s375 + $0x13d0] sm:$0xff]
        %v1156 = vld [vmem:[%s375 + $0x13d8] sm:$0xff]
        %v1157 = vld [vmem:[%s375 + $0x13e0] sm:$0xff]
        %v1158 = vld [vmem:[%s375 + $0x13e8] sm:$0xff]
        %v1159 = vld [vmem:[%s375 + $0x13f0] sm:$0xff]
        %v1160 = vld [vmem:[%s375 + $0x13f8] sm:$0xff]
        %v1161 = vld [vmem:[%s375 + $0x1400] sm:$0xff]
        %v1162 = vld [vmem:[%s375 + $0x1408] sm:$0xff]
        %v1163 = vld [vmem:[%s375 + $0x1410] sm:$0xff]
        %v1164 = vld [vmem:[%s375 + $0x1418] sm:$0xff]
        %v1165 = vld [vmem:[%s375 + $0x1420] sm:$0xff]
        %v1166 = vld [vmem:[%s375 + $0x1428] sm:$0xff]
        %v1167 = vld [vmem:[%s375 + $0x1430] sm:$0xff]
        %v1168 = vld [vmem:[%s375 + $0x1438] sm:$0xff]
        %v1169 = vld [vmem:[%s375 + $0x1440] sm:$0xff]
        %v1170 = vld [vmem:[%s375 + $0x1448] sm:$0xff]
        %v1171 = vld [vmem:[%s375 + $0x1450] sm:$0xff]
        %v1172 = vld [vmem:[%s375 + $0x1458] sm:$0xff]
        %v1173 = vld [vmem:[%s375 + $0x1460] sm:$0xff]
        %v1174 = vld [vmem:[%s375 + $0x1468] sm:$0xff]
        %v1175 = vld [vmem:[%s375 + $0x1470] sm:$0xff]
        %v1176 = vld [vmem:[%s375 + $0x1478] sm:$0xff]
        %v1177 = vld [vmem:[%s375 + $0x1480] sm:$0xff]
        %v1178 = vld [vmem:[%s375 + $0x1488] sm:$0xff]
        %v1179 = vld [vmem:[%s375 + $0x1490] sm:$0xff]
        %v1180 = vld [vmem:[%s375 + $0x1498] sm:$0xff]
        %v1181 = vld [vmem:[%s375 + $0x14a0] sm:$0xff]
        %v1182 = vld [vmem:[%s375 + $0x14a8] sm:$0xff]
        %v1183 = vld [vmem:[%s375 + $0x14b0] sm:$0xff]
        %v1184 = vld [vmem:[%s375 + $0x14b8] sm:$0xff]
        %v1185 = vld [vmem:[%s375 + $0x14c0] sm:$0xff]
        %v1186 = vld [vmem:[%s375 + $0x14c8] sm:$0xff]
        %v1187 = vld [vmem:[%s375 + $0x14d0] sm:$0xff]
        %v1188 = vld [vmem:[%s375 + $0x14d8] sm:$0xff]
        %v1189 = vld [vmem:[%s375 + $0x14e0] sm:$0xff]
        %v1190 = vld [vmem:[%s375 + $0x14e8] sm:$0xff]
        %v1191 = vld [vmem:[%s375 + $0x14f0] sm:$0xff]
        %v1192 = vld [vmem:[%s375 + $0x14f8] sm:$0xff]
        %v1193 = vld [vmem:[%s375 + $0x1500] sm:$0xff]
        %v1194 = vld [vmem:[%s375 + $0x1508] sm:$0xff]
        %v1195 = vld [vmem:[%s375 + $0x1510] sm:$0xff]
        %v1196 = vld [vmem:[%s375 + $0x1518] sm:$0xff]
        %v1197 = vld [vmem:[%s375 + $0x1520] sm:$0xff]
        %v1198 = vld [vmem:[%s375 + $0x1528] sm:$0xff]
        %v1199 = vld [vmem:[%s375 + $0x1530] sm:$0xff]
        %v1200 = vld [vmem:[%s375 + $0x1538] sm:$0xff]
        %v1201 = vld [vmem:[%s375 + $0x1540] sm:$0xff]
        %v1202 = vld [vmem:[%s375 + $0x1548] sm:$0xff]
        %v1203 = vld [vmem:[%s375 + $0x1550] sm:$0xff]
        %v1204 = vld [vmem:[%s375 + $0x1558] sm:$0xff]
        %v1205 = vld [vmem:[%s375 + $0x1560] sm:$0xff]
        %v1206 = vld [vmem:[%s375 + $0x1568] sm:$0xff]
        %v1207 = vld [vmem:[%s375 + $0x1570] sm:$0xff]
        %v1208 = vld [vmem:[%s375 + $0x1578] sm:$0xff]
        %v1209 = vld [vmem:[%s375 + $0x1580] sm:$0xff]
        %v1210 = vld [vmem:[%s375 + $0x1588] sm:$0xff]
        %v1211 = vld [vmem:[%s375 + $0x1590] sm:$0xff]
        %v1212 = vld [vmem:[%s375 + $0x1598] sm:$0xff]
        %v1213 = vld [vmem:[%s375 + $0x15a0] sm:$0xff]
        %v1214 = vld [vmem:[%s375 + $0x15a8] sm:$0xff]
        %v1215 = vld [vmem:[%s375 + $0x15b0] sm:$0xff]
        %v1216 = vld [vmem:[%s375 + $0x15b8] sm:$0xff]
        %v1217 = vld [vmem:[%s375 + $0x15c0] sm:$0xff]
        %v1218 = vld [vmem:[%s375 + $0x15c8] sm:$0xff]
        %v1219 = vld [vmem:[%s375 + $0x15d0] sm:$0xff]
        %v1220 = vld [vmem:[%s375 + $0x15d8] sm:$0xff]
        %v1221 = vld [vmem:[%s375 + $0x15e0] sm:$0xff]
        %v1222 = vld [vmem:[%s375 + $0x15e8] sm:$0xff]
        %v1223 = vld [vmem:[%s375 + $0x15f0] sm:$0xff]
        %v1224 = vld [vmem:[%s375 + $0x15f8] sm:$0xff]
        %v1225 = vld [vmem:[%s375 + $0x1600] sm:$0xff]
        %v1226 = vld [vmem:[%s375 + $0x1608] sm:$0xff]
        %v1227 = vld [vmem:[%s375 + $0x1610] sm:$0xff]
        %v1228 = vld [vmem:[%s375 + $0x1618] sm:$0xff]
        %v1229 = vld [vmem:[%s375 + $0x1620] sm:$0xff]
        %v1230 = vld [vmem:[%s375 + $0x1628] sm:$0xff]
        %v1231 = vld [vmem:[%s375 + $0x1630] sm:$0xff]
        %v1232 = vld [vmem:[%s375 + $0x1638] sm:$0xff]
        %v1233 = vld [vmem:[%s375 + $0x1640] sm:$0xff]
        %v1234 = vld [vmem:[%s375 + $0x1648] sm:$0xff]
        %v1235 = vld [vmem:[%s375 + $0x1650] sm:$0xff]
        %v1236 = vld [vmem:[%s375 + $0x1658] sm:$0xff]
        %v1237 = vld [vmem:[%s375 + $0x1660] sm:$0xff]
        %v1238 = vld [vmem:[%s375 + $0x1668] sm:$0xff]
        %v1239 = vld [vmem:[%s375 + $0x1670] sm:$0xff]
        %v1240 = vld [vmem:[%s375 + $0x1678] sm:$0xff]
        %v1241 = vld [vmem:[%s375 + $0x1680] sm:$0xff]
        %v1242 = vld [vmem:[%s375 + $0x1688] sm:$0xff]
        %v1243 = vld [vmem:[%s375 + $0x1690] sm:$0xff]
        %v1244 = vld [vmem:[%s375 + $0x1698] sm:$0xff]
        %v1245 = vld [vmem:[%s375 + $0x16a0] sm:$0xff]
        %v1246 = vld [vmem:[%s375 + $0x16a8] sm:$0xff]
        %v1247 = vld [vmem:[%s375 + $0x16b0] sm:$0xff]
        %v1248 = vld [vmem:[%s375 + $0x16b8] sm:$0xff]
        %v1249 = vld [vmem:[%s375 + $0x16c0] sm:$0xff]
        %v1250 = vld [vmem:[%s375 + $0x16c8] sm:$0xff]
        %v1251 = vld [vmem:[%s375 + $0x16d0] sm:$0xff]
        %v1252 = vld [vmem:[%s375 + $0x16d8] sm:$0xff]
        %v1253 = vld [vmem:[%s375 + $0x16e0] sm:$0xff]
        %v1254 = vld [vmem:[%s375 + $0x16e8] sm:$0xff]
        %v1255 = vld [vmem:[%s375 + $0x16f0] sm:$0xff]
        %v1256 = vld [vmem:[%s375 + $0x16f8] sm:$0xff]
        %v1257 = vld [vmem:[%s375 + $0x1700] sm:$0xff]
        %v1258 = vld [vmem:[%s375 + $0x1708] sm:$0xff]
        %v1259 = vld [vmem:[%s375 + $0x1710] sm:$0xff]
        %v1260 = vld [vmem:[%s375 + $0x1718] sm:$0xff]
        %v1261 = vld [vmem:[%s375 + $0x1720] sm:$0xff]
        %v1262 = vld [vmem:[%s375 + $0x1728] sm:$0xff]
        %v1263 = vld [vmem:[%s375 + $0x1730] sm:$0xff]
        %v1264 = vld [vmem:[%s375 + $0x1738] sm:$0xff]
        %v1265 = vld [vmem:[%s375 + $0x1740] sm:$0xff]
        %v1266 = vld [vmem:[%s375 + $0x1748] sm:$0xff]
        %v1267 = vld [vmem:[%s375 + $0x1750] sm:$0xff]
        %v1268 = vld [vmem:[%s375 + $0x1758] sm:$0xff]
        %v1269 = vld [vmem:[%s375 + $0x1760] sm:$0xff]
        %v1270 = vld [vmem:[%s375 + $0x1768] sm:$0xff]
        %v1271 = vld [vmem:[%s375 + $0x1770] sm:$0xff]
        %v1272 = vld [vmem:[%s375 + $0x1778] sm:$0xff]
        %v1273 = vld [vmem:[%s375 + $0x1780] sm:$0xff]
        %v1274 = vld [vmem:[%s375 + $0x1788] sm:$0xff]
        %v1275 = vld [vmem:[%s375 + $0x1790] sm:$0xff]
        %v1276 = vld [vmem:[%s375 + $0x1798] sm:$0xff]
        %v1277 = vld [vmem:[%s375 + $0x17a0] sm:$0xff]
        %v1278 = vld [vmem:[%s375 + $0x17a8] sm:$0xff]
        %v1279 = vld [vmem:[%s375 + $0x17b0] sm:$0xff]
        %v1280 = vld [vmem:[%s375 + $0x17b8] sm:$0xff]
        %v1281 = vld [vmem:[%s375 + $0x17c0] sm:$0xff]
        %v1282 = vld [vmem:[%s375 + $0x17c8] sm:$0xff]
        %v1283 = vld [vmem:[%s375 + $0x17d0] sm:$0xff]
        %v1284 = vld [vmem:[%s375 + $0x17d8] sm:$0xff]
        %v1285 = vld [vmem:[%s375 + $0x17e0] sm:$0xff]
        %v1286 = vld [vmem:[%s375 + $0x17e8] sm:$0xff]
        %v1287 = vld [vmem:[%s375 + $0x17f0] sm:$0xff]
        %v1288 = vld [vmem:[%s375 + $0x17f8] sm:$0xff]
        %v1289 = vunpack.c.l.s8.bf16 %v521
        %v1290 = vunpack.c.l.s8.bf16 %v522
        %v1291 = vunpack.c.l.s8.bf16 %v523
        %v1292 = vunpack.c.l.s8.bf16 %v524
        %v1293 = vunpack.c.l.s8.bf16 %v525
        %v1294 = vunpack.c.l.s8.bf16 %v526
        %v1295 = vunpack.c.l.s8.bf16 %v527
        %v1296 = vunpack.c.l.s8.bf16 %v528
        %v1297 = vunpack.c.l.s8.bf16 %v529
        %v1298 = vunpack.c.l.s8.bf16 %v530
        %v1299 = vunpack.c.l.s8.bf16 %v531
        %v1300 = vunpack.c.l.s8.bf16 %v532
        %v1301 = vunpack.c.l.s8.bf16 %v533
        %v1302 = vunpack.c.l.s8.bf16 %v534
        %v1303 = vunpack.c.l.s8.bf16 %v535
        %v1304 = vunpack.c.l.s8.bf16 %v536
        %v1305 = vunpack.c.l.s8.bf16 %v537
        %v1306 = vunpack.c.l.s8.bf16 %v538
        %v1307 = vunpack.c.l.s8.bf16 %v539
        %v1308 = vunpack.c.l.s8.bf16 %v540
        %v1309 = vunpack.c.l.s8.bf16 %v541
        %v1310 = vunpack.c.l.s8.bf16 %v542
        %v1311 = vunpack.c.l.s8.bf16 %v543
        %v1312 = vunpack.c.l.s8.bf16 %v544
        %v1313 = vunpack.c.h.s8.bf16 %v521
        %v1314 = vunpack.c.h.s8.bf16 %v522
        %v1315 = vunpack.c.h.s8.bf16 %v523
        %v1316 = vunpack.c.h.s8.bf16 %v524
        %v1317 = vunpack.c.h.s8.bf16 %v525
        %v1318 = vunpack.c.h.s8.bf16 %v526
        %v1319 = vunpack.c.h.s8.bf16 %v527
        %v1320 = vunpack.c.h.s8.bf16 %v528
        %v1321 = vunpack.c.h.s8.bf16 %v529
        %v1322 = vunpack.c.h.s8.bf16 %v530
        %v1323 = vunpack.c.h.s8.bf16 %v531
        %v1324 = vunpack.c.h.s8.bf16 %v532
        %v1325 = vunpack.c.h.s8.bf16 %v533
        %v1326 = vunpack.c.h.s8.bf16 %v534
        %v1327 = vunpack.c.h.s8.bf16 %v535
        %v1328 = vunpack.c.h.s8.bf16 %v536
        %v1329 = vunpack.c.h.s8.bf16 %v537
        %v1330 = vunpack.c.h.s8.bf16 %v538
        %v1331 = vunpack.c.h.s8.bf16 %v539
        %v1332 = vunpack.c.h.s8.bf16 %v540
        %v1333 = vunpack.c.h.s8.bf16 %v541
        %v1334 = vunpack.c.h.s8.bf16 %v542
        %v1335 = vunpack.c.h.s8.bf16 %v543
        %v1336 = vunpack.c.h.s8.bf16 %v544
        %v1337 = vunpack.c.l.s8.bf16 %v545
        %v1338 = vunpack.c.l.s8.bf16 %v546
        %v1339 = vunpack.c.l.s8.bf16 %v547
        %v1340 = vunpack.c.l.s8.bf16 %v548
        %v1341 = vunpack.c.l.s8.bf16 %v549
        %v1342 = vunpack.c.l.s8.bf16 %v550
        %v1343 = vunpack.c.l.s8.bf16 %v551
        %v1344 = vunpack.c.l.s8.bf16 %v552
        %v1345 = vunpack.c.l.s8.bf16 %v553
        %v1346 = vunpack.c.l.s8.bf16 %v554
        %v1347 = vunpack.c.l.s8.bf16 %v555
        %v1348 = vunpack.c.l.s8.bf16 %v556
        %v1349 = vunpack.c.l.s8.bf16 %v557
        %v1350 = vunpack.c.l.s8.bf16 %v558
        %v1351 = vunpack.c.l.s8.bf16 %v559
        %v1352 = vunpack.c.l.s8.bf16 %v560
        %v1353 = vunpack.c.l.s8.bf16 %v561
        %v1354 = vunpack.c.l.s8.bf16 %v562
        %v1355 = vunpack.c.l.s8.bf16 %v563
        %v1356 = vunpack.c.l.s8.bf16 %v564
        %v1357 = vunpack.c.l.s8.bf16 %v565
        %v1358 = vunpack.c.l.s8.bf16 %v566
        %v1359 = vunpack.c.l.s8.bf16 %v567
        %v1360 = vunpack.c.l.s8.bf16 %v568
        %v1361 = vunpack.c.h.s8.bf16 %v545
        %v1362 = vunpack.c.h.s8.bf16 %v546
        %v1363 = vunpack.c.h.s8.bf16 %v547
        %v1364 = vunpack.c.h.s8.bf16 %v548
        %v1365 = vunpack.c.h.s8.bf16 %v549
        %v1366 = vunpack.c.h.s8.bf16 %v550
        %v1367 = vunpack.c.h.s8.bf16 %v551
        %v1368 = vunpack.c.h.s8.bf16 %v552
        %v1369 = vunpack.c.h.s8.bf16 %v553
        %v1370 = vunpack.c.h.s8.bf16 %v554
        %v1371 = vunpack.c.h.s8.bf16 %v555
        %v1372 = vunpack.c.h.s8.bf16 %v556
        %v1373 = vunpack.c.h.s8.bf16 %v557
        %v1374 = vunpack.c.h.s8.bf16 %v558
        %v1375 = vunpack.c.h.s8.bf16 %v559
        %v1376 = vunpack.c.h.s8.bf16 %v560
        %v1377 = vunpack.c.h.s8.bf16 %v561
        %v1378 = vunpack.c.h.s8.bf16 %v562
        %v1379 = vunpack.c.h.s8.bf16 %v563
        %v1380 = vunpack.c.h.s8.bf16 %v564
        %v1381 = vunpack.c.h.s8.bf16 %v565
        %v1382 = vunpack.c.h.s8.bf16 %v566
        %v1383 = vunpack.c.h.s8.bf16 %v567
        %v1384 = vunpack.c.h.s8.bf16 %v568
        %v1385 = vunpack.c.l.s8.bf16 %v569
        %v1386 = vunpack.c.l.s8.bf16 %v570
        %v1387 = vunpack.c.l.s8.bf16 %v571
        %v1388 = vunpack.c.l.s8.bf16 %v572
        %v1389 = vunpack.c.l.s8.bf16 %v573
        %v1390 = vunpack.c.l.s8.bf16 %v574
        %v1391 = vunpack.c.l.s8.bf16 %v575
        %v1392 = vunpack.c.l.s8.bf16 %v576
        %v1393 = vunpack.c.l.s8.bf16 %v577
        %v1394 = vunpack.c.l.s8.bf16 %v578
        %v1395 = vunpack.c.l.s8.bf16 %v579
        %v1396 = vunpack.c.l.s8.bf16 %v580
        %v1397 = vunpack.c.l.s8.bf16 %v581
        %v1398 = vunpack.c.l.s8.bf16 %v582
        %v1399 = vunpack.c.l.s8.bf16 %v583
        %v1400 = vunpack.c.l.s8.bf16 %v584
        %v1401 = vunpack.c.l.s8.bf16 %v585
        %v1402 = vunpack.c.l.s8.bf16 %v586
        %v1403 = vunpack.c.l.s8.bf16 %v587
        %v1404 = vunpack.c.l.s8.bf16 %v588
        %v1405 = vunpack.c.l.s8.bf16 %v589
        %v1406 = vunpack.c.l.s8.bf16 %v590
        %v1407 = vunpack.c.l.s8.bf16 %v591
        %v1408 = vunpack.c.l.s8.bf16 %v592
        %v1409 = vunpack.c.h.s8.bf16 %v569
        %v1410 = vunpack.c.h.s8.bf16 %v570
        %v1411 = vunpack.c.h.s8.bf16 %v571
        %v1412 = vunpack.c.h.s8.bf16 %v572
        %v1413 = vunpack.c.h.s8.bf16 %v573
        %v1414 = vunpack.c.h.s8.bf16 %v574
        %v1415 = vunpack.c.h.s8.bf16 %v575
        %v1416 = vunpack.c.h.s8.bf16 %v576
        %v1417 = vunpack.c.h.s8.bf16 %v577
        %v1418 = vunpack.c.h.s8.bf16 %v578
        %v1419 = vunpack.c.h.s8.bf16 %v579
        %v1420 = vunpack.c.h.s8.bf16 %v580
        %v1421 = vunpack.c.h.s8.bf16 %v581
        %v1422 = vunpack.c.h.s8.bf16 %v582
        %v1423 = vunpack.c.h.s8.bf16 %v583
        %v1424 = vunpack.c.h.s8.bf16 %v584
        %v1425 = vunpack.c.h.s8.bf16 %v585
        %v1426 = vunpack.c.h.s8.bf16 %v586
        %v1427 = vunpack.c.h.s8.bf16 %v587
        %v1428 = vunpack.c.h.s8.bf16 %v588
        %v1429 = vunpack.c.h.s8.bf16 %v589
        %v1430 = vunpack.c.h.s8.bf16 %v590
        %v1431 = vunpack.c.h.s8.bf16 %v591
        %v1432 = vunpack.c.h.s8.bf16 %v592
        %v1433 = vunpack.c.l.s8.bf16 %v593
        %v1434 = vunpack.c.l.s8.bf16 %v594
        %v1435 = vunpack.c.l.s8.bf16 %v595
        %v1436 = vunpack.c.l.s8.bf16 %v596
        %v1437 = vunpack.c.l.s8.bf16 %v597
        %v1438 = vunpack.c.l.s8.bf16 %v598
        %v1439 = vunpack.c.l.s8.bf16 %v599
        %v1440 = vunpack.c.l.s8.bf16 %v600
        %v1441 = vunpack.c.l.s8.bf16 %v601
        %v1442 = vunpack.c.l.s8.bf16 %v602
        %v1443 = vunpack.c.l.s8.bf16 %v603
        %v1444 = vunpack.c.l.s8.bf16 %v604
        %v1445 = vunpack.c.l.s8.bf16 %v605
        %v1446 = vunpack.c.l.s8.bf16 %v606
        %v1447 = vunpack.c.l.s8.bf16 %v607
        %v1448 = vunpack.c.l.s8.bf16 %v608
        %v1449 = vunpack.c.l.s8.bf16 %v609
        %v1450 = vunpack.c.l.s8.bf16 %v610
        %v1451 = vunpack.c.l.s8.bf16 %v611
        %v1452 = vunpack.c.l.s8.bf16 %v612
        %v1453 = vunpack.c.l.s8.bf16 %v613
        %v1454 = vunpack.c.l.s8.bf16 %v614
        %v1455 = vunpack.c.l.s8.bf16 %v615
        %v1456 = vunpack.c.l.s8.bf16 %v616
        %v1457 = vunpack.c.h.s8.bf16 %v593
        %v1458 = vunpack.c.h.s8.bf16 %v594
        %v1459 = vunpack.c.h.s8.bf16 %v595
        %v1460 = vunpack.c.h.s8.bf16 %v596
        %v1461 = vunpack.c.h.s8.bf16 %v597
        %v1462 = vunpack.c.h.s8.bf16 %v598
        %v1463 = vunpack.c.h.s8.bf16 %v599
        %v1464 = vunpack.c.h.s8.bf16 %v600
        %v1465 = vunpack.c.h.s8.bf16 %v601
        %v1466 = vunpack.c.h.s8.bf16 %v602
        %v1467 = vunpack.c.h.s8.bf16 %v603
        %v1468 = vunpack.c.h.s8.bf16 %v604
        %v1469 = vunpack.c.h.s8.bf16 %v605
        %v1470 = vunpack.c.h.s8.bf16 %v606
        %v1471 = vunpack.c.h.s8.bf16 %v607
        %v1472 = vunpack.c.h.s8.bf16 %v608
        %v1473 = vunpack.c.h.s8.bf16 %v609
        %v1474 = vunpack.c.h.s8.bf16 %v610
        %v1475 = vunpack.c.h.s8.bf16 %v611
        %v1476 = vunpack.c.h.s8.bf16 %v612
        %v1477 = vunpack.c.h.s8.bf16 %v613
        %v1478 = vunpack.c.h.s8.bf16 %v614
        %v1479 = vunpack.c.h.s8.bf16 %v615
        %v1480 = vunpack.c.h.s8.bf16 %v616
        %v1481 = vunpack.c.l.s8.bf16 %v617
        %v1482 = vunpack.c.l.s8.bf16 %v618
        %v1483 = vunpack.c.l.s8.bf16 %v619
        %v1484 = vunpack.c.l.s8.bf16 %v620
        %v1485 = vunpack.c.l.s8.bf16 %v621
        %v1486 = vunpack.c.l.s8.bf16 %v622
        %v1487 = vunpack.c.l.s8.bf16 %v623
        %v1488 = vunpack.c.l.s8.bf16 %v624
        %v1489 = vunpack.c.l.s8.bf16 %v625
        %v1490 = vunpack.c.l.s8.bf16 %v626
        %v1491 = vunpack.c.l.s8.bf16 %v627
        %v1492 = vunpack.c.l.s8.bf16 %v628
        %v1493 = vunpack.c.l.s8.bf16 %v629
        %v1494 = vunpack.c.l.s8.bf16 %v630
        %v1495 = vunpack.c.l.s8.bf16 %v631
        %v1496 = vunpack.c.l.s8.bf16 %v632
        %v1497 = vunpack.c.l.s8.bf16 %v633
        %v1498 = vunpack.c.l.s8.bf16 %v634
        %v1499 = vunpack.c.l.s8.bf16 %v635
        %v1500 = vunpack.c.l.s8.bf16 %v636
        %v1501 = vunpack.c.l.s8.bf16 %v637
        %v1502 = vunpack.c.l.s8.bf16 %v638
        %v1503 = vunpack.c.l.s8.bf16 %v639
        %v1504 = vunpack.c.l.s8.bf16 %v640
        %v1505 = vunpack.c.h.s8.bf16 %v617
        %v1506 = vunpack.c.h.s8.bf16 %v618
        %v1507 = vunpack.c.h.s8.bf16 %v619
        %v1508 = vunpack.c.h.s8.bf16 %v620
        %v1509 = vunpack.c.h.s8.bf16 %v621
        %v1510 = vunpack.c.h.s8.bf16 %v622
        %v1511 = vunpack.c.h.s8.bf16 %v623
        %v1512 = vunpack.c.h.s8.bf16 %v624
        %v1513 = vunpack.c.h.s8.bf16 %v625
        %v1514 = vunpack.c.h.s8.bf16 %v626
        %v1515 = vunpack.c.h.s8.bf16 %v627
        %v1516 = vunpack.c.h.s8.bf16 %v628
        %v1517 = vunpack.c.h.s8.bf16 %v629
        %v1518 = vunpack.c.h.s8.bf16 %v630
        %v1519 = vunpack.c.h.s8.bf16 %v631
        %v1520 = vunpack.c.h.s8.bf16 %v632
        %v1521 = vunpack.c.h.s8.bf16 %v633
        %v1522 = vunpack.c.h.s8.bf16 %v634
        %v1523 = vunpack.c.h.s8.bf16 %v635
        %v1524 = vunpack.c.h.s8.bf16 %v636
        %v1525 = vunpack.c.h.s8.bf16 %v637
        %v1526 = vunpack.c.h.s8.bf16 %v638
        %v1527 = vunpack.c.h.s8.bf16 %v639
        %v1528 = vunpack.c.h.s8.bf16 %v640
        %v1529 = vunpack.c.l.s8.bf16 %v641
        %v1530 = vunpack.c.l.s8.bf16 %v642
        %v1531 = vunpack.c.l.s8.bf16 %v643
        %v1532 = vunpack.c.l.s8.bf16 %v644
        %v1533 = vunpack.c.l.s8.bf16 %v645
        %v1534 = vunpack.c.l.s8.bf16 %v646
        %v1535 = vunpack.c.l.s8.bf16 %v647
        %v1536 = vunpack.c.l.s8.bf16 %v648
        %v1537 = vunpack.c.l.s8.bf16 %v649
        %v1538 = vunpack.c.l.s8.bf16 %v650
        %v1539 = vunpack.c.l.s8.bf16 %v651
        %v1540 = vunpack.c.l.s8.bf16 %v652
        %v1541 = vunpack.c.l.s8.bf16 %v653
        %v1542 = vunpack.c.l.s8.bf16 %v654
        %v1543 = vunpack.c.l.s8.bf16 %v655
        %v1544 = vunpack.c.l.s8.bf16 %v656
        %v1545 = vunpack.c.l.s8.bf16 %v657
        %v1546 = vunpack.c.l.s8.bf16 %v658
        %v1547 = vunpack.c.l.s8.bf16 %v659
        %v1548 = vunpack.c.l.s8.bf16 %v660
        %v1549 = vunpack.c.l.s8.bf16 %v661
        %v1550 = vunpack.c.l.s8.bf16 %v662
        %v1551 = vunpack.c.l.s8.bf16 %v663
        %v1552 = vunpack.c.l.s8.bf16 %v664
        %v1553 = vunpack.c.h.s8.bf16 %v641
        %v1554 = vunpack.c.h.s8.bf16 %v642
        %v1555 = vunpack.c.h.s8.bf16 %v643
        %v1556 = vunpack.c.h.s8.bf16 %v644
        %v1557 = vunpack.c.h.s8.bf16 %v645
        %v1558 = vunpack.c.h.s8.bf16 %v646
        %v1559 = vunpack.c.h.s8.bf16 %v647
        %v1560 = vunpack.c.h.s8.bf16 %v648
        %v1561 = vunpack.c.h.s8.bf16 %v649
        %v1562 = vunpack.c.h.s8.bf16 %v650
        %v1563 = vunpack.c.h.s8.bf16 %v651
        %v1564 = vunpack.c.h.s8.bf16 %v652
        %v1565 = vunpack.c.h.s8.bf16 %v653
        %v1566 = vunpack.c.h.s8.bf16 %v654
        %v1567 = vunpack.c.h.s8.bf16 %v655
        %v1568 = vunpack.c.h.s8.bf16 %v656
        %v1569 = vunpack.c.h.s8.bf16 %v657
        %v1570 = vunpack.c.h.s8.bf16 %v658
        %v1571 = vunpack.c.h.s8.bf16 %v659
        %v1572 = vunpack.c.h.s8.bf16 %v660
        %v1573 = vunpack.c.h.s8.bf16 %v661
        %v1574 = vunpack.c.h.s8.bf16 %v662
        %v1575 = vunpack.c.h.s8.bf16 %v663
        %v1576 = vunpack.c.h.s8.bf16 %v664
        %v1577 = vunpack.c.l.s8.bf16 %v665
        %v1578 = vunpack.c.l.s8.bf16 %v666
        %v1579 = vunpack.c.l.s8.bf16 %v667
        %v1580 = vunpack.c.l.s8.bf16 %v668
        %v1581 = vunpack.c.l.s8.bf16 %v669
        %v1582 = vunpack.c.l.s8.bf16 %v670
        %v1583 = vunpack.c.l.s8.bf16 %v671
        %v1584 = vunpack.c.l.s8.bf16 %v672
        %v1585 = vunpack.c.l.s8.bf16 %v673
        %v1586 = vunpack.c.l.s8.bf16 %v674
        %v1587 = vunpack.c.l.s8.bf16 %v675
        %v1588 = vunpack.c.l.s8.bf16 %v676
        %v1589 = vunpack.c.l.s8.bf16 %v677
        %v1590 = vunpack.c.l.s8.bf16 %v678
        %v1591 = vunpack.c.l.s8.bf16 %v679
        %v1592 = vunpack.c.l.s8.bf16 %v680
        %v1593 = vunpack.c.l.s8.bf16 %v681
        %v1594 = vunpack.c.l.s8.bf16 %v682
        %v1595 = vunpack.c.l.s8.bf16 %v683
        %v1596 = vunpack.c.l.s8.bf16 %v684
        %v1597 = vunpack.c.l.s8.bf16 %v685
        %v1598 = vunpack.c.l.s8.bf16 %v686
        %v1599 = vunpack.c.l.s8.bf16 %v687
        %v1600 = vunpack.c.l.s8.bf16 %v688
        %v1601 = vunpack.c.h.s8.bf16 %v665
        %v1602 = vunpack.c.h.s8.bf16 %v666
        %v1603 = vunpack.c.h.s8.bf16 %v667
        %v1604 = vunpack.c.h.s8.bf16 %v668
        %v1605 = vunpack.c.h.s8.bf16 %v669
        %v1606 = vunpack.c.h.s8.bf16 %v670
        %v1607 = vunpack.c.h.s8.bf16 %v671
        %v1608 = vunpack.c.h.s8.bf16 %v672
        %v1609 = vunpack.c.h.s8.bf16 %v673
        %v1610 = vunpack.c.h.s8.bf16 %v674
        %v1611 = vunpack.c.h.s8.bf16 %v675
        %v1612 = vunpack.c.h.s8.bf16 %v676
        %v1613 = vunpack.c.h.s8.bf16 %v677
        %v1614 = vunpack.c.h.s8.bf16 %v678
        %v1615 = vunpack.c.h.s8.bf16 %v679
        %v1616 = vunpack.c.h.s8.bf16 %v680
        %v1617 = vunpack.c.h.s8.bf16 %v681
        %v1618 = vunpack.c.h.s8.bf16 %v682
        %v1619 = vunpack.c.h.s8.bf16 %v683
        %v1620 = vunpack.c.h.s8.bf16 %v684
        %v1621 = vunpack.c.h.s8.bf16 %v685
        %v1622 = vunpack.c.h.s8.bf16 %v686
        %v1623 = vunpack.c.h.s8.bf16 %v687
        %v1624 = vunpack.c.h.s8.bf16 %v688
        %v1625 = vunpack.c.l.s8.bf16 %v689
        %v1626 = vunpack.c.l.s8.bf16 %v690
        %v1627 = vunpack.c.l.s8.bf16 %v691
        %v1628 = vunpack.c.l.s8.bf16 %v692
        %v1629 = vunpack.c.l.s8.bf16 %v693
        %v1630 = vunpack.c.l.s8.bf16 %v694
        %v1631 = vunpack.c.l.s8.bf16 %v695
        %v1632 = vunpack.c.l.s8.bf16 %v696
        %v1633 = vunpack.c.l.s8.bf16 %v697
        %v1634 = vunpack.c.l.s8.bf16 %v698
        %v1635 = vunpack.c.l.s8.bf16 %v699
        %v1636 = vunpack.c.l.s8.bf16 %v700
        %v1637 = vunpack.c.l.s8.bf16 %v701
        %v1638 = vunpack.c.l.s8.bf16 %v702
        %v1639 = vunpack.c.l.s8.bf16 %v703
        %v1640 = vunpack.c.l.s8.bf16 %v704
        %v1641 = vunpack.c.l.s8.bf16 %v705
        %v1642 = vunpack.c.l.s8.bf16 %v706
        %v1643 = vunpack.c.l.s8.bf16 %v707
        %v1644 = vunpack.c.l.s8.bf16 %v708
        %v1645 = vunpack.c.l.s8.bf16 %v709
        %v1646 = vunpack.c.l.s8.bf16 %v710
        %v1647 = vunpack.c.l.s8.bf16 %v711
        %v1648 = vunpack.c.l.s8.bf16 %v712
        %v1649 = vunpack.c.h.s8.bf16 %v689
        %v1650 = vunpack.c.h.s8.bf16 %v690
        %v1651 = vunpack.c.h.s8.bf16 %v691
        %v1652 = vunpack.c.h.s8.bf16 %v692
        %v1653 = vunpack.c.h.s8.bf16 %v693
        %v1654 = vunpack.c.h.s8.bf16 %v694
        %v1655 = vunpack.c.h.s8.bf16 %v695
        %v1656 = vunpack.c.h.s8.bf16 %v696
        %v1657 = vunpack.c.h.s8.bf16 %v697
        %v1658 = vunpack.c.h.s8.bf16 %v698
        %v1659 = vunpack.c.h.s8.bf16 %v699
        %v1660 = vunpack.c.h.s8.bf16 %v700
        %v1661 = vunpack.c.h.s8.bf16 %v701
        %v1662 = vunpack.c.h.s8.bf16 %v702
        %v1663 = vunpack.c.h.s8.bf16 %v703
        %v1664 = vunpack.c.h.s8.bf16 %v704
        %v1665 = vunpack.c.h.s8.bf16 %v705
        %v1666 = vunpack.c.h.s8.bf16 %v706
        %v1667 = vunpack.c.h.s8.bf16 %v707
        %v1668 = vunpack.c.h.s8.bf16 %v708
        %v1669 = vunpack.c.h.s8.bf16 %v709
        %v1670 = vunpack.c.h.s8.bf16 %v710
        %v1671 = vunpack.c.h.s8.bf16 %v711
        %v1672 = vunpack.c.h.s8.bf16 %v712
        %v1673 = vunpack.c.l.s8.bf16 %v713
        %v1674 = vunpack.c.l.s8.bf16 %v714
        %v1675 = vunpack.c.l.s8.bf16 %v715
        %v1676 = vunpack.c.l.s8.bf16 %v716
        %v1677 = vunpack.c.l.s8.bf16 %v717
        %v1678 = vunpack.c.l.s8.bf16 %v718
        %v1679 = vunpack.c.l.s8.bf16 %v719
        %v1680 = vunpack.c.l.s8.bf16 %v720
        %v1681 = vunpack.c.l.s8.bf16 %v721
        %v1682 = vunpack.c.l.s8.bf16 %v722
        %v1683 = vunpack.c.l.s8.bf16 %v723
        %v1684 = vunpack.c.l.s8.bf16 %v724
        %v1685 = vunpack.c.l.s8.bf16 %v725
        %v1686 = vunpack.c.l.s8.bf16 %v726
        %v1687 = vunpack.c.l.s8.bf16 %v727
        %v1688 = vunpack.c.l.s8.bf16 %v728
        %v1689 = vunpack.c.l.s8.bf16 %v729
        %v1690 = vunpack.c.l.s8.bf16 %v730
        %v1691 = vunpack.c.l.s8.bf16 %v731
        %v1692 = vunpack.c.l.s8.bf16 %v732
        %v1693 = vunpack.c.l.s8.bf16 %v733
        %v1694 = vunpack.c.l.s8.bf16 %v734
        %v1695 = vunpack.c.l.s8.bf16 %v735
        %v1696 = vunpack.c.l.s8.bf16 %v736
        %v1697 = vunpack.c.h.s8.bf16 %v713
        %v1698 = vunpack.c.h.s8.bf16 %v714
        %v1699 = vunpack.c.h.s8.bf16 %v715
        %v1700 = vunpack.c.h.s8.bf16 %v716
        %v1701 = vunpack.c.h.s8.bf16 %v717
        %v1702 = vunpack.c.h.s8.bf16 %v718
        %v1703 = vunpack.c.h.s8.bf16 %v719
        %v1704 = vunpack.c.h.s8.bf16 %v720
        %v1705 = vunpack.c.h.s8.bf16 %v721
        %v1706 = vunpack.c.h.s8.bf16 %v722
        %v1707 = vunpack.c.h.s8.bf16 %v723
        %v1708 = vunpack.c.h.s8.bf16 %v724
        %v1709 = vunpack.c.h.s8.bf16 %v725
        %v1710 = vunpack.c.h.s8.bf16 %v726
        %v1711 = vunpack.c.h.s8.bf16 %v727
        %v1712 = vunpack.c.h.s8.bf16 %v728
        %v1713 = vunpack.c.h.s8.bf16 %v729
        %v1714 = vunpack.c.h.s8.bf16 %v730
        %v1715 = vunpack.c.h.s8.bf16 %v731
        %v1716 = vunpack.c.h.s8.bf16 %v732
        %v1717 = vunpack.c.h.s8.bf16 %v733
        %v1718 = vunpack.c.h.s8.bf16 %v734
        %v1719 = vunpack.c.h.s8.bf16 %v735
        %v1720 = vunpack.c.h.s8.bf16 %v736
        %v1721 = vunpack.c.l.s8.bf16 %v737
        %v1722 = vunpack.c.l.s8.bf16 %v738
        %v1723 = vunpack.c.l.s8.bf16 %v739
        %v1724 = vunpack.c.l.s8.bf16 %v740
        %v1725 = vunpack.c.l.s8.bf16 %v741
        %v1726 = vunpack.c.l.s8.bf16 %v742
        %v1727 = vunpack.c.l.s8.bf16 %v743
        %v1728 = vunpack.c.l.s8.bf16 %v744
        %v1729 = vunpack.c.l.s8.bf16 %v745
        %v1730 = vunpack.c.l.s8.bf16 %v746
        %v1731 = vunpack.c.l.s8.bf16 %v747
        %v1732 = vunpack.c.l.s8.bf16 %v748
        %v1733 = vunpack.c.l.s8.bf16 %v749
        %v1734 = vunpack.c.l.s8.bf16 %v750
        %v1735 = vunpack.c.l.s8.bf16 %v751
        %v1736 = vunpack.c.l.s8.bf16 %v752
        %v1737 = vunpack.c.l.s8.bf16 %v753
        %v1738 = vunpack.c.l.s8.bf16 %v754
        %v1739 = vunpack.c.l.s8.bf16 %v755
        %v1740 = vunpack.c.l.s8.bf16 %v756
        %v1741 = vunpack.c.l.s8.bf16 %v757
        %v1742 = vunpack.c.l.s8.bf16 %v758
        %v1743 = vunpack.c.l.s8.bf16 %v759
        %v1744 = vunpack.c.l.s8.bf16 %v760
        %v1745 = vunpack.c.h.s8.bf16 %v737
        %v1746 = vunpack.c.h.s8.bf16 %v738
        %v1747 = vunpack.c.h.s8.bf16 %v739
        %v1748 = vunpack.c.h.s8.bf16 %v740
        %v1749 = vunpack.c.h.s8.bf16 %v741
        %v1750 = vunpack.c.h.s8.bf16 %v742
        %v1751 = vunpack.c.h.s8.bf16 %v743
        %v1752 = vunpack.c.h.s8.bf16 %v744
        %v1753 = vunpack.c.h.s8.bf16 %v745
        %v1754 = vunpack.c.h.s8.bf16 %v746
        %v1755 = vunpack.c.h.s8.bf16 %v747
        %v1756 = vunpack.c.h.s8.bf16 %v748
        %v1757 = vunpack.c.h.s8.bf16 %v749
        %v1758 = vunpack.c.h.s8.bf16 %v750
        %v1759 = vunpack.c.h.s8.bf16 %v751
        %v1760 = vunpack.c.h.s8.bf16 %v752
        %v1761 = vunpack.c.h.s8.bf16 %v753
        %v1762 = vunpack.c.h.s8.bf16 %v754
        %v1763 = vunpack.c.h.s8.bf16 %v755
        %v1764 = vunpack.c.h.s8.bf16 %v756
        %v1765 = vunpack.c.h.s8.bf16 %v757
        %v1766 = vunpack.c.h.s8.bf16 %v758
        %v1767 = vunpack.c.h.s8.bf16 %v759
        %v1768 = vunpack.c.h.s8.bf16 %v760
        %v1769 = vunpack.c.l.s8.bf16 %v761
        %v1770 = vunpack.c.l.s8.bf16 %v762
        %v1771 = vunpack.c.l.s8.bf16 %v763
        %v1772 = vunpack.c.l.s8.bf16 %v764
        %v1773 = vunpack.c.l.s8.bf16 %v765
        %v1774 = vunpack.c.l.s8.bf16 %v766
        %v1775 = vunpack.c.l.s8.bf16 %v767
        %v1776 = vunpack.c.l.s8.bf16 %v768
        %v1777 = vunpack.c.l.s8.bf16 %v769
        %v1778 = vunpack.c.l.s8.bf16 %v770
        %v1779 = vunpack.c.l.s8.bf16 %v771
        %v1780 = vunpack.c.l.s8.bf16 %v772
        %v1781 = vunpack.c.l.s8.bf16 %v773
        %v1782 = vunpack.c.l.s8.bf16 %v774
        %v1783 = vunpack.c.l.s8.bf16 %v775
        %v1784 = vunpack.c.l.s8.bf16 %v776
        %v1785 = vunpack.c.l.s8.bf16 %v777
        %v1786 = vunpack.c.l.s8.bf16 %v778
        %v1787 = vunpack.c.l.s8.bf16 %v779
        %v1788 = vunpack.c.l.s8.bf16 %v780
        %v1789 = vunpack.c.l.s8.bf16 %v781
        %v1790 = vunpack.c.l.s8.bf16 %v782
        %v1791 = vunpack.c.l.s8.bf16 %v783
        %v1792 = vunpack.c.l.s8.bf16 %v784
        %v1793 = vunpack.c.h.s8.bf16 %v761
        %v1794 = vunpack.c.h.s8.bf16 %v762
        %v1795 = vunpack.c.h.s8.bf16 %v763
        %v1796 = vunpack.c.h.s8.bf16 %v764
        %v1797 = vunpack.c.h.s8.bf16 %v765
        %v1798 = vunpack.c.h.s8.bf16 %v766
        %v1799 = vunpack.c.h.s8.bf16 %v767
        %v1800 = vunpack.c.h.s8.bf16 %v768
        %v1801 = vunpack.c.h.s8.bf16 %v769
        %v1802 = vunpack.c.h.s8.bf16 %v770
        %v1803 = vunpack.c.h.s8.bf16 %v771
        %v1804 = vunpack.c.h.s8.bf16 %v772
        %v1805 = vunpack.c.h.s8.bf16 %v773
        %v1806 = vunpack.c.h.s8.bf16 %v774
        %v1807 = vunpack.c.h.s8.bf16 %v775
        %v1808 = vunpack.c.h.s8.bf16 %v776
        %v1809 = vunpack.c.h.s8.bf16 %v777
        %v1810 = vunpack.c.h.s8.bf16 %v778
        %v1811 = vunpack.c.h.s8.bf16 %v779
        %v1812 = vunpack.c.h.s8.bf16 %v780
        %v1813 = vunpack.c.h.s8.bf16 %v781
        %v1814 = vunpack.c.h.s8.bf16 %v782
        %v1815 = vunpack.c.h.s8.bf16 %v783
        %v1816 = vunpack.c.h.s8.bf16 %v784
        %v1817 = vunpack.c.l.s8.bf16 %v785
        %v1818 = vunpack.c.l.s8.bf16 %v786
        %v1819 = vunpack.c.l.s8.bf16 %v787
        %v1820 = vunpack.c.l.s8.bf16 %v788
        %v1821 = vunpack.c.l.s8.bf16 %v789
        %v1822 = vunpack.c.l.s8.bf16 %v790
        %v1823 = vunpack.c.l.s8.bf16 %v791
        %v1824 = vunpack.c.l.s8.bf16 %v792
        %v1825 = vunpack.c.l.s8.bf16 %v793
        %v1826 = vunpack.c.l.s8.bf16 %v794
        %v1827 = vunpack.c.l.s8.bf16 %v795
        %v1828 = vunpack.c.l.s8.bf16 %v796
        %v1829 = vunpack.c.l.s8.bf16 %v797
        %v1830 = vunpack.c.l.s8.bf16 %v798
        %v1831 = vunpack.c.l.s8.bf16 %v799
        %v1832 = vunpack.c.l.s8.bf16 %v800
        %v1833 = vunpack.c.l.s8.bf16 %v801
        %v1834 = vunpack.c.l.s8.bf16 %v802
        %v1835 = vunpack.c.l.s8.bf16 %v803
        %v1836 = vunpack.c.l.s8.bf16 %v804
        %v1837 = vunpack.c.l.s8.bf16 %v805
        %v1838 = vunpack.c.l.s8.bf16 %v806
        %v1839 = vunpack.c.l.s8.bf16 %v807
        %v1840 = vunpack.c.l.s8.bf16 %v808
        %v1841 = vunpack.c.h.s8.bf16 %v785
        %v1842 = vunpack.c.h.s8.bf16 %v786
        %v1843 = vunpack.c.h.s8.bf16 %v787
        %v1844 = vunpack.c.h.s8.bf16 %v788
        %v1845 = vunpack.c.h.s8.bf16 %v789
        %v1846 = vunpack.c.h.s8.bf16 %v790
        %v1847 = vunpack.c.h.s8.bf16 %v791
        %v1848 = vunpack.c.h.s8.bf16 %v792
        %v1849 = vunpack.c.h.s8.bf16 %v793
        %v1850 = vunpack.c.h.s8.bf16 %v794
        %v1851 = vunpack.c.h.s8.bf16 %v795
        %v1852 = vunpack.c.h.s8.bf16 %v796
        %v1853 = vunpack.c.h.s8.bf16 %v797
        %v1854 = vunpack.c.h.s8.bf16 %v798
        %v1855 = vunpack.c.h.s8.bf16 %v799
        %v1856 = vunpack.c.h.s8.bf16 %v800
        %v1857 = vunpack.c.h.s8.bf16 %v801
        %v1858 = vunpack.c.h.s8.bf16 %v802
        %v1859 = vunpack.c.h.s8.bf16 %v803
        %v1860 = vunpack.c.h.s8.bf16 %v804
        %v1861 = vunpack.c.h.s8.bf16 %v805
        %v1862 = vunpack.c.h.s8.bf16 %v806
        %v1863 = vunpack.c.h.s8.bf16 %v807
        %v1864 = vunpack.c.h.s8.bf16 %v808
        %v1865 = vunpack.c.l.s8.bf16 %v809
        %v1866 = vunpack.c.l.s8.bf16 %v810
        %v1867 = vunpack.c.l.s8.bf16 %v811
        %v1868 = vunpack.c.l.s8.bf16 %v812
        %v1869 = vunpack.c.l.s8.bf16 %v813
        %v1870 = vunpack.c.l.s8.bf16 %v814
        %v1871 = vunpack.c.l.s8.bf16 %v815
        %v1872 = vunpack.c.l.s8.bf16 %v816
        %v1873 = vunpack.c.l.s8.bf16 %v817
        %v1874 = vunpack.c.l.s8.bf16 %v818
        %v1875 = vunpack.c.l.s8.bf16 %v819
        %v1876 = vunpack.c.l.s8.bf16 %v820
        %v1877 = vunpack.c.l.s8.bf16 %v821
        %v1878 = vunpack.c.l.s8.bf16 %v822
        %v1879 = vunpack.c.l.s8.bf16 %v823
        %v1880 = vunpack.c.l.s8.bf16 %v824
        %v1881 = vunpack.c.l.s8.bf16 %v825
        %v1882 = vunpack.c.l.s8.bf16 %v826
        %v1883 = vunpack.c.l.s8.bf16 %v827
        %v1884 = vunpack.c.l.s8.bf16 %v828
        %v1885 = vunpack.c.l.s8.bf16 %v829
        %v1886 = vunpack.c.l.s8.bf16 %v830
        %v1887 = vunpack.c.l.s8.bf16 %v831
        %v1888 = vunpack.c.l.s8.bf16 %v832
        %v1889 = vunpack.c.h.s8.bf16 %v809
        %v1890 = vunpack.c.h.s8.bf16 %v810
        %v1891 = vunpack.c.h.s8.bf16 %v811
        %v1892 = vunpack.c.h.s8.bf16 %v812
        %v1893 = vunpack.c.h.s8.bf16 %v813
        %v1894 = vunpack.c.h.s8.bf16 %v814
        %v1895 = vunpack.c.h.s8.bf16 %v815
        %v1896 = vunpack.c.h.s8.bf16 %v816
        %v1897 = vunpack.c.h.s8.bf16 %v817
        %v1898 = vunpack.c.h.s8.bf16 %v818
        %v1899 = vunpack.c.h.s8.bf16 %v819
        %v1900 = vunpack.c.h.s8.bf16 %v820
        %v1901 = vunpack.c.h.s8.bf16 %v821
        %v1902 = vunpack.c.h.s8.bf16 %v822
        %v1903 = vunpack.c.h.s8.bf16 %v823
        %v1904 = vunpack.c.h.s8.bf16 %v824
        %v1905 = vunpack.c.h.s8.bf16 %v825
        %v1906 = vunpack.c.h.s8.bf16 %v826
        %v1907 = vunpack.c.h.s8.bf16 %v827
        %v1908 = vunpack.c.h.s8.bf16 %v828
        %v1909 = vunpack.c.h.s8.bf16 %v829
        %v1910 = vunpack.c.h.s8.bf16 %v830
        %v1911 = vunpack.c.h.s8.bf16 %v831
        %v1912 = vunpack.c.h.s8.bf16 %v832
        %v1913 = vunpack.c.l.s8.bf16 %v833
        %v1914 = vunpack.c.l.s8.bf16 %v834
        %v1915 = vunpack.c.l.s8.bf16 %v835
        %v1916 = vunpack.c.l.s8.bf16 %v836
        %v1917 = vunpack.c.l.s8.bf16 %v837
        %v1918 = vunpack.c.l.s8.bf16 %v838
        %v1919 = vunpack.c.l.s8.bf16 %v839
        %v1920 = vunpack.c.l.s8.bf16 %v840
        %v1921 = vunpack.c.l.s8.bf16 %v841
        %v1922 = vunpack.c.l.s8.bf16 %v842
        %v1923 = vunpack.c.l.s8.bf16 %v843
        %v1924 = vunpack.c.l.s8.bf16 %v844
        %v1925 = vunpack.c.l.s8.bf16 %v845
        %v1926 = vunpack.c.l.s8.bf16 %v846
        %v1927 = vunpack.c.l.s8.bf16 %v847
        %v1928 = vunpack.c.l.s8.bf16 %v848
        %v1929 = vunpack.c.l.s8.bf16 %v849
        %v1930 = vunpack.c.l.s8.bf16 %v850
        %v1931 = vunpack.c.l.s8.bf16 %v851
        %v1932 = vunpack.c.l.s8.bf16 %v852
        %v1933 = vunpack.c.l.s8.bf16 %v853
        %v1934 = vunpack.c.l.s8.bf16 %v854
        %v1935 = vunpack.c.l.s8.bf16 %v855
        %v1936 = vunpack.c.l.s8.bf16 %v856
        %v1937 = vunpack.c.h.s8.bf16 %v833
        %v1938 = vunpack.c.h.s8.bf16 %v834
        %v1939 = vunpack.c.h.s8.bf16 %v835
        %v1940 = vunpack.c.h.s8.bf16 %v836
        %v1941 = vunpack.c.h.s8.bf16 %v837
        %v1942 = vunpack.c.h.s8.bf16 %v838
        %v1943 = vunpack.c.h.s8.bf16 %v839
        %v1944 = vunpack.c.h.s8.bf16 %v840
        %v1945 = vunpack.c.h.s8.bf16 %v841
        %v1946 = vunpack.c.h.s8.bf16 %v842
        %v1947 = vunpack.c.h.s8.bf16 %v843
        %v1948 = vunpack.c.h.s8.bf16 %v844
        %v1949 = vunpack.c.h.s8.bf16 %v845
        %v1950 = vunpack.c.h.s8.bf16 %v846
        %v1951 = vunpack.c.h.s8.bf16 %v847
        %v1952 = vunpack.c.h.s8.bf16 %v848
        %v1953 = vunpack.c.h.s8.bf16 %v849
        %v1954 = vunpack.c.h.s8.bf16 %v850
        %v1955 = vunpack.c.h.s8.bf16 %v851
        %v1956 = vunpack.c.h.s8.bf16 %v852
        %v1957 = vunpack.c.h.s8.bf16 %v853
        %v1958 = vunpack.c.h.s8.bf16 %v854
        %v1959 = vunpack.c.h.s8.bf16 %v855
        %v1960 = vunpack.c.h.s8.bf16 %v856
        %v1961 = vunpack.c.l.s8.bf16 %v857
        %v1962 = vunpack.c.l.s8.bf16 %v858
        %v1963 = vunpack.c.l.s8.bf16 %v859
        %v1964 = vunpack.c.l.s8.bf16 %v860
        %v1965 = vunpack.c.l.s8.bf16 %v861
        %v1966 = vunpack.c.l.s8.bf16 %v862
        %v1967 = vunpack.c.l.s8.bf16 %v863
        %v1968 = vunpack.c.l.s8.bf16 %v864
        %v1969 = vunpack.c.l.s8.bf16 %v865
        %v1970 = vunpack.c.l.s8.bf16 %v866
        %v1971 = vunpack.c.l.s8.bf16 %v867
        %v1972 = vunpack.c.l.s8.bf16 %v868
        %v1973 = vunpack.c.l.s8.bf16 %v869
        %v1974 = vunpack.c.l.s8.bf16 %v870
        %v1975 = vunpack.c.l.s8.bf16 %v871
        %v1976 = vunpack.c.l.s8.bf16 %v872
        %v1977 = vunpack.c.l.s8.bf16 %v873
        %v1978 = vunpack.c.l.s8.bf16 %v874
        %v1979 = vunpack.c.l.s8.bf16 %v875
        %v1980 = vunpack.c.l.s8.bf16 %v876
        %v1981 = vunpack.c.l.s8.bf16 %v877
        %v1982 = vunpack.c.l.s8.bf16 %v878
        %v1983 = vunpack.c.l.s8.bf16 %v879
        %v1984 = vunpack.c.l.s8.bf16 %v880
        %v1985 = vunpack.c.h.s8.bf16 %v857
        %v1986 = vunpack.c.h.s8.bf16 %v858
        %v1987 = vunpack.c.h.s8.bf16 %v859
        %v1988 = vunpack.c.h.s8.bf16 %v860
        %v1989 = vunpack.c.h.s8.bf16 %v861
        %v1990 = vunpack.c.h.s8.bf16 %v862
        %v1991 = vunpack.c.h.s8.bf16 %v863
        %v1992 = vunpack.c.h.s8.bf16 %v864
        %v1993 = vunpack.c.h.s8.bf16 %v865
        %v1994 = vunpack.c.h.s8.bf16 %v866
        %v1995 = vunpack.c.h.s8.bf16 %v867
        %v1996 = vunpack.c.h.s8.bf16 %v868
        %v1997 = vunpack.c.h.s8.bf16 %v869
        %v1998 = vunpack.c.h.s8.bf16 %v870
        %v1999 = vunpack.c.h.s8.bf16 %v871
        %v2000 = vunpack.c.h.s8.bf16 %v872
        %v2001 = vunpack.c.h.s8.bf16 %v873
        %v2002 = vunpack.c.h.s8.bf16 %v874
        %v2003 = vunpack.c.h.s8.bf16 %v875
        %v2004 = vunpack.c.h.s8.bf16 %v876
        %v2005 = vunpack.c.h.s8.bf16 %v877
        %v2006 = vunpack.c.h.s8.bf16 %v878
        %v2007 = vunpack.c.h.s8.bf16 %v879
        %v2008 = vunpack.c.h.s8.bf16 %v880
        %v2009 = vunpack.c.l.s8.bf16 %v881
        %v2010 = vunpack.c.l.s8.bf16 %v882
        %v2011 = vunpack.c.l.s8.bf16 %v883
        %v2012 = vunpack.c.l.s8.bf16 %v884
        %v2013 = vunpack.c.l.s8.bf16 %v885
        %v2014 = vunpack.c.l.s8.bf16 %v886
        %v2015 = vunpack.c.l.s8.bf16 %v887
        %v2016 = vunpack.c.l.s8.bf16 %v888
        %v2017 = vunpack.c.l.s8.bf16 %v889
        %v2018 = vunpack.c.l.s8.bf16 %v890
        %v2019 = vunpack.c.l.s8.bf16 %v891
        %v2020 = vunpack.c.l.s8.bf16 %v892
        %v2021 = vunpack.c.l.s8.bf16 %v893
        %v2022 = vunpack.c.l.s8.bf16 %v894
        %v2023 = vunpack.c.l.s8.bf16 %v895
        %v2024 = vunpack.c.l.s8.bf16 %v896
        %v2025 = vunpack.c.l.s8.bf16 %v897
        %v2026 = vunpack.c.l.s8.bf16 %v898
        %v2027 = vunpack.c.l.s8.bf16 %v899
        %v2028 = vunpack.c.l.s8.bf16 %v900
        %v2029 = vunpack.c.l.s8.bf16 %v901
        %v2030 = vunpack.c.l.s8.bf16 %v902
        %v2031 = vunpack.c.l.s8.bf16 %v903
        %v2032 = vunpack.c.l.s8.bf16 %v904
        %v2033 = vunpack.c.h.s8.bf16 %v881
        %v2034 = vunpack.c.h.s8.bf16 %v882
        %v2035 = vunpack.c.h.s8.bf16 %v883
        %v2036 = vunpack.c.h.s8.bf16 %v884
        %v2037 = vunpack.c.h.s8.bf16 %v885
        %v2038 = vunpack.c.h.s8.bf16 %v886
        %v2039 = vunpack.c.h.s8.bf16 %v887
        %v2040 = vunpack.c.h.s8.bf16 %v888
        %v2041 = vunpack.c.h.s8.bf16 %v889
        %v2042 = vunpack.c.h.s8.bf16 %v890
        %v2043 = vunpack.c.h.s8.bf16 %v891
        %v2044 = vunpack.c.h.s8.bf16 %v892
        %v2045 = vunpack.c.h.s8.bf16 %v893
        %v2046 = vunpack.c.h.s8.bf16 %v894
        %v2047 = vunpack.c.h.s8.bf16 %v895
        %v2048 = vunpack.c.h.s8.bf16 %v896
        %v2049 = vunpack.c.h.s8.bf16 %v897
        %v2050 = vunpack.c.h.s8.bf16 %v898
        %v2051 = vunpack.c.h.s8.bf16 %v899
        %v2052 = vunpack.c.h.s8.bf16 %v900
        %v2053 = vunpack.c.h.s8.bf16 %v901
        %v2054 = vunpack.c.h.s8.bf16 %v902
        %v2055 = vunpack.c.h.s8.bf16 %v903
        %v2056 = vunpack.c.h.s8.bf16 %v904
        %v2057 = vunpack.c.l.s8.bf16 %v905
        %v2058 = vunpack.c.l.s8.bf16 %v906
        %v2059 = vunpack.c.l.s8.bf16 %v907
        %v2060 = vunpack.c.l.s8.bf16 %v908
        %v2061 = vunpack.c.l.s8.bf16 %v909
        %v2062 = vunpack.c.l.s8.bf16 %v910
        %v2063 = vunpack.c.l.s8.bf16 %v911
        %v2064 = vunpack.c.l.s8.bf16 %v912
        %v2065 = vunpack.c.l.s8.bf16 %v913
        %v2066 = vunpack.c.l.s8.bf16 %v914
        %v2067 = vunpack.c.l.s8.bf16 %v915
        %v2068 = vunpack.c.l.s8.bf16 %v916
        %v2069 = vunpack.c.l.s8.bf16 %v917
        %v2070 = vunpack.c.l.s8.bf16 %v918
        %v2071 = vunpack.c.l.s8.bf16 %v919
        %v2072 = vunpack.c.l.s8.bf16 %v920
        %v2073 = vunpack.c.l.s8.bf16 %v921
        %v2074 = vunpack.c.l.s8.bf16 %v922
        %v2075 = vunpack.c.l.s8.bf16 %v923
        %v2076 = vunpack.c.l.s8.bf16 %v924
        %v2077 = vunpack.c.l.s8.bf16 %v925
        %v2078 = vunpack.c.l.s8.bf16 %v926
        %v2079 = vunpack.c.l.s8.bf16 %v927
        %v2080 = vunpack.c.l.s8.bf16 %v928
        %v2081 = vunpack.c.h.s8.bf16 %v905
        %v2082 = vunpack.c.h.s8.bf16 %v906
        %v2083 = vunpack.c.h.s8.bf16 %v907
        %v2084 = vunpack.c.h.s8.bf16 %v908
        %v2085 = vunpack.c.h.s8.bf16 %v909
        %v2086 = vunpack.c.h.s8.bf16 %v910
        %v2087 = vunpack.c.h.s8.bf16 %v911
        %v2088 = vunpack.c.h.s8.bf16 %v912
        %v2089 = vunpack.c.h.s8.bf16 %v913
        %v2090 = vunpack.c.h.s8.bf16 %v914
        %v2091 = vunpack.c.h.s8.bf16 %v915
        %v2092 = vunpack.c.h.s8.bf16 %v916
        %v2093 = vunpack.c.h.s8.bf16 %v917
        %v2094 = vunpack.c.h.s8.bf16 %v918
        %v2095 = vunpack.c.h.s8.bf16 %v919
        %v2096 = vunpack.c.h.s8.bf16 %v920
        %v2097 = vunpack.c.h.s8.bf16 %v921
        %v2098 = vunpack.c.h.s8.bf16 %v922
        %v2099 = vunpack.c.h.s8.bf16 %v923
        %v2100 = vunpack.c.h.s8.bf16 %v924
        %v2101 = vunpack.c.h.s8.bf16 %v925
        %v2102 = vunpack.c.h.s8.bf16 %v926
        %v2103 = vunpack.c.h.s8.bf16 %v927
        %v2104 = vunpack.c.h.s8.bf16 %v928
        %v2105 = vunpack.c.l.s8.bf16 %v929
        %v2106 = vunpack.c.l.s8.bf16 %v930
        %v2107 = vunpack.c.l.s8.bf16 %v931
        %v2108 = vunpack.c.l.s8.bf16 %v932
        %v2109 = vunpack.c.l.s8.bf16 %v933
        %v2110 = vunpack.c.l.s8.bf16 %v934
        %v2111 = vunpack.c.l.s8.bf16 %v935
        %v2112 = vunpack.c.l.s8.bf16 %v936
        %v2113 = vunpack.c.l.s8.bf16 %v937
        %v2114 = vunpack.c.l.s8.bf16 %v938
        %v2115 = vunpack.c.l.s8.bf16 %v939
        %v2116 = vunpack.c.l.s8.bf16 %v940
        %v2117 = vunpack.c.l.s8.bf16 %v941
        %v2118 = vunpack.c.l.s8.bf16 %v942
        %v2119 = vunpack.c.l.s8.bf16 %v943
        %v2120 = vunpack.c.l.s8.bf16 %v944
        %v2121 = vunpack.c.l.s8.bf16 %v945
        %v2122 = vunpack.c.l.s8.bf16 %v946
        %v2123 = vunpack.c.l.s8.bf16 %v947
        %v2124 = vunpack.c.l.s8.bf16 %v948
        %v2125 = vunpack.c.l.s8.bf16 %v949
        %v2126 = vunpack.c.l.s8.bf16 %v950
        %v2127 = vunpack.c.l.s8.bf16 %v951
        %v2128 = vunpack.c.l.s8.bf16 %v952
        %v2129 = vunpack.c.h.s8.bf16 %v929
        %v2130 = vunpack.c.h.s8.bf16 %v930
        %v2131 = vunpack.c.h.s8.bf16 %v931
        %v2132 = vunpack.c.h.s8.bf16 %v932
        %v2133 = vunpack.c.h.s8.bf16 %v933
        %v2134 = vunpack.c.h.s8.bf16 %v934
        %v2135 = vunpack.c.h.s8.bf16 %v935
        %v2136 = vunpack.c.h.s8.bf16 %v936
        %v2137 = vunpack.c.h.s8.bf16 %v937
        %v2138 = vunpack.c.h.s8.bf16 %v938
        %v2139 = vunpack.c.h.s8.bf16 %v939
        %v2140 = vunpack.c.h.s8.bf16 %v940
        %v2141 = vunpack.c.h.s8.bf16 %v941
        %v2142 = vunpack.c.h.s8.bf16 %v942
        %v2143 = vunpack.c.h.s8.bf16 %v943
        %v2144 = vunpack.c.h.s8.bf16 %v944
        %v2145 = vunpack.c.h.s8.bf16 %v945
        %v2146 = vunpack.c.h.s8.bf16 %v946
        %v2147 = vunpack.c.h.s8.bf16 %v947
        %v2148 = vunpack.c.h.s8.bf16 %v948
        %v2149 = vunpack.c.h.s8.bf16 %v949
        %v2150 = vunpack.c.h.s8.bf16 %v950
        %v2151 = vunpack.c.h.s8.bf16 %v951
        %v2152 = vunpack.c.h.s8.bf16 %v952
        %v2153 = vunpack.c.l.s8.bf16 %v953
        %v2154 = vunpack.c.l.s8.bf16 %v954
        %v2155 = vunpack.c.l.s8.bf16 %v955
        %v2156 = vunpack.c.l.s8.bf16 %v956
        %v2157 = vunpack.c.l.s8.bf16 %v957
        %v2158 = vunpack.c.l.s8.bf16 %v958
        %v2159 = vunpack.c.l.s8.bf16 %v959
        %v2160 = vunpack.c.l.s8.bf16 %v960
        %v2161 = vunpack.c.l.s8.bf16 %v961
        %v2162 = vunpack.c.l.s8.bf16 %v962
        %v2163 = vunpack.c.l.s8.bf16 %v963
        %v2164 = vunpack.c.l.s8.bf16 %v964
        %v2165 = vunpack.c.l.s8.bf16 %v965
        %v2166 = vunpack.c.l.s8.bf16 %v966
        %v2167 = vunpack.c.l.s8.bf16 %v967
        %v2168 = vunpack.c.l.s8.bf16 %v968
        %v2169 = vunpack.c.l.s8.bf16 %v969
        %v2170 = vunpack.c.l.s8.bf16 %v970
        %v2171 = vunpack.c.l.s8.bf16 %v971
        %v2172 = vunpack.c.l.s8.bf16 %v972
        %v2173 = vunpack.c.l.s8.bf16 %v973
        %v2174 = vunpack.c.l.s8.bf16 %v974
        %v2175 = vunpack.c.l.s8.bf16 %v975
        %v2176 = vunpack.c.l.s8.bf16 %v976
        %v2177 = vunpack.c.h.s8.bf16 %v953
        %v2178 = vunpack.c.h.s8.bf16 %v954
        %v2179 = vunpack.c.h.s8.bf16 %v955
        %v2180 = vunpack.c.h.s8.bf16 %v956
        %v2181 = vunpack.c.h.s8.bf16 %v957
        %v2182 = vunpack.c.h.s8.bf16 %v958
        %v2183 = vunpack.c.h.s8.bf16 %v959
        %v2184 = vunpack.c.h.s8.bf16 %v960
        %v2185 = vunpack.c.h.s8.bf16 %v961
        %v2186 = vunpack.c.h.s8.bf16 %v962
        %v2187 = vunpack.c.h.s8.bf16 %v963
        %v2188 = vunpack.c.h.s8.bf16 %v964
        %v2189 = vunpack.c.h.s8.bf16 %v965
        %v2190 = vunpack.c.h.s8.bf16 %v966
        %v2191 = vunpack.c.h.s8.bf16 %v967
        %v2192 = vunpack.c.h.s8.bf16 %v968
        %v2193 = vunpack.c.h.s8.bf16 %v969
        %v2194 = vunpack.c.h.s8.bf16 %v970
        %v2195 = vunpack.c.h.s8.bf16 %v971
        %v2196 = vunpack.c.h.s8.bf16 %v972
        %v2197 = vunpack.c.h.s8.bf16 %v973
        %v2198 = vunpack.c.h.s8.bf16 %v974
        %v2199 = vunpack.c.h.s8.bf16 %v975
        %v2200 = vunpack.c.h.s8.bf16 %v976
        %v2201 = vunpack.c.l.s8.bf16 %v977
        %v2202 = vunpack.c.l.s8.bf16 %v978
        %v2203 = vunpack.c.l.s8.bf16 %v979
        %v2204 = vunpack.c.l.s8.bf16 %v980
        %v2205 = vunpack.c.l.s8.bf16 %v981
        %v2206 = vunpack.c.l.s8.bf16 %v982
        %v2207 = vunpack.c.l.s8.bf16 %v983
        %v2208 = vunpack.c.l.s8.bf16 %v984
        %v2209 = vunpack.c.l.s8.bf16 %v985
        %v2210 = vunpack.c.l.s8.bf16 %v986
        %v2211 = vunpack.c.l.s8.bf16 %v987
        %v2212 = vunpack.c.l.s8.bf16 %v988
        %v2213 = vunpack.c.l.s8.bf16 %v989
        %v2214 = vunpack.c.l.s8.bf16 %v990
        %v2215 = vunpack.c.l.s8.bf16 %v991
        %v2216 = vunpack.c.l.s8.bf16 %v992
        %v2217 = vunpack.c.l.s8.bf16 %v993
        %v2218 = vunpack.c.l.s8.bf16 %v994
        %v2219 = vunpack.c.l.s8.bf16 %v995
        %v2220 = vunpack.c.l.s8.bf16 %v996
        %v2221 = vunpack.c.l.s8.bf16 %v997
        %v2222 = vunpack.c.l.s8.bf16 %v998
        %v2223 = vunpack.c.l.s8.bf16 %v999
        %v2224 = vunpack.c.l.s8.bf16 %v1000
        %v2225 = vunpack.c.h.s8.bf16 %v977
        %v2226 = vunpack.c.h.s8.bf16 %v978
        %v2227 = vunpack.c.h.s8.bf16 %v979
        %v2228 = vunpack.c.h.s8.bf16 %v980
        %v2229 = vunpack.c.h.s8.bf16 %v981
        %v2230 = vunpack.c.h.s8.bf16 %v982
        %v2231 = vunpack.c.h.s8.bf16 %v983
        %v2232 = vunpack.c.h.s8.bf16 %v984
        %v2233 = vunpack.c.h.s8.bf16 %v985
        %v2234 = vunpack.c.h.s8.bf16 %v986
        %v2235 = vunpack.c.h.s8.bf16 %v987
        %v2236 = vunpack.c.h.s8.bf16 %v988
        %v2237 = vunpack.c.h.s8.bf16 %v989
        %v2238 = vunpack.c.h.s8.bf16 %v990
        %v2239 = vunpack.c.h.s8.bf16 %v991
        %v2240 = vunpack.c.h.s8.bf16 %v992
        %v2241 = vunpack.c.h.s8.bf16 %v993
        %v2242 = vunpack.c.h.s8.bf16 %v994
        %v2243 = vunpack.c.h.s8.bf16 %v995
        %v2244 = vunpack.c.h.s8.bf16 %v996
        %v2245 = vunpack.c.h.s8.bf16 %v997
        %v2246 = vunpack.c.h.s8.bf16 %v998
        %v2247 = vunpack.c.h.s8.bf16 %v999
        %v2248 = vunpack.c.h.s8.bf16 %v1000
        %v2249 = vunpack.c.l.s8.bf16 %v1001
        %v2250 = vunpack.c.l.s8.bf16 %v1002
        %v2251 = vunpack.c.l.s8.bf16 %v1003
        %v2252 = vunpack.c.l.s8.bf16 %v1004
        %v2253 = vunpack.c.l.s8.bf16 %v1005
        %v2254 = vunpack.c.l.s8.bf16 %v1006
        %v2255 = vunpack.c.l.s8.bf16 %v1007
        %v2256 = vunpack.c.l.s8.bf16 %v1008
        %v2257 = vunpack.c.l.s8.bf16 %v1009
        %v2258 = vunpack.c.l.s8.bf16 %v1010
        %v2259 = vunpack.c.l.s8.bf16 %v1011
        %v2260 = vunpack.c.l.s8.bf16 %v1012
        %v2261 = vunpack.c.l.s8.bf16 %v1013
        %v2262 = vunpack.c.l.s8.bf16 %v1014
        %v2263 = vunpack.c.l.s8.bf16 %v1015
        %v2264 = vunpack.c.l.s8.bf16 %v1016
        %v2265 = vunpack.c.l.s8.bf16 %v1017
        %v2266 = vunpack.c.l.s8.bf16 %v1018
        %v2267 = vunpack.c.l.s8.bf16 %v1019
        %v2268 = vunpack.c.l.s8.bf16 %v1020
        %v2269 = vunpack.c.l.s8.bf16 %v1021
        %v2270 = vunpack.c.l.s8.bf16 %v1022
        %v2271 = vunpack.c.l.s8.bf16 %v1023
        %v2272 = vunpack.c.l.s8.bf16 %v1024
        %v2273 = vunpack.c.h.s8.bf16 %v1001
        %v2274 = vunpack.c.h.s8.bf16 %v1002
        %v2275 = vunpack.c.h.s8.bf16 %v1003
        %v2276 = vunpack.c.h.s8.bf16 %v1004
        %v2277 = vunpack.c.h.s8.bf16 %v1005
        %v2278 = vunpack.c.h.s8.bf16 %v1006
        %v2279 = vunpack.c.h.s8.bf16 %v1007
        %v2280 = vunpack.c.h.s8.bf16 %v1008
        %v2281 = vunpack.c.h.s8.bf16 %v1009
        %v2282 = vunpack.c.h.s8.bf16 %v1010
        %v2283 = vunpack.c.h.s8.bf16 %v1011
        %v2284 = vunpack.c.h.s8.bf16 %v1012
        %v2285 = vunpack.c.h.s8.bf16 %v1013
        %v2286 = vunpack.c.h.s8.bf16 %v1014
        %v2287 = vunpack.c.h.s8.bf16 %v1015
        %v2288 = vunpack.c.h.s8.bf16 %v1016
        %v2289 = vunpack.c.h.s8.bf16 %v1017
        %v2290 = vunpack.c.h.s8.bf16 %v1018
        %v2291 = vunpack.c.h.s8.bf16 %v1019
        %v2292 = vunpack.c.h.s8.bf16 %v1020
        %v2293 = vunpack.c.h.s8.bf16 %v1021
        %v2294 = vunpack.c.h.s8.bf16 %v1022
        %v2295 = vunpack.c.h.s8.bf16 %v1023
        %v2296 = vunpack.c.h.s8.bf16 %v1024
        %v2297 = vunpack.c.l.s8.bf16 %v1025
        %v2298 = vunpack.c.l.s8.bf16 %v1026
        %v2299 = vunpack.c.l.s8.bf16 %v1027
        %v2300 = vunpack.c.l.s8.bf16 %v1028
        %v2301 = vunpack.c.l.s8.bf16 %v1029
        %v2302 = vunpack.c.l.s8.bf16 %v1030
        %v2303 = vunpack.c.l.s8.bf16 %v1031
        %v2304 = vunpack.c.l.s8.bf16 %v1032
        %v2305 = vunpack.c.l.s8.bf16 %v1033
        %v2306 = vunpack.c.l.s8.bf16 %v1034
        %v2307 = vunpack.c.l.s8.bf16 %v1035
        %v2308 = vunpack.c.l.s8.bf16 %v1036
        %v2309 = vunpack.c.l.s8.bf16 %v1037
        %v2310 = vunpack.c.l.s8.bf16 %v1038
        %v2311 = vunpack.c.l.s8.bf16 %v1039
        %v2312 = vunpack.c.l.s8.bf16 %v1040
        %v2313 = vunpack.c.l.s8.bf16 %v1041
        %v2314 = vunpack.c.l.s8.bf16 %v1042
        %v2315 = vunpack.c.l.s8.bf16 %v1043
        %v2316 = vunpack.c.l.s8.bf16 %v1044
        %v2317 = vunpack.c.l.s8.bf16 %v1045
        %v2318 = vunpack.c.l.s8.bf16 %v1046
        %v2319 = vunpack.c.l.s8.bf16 %v1047
        %v2320 = vunpack.c.l.s8.bf16 %v1048
        %v2321 = vunpack.c.h.s8.bf16 %v1025
        %v2322 = vunpack.c.h.s8.bf16 %v1026
        %v2323 = vunpack.c.h.s8.bf16 %v1027
        %v2324 = vunpack.c.h.s8.bf16 %v1028
        %v2325 = vunpack.c.h.s8.bf16 %v1029
        %v2326 = vunpack.c.h.s8.bf16 %v1030
        %v2327 = vunpack.c.h.s8.bf16 %v1031
        %v2328 = vunpack.c.h.s8.bf16 %v1032
        %v2329 = vunpack.c.h.s8.bf16 %v1033
        %v2330 = vunpack.c.h.s8.bf16 %v1034
        %v2331 = vunpack.c.h.s8.bf16 %v1035
        %v2332 = vunpack.c.h.s8.bf16 %v1036
        %v2333 = vunpack.c.h.s8.bf16 %v1037
        %v2334 = vunpack.c.h.s8.bf16 %v1038
        %v2335 = vunpack.c.h.s8.bf16 %v1039
        %v2336 = vunpack.c.h.s8.bf16 %v1040
        %v2337 = vunpack.c.h.s8.bf16 %v1041
        %v2338 = vunpack.c.h.s8.bf16 %v1042
        %v2339 = vunpack.c.h.s8.bf16 %v1043
        %v2340 = vunpack.c.h.s8.bf16 %v1044
        %v2341 = vunpack.c.h.s8.bf16 %v1045
        %v2342 = vunpack.c.h.s8.bf16 %v1046
        %v2343 = vunpack.c.h.s8.bf16 %v1047
        %v2344 = vunpack.c.h.s8.bf16 %v1048
        %v2345 = vunpack.c.l.s8.bf16 %v1049
        %v2346 = vunpack.c.l.s8.bf16 %v1050
        %v2347 = vunpack.c.l.s8.bf16 %v1051
        %v2348 = vunpack.c.l.s8.bf16 %v1052
        %v2349 = vunpack.c.l.s8.bf16 %v1053
        %v2350 = vunpack.c.l.s8.bf16 %v1054
        %v2351 = vunpack.c.l.s8.bf16 %v1055
        %v2352 = vunpack.c.l.s8.bf16 %v1056
        %v2353 = vunpack.c.l.s8.bf16 %v1057
        %v2354 = vunpack.c.l.s8.bf16 %v1058
        %v2355 = vunpack.c.l.s8.bf16 %v1059
        %v2356 = vunpack.c.l.s8.bf16 %v1060
        %v2357 = vunpack.c.l.s8.bf16 %v1061
        %v2358 = vunpack.c.l.s8.bf16 %v1062
        %v2359 = vunpack.c.l.s8.bf16 %v1063
        %v2360 = vunpack.c.l.s8.bf16 %v1064
        %v2361 = vunpack.c.l.s8.bf16 %v1065
        %v2362 = vunpack.c.l.s8.bf16 %v1066
        %v2363 = vunpack.c.l.s8.bf16 %v1067
        %v2364 = vunpack.c.l.s8.bf16 %v1068
        %v2365 = vunpack.c.l.s8.bf16 %v1069
        %v2366 = vunpack.c.l.s8.bf16 %v1070
        %v2367 = vunpack.c.l.s8.bf16 %v1071
        %v2368 = vunpack.c.l.s8.bf16 %v1072
        %v2369 = vunpack.c.h.s8.bf16 %v1049
        %v2370 = vunpack.c.h.s8.bf16 %v1050
        %v2371 = vunpack.c.h.s8.bf16 %v1051
        %v2372 = vunpack.c.h.s8.bf16 %v1052
        %v2373 = vunpack.c.h.s8.bf16 %v1053
        %v2374 = vunpack.c.h.s8.bf16 %v1054
        %v2375 = vunpack.c.h.s8.bf16 %v1055
        %v2376 = vunpack.c.h.s8.bf16 %v1056
        %v2377 = vunpack.c.h.s8.bf16 %v1057
        %v2378 = vunpack.c.h.s8.bf16 %v1058
        %v2379 = vunpack.c.h.s8.bf16 %v1059
        %v2380 = vunpack.c.h.s8.bf16 %v1060
        %v2381 = vunpack.c.h.s8.bf16 %v1061
        %v2382 = vunpack.c.h.s8.bf16 %v1062
        %v2383 = vunpack.c.h.s8.bf16 %v1063
        %v2384 = vunpack.c.h.s8.bf16 %v1064
        %v2385 = vunpack.c.h.s8.bf16 %v1065
        %v2386 = vunpack.c.h.s8.bf16 %v1066
        %v2387 = vunpack.c.h.s8.bf16 %v1067
        %v2388 = vunpack.c.h.s8.bf16 %v1068
        %v2389 = vunpack.c.h.s8.bf16 %v1069
        %v2390 = vunpack.c.h.s8.bf16 %v1070
        %v2391 = vunpack.c.h.s8.bf16 %v1071
        %v2392 = vunpack.c.h.s8.bf16 %v1072
        %v2393 = vunpack.c.l.s8.bf16 %v1073
        %v2394 = vunpack.c.l.s8.bf16 %v1074
        %v2395 = vunpack.c.l.s8.bf16 %v1075
        %v2396 = vunpack.c.l.s8.bf16 %v1076
        %v2397 = vunpack.c.l.s8.bf16 %v1077
        %v2398 = vunpack.c.l.s8.bf16 %v1078
        %v2399 = vunpack.c.l.s8.bf16 %v1079
        %v2400 = vunpack.c.l.s8.bf16 %v1080
        %v2401 = vunpack.c.l.s8.bf16 %v1081
        %v2402 = vunpack.c.l.s8.bf16 %v1082
        %v2403 = vunpack.c.l.s8.bf16 %v1083
        %v2404 = vunpack.c.l.s8.bf16 %v1084
        %v2405 = vunpack.c.l.s8.bf16 %v1085
        %v2406 = vunpack.c.l.s8.bf16 %v1086
        %v2407 = vunpack.c.l.s8.bf16 %v1087
        %v2408 = vunpack.c.l.s8.bf16 %v1088
        %v2409 = vunpack.c.l.s8.bf16 %v1089
        %v2410 = vunpack.c.l.s8.bf16 %v1090
        %v2411 = vunpack.c.l.s8.bf16 %v1091
        %v2412 = vunpack.c.l.s8.bf16 %v1092
        %v2413 = vunpack.c.l.s8.bf16 %v1093
        %v2414 = vunpack.c.l.s8.bf16 %v1094
        %v2415 = vunpack.c.l.s8.bf16 %v1095
        %v2416 = vunpack.c.l.s8.bf16 %v1096
        %v2417 = vunpack.c.h.s8.bf16 %v1073
        %v2418 = vunpack.c.h.s8.bf16 %v1074
        %v2419 = vunpack.c.h.s8.bf16 %v1075
        %v2420 = vunpack.c.h.s8.bf16 %v1076
        %v2421 = vunpack.c.h.s8.bf16 %v1077
        %v2422 = vunpack.c.h.s8.bf16 %v1078
        %v2423 = vunpack.c.h.s8.bf16 %v1079
        %v2424 = vunpack.c.h.s8.bf16 %v1080
        %v2425 = vunpack.c.h.s8.bf16 %v1081
        %v2426 = vunpack.c.h.s8.bf16 %v1082
        %v2427 = vunpack.c.h.s8.bf16 %v1083
        %v2428 = vunpack.c.h.s8.bf16 %v1084
        %v2429 = vunpack.c.h.s8.bf16 %v1085
        %v2430 = vunpack.c.h.s8.bf16 %v1086
        %v2431 = vunpack.c.h.s8.bf16 %v1087
        %v2432 = vunpack.c.h.s8.bf16 %v1088
        %v2433 = vunpack.c.h.s8.bf16 %v1089
        %v2434 = vunpack.c.h.s8.bf16 %v1090
        %v2435 = vunpack.c.h.s8.bf16 %v1091
        %v2436 = vunpack.c.h.s8.bf16 %v1092
        %v2437 = vunpack.c.h.s8.bf16 %v1093
        %v2438 = vunpack.c.h.s8.bf16 %v1094
        %v2439 = vunpack.c.h.s8.bf16 %v1095
        %v2440 = vunpack.c.h.s8.bf16 %v1096
        %v2441 = vunpack.c.l.s8.bf16 %v1097
        %v2442 = vunpack.c.l.s8.bf16 %v1098
        %v2443 = vunpack.c.l.s8.bf16 %v1099
        %v2444 = vunpack.c.l.s8.bf16 %v1100
        %v2445 = vunpack.c.l.s8.bf16 %v1101
        %v2446 = vunpack.c.l.s8.bf16 %v1102
        %v2447 = vunpack.c.l.s8.bf16 %v1103
        %v2448 = vunpack.c.l.s8.bf16 %v1104
        %v2449 = vunpack.c.l.s8.bf16 %v1105
        %v2450 = vunpack.c.l.s8.bf16 %v1106
        %v2451 = vunpack.c.l.s8.bf16 %v1107
        %v2452 = vunpack.c.l.s8.bf16 %v1108
        %v2453 = vunpack.c.l.s8.bf16 %v1109
        %v2454 = vunpack.c.l.s8.bf16 %v1110
        %v2455 = vunpack.c.l.s8.bf16 %v1111
        %v2456 = vunpack.c.l.s8.bf16 %v1112
        %v2457 = vunpack.c.l.s8.bf16 %v1113
        %v2458 = vunpack.c.l.s8.bf16 %v1114
        %v2459 = vunpack.c.l.s8.bf16 %v1115
        %v2460 = vunpack.c.l.s8.bf16 %v1116
        %v2461 = vunpack.c.l.s8.bf16 %v1117
        %v2462 = vunpack.c.l.s8.bf16 %v1118
        %v2463 = vunpack.c.l.s8.bf16 %v1119
        %v2464 = vunpack.c.l.s8.bf16 %v1120
        %v2465 = vunpack.c.h.s8.bf16 %v1097
        %v2466 = vunpack.c.h.s8.bf16 %v1098
        %v2467 = vunpack.c.h.s8.bf16 %v1099
        %v2468 = vunpack.c.h.s8.bf16 %v1100
        %v2469 = vunpack.c.h.s8.bf16 %v1101
        %v2470 = vunpack.c.h.s8.bf16 %v1102
        %v2471 = vunpack.c.h.s8.bf16 %v1103
        %v2472 = vunpack.c.h.s8.bf16 %v1104
        %v2473 = vunpack.c.h.s8.bf16 %v1105
        %v2474 = vunpack.c.h.s8.bf16 %v1106
        %v2475 = vunpack.c.h.s8.bf16 %v1107
        %v2476 = vunpack.c.h.s8.bf16 %v1108
        %v2477 = vunpack.c.h.s8.bf16 %v1109
        %v2478 = vunpack.c.h.s8.bf16 %v1110
        %v2479 = vunpack.c.h.s8.bf16 %v1111
        %v2480 = vunpack.c.h.s8.bf16 %v1112
        %v2481 = vunpack.c.h.s8.bf16 %v1113
        %v2482 = vunpack.c.h.s8.bf16 %v1114
        %v2483 = vunpack.c.h.s8.bf16 %v1115
        %v2484 = vunpack.c.h.s8.bf16 %v1116
        %v2485 = vunpack.c.h.s8.bf16 %v1117
        %v2486 = vunpack.c.h.s8.bf16 %v1118
        %v2487 = vunpack.c.h.s8.bf16 %v1119
        %v2488 = vunpack.c.h.s8.bf16 %v1120
        %v2489 = vunpack.c.l.s8.bf16 %v1121
        %v2490 = vunpack.c.l.s8.bf16 %v1122
        %v2491 = vunpack.c.l.s8.bf16 %v1123
        %v2492 = vunpack.c.l.s8.bf16 %v1124
        %v2493 = vunpack.c.l.s8.bf16 %v1125
        %v2494 = vunpack.c.l.s8.bf16 %v1126
        %v2495 = vunpack.c.l.s8.bf16 %v1127
        %v2496 = vunpack.c.l.s8.bf16 %v1128
        %v2497 = vunpack.c.l.s8.bf16 %v1129
        %v2498 = vunpack.c.l.s8.bf16 %v1130
        %v2499 = vunpack.c.l.s8.bf16 %v1131
        %v2500 = vunpack.c.l.s8.bf16 %v1132
        %v2501 = vunpack.c.l.s8.bf16 %v1133
        %v2502 = vunpack.c.l.s8.bf16 %v1134
        %v2503 = vunpack.c.l.s8.bf16 %v1135
        %v2504 = vunpack.c.l.s8.bf16 %v1136
        %v2505 = vunpack.c.l.s8.bf16 %v1137
        %v2506 = vunpack.c.l.s8.bf16 %v1138
        %v2507 = vunpack.c.l.s8.bf16 %v1139
        %v2508 = vunpack.c.l.s8.bf16 %v1140
        %v2509 = vunpack.c.l.s8.bf16 %v1141
        %v2510 = vunpack.c.l.s8.bf16 %v1142
        %v2511 = vunpack.c.l.s8.bf16 %v1143
        %v2512 = vunpack.c.l.s8.bf16 %v1144
        %v2513 = vunpack.c.h.s8.bf16 %v1121
        %v2514 = vunpack.c.h.s8.bf16 %v1122
        %v2515 = vunpack.c.h.s8.bf16 %v1123
        %v2516 = vunpack.c.h.s8.bf16 %v1124
        %v2517 = vunpack.c.h.s8.bf16 %v1125
        %v2518 = vunpack.c.h.s8.bf16 %v1126
        %v2519 = vunpack.c.h.s8.bf16 %v1127
        %v2520 = vunpack.c.h.s8.bf16 %v1128
        %v2521 = vunpack.c.h.s8.bf16 %v1129
        %v2522 = vunpack.c.h.s8.bf16 %v1130
        %v2523 = vunpack.c.h.s8.bf16 %v1131
        %v2524 = vunpack.c.h.s8.bf16 %v1132
        %v2525 = vunpack.c.h.s8.bf16 %v1133
        %v2526 = vunpack.c.h.s8.bf16 %v1134
        %v2527 = vunpack.c.h.s8.bf16 %v1135
        %v2528 = vunpack.c.h.s8.bf16 %v1136
        %v2529 = vunpack.c.h.s8.bf16 %v1137
        %v2530 = vunpack.c.h.s8.bf16 %v1138
        %v2531 = vunpack.c.h.s8.bf16 %v1139
        %v2532 = vunpack.c.h.s8.bf16 %v1140
        %v2533 = vunpack.c.h.s8.bf16 %v1141
        %v2534 = vunpack.c.h.s8.bf16 %v1142
        %v2535 = vunpack.c.h.s8.bf16 %v1143
        %v2536 = vunpack.c.h.s8.bf16 %v1144
        %v2537 = vunpack.c.l.s8.bf16 %v1145
        %v2538 = vunpack.c.l.s8.bf16 %v1146
        %v2539 = vunpack.c.l.s8.bf16 %v1147
        %v2540 = vunpack.c.l.s8.bf16 %v1148
        %v2541 = vunpack.c.l.s8.bf16 %v1149
        %v2542 = vunpack.c.l.s8.bf16 %v1150
        %v2543 = vunpack.c.l.s8.bf16 %v1151
        %v2544 = vunpack.c.l.s8.bf16 %v1152
        %v2545 = vunpack.c.l.s8.bf16 %v1153
        %v2546 = vunpack.c.l.s8.bf16 %v1154
        %v2547 = vunpack.c.l.s8.bf16 %v1155
        %v2548 = vunpack.c.l.s8.bf16 %v1156
        %v2549 = vunpack.c.l.s8.bf16 %v1157
        %v2550 = vunpack.c.l.s8.bf16 %v1158
        %v2551 = vunpack.c.l.s8.bf16 %v1159
        %v2552 = vunpack.c.l.s8.bf16 %v1160
        %v2553 = vunpack.c.l.s8.bf16 %v1161
        %v2554 = vunpack.c.l.s8.bf16 %v1162
        %v2555 = vunpack.c.l.s8.bf16 %v1163
        %v2556 = vunpack.c.l.s8.bf16 %v1164
        %v2557 = vunpack.c.l.s8.bf16 %v1165
        %v2558 = vunpack.c.l.s8.bf16 %v1166
        %v2559 = vunpack.c.l.s8.bf16 %v1167
        %v2560 = vunpack.c.l.s8.bf16 %v1168
        %v2561 = vunpack.c.h.s8.bf16 %v1145
        %v2562 = vunpack.c.h.s8.bf16 %v1146
        %v2563 = vunpack.c.h.s8.bf16 %v1147
        %v2564 = vunpack.c.h.s8.bf16 %v1148
        %v2565 = vunpack.c.h.s8.bf16 %v1149
        %v2566 = vunpack.c.h.s8.bf16 %v1150
        %v2567 = vunpack.c.h.s8.bf16 %v1151
        %v2568 = vunpack.c.h.s8.bf16 %v1152
        %v2569 = vunpack.c.h.s8.bf16 %v1153
        %v2570 = vunpack.c.h.s8.bf16 %v1154
        %v2571 = vunpack.c.h.s8.bf16 %v1155
        %v2572 = vunpack.c.h.s8.bf16 %v1156
        %v2573 = vunpack.c.h.s8.bf16 %v1157
        %v2574 = vunpack.c.h.s8.bf16 %v1158
        %v2575 = vunpack.c.h.s8.bf16 %v1159
        %v2576 = vunpack.c.h.s8.bf16 %v1160
        %v2577 = vunpack.c.h.s8.bf16 %v1161
        %v2578 = vunpack.c.h.s8.bf16 %v1162
        %v2579 = vunpack.c.h.s8.bf16 %v1163
        %v2580 = vunpack.c.h.s8.bf16 %v1164
        %v2581 = vunpack.c.h.s8.bf16 %v1165
        %v2582 = vunpack.c.h.s8.bf16 %v1166
        %v2583 = vunpack.c.h.s8.bf16 %v1167
        %v2584 = vunpack.c.h.s8.bf16 %v1168
        %v2585 = vunpack.c.l.s8.bf16 %v1169
        %v2586 = vunpack.c.l.s8.bf16 %v1170
        %v2587 = vunpack.c.l.s8.bf16 %v1171
        %v2588 = vunpack.c.l.s8.bf16 %v1172
        %v2589 = vunpack.c.l.s8.bf16 %v1173
        %v2590 = vunpack.c.l.s8.bf16 %v1174
        %v2591 = vunpack.c.l.s8.bf16 %v1175
        %v2592 = vunpack.c.l.s8.bf16 %v1176
        %v2593 = vunpack.c.l.s8.bf16 %v1177
        %v2594 = vunpack.c.l.s8.bf16 %v1178
        %v2595 = vunpack.c.l.s8.bf16 %v1179
        %v2596 = vunpack.c.l.s8.bf16 %v1180
        %v2597 = vunpack.c.l.s8.bf16 %v1181
        %v2598 = vunpack.c.l.s8.bf16 %v1182
        %v2599 = vunpack.c.l.s8.bf16 %v1183
        %v2600 = vunpack.c.l.s8.bf16 %v1184
        %v2601 = vunpack.c.l.s8.bf16 %v1185
        %v2602 = vunpack.c.l.s8.bf16 %v1186
        %v2603 = vunpack.c.l.s8.bf16 %v1187
        %v2604 = vunpack.c.l.s8.bf16 %v1188
        %v2605 = vunpack.c.l.s8.bf16 %v1189
        %v2606 = vunpack.c.l.s8.bf16 %v1190
        %v2607 = vunpack.c.l.s8.bf16 %v1191
        %v2608 = vunpack.c.l.s8.bf16 %v1192
        %v2609 = vunpack.c.h.s8.bf16 %v1169
        %v2610 = vunpack.c.h.s8.bf16 %v1170
        %v2611 = vunpack.c.h.s8.bf16 %v1171
        %v2612 = vunpack.c.h.s8.bf16 %v1172
        %v2613 = vunpack.c.h.s8.bf16 %v1173
        %v2614 = vunpack.c.h.s8.bf16 %v1174
        %v2615 = vunpack.c.h.s8.bf16 %v1175
        %v2616 = vunpack.c.h.s8.bf16 %v1176
        %v2617 = vunpack.c.h.s8.bf16 %v1177
        %v2618 = vunpack.c.h.s8.bf16 %v1178
        %v2619 = vunpack.c.h.s8.bf16 %v1179
        %v2620 = vunpack.c.h.s8.bf16 %v1180
        %v2621 = vunpack.c.h.s8.bf16 %v1181
        %v2622 = vunpack.c.h.s8.bf16 %v1182
        %v2623 = vunpack.c.h.s8.bf16 %v1183
        %v2624 = vunpack.c.h.s8.bf16 %v1184
        %v2625 = vunpack.c.h.s8.bf16 %v1185
        %v2626 = vunpack.c.h.s8.bf16 %v1186
        %v2627 = vunpack.c.h.s8.bf16 %v1187
        %v2628 = vunpack.c.h.s8.bf16 %v1188
        %v2629 = vunpack.c.h.s8.bf16 %v1189
        %v2630 = vunpack.c.h.s8.bf16 %v1190
        %v2631 = vunpack.c.h.s8.bf16 %v1191
        %v2632 = vunpack.c.h.s8.bf16 %v1192
        %v2633 = vunpack.c.l.s8.bf16 %v1193
        %v2634 = vunpack.c.l.s8.bf16 %v1194
        %v2635 = vunpack.c.l.s8.bf16 %v1195
        %v2636 = vunpack.c.l.s8.bf16 %v1196
        %v2637 = vunpack.c.l.s8.bf16 %v1197
        %v2638 = vunpack.c.l.s8.bf16 %v1198
        %v2639 = vunpack.c.l.s8.bf16 %v1199
        %v2640 = vunpack.c.l.s8.bf16 %v1200
        %v2641 = vunpack.c.l.s8.bf16 %v1201
        %v2642 = vunpack.c.l.s8.bf16 %v1202
        %v2643 = vunpack.c.l.s8.bf16 %v1203
        %v2644 = vunpack.c.l.s8.bf16 %v1204
        %v2645 = vunpack.c.l.s8.bf16 %v1205
        %v2646 = vunpack.c.l.s8.bf16 %v1206
        %v2647 = vunpack.c.l.s8.bf16 %v1207
        %v2648 = vunpack.c.l.s8.bf16 %v1208
        %v2649 = vunpack.c.l.s8.bf16 %v1209
        %v2650 = vunpack.c.l.s8.bf16 %v1210
        %v2651 = vunpack.c.l.s8.bf16 %v1211
        %v2652 = vunpack.c.l.s8.bf16 %v1212
        %v2653 = vunpack.c.l.s8.bf16 %v1213
        %v2654 = vunpack.c.l.s8.bf16 %v1214
        %v2655 = vunpack.c.l.s8.bf16 %v1215
        %v2656 = vunpack.c.l.s8.bf16 %v1216
        %v2657 = vunpack.c.h.s8.bf16 %v1193
        %v2658 = vunpack.c.h.s8.bf16 %v1194
        %v2659 = vunpack.c.h.s8.bf16 %v1195
        %v2660 = vunpack.c.h.s8.bf16 %v1196
        %v2661 = vunpack.c.h.s8.bf16 %v1197
        %v2662 = vunpack.c.h.s8.bf16 %v1198
        %v2663 = vunpack.c.h.s8.bf16 %v1199
        %v2664 = vunpack.c.h.s8.bf16 %v1200
        %v2665 = vunpack.c.h.s8.bf16 %v1201
        %v2666 = vunpack.c.h.s8.bf16 %v1202
        %v2667 = vunpack.c.h.s8.bf16 %v1203
        %v2668 = vunpack.c.h.s8.bf16 %v1204
        %v2669 = vunpack.c.h.s8.bf16 %v1205
        %v2670 = vunpack.c.h.s8.bf16 %v1206
        %v2671 = vunpack.c.h.s8.bf16 %v1207
        %v2672 = vunpack.c.h.s8.bf16 %v1208
        %v2673 = vunpack.c.h.s8.bf16 %v1209
        %v2674 = vunpack.c.h.s8.bf16 %v1210
        %v2675 = vunpack.c.h.s8.bf16 %v1211
        %v2676 = vunpack.c.h.s8.bf16 %v1212
        %v2677 = vunpack.c.h.s8.bf16 %v1213
        %v2678 = vunpack.c.h.s8.bf16 %v1214
        %v2679 = vunpack.c.h.s8.bf16 %v1215
        %v2680 = vunpack.c.h.s8.bf16 %v1216
        %v2681 = vunpack.c.l.s8.bf16 %v1217
        %v2682 = vunpack.c.l.s8.bf16 %v1218
        %v2683 = vunpack.c.l.s8.bf16 %v1219
        %v2684 = vunpack.c.l.s8.bf16 %v1220
        %v2685 = vunpack.c.l.s8.bf16 %v1221
        %v2686 = vunpack.c.l.s8.bf16 %v1222
        %v2687 = vunpack.c.l.s8.bf16 %v1223
        %v2688 = vunpack.c.l.s8.bf16 %v1224
        %v2689 = vunpack.c.l.s8.bf16 %v1225
        %v2690 = vunpack.c.l.s8.bf16 %v1226
        %v2691 = vunpack.c.l.s8.bf16 %v1227
        %v2692 = vunpack.c.l.s8.bf16 %v1228
        %v2693 = vunpack.c.l.s8.bf16 %v1229
        %v2694 = vunpack.c.l.s8.bf16 %v1230
        %v2695 = vunpack.c.l.s8.bf16 %v1231
        %v2696 = vunpack.c.l.s8.bf16 %v1232
        %v2697 = vunpack.c.l.s8.bf16 %v1233
        %v2698 = vunpack.c.l.s8.bf16 %v1234
        %v2699 = vunpack.c.l.s8.bf16 %v1235
        %v2700 = vunpack.c.l.s8.bf16 %v1236
        %v2701 = vunpack.c.l.s8.bf16 %v1237
        %v2702 = vunpack.c.l.s8.bf16 %v1238
        %v2703 = vunpack.c.l.s8.bf16 %v1239
        %v2704 = vunpack.c.l.s8.bf16 %v1240
        %v2705 = vunpack.c.h.s8.bf16 %v1217
        %v2706 = vunpack.c.h.s8.bf16 %v1218
        %v2707 = vunpack.c.h.s8.bf16 %v1219
        %v2708 = vunpack.c.h.s8.bf16 %v1220
        %v2709 = vunpack.c.h.s8.bf16 %v1221
        %v2710 = vunpack.c.h.s8.bf16 %v1222
        %v2711 = vunpack.c.h.s8.bf16 %v1223
        %v2712 = vunpack.c.h.s8.bf16 %v1224
        %v2713 = vunpack.c.h.s8.bf16 %v1225
        %v2714 = vunpack.c.h.s8.bf16 %v1226
        %v2715 = vunpack.c.h.s8.bf16 %v1227
        %v2716 = vunpack.c.h.s8.bf16 %v1228
        %v2717 = vunpack.c.h.s8.bf16 %v1229
        %v2718 = vunpack.c.h.s8.bf16 %v1230
        %v2719 = vunpack.c.h.s8.bf16 %v1231
        %v2720 = vunpack.c.h.s8.bf16 %v1232
        %v2721 = vunpack.c.h.s8.bf16 %v1233
        %v2722 = vunpack.c.h.s8.bf16 %v1234
        %v2723 = vunpack.c.h.s8.bf16 %v1235
        %v2724 = vunpack.c.h.s8.bf16 %v1236
        %v2725 = vunpack.c.h.s8.bf16 %v1237
        %v2726 = vunpack.c.h.s8.bf16 %v1238
        %v2727 = vunpack.c.h.s8.bf16 %v1239
        %v2728 = vunpack.c.h.s8.bf16 %v1240
        %v2729 = vunpack.c.l.s8.bf16 %v1241
        %v2730 = vunpack.c.l.s8.bf16 %v1242
        %v2731 = vunpack.c.l.s8.bf16 %v1243
        %v2732 = vunpack.c.l.s8.bf16 %v1244
        %v2733 = vunpack.c.l.s8.bf16 %v1245
        %v2734 = vunpack.c.l.s8.bf16 %v1246
        %v2735 = vunpack.c.l.s8.bf16 %v1247
        %v2736 = vunpack.c.l.s8.bf16 %v1248
        %v2737 = vunpack.c.l.s8.bf16 %v1249
        %v2738 = vunpack.c.l.s8.bf16 %v1250
        %v2739 = vunpack.c.l.s8.bf16 %v1251
        %v2740 = vunpack.c.l.s8.bf16 %v1252
        %v2741 = vunpack.c.l.s8.bf16 %v1253
        %v2742 = vunpack.c.l.s8.bf16 %v1254
        %v2743 = vunpack.c.l.s8.bf16 %v1255
        %v2744 = vunpack.c.l.s8.bf16 %v1256
        %v2745 = vunpack.c.l.s8.bf16 %v1257
        %v2746 = vunpack.c.l.s8.bf16 %v1258
        %v2747 = vunpack.c.l.s8.bf16 %v1259
        %v2748 = vunpack.c.l.s8.bf16 %v1260
        %v2749 = vunpack.c.l.s8.bf16 %v1261
        %v2750 = vunpack.c.l.s8.bf16 %v1262
        %v2751 = vunpack.c.l.s8.bf16 %v1263
        %v2752 = vunpack.c.l.s8.bf16 %v1264
        %v2753 = vunpack.c.h.s8.bf16 %v1241
        %v2754 = vunpack.c.h.s8.bf16 %v1242
        %v2755 = vunpack.c.h.s8.bf16 %v1243
        %v2756 = vunpack.c.h.s8.bf16 %v1244
        %v2757 = vunpack.c.h.s8.bf16 %v1245
        %v2758 = vunpack.c.h.s8.bf16 %v1246
        %v2759 = vunpack.c.h.s8.bf16 %v1247
        %v2760 = vunpack.c.h.s8.bf16 %v1248
        %v2761 = vunpack.c.h.s8.bf16 %v1249
        %v2762 = vunpack.c.h.s8.bf16 %v1250
        %v2763 = vunpack.c.h.s8.bf16 %v1251
        %v2764 = vunpack.c.h.s8.bf16 %v1252
        %v2765 = vunpack.c.h.s8.bf16 %v1253
        %v2766 = vunpack.c.h.s8.bf16 %v1254
        %v2767 = vunpack.c.h.s8.bf16 %v1255
        %v2768 = vunpack.c.h.s8.bf16 %v1256
        %v2769 = vunpack.c.h.s8.bf16 %v1257
        %v2770 = vunpack.c.h.s8.bf16 %v1258
        %v2771 = vunpack.c.h.s8.bf16 %v1259
        %v2772 = vunpack.c.h.s8.bf16 %v1260
        %v2773 = vunpack.c.h.s8.bf16 %v1261
        %v2774 = vunpack.c.h.s8.bf16 %v1262
        %v2775 = vunpack.c.h.s8.bf16 %v1263
        %v2776 = vunpack.c.h.s8.bf16 %v1264
        %v2777 = vunpack.c.l.s8.bf16 %v1265
        %v2778 = vunpack.c.l.s8.bf16 %v1266
        %v2779 = vunpack.c.l.s8.bf16 %v1267
        %v2780 = vunpack.c.l.s8.bf16 %v1268
        %v2781 = vunpack.c.l.s8.bf16 %v1269
        %v2782 = vunpack.c.l.s8.bf16 %v1270
        %v2783 = vunpack.c.l.s8.bf16 %v1271
        %v2784 = vunpack.c.l.s8.bf16 %v1272
        %v2785 = vunpack.c.l.s8.bf16 %v1273
        %v2786 = vunpack.c.l.s8.bf16 %v1274
        %v2787 = vunpack.c.l.s8.bf16 %v1275
        %v2788 = vunpack.c.l.s8.bf16 %v1276
        %v2789 = vunpack.c.l.s8.bf16 %v1277
        %v2790 = vunpack.c.l.s8.bf16 %v1278
        %v2791 = vunpack.c.l.s8.bf16 %v1279
        %v2792 = vunpack.c.l.s8.bf16 %v1280
        %v2793 = vunpack.c.l.s8.bf16 %v1281
        %v2794 = vunpack.c.l.s8.bf16 %v1282
        %v2795 = vunpack.c.l.s8.bf16 %v1283
        %v2796 = vunpack.c.l.s8.bf16 %v1284
        %v2797 = vunpack.c.l.s8.bf16 %v1285
        %v2798 = vunpack.c.l.s8.bf16 %v1286
        %v2799 = vunpack.c.l.s8.bf16 %v1287
        %v2800 = vunpack.c.l.s8.bf16 %v1288
        %v2801 = vunpack.c.h.s8.bf16 %v1265
        %v2802 = vunpack.c.h.s8.bf16 %v1266
        %v2803 = vunpack.c.h.s8.bf16 %v1267
        %v2804 = vunpack.c.h.s8.bf16 %v1268
        %v2805 = vunpack.c.h.s8.bf16 %v1269
        %v2806 = vunpack.c.h.s8.bf16 %v1270
        %v2807 = vunpack.c.h.s8.bf16 %v1271
        %v2808 = vunpack.c.h.s8.bf16 %v1272
        %v2809 = vunpack.c.h.s8.bf16 %v1273
        %v2810 = vunpack.c.h.s8.bf16 %v1274
        %v2811 = vunpack.c.h.s8.bf16 %v1275
        %v2812 = vunpack.c.h.s8.bf16 %v1276
        %v2813 = vunpack.c.h.s8.bf16 %v1277
        %v2814 = vunpack.c.h.s8.bf16 %v1278
        %v2815 = vunpack.c.h.s8.bf16 %v1279
        %v2816 = vunpack.c.h.s8.bf16 %v1280
        %v2817 = vunpack.c.h.s8.bf16 %v1281
        %v2818 = vunpack.c.h.s8.bf16 %v1282
        %v2819 = vunpack.c.h.s8.bf16 %v1283
        %v2820 = vunpack.c.h.s8.bf16 %v1284
        %v2821 = vunpack.c.h.s8.bf16 %v1285
        %v2822 = vunpack.c.h.s8.bf16 %v1286
        %v2823 = vunpack.c.h.s8.bf16 %v1287
        %v2824 = vunpack.c.h.s8.bf16 %v1288
        %2825 = vmatprep.subr.bf16.mxu0 %v1458
        %2826 = vmatpush1.bf16.msra.mxu0 %v1457
        %2827 = vmatprep.subr.bf16.mxu0 %v1434
        %2828 = vmatpush1.bf16.msra.mxu0 %v1433
        %2829 = vmatprep.subr.bf16.mxu0 %v1410
        %2830 = vmatpush1.bf16.msra.mxu0 %v1409
        %2831 = vmatprep.subr.bf16.mxu0 %v1386
        %2832 = vmatpush1.bf16.msra.mxu0 %v1385
        %2833 = vmatprep.subr.bf16.mxu0 %v1362
        %2834 = vmatpush1.bf16.msra.mxu0 %v1361
        %2835 = vmatprep.subr.bf16.mxu0 %v1338
        %2836 = vmatpush1.bf16.msra.mxu0 %v1337
        %2837 = vmatprep.subr.bf16.mxu0 %v1314
        %2838 = vmatpush1.bf16.msra.mxu0 %v1313
        %2839 = vmatprep.subr.bf16.mxu0 %v1290
        %2840 = vmatpush1.bf16.msra.mxu0 %v1289
        %2841 = vmatprep.subr.bf16.mxu0 %v1650
        %2842 = vmatpush2.bf16.msra.mxu0 %v1649
        %2843 = vmatprep.subr.bf16.mxu0 %v1626
        %2844 = vmatpush2.bf16.msra.mxu0 %v1625
        %2845 = vmatprep.subr.bf16.mxu0 %v1602
        %2846 = vmatpush2.bf16.msra.mxu0 %v1601
        %2847 = vmatprep.subr.bf16.mxu0 %v1578
        %2848 = vmatpush2.bf16.msra.mxu0 %v1577
        %2849 = vmatprep.subr.bf16.mxu0 %v1554
        %2850 = vmatpush2.bf16.msra.mxu0 %v1553
        %2851 = vmatprep.subr.bf16.mxu0 %v1530
        %2852 = vmatpush2.bf16.msra.mxu0 %v1529
        %2853 = vmatprep.subr.bf16.mxu0 %v1506
        %2854 = vmatpush2.bf16.msra.mxu0 %v1505
        %2855 = vmatprep.subr.bf16.mxu0 %v1482
        %2856 = vmatpush2.bf16.msra.mxu0 %v1481
        %2857 = vmatprep.mubr.bf16.mxu0 %v514
        %2858 = vmatmul.mubr.bf16.gmra.mxu0 %v513
        %v2859 = vpop.f32.mrf.mxu0
        %v2860 = vadd.f32 0.0, %v2859
        %v2861 = vpop.f32.mrf.mxu0
        %v2862 = vadd.f32 0.0, %v2861
        %v2863 = vpop.f32.mrf.mxu0
        %v2864 = vpop.f32.mrf.mxu0
        %2865 = vdwg.mxu0
        %2866 = vmatprep.subr.bf16.mxu0 %v1842
        %2867 = vmatpush1.bf16.msra.mxu0 %v1841
        %2868 = vmatprep.subr.bf16.mxu0 %v1818
        %2869 = vmatpush1.bf16.msra.mxu0 %v1817
        %2870 = vmatprep.subr.bf16.mxu0 %v1794
        %2871 = vmatpush1.bf16.msra.mxu0 %v1793
        %2872 = vmatprep.subr.bf16.mxu0 %v1770
        %2873 = vmatpush1.bf16.msra.mxu0 %v1769
        %2874 = vmatprep.subr.bf16.mxu0 %v1746
        %2875 = vmatpush1.bf16.msra.mxu0 %v1745
        %2876 = vmatprep.subr.bf16.mxu0 %v1722
        %2877 = vmatpush1.bf16.msra.mxu0 %v1721
        %2878 = vmatprep.subr.bf16.mxu0 %v1698
        %2879 = vmatpush1.bf16.msra.mxu0 %v1697
        %2880 = vmatprep.subr.bf16.mxu0 %v1674
        %2881 = vmatpush1.bf16.msra.mxu0 %v1673
        %2882 = vmatprep.subr.bf16.mxu0 %v2034
        %2883 = vmatpush2.bf16.msra.mxu0 %v2033
        %2884 = vmatprep.subr.bf16.mxu0 %v2010
        %2885 = vmatpush2.bf16.msra.mxu0 %v2009
        %2886 = vmatprep.subr.bf16.mxu0 %v1986
        %2887 = vmatpush2.bf16.msra.mxu0 %v1985
        %2888 = vmatprep.subr.bf16.mxu0 %v1962
        %2889 = vmatpush2.bf16.msra.mxu0 %v1961
        %2890 = vmatprep.subr.bf16.mxu0 %v1938
        %2891 = vmatpush2.bf16.msra.mxu0 %v1937
        %2892 = vmatprep.subr.bf16.mxu0 %v1914
        %2893 = vmatpush2.bf16.msra.mxu0 %v1913
        %2894 = vmatprep.subr.bf16.mxu0 %v1890
        %2895 = vmatpush2.bf16.msra.mxu0 %v1889
        %2896 = vmatprep.subr.bf16.mxu0 %v1866
        %2897 = vmatpush2.bf16.msra.mxu0 %v1865
        %2898 = vmatprep.mubr.bf16.mxu0 %v516
        %2899 = vmatmul.mubr.bf16.gmra.mxu0 %v515
        %v2900 = vpop.f32.mrf.mxu0
        %v2901 = vadd.f32 %v2860, %v2900
        %v2902 = vpop.f32.mrf.mxu0
        %v2903 = vadd.f32 %v2862, %v2902
        %v2904 = vpop.f32.mrf.mxu0
        %v2905 = vpop.f32.mrf.mxu0
        %2906 = vdwg.mxu0
        %2907 = vmatprep.subr.bf16.mxu0 %v2226
        %2908 = vmatpush1.bf16.msra.mxu0 %v2225
        %2909 = vmatprep.subr.bf16.mxu0 %v2202
        %2910 = vmatpush1.bf16.msra.mxu0 %v2201
        %2911 = vmatprep.subr.bf16.mxu0 %v2178
        %2912 = vmatpush1.bf16.msra.mxu0 %v2177
        %2913 = vmatprep.subr.bf16.mxu0 %v2154
        %2914 = vmatpush1.bf16.msra.mxu0 %v2153
        %2915 = vmatprep.subr.bf16.mxu0 %v2130
        %2916 = vmatpush1.bf16.msra.mxu0 %v2129
        %2917 = vmatprep.subr.bf16.mxu0 %v2106
        %2918 = vmatpush1.bf16.msra.mxu0 %v2105
        %2919 = vmatprep.subr.bf16.mxu0 %v2082
        %2920 = vmatpush1.bf16.msra.mxu0 %v2081
        %2921 = vmatprep.subr.bf16.mxu0 %v2058
        %2922 = vmatpush1.bf16.msra.mxu0 %v2057
        %2923 = vmatprep.subr.bf16.mxu0 %v2418
        %2924 = vmatpush2.bf16.msra.mxu0 %v2417
        %2925 = vmatprep.subr.bf16.mxu0 %v2394
        %2926 = vmatpush2.bf16.msra.mxu0 %v2393
        %2927 = vmatprep.subr.bf16.mxu0 %v2370
        %2928 = vmatpush2.bf16.msra.mxu0 %v2369
        %2929 = vmatprep.subr.bf16.mxu0 %v2346
        %2930 = vmatpush2.bf16.msra.mxu0 %v2345
        %2931 = vmatprep.subr.bf16.mxu0 %v2322
        %2932 = vmatpush2.bf16.msra.mxu0 %v2321
        %2933 = vmatprep.subr.bf16.mxu0 %v2298
        %2934 = vmatpush2.bf16.msra.mxu0 %v2297
        %2935 = vmatprep.subr.bf16.mxu0 %v2274
        %2936 = vmatpush2.bf16.msra.mxu0 %v2273
        %2937 = vmatprep.subr.bf16.mxu0 %v2250
        %2938 = vmatpush2.bf16.msra.mxu0 %v2249
        %2939 = vmatprep.mubr.bf16.mxu0 %v518
        %2940 = vmatmul.mubr.bf16.gmra.mxu0 %v517
        %v2941 = vpop.f32.mrf.mxu0
        %v2942 = vadd.f32 %v2901, %v2941
        %v2943 = vpop.f32.mrf.mxu0
        %v2944 = vadd.f32 %v2903, %v2943
        %v2945 = vpop.f32.mrf.mxu0
        %v2946 = vpop.f32.mrf.mxu0
        %2947 = vdwg.mxu0
        %2948 = vmatprep.subr.bf16.mxu0 %v2610
        %2949 = vmatpush1.bf16.msra.mxu0 %v2609
        %2950 = vmatprep.subr.bf16.mxu0 %v2586
        %2951 = vmatpush1.bf16.msra.mxu0 %v2585
        %2952 = vmatprep.subr.bf16.mxu0 %v2562
        %2953 = vmatpush1.bf16.msra.mxu0 %v2561
        %2954 = vmatprep.subr.bf16.mxu0 %v2538
        %2955 = vmatpush1.bf16.msra.mxu0 %v2537
        %2956 = vmatprep.subr.bf16.mxu0 %v2514
        %2957 = vmatpush1.bf16.msra.mxu0 %v2513
        %2958 = vmatprep.subr.bf16.mxu0 %v2490
        %2959 = vmatpush1.bf16.msra.mxu0 %v2489
        %2960 = vmatprep.subr.bf16.mxu0 %v2466
        %2961 = vmatpush1.bf16.msra.mxu0 %v2465
        %2962 = vmatprep.subr.bf16.mxu0 %v2442
        %2963 = vmatpush1.bf16.msra.mxu0 %v2441
        %2964 = vmatprep.subr.bf16.mxu0 %v2802
        %2965 = vmatpush2.bf16.msra.mxu0 %v2801
        %2966 = vmatprep.subr.bf16.mxu0 %v2778
        %2967 = vmatpush2.bf16.msra.mxu0 %v2777
        %2968 = vmatprep.subr.bf16.mxu0 %v2754
        %2969 = vmatpush2.bf16.msra.mxu0 %v2753
        %2970 = vmatprep.subr.bf16.mxu0 %v2730
        %2971 = vmatpush2.bf16.msra.mxu0 %v2729
        %2972 = vmatprep.subr.bf16.mxu0 %v2706
        %2973 = vmatpush2.bf16.msra.mxu0 %v2705
        %2974 = vmatprep.subr.bf16.mxu0 %v2682
        %2975 = vmatpush2.bf16.msra.mxu0 %v2681
        %2976 = vmatprep.subr.bf16.mxu0 %v2658
        %2977 = vmatpush2.bf16.msra.mxu0 %v2657
        %2978 = vmatprep.subr.bf16.mxu0 %v2634
        %2979 = vmatpush2.bf16.msra.mxu0 %v2633
        %2980 = vmatprep.mubr.bf16.mxu0 %v520
        %2981 = vmatmul.mubr.bf16.gmra.mxu0 %v519
        %v2982 = vpop.f32.mrf.mxu0
        %v2983 = vadd.f32 %v2942, %v2982
        %v2984 = vpop.f32.mrf.mxu0
        %v2985 = vadd.f32 %v2944, %v2984
        %v2986 = vpop.f32.mrf.mxu0
        %v2987 = vpop.f32.mrf.mxu0
        %2988 = vdwg.mxu0
        %2989 = vmatprep.subr.bf16.mxu0 %v1460
        %2990 = vmatpush1.bf16.msra.mxu0 %v1459
        %2991 = vmatprep.subr.bf16.mxu0 %v1436
        %2992 = vmatpush1.bf16.msra.mxu0 %v1435
        %2993 = vmatprep.subr.bf16.mxu0 %v1412
        %2994 = vmatpush1.bf16.msra.mxu0 %v1411
        %2995 = vmatprep.subr.bf16.mxu0 %v1388
        %2996 = vmatpush1.bf16.msra.mxu0 %v1387
        %2997 = vmatprep.subr.bf16.mxu0 %v1364
        %2998 = vmatpush1.bf16.msra.mxu0 %v1363
        %2999 = vmatprep.subr.bf16.mxu0 %v1340
        %3000 = vmatpush1.bf16.msra.mxu0 %v1339
        %3001 = vmatprep.subr.bf16.mxu0 %v1316
        %3002 = vmatpush1.bf16.msra.mxu0 %v1315
        %3003 = vmatprep.subr.bf16.mxu0 %v1292
        %3004 = vmatpush1.bf16.msra.mxu0 %v1291
        %3005 = vmatprep.subr.bf16.mxu0 %v1652
        %3006 = vmatpush2.bf16.msra.mxu0 %v1651
        %3007 = vmatprep.subr.bf16.mxu0 %v1628
        %3008 = vmatpush2.bf16.msra.mxu0 %v1627
        %3009 = vmatprep.subr.bf16.mxu0 %v1604
        %3010 = vmatpush2.bf16.msra.mxu0 %v1603
        %3011 = vmatprep.subr.bf16.mxu0 %v1580
        %3012 = vmatpush2.bf16.msra.mxu0 %v1579
        %3013 = vmatprep.subr.bf16.mxu0 %v1556
        %3014 = vmatpush2.bf16.msra.mxu0 %v1555
        %3015 = vmatprep.subr.bf16.mxu0 %v1532
        %3016 = vmatpush2.bf16.msra.mxu0 %v1531
        %3017 = vmatprep.subr.bf16.mxu0 %v1508
        %3018 = vmatpush2.bf16.msra.mxu0 %v1507
        %3019 = vmatprep.subr.bf16.mxu0 %v1484
        %3020 = vmatpush2.bf16.msra.mxu0 %v1483
        %3021 = vmatprep.mubr.bf16.mxu0 %v514
        %3022 = vmatmul.mubr.bf16.gmra.mxu0 %v513
        %v3023 = vpop.f32.mrf.mxu0
        %v3024 = vadd.f32 0.0, %v3023
        %v3025 = vpop.f32.mrf.mxu0
        %v3026 = vadd.f32 0.0, %v3025
        %v3027 = vpop.f32.mrf.mxu0
        %v3028 = vpop.f32.mrf.mxu0
        %3029 = vdwg.mxu0
        %3030 = vmatprep.subr.bf16.mxu0 %v1844
        %3031 = vmatpush1.bf16.msra.mxu0 %v1843
        %3032 = vmatprep.subr.bf16.mxu0 %v1820
        %3033 = vmatpush1.bf16.msra.mxu0 %v1819
        %3034 = vmatprep.subr.bf16.mxu0 %v1796
        %3035 = vmatpush1.bf16.msra.mxu0 %v1795
        %3036 = vmatprep.subr.bf16.mxu0 %v1772
        %3037 = vmatpush1.bf16.msra.mxu0 %v1771
        %3038 = vmatprep.subr.bf16.mxu0 %v1748
        %3039 = vmatpush1.bf16.msra.mxu0 %v1747
        %3040 = vmatprep.subr.bf16.mxu0 %v1724
        %3041 = vmatpush1.bf16.msra.mxu0 %v1723
        %3042 = vmatprep.subr.bf16.mxu0 %v1700
        %3043 = vmatpush1.bf16.msra.mxu0 %v1699
        %3044 = vmatprep.subr.bf16.mxu0 %v1676
        %3045 = vmatpush1.bf16.msra.mxu0 %v1675
        %3046 = vmatprep.subr.bf16.mxu0 %v2036
        %3047 = vmatpush2.bf16.msra.mxu0 %v2035
        %3048 = vmatprep.subr.bf16.mxu0 %v2012
        %3049 = vmatpush2.bf16.msra.mxu0 %v2011
        %3050 = vmatprep.subr.bf16.mxu0 %v1988
        %3051 = vmatpush2.bf16.msra.mxu0 %v1987
        %3052 = vmatprep.subr.bf16.mxu0 %v1964
        %3053 = vmatpush2.bf16.msra.mxu0 %v1963
        %3054 = vmatprep.subr.bf16.mxu0 %v1940
        %3055 = vmatpush2.bf16.msra.mxu0 %v1939
        %3056 = vmatprep.subr.bf16.mxu0 %v1916
        %3057 = vmatpush2.bf16.msra.mxu0 %v1915
        %3058 = vmatprep.subr.bf16.mxu0 %v1892
        %3059 = vmatpush2.bf16.msra.mxu0 %v1891
        %3060 = vmatprep.subr.bf16.mxu0 %v1868
        %3061 = vmatpush2.bf16.msra.mxu0 %v1867
        %3062 = vmatprep.mubr.bf16.mxu0 %v516
        %3063 = vmatmul.mubr.bf16.gmra.mxu0 %v515
        %v3064 = vpop.f32.mrf.mxu0
        %v3065 = vadd.f32 %v3024, %v3064
        %v3066 = vpop.f32.mrf.mxu0
        %v3067 = vadd.f32 %v3026, %v3066
        %v3068 = vpop.f32.mrf.mxu0
        %v3069 = vpop.f32.mrf.mxu0
        %3070 = vdwg.mxu0
        %3071 = vmatprep.subr.bf16.mxu0 %v2228
        %3072 = vmatpush1.bf16.msra.mxu0 %v2227
        %3073 = vmatprep.subr.bf16.mxu0 %v2204
        %3074 = vmatpush1.bf16.msra.mxu0 %v2203
        %3075 = vmatprep.subr.bf16.mxu0 %v2180
        %3076 = vmatpush1.bf16.msra.mxu0 %v2179
        %3077 = vmatprep.subr.bf16.mxu0 %v2156
        %3078 = vmatpush1.bf16.msra.mxu0 %v2155
        %3079 = vmatprep.subr.bf16.mxu0 %v2132
        %3080 = vmatpush1.bf16.msra.mxu0 %v2131
        %3081 = vmatprep.subr.bf16.mxu0 %v2108
        %3082 = vmatpush1.bf16.msra.mxu0 %v2107
        %3083 = vmatprep.subr.bf16.mxu0 %v2084
        %3084 = vmatpush1.bf16.msra.mxu0 %v2083
        %3085 = vmatprep.subr.bf16.mxu0 %v2060
        %3086 = vmatpush1.bf16.msra.mxu0 %v2059
        %3087 = vmatprep.subr.bf16.mxu0 %v2420
        %3088 = vmatpush2.bf16.msra.mxu0 %v2419
        %3089 = vmatprep.subr.bf16.mxu0 %v2396
        %3090 = vmatpush2.bf16.msra.mxu0 %v2395
        %3091 = vmatprep.subr.bf16.mxu0 %v2372
        %3092 = vmatpush2.bf16.msra.mxu0 %v2371
        %3093 = vmatprep.subr.bf16.mxu0 %v2348
        %3094 = vmatpush2.bf16.msra.mxu0 %v2347
        %3095 = vmatprep.subr.bf16.mxu0 %v2324
        %3096 = vmatpush2.bf16.msra.mxu0 %v2323
        %3097 = vmatprep.subr.bf16.mxu0 %v2300
        %3098 = vmatpush2.bf16.msra.mxu0 %v2299
        %3099 = vmatprep.subr.bf16.mxu0 %v2276
        %3100 = vmatpush2.bf16.msra.mxu0 %v2275
        %3101 = vmatprep.subr.bf16.mxu0 %v2252
        %3102 = vmatpush2.bf16.msra.mxu0 %v2251
        %3103 = vmatprep.mubr.bf16.mxu0 %v518
        %3104 = vmatmul.mubr.bf16.gmra.mxu0 %v517
        %v3105 = vpop.f32.mrf.mxu0
        %v3106 = vadd.f32 %v3065, %v3105
        %v3107 = vpop.f32.mrf.mxu0
        %v3108 = vadd.f32 %v3067, %v3107
        %v3109 = vpop.f32.mrf.mxu0
        %v3110 = vpop.f32.mrf.mxu0
        %3111 = vdwg.mxu0
        %3112 = vmatprep.subr.bf16.mxu0 %v2612
        %3113 = vmatpush1.bf16.msra.mxu0 %v2611
        %3114 = vmatprep.subr.bf16.mxu0 %v2588
        %3115 = vmatpush1.bf16.msra.mxu0 %v2587
        %3116 = vmatprep.subr.bf16.mxu0 %v2564
        %3117 = vmatpush1.bf16.msra.mxu0 %v2563
        %3118 = vmatprep.subr.bf16.mxu0 %v2540
        %3119 = vmatpush1.bf16.msra.mxu0 %v2539
        %3120 = vmatprep.subr.bf16.mxu0 %v2516
        %3121 = vmatpush1.bf16.msra.mxu0 %v2515
        %3122 = vmatprep.subr.bf16.mxu0 %v2492
        %3123 = vmatpush1.bf16.msra.mxu0 %v2491
        %3124 = vmatprep.subr.bf16.mxu0 %v2468
        %3125 = vmatpush1.bf16.msra.mxu0 %v2467
        %3126 = vmatprep.subr.bf16.mxu0 %v2444
        %3127 = vmatpush1.bf16.msra.mxu0 %v2443
        %3128 = vmatprep.subr.bf16.mxu0 %v2804
        %3129 = vmatpush2.bf16.msra.mxu0 %v2803
        %3130 = vmatprep.subr.bf16.mxu0 %v2780
        %3131 = vmatpush2.bf16.msra.mxu0 %v2779
        %3132 = vmatprep.subr.bf16.mxu0 %v2756
        %3133 = vmatpush2.bf16.msra.mxu0 %v2755
        %3134 = vmatprep.subr.bf16.mxu0 %v2732
        %3135 = vmatpush2.bf16.msra.mxu0 %v2731
        %3136 = vmatprep.subr.bf16.mxu0 %v2708
        %3137 = vmatpush2.bf16.msra.mxu0 %v2707
        %3138 = vmatprep.subr.bf16.mxu0 %v2684
        %3139 = vmatpush2.bf16.msra.mxu0 %v2683
        %3140 = vmatprep.subr.bf16.mxu0 %v2660
        %3141 = vmatpush2.bf16.msra.mxu0 %v2659
        %3142 = vmatprep.subr.bf16.mxu0 %v2636
        %3143 = vmatpush2.bf16.msra.mxu0 %v2635
        %3144 = vmatprep.mubr.bf16.mxu0 %v520
        %3145 = vmatmul.mubr.bf16.gmra.mxu0 %v519
        %v3146 = vpop.f32.mrf.mxu0
        %v3147 = vadd.f32 %v3106, %v3146
        %v3148 = vpop.f32.mrf.mxu0
        %v3149 = vadd.f32 %v3108, %v3148
        %v3150 = vpop.f32.mrf.mxu0
        %v3151 = vpop.f32.mrf.mxu0
        %3152 = vdwg.mxu0
        %3153 = vmatprep.subr.bf16.mxu0 %v1462
        %3154 = vmatpush1.bf16.msra.mxu0 %v1461
        %3155 = vmatprep.subr.bf16.mxu0 %v1438
        %3156 = vmatpush1.bf16.msra.mxu0 %v1437
        %3157 = vmatprep.subr.bf16.mxu0 %v1414
        %3158 = vmatpush1.bf16.msra.mxu0 %v1413
        %3159 = vmatprep.subr.bf16.mxu0 %v1390
        %3160 = vmatpush1.bf16.msra.mxu0 %v1389
        %3161 = vmatprep.subr.bf16.mxu0 %v1366
        %3162 = vmatpush1.bf16.msra.mxu0 %v1365
        %3163 = vmatprep.subr.bf16.mxu0 %v1342
        %3164 = vmatpush1.bf16.msra.mxu0 %v1341
        %3165 = vmatprep.subr.bf16.mxu0 %v1318
        %3166 = vmatpush1.bf16.msra.mxu0 %v1317
        %3167 = vmatprep.subr.bf16.mxu0 %v1294
        %3168 = vmatpush1.bf16.msra.mxu0 %v1293
        %3169 = vmatprep.subr.bf16.mxu0 %v1654
        %3170 = vmatpush2.bf16.msra.mxu0 %v1653
        %3171 = vmatprep.subr.bf16.mxu0 %v1630
        %3172 = vmatpush2.bf16.msra.mxu0 %v1629
        %3173 = vmatprep.subr.bf16.mxu0 %v1606
        %3174 = vmatpush2.bf16.msra.mxu0 %v1605
        %3175 = vmatprep.subr.bf16.mxu0 %v1582
        %3176 = vmatpush2.bf16.msra.mxu0 %v1581
        %3177 = vmatprep.subr.bf16.mxu0 %v1558
        %3178 = vmatpush2.bf16.msra.mxu0 %v1557
        %3179 = vmatprep.subr.bf16.mxu0 %v1534
        %3180 = vmatpush2.bf16.msra.mxu0 %v1533
        %3181 = vmatprep.subr.bf16.mxu0 %v1510
        %3182 = vmatpush2.bf16.msra.mxu0 %v1509
        %3183 = vmatprep.subr.bf16.mxu0 %v1486
        %3184 = vmatpush2.bf16.msra.mxu0 %v1485
        %3185 = vmatprep.mubr.bf16.mxu0 %v514
        %3186 = vmatmul.mubr.bf16.gmra.mxu0 %v513
        %v3187 = vpop.f32.mrf.mxu0
        %v3188 = vadd.f32 0.0, %v3187
        %v3189 = vpop.f32.mrf.mxu0
        %v3190 = vadd.f32 0.0, %v3189
        %v3191 = vpop.f32.mrf.mxu0
        %v3192 = vpop.f32.mrf.mxu0
        %3193 = vdwg.mxu0
        %3194 = vmatprep.subr.bf16.mxu0 %v1846
        %3195 = vmatpush1.bf16.msra.mxu0 %v1845
        %3196 = vmatprep.subr.bf16.mxu0 %v1822
        %3197 = vmatpush1.bf16.msra.mxu0 %v1821
        %3198 = vmatprep.subr.bf16.mxu0 %v1798
        %3199 = vmatpush1.bf16.msra.mxu0 %v1797
        %3200 = vmatprep.subr.bf16.mxu0 %v1774
        %3201 = vmatpush1.bf16.msra.mxu0 %v1773
        %3202 = vmatprep.subr.bf16.mxu0 %v1750
        %3203 = vmatpush1.bf16.msra.mxu0 %v1749
        %3204 = vmatprep.subr.bf16.mxu0 %v1726
        %3205 = vmatpush1.bf16.msra.mxu0 %v1725
        %3206 = vmatprep.subr.bf16.mxu0 %v1702
        %3207 = vmatpush1.bf16.msra.mxu0 %v1701
        %3208 = vmatprep.subr.bf16.mxu0 %v1678
        %3209 = vmatpush1.bf16.msra.mxu0 %v1677
        %3210 = vmatprep.subr.bf16.mxu0 %v2038
        %3211 = vmatpush2.bf16.msra.mxu0 %v2037
        %3212 = vmatprep.subr.bf16.mxu0 %v2014
        %3213 = vmatpush2.bf16.msra.mxu0 %v2013
        %3214 = vmatprep.subr.bf16.mxu0 %v1990
        %3215 = vmatpush2.bf16.msra.mxu0 %v1989
        %3216 = vmatprep.subr.bf16.mxu0 %v1966
        %3217 = vmatpush2.bf16.msra.mxu0 %v1965
        %3218 = vmatprep.subr.bf16.mxu0 %v1942
        %3219 = vmatpush2.bf16.msra.mxu0 %v1941
        %3220 = vmatprep.subr.bf16.mxu0 %v1918
        %3221 = vmatpush2.bf16.msra.mxu0 %v1917
        %3222 = vmatprep.subr.bf16.mxu0 %v1894
        %3223 = vmatpush2.bf16.msra.mxu0 %v1893
        %3224 = vmatprep.subr.bf16.mxu0 %v1870
        %3225 = vmatpush2.bf16.msra.mxu0 %v1869
        %3226 = vmatprep.mubr.bf16.mxu0 %v516
        %3227 = vmatmul.mubr.bf16.gmra.mxu0 %v515
        %v3228 = vpop.f32.mrf.mxu0
        %v3229 = vadd.f32 %v3188, %v3228
        %v3230 = vpop.f32.mrf.mxu0
        %v3231 = vadd.f32 %v3190, %v3230
        %v3232 = vpop.f32.mrf.mxu0
        %v3233 = vpop.f32.mrf.mxu0
        %3234 = vdwg.mxu0
        %3235 = vmatprep.subr.bf16.mxu0 %v2230
        %3236 = vmatpush1.bf16.msra.mxu0 %v2229
        %3237 = vmatprep.subr.bf16.mxu0 %v2206
        %3238 = vmatpush1.bf16.msra.mxu0 %v2205
        %3239 = vmatprep.subr.bf16.mxu0 %v2182
        %3240 = vmatpush1.bf16.msra.mxu0 %v2181
        %3241 = vmatprep.subr.bf16.mxu0 %v2158
        %3242 = vmatpush1.bf16.msra.mxu0 %v2157
        %3243 = vmatprep.subr.bf16.mxu0 %v2134
        %3244 = vmatpush1.bf16.msra.mxu0 %v2133
        %3245 = vmatprep.subr.bf16.mxu0 %v2110
        %3246 = vmatpush1.bf16.msra.mxu0 %v2109
        %3247 = vmatprep.subr.bf16.mxu0 %v2086
        %3248 = vmatpush1.bf16.msra.mxu0 %v2085
        %3249 = vmatprep.subr.bf16.mxu0 %v2062
        %3250 = vmatpush1.bf16.msra.mxu0 %v2061
        %3251 = vmatprep.subr.bf16.mxu0 %v2422
        %3252 = vmatpush2.bf16.msra.mxu0 %v2421
        %3253 = vmatprep.subr.bf16.mxu0 %v2398
        %3254 = vmatpush2.bf16.msra.mxu0 %v2397
        %3255 = vmatprep.subr.bf16.mxu0 %v2374
        %3256 = vmatpush2.bf16.msra.mxu0 %v2373
        %3257 = vmatprep.subr.bf16.mxu0 %v2350
        %3258 = vmatpush2.bf16.msra.mxu0 %v2349
        %3259 = vmatprep.subr.bf16.mxu0 %v2326
        %3260 = vmatpush2.bf16.msra.mxu0 %v2325
        %3261 = vmatprep.subr.bf16.mxu0 %v2302
        %3262 = vmatpush2.bf16.msra.mxu0 %v2301
        %3263 = vmatprep.subr.bf16.mxu0 %v2278
        %3264 = vmatpush2.bf16.msra.mxu0 %v2277
        %3265 = vmatprep.subr.bf16.mxu0 %v2254
        %3266 = vmatpush2.bf16.msra.mxu0 %v2253
        %3267 = vmatprep.mubr.bf16.mxu0 %v518
        %3268 = vmatmul.mubr.bf16.gmra.mxu0 %v517
        %v3269 = vpop.f32.mrf.mxu0
        %v3270 = vadd.f32 %v3229, %v3269
        %v3271 = vpop.f32.mrf.mxu0
        %v3272 = vadd.f32 %v3231, %v3271
        %v3273 = vpop.f32.mrf.mxu0
        %v3274 = vpop.f32.mrf.mxu0
        %3275 = vdwg.mxu0
        %3276 = vmatprep.subr.bf16.mxu0 %v2614
        %3277 = vmatpush1.bf16.msra.mxu0 %v2613
        %3278 = vmatprep.subr.bf16.mxu0 %v2590
        %3279 = vmatpush1.bf16.msra.mxu0 %v2589
        %3280 = vmatprep.subr.bf16.mxu0 %v2566
        %3281 = vmatpush1.bf16.msra.mxu0 %v2565
        %3282 = vmatprep.subr.bf16.mxu0 %v2542
        %3283 = vmatpush1.bf16.msra.mxu0 %v2541
        %3284 = vmatprep.subr.bf16.mxu0 %v2518
        %3285 = vmatpush1.bf16.msra.mxu0 %v2517
        %3286 = vmatprep.subr.bf16.mxu0 %v2494
        %3287 = vmatpush1.bf16.msra.mxu0 %v2493
        %3288 = vmatprep.subr.bf16.mxu0 %v2470
        %3289 = vmatpush1.bf16.msra.mxu0 %v2469
        %3290 = vmatprep.subr.bf16.mxu0 %v2446
        %3291 = vmatpush1.bf16.msra.mxu0 %v2445
        %3292 = vmatprep.subr.bf16.mxu0 %v2806
        %3293 = vmatpush2.bf16.msra.mxu0 %v2805
        %3294 = vmatprep.subr.bf16.mxu0 %v2782
        %3295 = vmatpush2.bf16.msra.mxu0 %v2781
        %3296 = vmatprep.subr.bf16.mxu0 %v2758
        %3297 = vmatpush2.bf16.msra.mxu0 %v2757
        %3298 = vmatprep.subr.bf16.mxu0 %v2734
        %3299 = vmatpush2.bf16.msra.mxu0 %v2733
        %3300 = vmatprep.subr.bf16.mxu0 %v2710
        %3301 = vmatpush2.bf16.msra.mxu0 %v2709
        %3302 = vmatprep.subr.bf16.mxu0 %v2686
        %3303 = vmatpush2.bf16.msra.mxu0 %v2685
        %3304 = vmatprep.subr.bf16.mxu0 %v2662
        %3305 = vmatpush2.bf16.msra.mxu0 %v2661
        %3306 = vmatprep.subr.bf16.mxu0 %v2638
        %3307 = vmatpush2.bf16.msra.mxu0 %v2637
        %3308 = vmatprep.mubr.bf16.mxu0 %v520
        %3309 = vmatmul.mubr.bf16.gmra.mxu0 %v519
        %v3310 = vpop.f32.mrf.mxu0
        %v3311 = vadd.f32 %v3270, %v3310
        %v3312 = vpop.f32.mrf.mxu0
        %v3313 = vadd.f32 %v3272, %v3312
        %v3314 = vpop.f32.mrf.mxu0
        %v3315 = vpop.f32.mrf.mxu0
        %3316 = vdwg.mxu0
        %3317 = vmatprep.subr.bf16.mxu0 %v1464
        %3318 = vmatpush1.bf16.msra.mxu0 %v1463
        %3319 = vmatprep.subr.bf16.mxu0 %v1440
        %3320 = vmatpush1.bf16.msra.mxu0 %v1439
        %3321 = vmatprep.subr.bf16.mxu0 %v1416
        %3322 = vmatpush1.bf16.msra.mxu0 %v1415
        %3323 = vmatprep.subr.bf16.mxu0 %v1392
        %3324 = vmatpush1.bf16.msra.mxu0 %v1391
        %3325 = vmatprep.subr.bf16.mxu0 %v1368
        %3326 = vmatpush1.bf16.msra.mxu0 %v1367
        %3327 = vmatprep.subr.bf16.mxu0 %v1344
        %3328 = vmatpush1.bf16.msra.mxu0 %v1343
        %3329 = vmatprep.subr.bf16.mxu0 %v1320
        %3330 = vmatpush1.bf16.msra.mxu0 %v1319
        %3331 = vmatprep.subr.bf16.mxu0 %v1296
        %3332 = vmatpush1.bf16.msra.mxu0 %v1295
        %3333 = vmatprep.subr.bf16.mxu0 %v1656
        %3334 = vmatpush2.bf16.msra.mxu0 %v1655
        %3335 = vmatprep.subr.bf16.mxu0 %v1632
        %3336 = vmatpush2.bf16.msra.mxu0 %v1631
        %3337 = vmatprep.subr.bf16.mxu0 %v1608
        %3338 = vmatpush2.bf16.msra.mxu0 %v1607
        %3339 = vmatprep.subr.bf16.mxu0 %v1584
        %3340 = vmatpush2.bf16.msra.mxu0 %v1583
        %3341 = vmatprep.subr.bf16.mxu0 %v1560
        %3342 = vmatpush2.bf16.msra.mxu0 %v1559
        %3343 = vmatprep.subr.bf16.mxu0 %v1536
        %3344 = vmatpush2.bf16.msra.mxu0 %v1535
        %3345 = vmatprep.subr.bf16.mxu0 %v1512
        %3346 = vmatpush2.bf16.msra.mxu0 %v1511
        %3347 = vmatprep.subr.bf16.mxu0 %v1488
        %3348 = vmatpush2.bf16.msra.mxu0 %v1487
        %3349 = vmatprep.mubr.bf16.mxu0 %v514
        %3350 = vmatmul.mubr.bf16.gmra.mxu0 %v513
        %v3351 = vpop.f32.mrf.mxu0
        %v3352 = vadd.f32 0.0, %v3351
        %v3353 = vpop.f32.mrf.mxu0
        %v3354 = vadd.f32 0.0, %v3353
        %v3355 = vpop.f32.mrf.mxu0
        %v3356 = vpop.f32.mrf.mxu0
        %3357 = vdwg.mxu0
        %3358 = vmatprep.subr.bf16.mxu0 %v1848
        %3359 = vmatpush1.bf16.msra.mxu0 %v1847
        %3360 = vmatprep.subr.bf16.mxu0 %v1824
        %3361 = vmatpush1.bf16.msra.mxu0 %v1823
        %3362 = vmatprep.subr.bf16.mxu0 %v1800
        %3363 = vmatpush1.bf16.msra.mxu0 %v1799
        %3364 = vmatprep.subr.bf16.mxu0 %v1776
        %3365 = vmatpush1.bf16.msra.mxu0 %v1775
        %3366 = vmatprep.subr.bf16.mxu0 %v1752
        %3367 = vmatpush1.bf16.msra.mxu0 %v1751
        %3368 = vmatprep.subr.bf16.mxu0 %v1728
        %3369 = vmatpush1.bf16.msra.mxu0 %v1727
        %3370 = vmatprep.subr.bf16.mxu0 %v1704
        %3371 = vmatpush1.bf16.msra.mxu0 %v1703
        %3372 = vmatprep.subr.bf16.mxu0 %v1680
        %3373 = vmatpush1.bf16.msra.mxu0 %v1679
        %3374 = vmatprep.subr.bf16.mxu0 %v2040
        %3375 = vmatpush2.bf16.msra.mxu0 %v2039
        %3376 = vmatprep.subr.bf16.mxu0 %v2016
        %3377 = vmatpush2.bf16.msra.mxu0 %v2015
        %3378 = vmatprep.subr.bf16.mxu0 %v1992
        %3379 = vmatpush2.bf16.msra.mxu0 %v1991
        %3380 = vmatprep.subr.bf16.mxu0 %v1968
        %3381 = vmatpush2.bf16.msra.mxu0 %v1967
        %3382 = vmatprep.subr.bf16.mxu0 %v1944
        %3383 = vmatpush2.bf16.msra.mxu0 %v1943
        %3384 = vmatprep.subr.bf16.mxu0 %v1920
        %3385 = vmatpush2.bf16.msra.mxu0 %v1919
        %3386 = vmatprep.subr.bf16.mxu0 %v1896
        %3387 = vmatpush2.bf16.msra.mxu0 %v1895
        %3388 = vmatprep.subr.bf16.mxu0 %v1872
        %3389 = vmatpush2.bf16.msra.mxu0 %v1871
        %3390 = vmatprep.mubr.bf16.mxu0 %v516
        %3391 = vmatmul.mubr.bf16.gmra.mxu0 %v515
        %v3392 = vpop.f32.mrf.mxu0
        %v3393 = vadd.f32 %v3352, %v3392
        %v3394 = vpop.f32.mrf.mxu0
        %v3395 = vadd.f32 %v3354, %v3394
        %v3396 = vpop.f32.mrf.mxu0
        %v3397 = vpop.f32.mrf.mxu0
        %3398 = vdwg.mxu0
        %3399 = vmatprep.subr.bf16.mxu0 %v2232
        %3400 = vmatpush1.bf16.msra.mxu0 %v2231
        %3401 = vmatprep.subr.bf16.mxu0 %v2208
        %3402 = vmatpush1.bf16.msra.mxu0 %v2207
        %3403 = vmatprep.subr.bf16.mxu0 %v2184
        %3404 = vmatpush1.bf16.msra.mxu0 %v2183
        %3405 = vmatprep.subr.bf16.mxu0 %v2160
        %3406 = vmatpush1.bf16.msra.mxu0 %v2159
        %3407 = vmatprep.subr.bf16.mxu0 %v2136
        %3408 = vmatpush1.bf16.msra.mxu0 %v2135
        %3409 = vmatprep.subr.bf16.mxu0 %v2112
        %3410 = vmatpush1.bf16.msra.mxu0 %v2111
        %3411 = vmatprep.subr.bf16.mxu0 %v2088
        %3412 = vmatpush1.bf16.msra.mxu0 %v2087
        %3413 = vmatprep.subr.bf16.mxu0 %v2064
        %3414 = vmatpush1.bf16.msra.mxu0 %v2063
        %3415 = vmatprep.subr.bf16.mxu0 %v2424
        %3416 = vmatpush2.bf16.msra.mxu0 %v2423
        %3417 = vmatprep.subr.bf16.mxu0 %v2400
        %3418 = vmatpush2.bf16.msra.mxu0 %v2399
        %3419 = vmatprep.subr.bf16.mxu0 %v2376
        %3420 = vmatpush2.bf16.msra.mxu0 %v2375
        %3421 = vmatprep.subr.bf16.mxu0 %v2352
        %3422 = vmatpush2.bf16.msra.mxu0 %v2351
        %3423 = vmatprep.subr.bf16.mxu0 %v2328
        %3424 = vmatpush2.bf16.msra.mxu0 %v2327
        %3425 = vmatprep.subr.bf16.mxu0 %v2304
        %3426 = vmatpush2.bf16.msra.mxu0 %v2303
        %3427 = vmatprep.subr.bf16.mxu0 %v2280
        %3428 = vmatpush2.bf16.msra.mxu0 %v2279
        %3429 = vmatprep.subr.bf16.mxu0 %v2256
        %3430 = vmatpush2.bf16.msra.mxu0 %v2255
        %3431 = vmatprep.mubr.bf16.mxu0 %v518
        %3432 = vmatmul.mubr.bf16.gmra.mxu0 %v517
        %v3433 = vpop.f32.mrf.mxu0
        %v3434 = vadd.f32 %v3393, %v3433
        %v3435 = vpop.f32.mrf.mxu0
        %v3436 = vadd.f32 %v3395, %v3435
        %v3437 = vpop.f32.mrf.mxu0
        %v3438 = vpop.f32.mrf.mxu0
        %3439 = vdwg.mxu0
        %3440 = vmatprep.subr.bf16.mxu0 %v2616
        %3441 = vmatpush1.bf16.msra.mxu0 %v2615
        %3442 = vmatprep.subr.bf16.mxu0 %v2592
        %3443 = vmatpush1.bf16.msra.mxu0 %v2591
        %3444 = vmatprep.subr.bf16.mxu0 %v2568
        %3445 = vmatpush1.bf16.msra.mxu0 %v2567
        %3446 = vmatprep.subr.bf16.mxu0 %v2544
        %3447 = vmatpush1.bf16.msra.mxu0 %v2543
        %3448 = vmatprep.subr.bf16.mxu0 %v2520
        %3449 = vmatpush1.bf16.msra.mxu0 %v2519
        %3450 = vmatprep.subr.bf16.mxu0 %v2496
        %3451 = vmatpush1.bf16.msra.mxu0 %v2495
        %3452 = vmatprep.subr.bf16.mxu0 %v2472
        %3453 = vmatpush1.bf16.msra.mxu0 %v2471
        %3454 = vmatprep.subr.bf16.mxu0 %v2448
        %3455 = vmatpush1.bf16.msra.mxu0 %v2447
        %3456 = vmatprep.subr.bf16.mxu0 %v2808
        %3457 = vmatpush2.bf16.msra.mxu0 %v2807
        %3458 = vmatprep.subr.bf16.mxu0 %v2784
        %3459 = vmatpush2.bf16.msra.mxu0 %v2783
        %3460 = vmatprep.subr.bf16.mxu0 %v2760
        %3461 = vmatpush2.bf16.msra.mxu0 %v2759
        %3462 = vmatprep.subr.bf16.mxu0 %v2736
        %3463 = vmatpush2.bf16.msra.mxu0 %v2735
        %3464 = vmatprep.subr.bf16.mxu0 %v2712
        %3465 = vmatpush2.bf16.msra.mxu0 %v2711
        %3466 = vmatprep.subr.bf16.mxu0 %v2688
        %3467 = vmatpush2.bf16.msra.mxu0 %v2687
        %3468 = vmatprep.subr.bf16.mxu0 %v2664
        %3469 = vmatpush2.bf16.msra.mxu0 %v2663
        %3470 = vmatprep.subr.bf16.mxu0 %v2640
        %3471 = vmatpush2.bf16.msra.mxu0 %v2639
        %3472 = vmatprep.mubr.bf16.mxu0 %v520
        %3473 = vmatmul.mubr.bf16.gmra.mxu0 %v519
        %v3474 = vpop.f32.mrf.mxu0
        %v3475 = vadd.f32 %v3434, %v3474
        %v3476 = vpop.f32.mrf.mxu0
        %v3477 = vadd.f32 %v3436, %v3476
        %v3478 = vpop.f32.mrf.mxu0
        %v3479 = vpop.f32.mrf.mxu0
        %3480 = vdwg.mxu0
        %3481 = vmatprep.subr.bf16.mxu0 %v1466
        %3482 = vmatpush1.bf16.msra.mxu0 %v1465
        %3483 = vmatprep.subr.bf16.mxu0 %v1442
        %3484 = vmatpush1.bf16.msra.mxu0 %v1441
        %3485 = vmatprep.subr.bf16.mxu0 %v1418
        %3486 = vmatpush1.bf16.msra.mxu0 %v1417
        %3487 = vmatprep.subr.bf16.mxu0 %v1394
        %3488 = vmatpush1.bf16.msra.mxu0 %v1393
        %3489 = vmatprep.subr.bf16.mxu0 %v1370
        %3490 = vmatpush1.bf16.msra.mxu0 %v1369
        %3491 = vmatprep.subr.bf16.mxu0 %v1346
        %3492 = vmatpush1.bf16.msra.mxu0 %v1345
        %3493 = vmatprep.subr.bf16.mxu0 %v1322
        %3494 = vmatpush1.bf16.msra.mxu0 %v1321
        %3495 = vmatprep.subr.bf16.mxu0 %v1298
        %3496 = vmatpush1.bf16.msra.mxu0 %v1297
        %3497 = vmatprep.subr.bf16.mxu0 %v1658
        %3498 = vmatpush2.bf16.msra.mxu0 %v1657
        %3499 = vmatprep.subr.bf16.mxu0 %v1634
        %3500 = vmatpush2.bf16.msra.mxu0 %v1633
        %3501 = vmatprep.subr.bf16.mxu0 %v1610
        %3502 = vmatpush2.bf16.msra.mxu0 %v1609
        %3503 = vmatprep.subr.bf16.mxu0 %v1586
        %3504 = vmatpush2.bf16.msra.mxu0 %v1585
        %3505 = vmatprep.subr.bf16.mxu0 %v1562
        %3506 = vmatpush2.bf16.msra.mxu0 %v1561
        %3507 = vmatprep.subr.bf16.mxu0 %v1538
        %3508 = vmatpush2.bf16.msra.mxu0 %v1537
        %3509 = vmatprep.subr.bf16.mxu0 %v1514
        %3510 = vmatpush2.bf16.msra.mxu0 %v1513
        %3511 = vmatprep.subr.bf16.mxu0 %v1490
        %3512 = vmatpush2.bf16.msra.mxu0 %v1489
        %3513 = vmatprep.mubr.bf16.mxu0 %v514
        %3514 = vmatmul.mubr.bf16.gmra.mxu0 %v513
        %v3515 = vpop.f32.mrf.mxu0
        %v3516 = vadd.f32 0.0, %v3515
        %v3517 = vpop.f32.mrf.mxu0
        %v3518 = vadd.f32 0.0, %v3517
        %v3519 = vpop.f32.mrf.mxu0
        %v3520 = vpop.f32.mrf.mxu0
        %3521 = vdwg.mxu0
        %3522 = vmatprep.subr.bf16.mxu0 %v1850
        %3523 = vmatpush1.bf16.msra.mxu0 %v1849
        %3524 = vmatprep.subr.bf16.mxu0 %v1826
        %3525 = vmatpush1.bf16.msra.mxu0 %v1825
        %3526 = vmatprep.subr.bf16.mxu0 %v1802
        %3527 = vmatpush1.bf16.msra.mxu0 %v1801
        %3528 = vmatprep.subr.bf16.mxu0 %v1778
        %3529 = vmatpush1.bf16.msra.mxu0 %v1777
        %3530 = vmatprep.subr.bf16.mxu0 %v1754
        %3531 = vmatpush1.bf16.msra.mxu0 %v1753
        %3532 = vmatprep.subr.bf16.mxu0 %v1730
        %3533 = vmatpush1.bf16.msra.mxu0 %v1729
        %3534 = vmatprep.subr.bf16.mxu0 %v1706
        %3535 = vmatpush1.bf16.msra.mxu0 %v1705
        %3536 = vmatprep.subr.bf16.mxu0 %v1682
        %3537 = vmatpush1.bf16.msra.mxu0 %v1681
        %3538 = vmatprep.subr.bf16.mxu0 %v2042
        %3539 = vmatpush2.bf16.msra.mxu0 %v2041
        %3540 = vmatprep.subr.bf16.mxu0 %v2018
        %3541 = vmatpush2.bf16.msra.mxu0 %v2017
        %3542 = vmatprep.subr.bf16.mxu0 %v1994
        %3543 = vmatpush2.bf16.msra.mxu0 %v1993
        %3544 = vmatprep.subr.bf16.mxu0 %v1970
        %3545 = vmatpush2.bf16.msra.mxu0 %v1969
        %3546 = vmatprep.subr.bf16.mxu0 %v1946
        %3547 = vmatpush2.bf16.msra.mxu0 %v1945
        %3548 = vmatprep.subr.bf16.mxu0 %v1922
        %3549 = vmatpush2.bf16.msra.mxu0 %v1921
        %3550 = vmatprep.subr.bf16.mxu0 %v1898
        %3551 = vmatpush2.bf16.msra.mxu0 %v1897
        %3552 = vmatprep.subr.bf16.mxu0 %v1874
        %3553 = vmatpush2.bf16.msra.mxu0 %v1873
        %3554 = vmatprep.mubr.bf16.mxu0 %v516
        %3555 = vmatmul.mubr.bf16.gmra.mxu0 %v515
        %v3556 = vpop.f32.mrf.mxu0
        %v3557 = vadd.f32 %v3516, %v3556
        %v3558 = vpop.f32.mrf.mxu0
        %v3559 = vadd.f32 %v3518, %v3558
        %v3560 = vpop.f32.mrf.mxu0
        %v3561 = vpop.f32.mrf.mxu0
        %3562 = vdwg.mxu0
        %3563 = vmatprep.subr.bf16.mxu0 %v2234
        %3564 = vmatpush1.bf16.msra.mxu0 %v2233
        %3565 = vmatprep.subr.bf16.mxu0 %v2210
        %3566 = vmatpush1.bf16.msra.mxu0 %v2209
        %3567 = vmatprep.subr.bf16.mxu0 %v2186
        %3568 = vmatpush1.bf16.msra.mxu0 %v2185
        %3569 = vmatprep.subr.bf16.mxu0 %v2162
        %3570 = vmatpush1.bf16.msra.mxu0 %v2161
        %3571 = vmatprep.subr.bf16.mxu0 %v2138
        %3572 = vmatpush1.bf16.msra.mxu0 %v2137
        %3573 = vmatprep.subr.bf16.mxu0 %v2114
        %3574 = vmatpush1.bf16.msra.mxu0 %v2113
        %3575 = vmatprep.subr.bf16.mxu0 %v2090
        %3576 = vmatpush1.bf16.msra.mxu0 %v2089
        %3577 = vmatprep.subr.bf16.mxu0 %v2066
        %3578 = vmatpush1.bf16.msra.mxu0 %v2065
        %3579 = vmatprep.subr.bf16.mxu0 %v2426
        %3580 = vmatpush2.bf16.msra.mxu0 %v2425
        %3581 = vmatprep.subr.bf16.mxu0 %v2402
        %3582 = vmatpush2.bf16.msra.mxu0 %v2401
        %3583 = vmatprep.subr.bf16.mxu0 %v2378
        %3584 = vmatpush2.bf16.msra.mxu0 %v2377
        %3585 = vmatprep.subr.bf16.mxu0 %v2354
        %3586 = vmatpush2.bf16.msra.mxu0 %v2353
        %3587 = vmatprep.subr.bf16.mxu0 %v2330
        %3588 = vmatpush2.bf16.msra.mxu0 %v2329
        %3589 = vmatprep.subr.bf16.mxu0 %v2306
        %3590 = vmatpush2.bf16.msra.mxu0 %v2305
        %3591 = vmatprep.subr.bf16.mxu0 %v2282
        %3592 = vmatpush2.bf16.msra.mxu0 %v2281
        %3593 = vmatprep.subr.bf16.mxu0 %v2258
        %3594 = vmatpush2.bf16.msra.mxu0 %v2257
        %3595 = vmatprep.mubr.bf16.mxu0 %v518
        %3596 = vmatmul.mubr.bf16.gmra.mxu0 %v517
        %v3597 = vpop.f32.mrf.mxu0
        %v3598 = vadd.f32 %v3557, %v3597
        %v3599 = vpop.f32.mrf.mxu0
        %v3600 = vadd.f32 %v3559, %v3599
        %v3601 = vpop.f32.mrf.mxu0
        %v3602 = vpop.f32.mrf.mxu0
        %3603 = vdwg.mxu0
        %3604 = vmatprep.subr.bf16.mxu0 %v2618
        %3605 = vmatpush1.bf16.msra.mxu0 %v2617
        %3606 = vmatprep.subr.bf16.mxu0 %v2594
        %3607 = vmatpush1.bf16.msra.mxu0 %v2593
        %3608 = vmatprep.subr.bf16.mxu0 %v2570
        %3609 = vmatpush1.bf16.msra.mxu0 %v2569
        %3610 = vmatprep.subr.bf16.mxu0 %v2546
        %3611 = vmatpush1.bf16.msra.mxu0 %v2545
        %3612 = vmatprep.subr.bf16.mxu0 %v2522
        %3613 = vmatpush1.bf16.msra.mxu0 %v2521
        %3614 = vmatprep.subr.bf16.mxu0 %v2498
        %3615 = vmatpush1.bf16.msra.mxu0 %v2497
        %3616 = vmatprep.subr.bf16.mxu0 %v2474
        %3617 = vmatpush1.bf16.msra.mxu0 %v2473
        %3618 = vmatprep.subr.bf16.mxu0 %v2450
        %3619 = vmatpush1.bf16.msra.mxu0 %v2449
        %3620 = vmatprep.subr.bf16.mxu0 %v2810
        %3621 = vmatpush2.bf16.msra.mxu0 %v2809
        %3622 = vmatprep.subr.bf16.mxu0 %v2786
        %3623 = vmatpush2.bf16.msra.mxu0 %v2785
        %3624 = vmatprep.subr.bf16.mxu0 %v2762
        %3625 = vmatpush2.bf16.msra.mxu0 %v2761
        %3626 = vmatprep.subr.bf16.mxu0 %v2738
        %3627 = vmatpush2.bf16.msra.mxu0 %v2737
        %3628 = vmatprep.subr.bf16.mxu0 %v2714
        %3629 = vmatpush2.bf16.msra.mxu0 %v2713
        %3630 = vmatprep.subr.bf16.mxu0 %v2690
        %3631 = vmatpush2.bf16.msra.mxu0 %v2689
        %3632 = vmatprep.subr.bf16.mxu0 %v2666
        %3633 = vmatpush2.bf16.msra.mxu0 %v2665
        %3634 = vmatprep.subr.bf16.mxu0 %v2642
        %3635 = vmatpush2.bf16.msra.mxu0 %v2641
        %3636 = vmatprep.mubr.bf16.mxu0 %v520
        %3637 = vmatmul.mubr.bf16.gmra.mxu0 %v519
        %v3638 = vpop.f32.mrf.mxu0
        %v3639 = vadd.f32 %v3598, %v3638
        %v3640 = vpop.f32.mrf.mxu0
        %v3641 = vadd.f32 %v3600, %v3640
        %v3642 = vpop.f32.mrf.mxu0
        %v3643 = vpop.f32.mrf.mxu0
        %3644 = vdwg.mxu0
        %3645 = vmatprep.subr.bf16.mxu0 %v1468
        %3646 = vmatpush1.bf16.msra.mxu0 %v1467
        %3647 = vmatprep.subr.bf16.mxu0 %v1444
        %3648 = vmatpush1.bf16.msra.mxu0 %v1443
        %3649 = vmatprep.subr.bf16.mxu0 %v1420
        %3650 = vmatpush1.bf16.msra.mxu0 %v1419
        %3651 = vmatprep.subr.bf16.mxu0 %v1396
        %3652 = vmatpush1.bf16.msra.mxu0 %v1395
        %3653 = vmatprep.subr.bf16.mxu0 %v1372
        %3654 = vmatpush1.bf16.msra.mxu0 %v1371
        %3655 = vmatprep.subr.bf16.mxu0 %v1348
        %3656 = vmatpush1.bf16.msra.mxu0 %v1347
        %3657 = vmatprep.subr.bf16.mxu0 %v1324
        %3658 = vmatpush1.bf16.msra.mxu0 %v1323
        %3659 = vmatprep.subr.bf16.mxu0 %v1300
        %3660 = vmatpush1.bf16.msra.mxu0 %v1299
        %3661 = vmatprep.subr.bf16.mxu0 %v1660
        %3662 = vmatpush2.bf16.msra.mxu0 %v1659
        %3663 = vmatprep.subr.bf16.mxu0 %v1636
        %3664 = vmatpush2.bf16.msra.mxu0 %v1635
        %3665 = vmatprep.subr.bf16.mxu0 %v1612
        %3666 = vmatpush2.bf16.msra.mxu0 %v1611
        %3667 = vmatprep.subr.bf16.mxu0 %v1588
        %3668 = vmatpush2.bf16.msra.mxu0 %v1587
        %3669 = vmatprep.subr.bf16.mxu0 %v1564
        %3670 = vmatpush2.bf16.msra.mxu0 %v1563
        %3671 = vmatprep.subr.bf16.mxu0 %v1540
        %3672 = vmatpush2.bf16.msra.mxu0 %v1539
        %3673 = vmatprep.subr.bf16.mxu0 %v1516
        %3674 = vmatpush2.bf16.msra.mxu0 %v1515
        %3675 = vmatprep.subr.bf16.mxu0 %v1492
        %3676 = vmatpush2.bf16.msra.mxu0 %v1491
        %3677 = vmatprep.mubr.bf16.mxu0 %v514
        %3678 = vmatmul.mubr.bf16.gmra.mxu0 %v513
        %v3679 = vpop.f32.mrf.mxu0
        %v3680 = vadd.f32 0.0, %v3679
        %v3681 = vpop.f32.mrf.mxu0
        %v3682 = vadd.f32 0.0, %v3681
        %v3683 = vpop.f32.mrf.mxu0
        %v3684 = vpop.f32.mrf.mxu0
        %3685 = vdwg.mxu0
        %3686 = vmatprep.subr.bf16.mxu0 %v1852
        %3687 = vmatpush1.bf16.msra.mxu0 %v1851
        %3688 = vmatprep.subr.bf16.mxu0 %v1828
        %3689 = vmatpush1.bf16.msra.mxu0 %v1827
        %3690 = vmatprep.subr.bf16.mxu0 %v1804
        %3691 = vmatpush1.bf16.msra.mxu0 %v1803
        %3692 = vmatprep.subr.bf16.mxu0 %v1780
        %3693 = vmatpush1.bf16.msra.mxu0 %v1779
        %3694 = vmatprep.subr.bf16.mxu0 %v1756
        %3695 = vmatpush1.bf16.msra.mxu0 %v1755
        %3696 = vmatprep.subr.bf16.mxu0 %v1732
        %3697 = vmatpush1.bf16.msra.mxu0 %v1731
        %3698 = vmatprep.subr.bf16.mxu0 %v1708
        %3699 = vmatpush1.bf16.msra.mxu0 %v1707
        %3700 = vmatprep.subr.bf16.mxu0 %v1684
        %3701 = vmatpush1.bf16.msra.mxu0 %v1683
        %3702 = vmatprep.subr.bf16.mxu0 %v2044
        %3703 = vmatpush2.bf16.msra.mxu0 %v2043
        %3704 = vmatprep.subr.bf16.mxu0 %v2020
        %3705 = vmatpush2.bf16.msra.mxu0 %v2019
        %3706 = vmatprep.subr.bf16.mxu0 %v1996
        %3707 = vmatpush2.bf16.msra.mxu0 %v1995
        %3708 = vmatprep.subr.bf16.mxu0 %v1972
        %3709 = vmatpush2.bf16.msra.mxu0 %v1971
        %3710 = vmatprep.subr.bf16.mxu0 %v1948
        %3711 = vmatpush2.bf16.msra.mxu0 %v1947
        %3712 = vmatprep.subr.bf16.mxu0 %v1924
        %3713 = vmatpush2.bf16.msra.mxu0 %v1923
        %3714 = vmatprep.subr.bf16.mxu0 %v1900
        %3715 = vmatpush2.bf16.msra.mxu0 %v1899
        %3716 = vmatprep.subr.bf16.mxu0 %v1876
        %3717 = vmatpush2.bf16.msra.mxu0 %v1875
        %3718 = vmatprep.mubr.bf16.mxu0 %v516
        %3719 = vmatmul.mubr.bf16.gmra.mxu0 %v515
        %v3720 = vpop.f32.mrf.mxu0
        %v3721 = vadd.f32 %v3680, %v3720
        %v3722 = vpop.f32.mrf.mxu0
        %v3723 = vadd.f32 %v3682, %v3722
        %v3724 = vpop.f32.mrf.mxu0
        %v3725 = vpop.f32.mrf.mxu0
        %3726 = vdwg.mxu0
        %3727 = vmatprep.subr.bf16.mxu0 %v2236
        %3728 = vmatpush1.bf16.msra.mxu0 %v2235
        %3729 = vmatprep.subr.bf16.mxu0 %v2212
        %3730 = vmatpush1.bf16.msra.mxu0 %v2211
        %3731 = vmatprep.subr.bf16.mxu0 %v2188
        %3732 = vmatpush1.bf16.msra.mxu0 %v2187
        %3733 = vmatprep.subr.bf16.mxu0 %v2164
        %3734 = vmatpush1.bf16.msra.mxu0 %v2163
        %3735 = vmatprep.subr.bf16.mxu0 %v2140
        %3736 = vmatpush1.bf16.msra.mxu0 %v2139
        %3737 = vmatprep.subr.bf16.mxu0 %v2116
        %3738 = vmatpush1.bf16.msra.mxu0 %v2115
        %3739 = vmatprep.subr.bf16.mxu0 %v2092
        %3740 = vmatpush1.bf16.msra.mxu0 %v2091
        %3741 = vmatprep.subr.bf16.mxu0 %v2068
        %3742 = vmatpush1.bf16.msra.mxu0 %v2067
        %3743 = vmatprep.subr.bf16.mxu0 %v2428
        %3744 = vmatpush2.bf16.msra.mxu0 %v2427
        %3745 = vmatprep.subr.bf16.mxu0 %v2404
        %3746 = vmatpush2.bf16.msra.mxu0 %v2403
        %3747 = vmatprep.subr.bf16.mxu0 %v2380
        %3748 = vmatpush2.bf16.msra.mxu0 %v2379
        %3749 = vmatprep.subr.bf16.mxu0 %v2356
        %3750 = vmatpush2.bf16.msra.mxu0 %v2355
        %3751 = vmatprep.subr.bf16.mxu0 %v2332
        %3752 = vmatpush2.bf16.msra.mxu0 %v2331
        %3753 = vmatprep.subr.bf16.mxu0 %v2308
        %3754 = vmatpush2.bf16.msra.mxu0 %v2307
        %3755 = vmatprep.subr.bf16.mxu0 %v2284
        %3756 = vmatpush2.bf16.msra.mxu0 %v2283
        %3757 = vmatprep.subr.bf16.mxu0 %v2260
        %3758 = vmatpush2.bf16.msra.mxu0 %v2259
        %3759 = vmatprep.mubr.bf16.mxu0 %v518
        %3760 = vmatmul.mubr.bf16.gmra.mxu0 %v517
        %v3761 = vpop.f32.mrf.mxu0
        %v3762 = vadd.f32 %v3721, %v3761
        %v3763 = vpop.f32.mrf.mxu0
        %v3764 = vadd.f32 %v3723, %v3763
        %v3765 = vpop.f32.mrf.mxu0
        %v3766 = vpop.f32.mrf.mxu0
        %3767 = vdwg.mxu0
        %3768 = vmatprep.subr.bf16.mxu0 %v2620
        %3769 = vmatpush1.bf16.msra.mxu0 %v2619
        %3770 = vmatprep.subr.bf16.mxu0 %v2596
        %3771 = vmatpush1.bf16.msra.mxu0 %v2595
        %3772 = vmatprep.subr.bf16.mxu0 %v2572
        %3773 = vmatpush1.bf16.msra.mxu0 %v2571
        %3774 = vmatprep.subr.bf16.mxu0 %v2548
        %3775 = vmatpush1.bf16.msra.mxu0 %v2547
        %3776 = vmatprep.subr.bf16.mxu0 %v2524
        %3777 = vmatpush1.bf16.msra.mxu0 %v2523
        %3778 = vmatprep.subr.bf16.mxu0 %v2500
        %3779 = vmatpush1.bf16.msra.mxu0 %v2499
        %3780 = vmatprep.subr.bf16.mxu0 %v2476
        %3781 = vmatpush1.bf16.msra.mxu0 %v2475
        %3782 = vmatprep.subr.bf16.mxu0 %v2452
        %3783 = vmatpush1.bf16.msra.mxu0 %v2451
        %3784 = vmatprep.subr.bf16.mxu0 %v2812
        %3785 = vmatpush2.bf16.msra.mxu0 %v2811
        %3786 = vmatprep.subr.bf16.mxu0 %v2788
        %3787 = vmatpush2.bf16.msra.mxu0 %v2787
        %3788 = vmatprep.subr.bf16.mxu0 %v2764
        %3789 = vmatpush2.bf16.msra.mxu0 %v2763
        %3790 = vmatprep.subr.bf16.mxu0 %v2740
        %3791 = vmatpush2.bf16.msra.mxu0 %v2739
        %3792 = vmatprep.subr.bf16.mxu0 %v2716
        %3793 = vmatpush2.bf16.msra.mxu0 %v2715
        %3794 = vmatprep.subr.bf16.mxu0 %v2692
        %3795 = vmatpush2.bf16.msra.mxu0 %v2691
        %3796 = vmatprep.subr.bf16.mxu0 %v2668
        %3797 = vmatpush2.bf16.msra.mxu0 %v2667
        %3798 = vmatprep.subr.bf16.mxu0 %v2644
        %3799 = vmatpush2.bf16.msra.mxu0 %v2643
        %3800 = vmatprep.mubr.bf16.mxu0 %v520
        %3801 = vmatmul.mubr.bf16.gmra.mxu0 %v519
        %v3802 = vpop.f32.mrf.mxu0
        %v3803 = vadd.f32 %v3762, %v3802
        %v3804 = vpop.f32.mrf.mxu0
        %v3805 = vadd.f32 %v3764, %v3804
        %v3806 = vpop.f32.mrf.mxu0
        %v3807 = vpop.f32.mrf.mxu0
        %3808 = vdwg.mxu0
        %3809 = vmatprep.subr.bf16.mxu0 %v1470
        %3810 = vmatpush1.bf16.msra.mxu0 %v1469
        %3811 = vmatprep.subr.bf16.mxu0 %v1446
        %3812 = vmatpush1.bf16.msra.mxu0 %v1445
        %3813 = vmatprep.subr.bf16.mxu0 %v1422
        %3814 = vmatpush1.bf16.msra.mxu0 %v1421
        %3815 = vmatprep.subr.bf16.mxu0 %v1398
        %3816 = vmatpush1.bf16.msra.mxu0 %v1397
        %3817 = vmatprep.subr.bf16.mxu0 %v1374
        %3818 = vmatpush1.bf16.msra.mxu0 %v1373
        %3819 = vmatprep.subr.bf16.mxu0 %v1350
        %3820 = vmatpush1.bf16.msra.mxu0 %v1349
        %3821 = vmatprep.subr.bf16.mxu0 %v1326
        %3822 = vmatpush1.bf16.msra.mxu0 %v1325
        %3823 = vmatprep.subr.bf16.mxu0 %v1302
        %3824 = vmatpush1.bf16.msra.mxu0 %v1301
        %3825 = vmatprep.subr.bf16.mxu0 %v1662
        %3826 = vmatpush2.bf16.msra.mxu0 %v1661
        %3827 = vmatprep.subr.bf16.mxu0 %v1638
        %3828 = vmatpush2.bf16.msra.mxu0 %v1637
        %3829 = vmatprep.subr.bf16.mxu0 %v1614
        %3830 = vmatpush2.bf16.msra.mxu0 %v1613
        %3831 = vmatprep.subr.bf16.mxu0 %v1590
        %3832 = vmatpush2.bf16.msra.mxu0 %v1589
        %3833 = vmatprep.subr.bf16.mxu0 %v1566
        %3834 = vmatpush2.bf16.msra.mxu0 %v1565
        %3835 = vmatprep.subr.bf16.mxu0 %v1542
        %3836 = vmatpush2.bf16.msra.mxu0 %v1541
        %3837 = vmatprep.subr.bf16.mxu0 %v1518
        %3838 = vmatpush2.bf16.msra.mxu0 %v1517
        %3839 = vmatprep.subr.bf16.mxu0 %v1494
        %3840 = vmatpush2.bf16.msra.mxu0 %v1493
        %3841 = vmatprep.mubr.bf16.mxu0 %v514
        %3842 = vmatmul.mubr.bf16.gmra.mxu0 %v513
        %v3843 = vpop.f32.mrf.mxu0
        %v3844 = vadd.f32 0.0, %v3843
        %v3845 = vpop.f32.mrf.mxu0
        %v3846 = vadd.f32 0.0, %v3845
        %v3847 = vpop.f32.mrf.mxu0
        %v3848 = vpop.f32.mrf.mxu0
        %3849 = vdwg.mxu0
        %3850 = vmatprep.subr.bf16.mxu0 %v1854
        %3851 = vmatpush1.bf16.msra.mxu0 %v1853
        %3852 = vmatprep.subr.bf16.mxu0 %v1830
        %3853 = vmatpush1.bf16.msra.mxu0 %v1829
        %3854 = vmatprep.subr.bf16.mxu0 %v1806
        %3855 = vmatpush1.bf16.msra.mxu0 %v1805
        %3856 = vmatprep.subr.bf16.mxu0 %v1782
        %3857 = vmatpush1.bf16.msra.mxu0 %v1781
        %3858 = vmatprep.subr.bf16.mxu0 %v1758
        %3859 = vmatpush1.bf16.msra.mxu0 %v1757
        %3860 = vmatprep.subr.bf16.mxu0 %v1734
        %3861 = vmatpush1.bf16.msra.mxu0 %v1733
        %3862 = vmatprep.subr.bf16.mxu0 %v1710
        %3863 = vmatpush1.bf16.msra.mxu0 %v1709
        %3864 = vmatprep.subr.bf16.mxu0 %v1686
        %3865 = vmatpush1.bf16.msra.mxu0 %v1685
        %3866 = vmatprep.subr.bf16.mxu0 %v2046
        %3867 = vmatpush2.bf16.msra.mxu0 %v2045
        %3868 = vmatprep.subr.bf16.mxu0 %v2022
        %3869 = vmatpush2.bf16.msra.mxu0 %v2021
        %3870 = vmatprep.subr.bf16.mxu0 %v1998
        %3871 = vmatpush2.bf16.msra.mxu0 %v1997
        %3872 = vmatprep.subr.bf16.mxu0 %v1974
        %3873 = vmatpush2.bf16.msra.mxu0 %v1973
        %3874 = vmatprep.subr.bf16.mxu0 %v1950
        %3875 = vmatpush2.bf16.msra.mxu0 %v1949
        %3876 = vmatprep.subr.bf16.mxu0 %v1926
        %3877 = vmatpush2.bf16.msra.mxu0 %v1925
        %3878 = vmatprep.subr.bf16.mxu0 %v1902
        %3879 = vmatpush2.bf16.msra.mxu0 %v1901
        %3880 = vmatprep.subr.bf16.mxu0 %v1878
        %3881 = vmatpush2.bf16.msra.mxu0 %v1877
        %3882 = vmatprep.mubr.bf16.mxu0 %v516
        %3883 = vmatmul.mubr.bf16.gmra.mxu0 %v515
        %v3884 = vpop.f32.mrf.mxu0
        %v3885 = vadd.f32 %v3844, %v3884
        %v3886 = vpop.f32.mrf.mxu0
        %v3887 = vadd.f32 %v3846, %v3886
        %v3888 = vpop.f32.mrf.mxu0
        %v3889 = vpop.f32.mrf.mxu0
        %3890 = vdwg.mxu0
        %3891 = vmatprep.subr.bf16.mxu0 %v2238
        %3892 = vmatpush1.bf16.msra.mxu0 %v2237
        %3893 = vmatprep.subr.bf16.mxu0 %v2214
        %3894 = vmatpush1.bf16.msra.mxu0 %v2213
        %3895 = vmatprep.subr.bf16.mxu0 %v2190
        %3896 = vmatpush1.bf16.msra.mxu0 %v2189
        %3897 = vmatprep.subr.bf16.mxu0 %v2166
        %3898 = vmatpush1.bf16.msra.mxu0 %v2165
        %3899 = vmatprep.subr.bf16.mxu0 %v2142
        %3900 = vmatpush1.bf16.msra.mxu0 %v2141
        %3901 = vmatprep.subr.bf16.mxu0 %v2118
        %3902 = vmatpush1.bf16.msra.mxu0 %v2117
        %3903 = vmatprep.subr.bf16.mxu0 %v2094
        %3904 = vmatpush1.bf16.msra.mxu0 %v2093
        %3905 = vmatprep.subr.bf16.mxu0 %v2070
        %3906 = vmatpush1.bf16.msra.mxu0 %v2069
        %3907 = vmatprep.subr.bf16.mxu0 %v2430
        %3908 = vmatpush2.bf16.msra.mxu0 %v2429
        %3909 = vmatprep.subr.bf16.mxu0 %v2406
        %3910 = vmatpush2.bf16.msra.mxu0 %v2405
        %3911 = vmatprep.subr.bf16.mxu0 %v2382
        %3912 = vmatpush2.bf16.msra.mxu0 %v2381
        %3913 = vmatprep.subr.bf16.mxu0 %v2358
        %3914 = vmatpush2.bf16.msra.mxu0 %v2357
        %3915 = vmatprep.subr.bf16.mxu0 %v2334
        %3916 = vmatpush2.bf16.msra.mxu0 %v2333
        %3917 = vmatprep.subr.bf16.mxu0 %v2310
        %3918 = vmatpush2.bf16.msra.mxu0 %v2309
        %3919 = vmatprep.subr.bf16.mxu0 %v2286
        %3920 = vmatpush2.bf16.msra.mxu0 %v2285
        %3921 = vmatprep.subr.bf16.mxu0 %v2262
        %3922 = vmatpush2.bf16.msra.mxu0 %v2261
        %3923 = vmatprep.mubr.bf16.mxu0 %v518
        %3924 = vmatmul.mubr.bf16.gmra.mxu0 %v517
        %v3925 = vpop.f32.mrf.mxu0
        %v3926 = vadd.f32 %v3885, %v3925
        %v3927 = vpop.f32.mrf.mxu0
        %v3928 = vadd.f32 %v3887, %v3927
        %v3929 = vpop.f32.mrf.mxu0
        %v3930 = vpop.f32.mrf.mxu0
        %3931 = vdwg.mxu0
        %3932 = vmatprep.subr.bf16.mxu0 %v2622
        %3933 = vmatpush1.bf16.msra.mxu0 %v2621
        %3934 = vmatprep.subr.bf16.mxu0 %v2598
        %3935 = vmatpush1.bf16.msra.mxu0 %v2597
        %3936 = vmatprep.subr.bf16.mxu0 %v2574
        %3937 = vmatpush1.bf16.msra.mxu0 %v2573
        %3938 = vmatprep.subr.bf16.mxu0 %v2550
        %3939 = vmatpush1.bf16.msra.mxu0 %v2549
        %3940 = vmatprep.subr.bf16.mxu0 %v2526
        %3941 = vmatpush1.bf16.msra.mxu0 %v2525
        %3942 = vmatprep.subr.bf16.mxu0 %v2502
        %3943 = vmatpush1.bf16.msra.mxu0 %v2501
        %3944 = vmatprep.subr.bf16.mxu0 %v2478
        %3945 = vmatpush1.bf16.msra.mxu0 %v2477
        %3946 = vmatprep.subr.bf16.mxu0 %v2454
        %3947 = vmatpush1.bf16.msra.mxu0 %v2453
        %3948 = vmatprep.subr.bf16.mxu0 %v2814
        %3949 = vmatpush2.bf16.msra.mxu0 %v2813
        %3950 = vmatprep.subr.bf16.mxu0 %v2790
        %3951 = vmatpush2.bf16.msra.mxu0 %v2789
        %3952 = vmatprep.subr.bf16.mxu0 %v2766
        %3953 = vmatpush2.bf16.msra.mxu0 %v2765
        %3954 = vmatprep.subr.bf16.mxu0 %v2742
        %3955 = vmatpush2.bf16.msra.mxu0 %v2741
        %3956 = vmatprep.subr.bf16.mxu0 %v2718
        %3957 = vmatpush2.bf16.msra.mxu0 %v2717
        %3958 = vmatprep.subr.bf16.mxu0 %v2694
        %3959 = vmatpush2.bf16.msra.mxu0 %v2693
        %3960 = vmatprep.subr.bf16.mxu0 %v2670
        %3961 = vmatpush2.bf16.msra.mxu0 %v2669
        %3962 = vmatprep.subr.bf16.mxu0 %v2646
        %3963 = vmatpush2.bf16.msra.mxu0 %v2645
        %3964 = vmatprep.mubr.bf16.mxu0 %v520
        %3965 = vmatmul.mubr.bf16.gmra.mxu0 %v519
        %v3966 = vpop.f32.mrf.mxu0
        %v3967 = vadd.f32 %v3926, %v3966
        %v3968 = vpop.f32.mrf.mxu0
        %v3969 = vadd.f32 %v3928, %v3968
        %v3970 = vpop.f32.mrf.mxu0
        %v3971 = vpop.f32.mrf.mxu0
        %3972 = vdwg.mxu0
        %3973 = vmatprep.subr.bf16.mxu0 %v1472
        %3974 = vmatpush1.bf16.msra.mxu0 %v1471
        %3975 = vmatprep.subr.bf16.mxu0 %v1448
        %3976 = vmatpush1.bf16.msra.mxu0 %v1447
        %3977 = vmatprep.subr.bf16.mxu0 %v1424
        %3978 = vmatpush1.bf16.msra.mxu0 %v1423
        %3979 = vmatprep.subr.bf16.mxu0 %v1400
        %3980 = vmatpush1.bf16.msra.mxu0 %v1399
        %3981 = vmatprep.subr.bf16.mxu0 %v1376
        %3982 = vmatpush1.bf16.msra.mxu0 %v1375
        %3983 = vmatprep.subr.bf16.mxu0 %v1352
        %3984 = vmatpush1.bf16.msra.mxu0 %v1351
        %3985 = vmatprep.subr.bf16.mxu0 %v1328
        %3986 = vmatpush1.bf16.msra.mxu0 %v1327
        %3987 = vmatprep.subr.bf16.mxu0 %v1304
        %3988 = vmatpush1.bf16.msra.mxu0 %v1303
        %3989 = vmatprep.subr.bf16.mxu0 %v1664
        %3990 = vmatpush2.bf16.msra.mxu0 %v1663
        %3991 = vmatprep.subr.bf16.mxu0 %v1640
        %3992 = vmatpush2.bf16.msra.mxu0 %v1639
        %3993 = vmatprep.subr.bf16.mxu0 %v1616
        %3994 = vmatpush2.bf16.msra.mxu0 %v1615
        %3995 = vmatprep.subr.bf16.mxu0 %v1592
        %3996 = vmatpush2.bf16.msra.mxu0 %v1591
        %3997 = vmatprep.subr.bf16.mxu0 %v1568
        %3998 = vmatpush2.bf16.msra.mxu0 %v1567
        %3999 = vmatprep.subr.bf16.mxu0 %v1544
        %4000 = vmatpush2.bf16.msra.mxu0 %v1543
        %4001 = vmatprep.subr.bf16.mxu0 %v1520
        %4002 = vmatpush2.bf16.msra.mxu0 %v1519
        %4003 = vmatprep.subr.bf16.mxu0 %v1496
        %4004 = vmatpush2.bf16.msra.mxu0 %v1495
        %4005 = vmatprep.mubr.bf16.mxu0 %v514
        %4006 = vmatmul.mubr.bf16.gmra.mxu0 %v513
        %v4007 = vpop.f32.mrf.mxu0
        %v4008 = vadd.f32 0.0, %v4007
        %v4009 = vpop.f32.mrf.mxu0
        %v4010 = vadd.f32 0.0, %v4009
        %v4011 = vpop.f32.mrf.mxu0
        %v4012 = vpop.f32.mrf.mxu0
        %4013 = vdwg.mxu0
        %4014 = vmatprep.subr.bf16.mxu0 %v1856
        %4015 = vmatpush1.bf16.msra.mxu0 %v1855
        %4016 = vmatprep.subr.bf16.mxu0 %v1832
        %4017 = vmatpush1.bf16.msra.mxu0 %v1831
        %4018 = vmatprep.subr.bf16.mxu0 %v1808
        %4019 = vmatpush1.bf16.msra.mxu0 %v1807
        %4020 = vmatprep.subr.bf16.mxu0 %v1784
        %4021 = vmatpush1.bf16.msra.mxu0 %v1783
        %4022 = vmatprep.subr.bf16.mxu0 %v1760
        %4023 = vmatpush1.bf16.msra.mxu0 %v1759
        %4024 = vmatprep.subr.bf16.mxu0 %v1736
        %4025 = vmatpush1.bf16.msra.mxu0 %v1735
        %4026 = vmatprep.subr.bf16.mxu0 %v1712
        %4027 = vmatpush1.bf16.msra.mxu0 %v1711
        %4028 = vmatprep.subr.bf16.mxu0 %v1688
        %4029 = vmatpush1.bf16.msra.mxu0 %v1687
        %4030 = vmatprep.subr.bf16.mxu0 %v2048
        %4031 = vmatpush2.bf16.msra.mxu0 %v2047
        %4032 = vmatprep.subr.bf16.mxu0 %v2024
        %4033 = vmatpush2.bf16.msra.mxu0 %v2023
        %4034 = vmatprep.subr.bf16.mxu0 %v2000
        %4035 = vmatpush2.bf16.msra.mxu0 %v1999
        %4036 = vmatprep.subr.bf16.mxu0 %v1976
        %4037 = vmatpush2.bf16.msra.mxu0 %v1975
        %4038 = vmatprep.subr.bf16.mxu0 %v1952
        %4039 = vmatpush2.bf16.msra.mxu0 %v1951
        %4040 = vmatprep.subr.bf16.mxu0 %v1928
        %4041 = vmatpush2.bf16.msra.mxu0 %v1927
        %4042 = vmatprep.subr.bf16.mxu0 %v1904
        %4043 = vmatpush2.bf16.msra.mxu0 %v1903
        %4044 = vmatprep.subr.bf16.mxu0 %v1880
        %4045 = vmatpush2.bf16.msra.mxu0 %v1879
        %4046 = vmatprep.mubr.bf16.mxu0 %v516
        %4047 = vmatmul.mubr.bf16.gmra.mxu0 %v515
        %v4048 = vpop.f32.mrf.mxu0
        %v4049 = vadd.f32 %v4008, %v4048
        %v4050 = vpop.f32.mrf.mxu0
        %v4051 = vadd.f32 %v4010, %v4050
        %v4052 = vpop.f32.mrf.mxu0
        %v4053 = vpop.f32.mrf.mxu0
        %4054 = vdwg.mxu0
        %4055 = vmatprep.subr.bf16.mxu0 %v2240
        %4056 = vmatpush1.bf16.msra.mxu0 %v2239
        %4057 = vmatprep.subr.bf16.mxu0 %v2216
        %4058 = vmatpush1.bf16.msra.mxu0 %v2215
        %4059 = vmatprep.subr.bf16.mxu0 %v2192
        %4060 = vmatpush1.bf16.msra.mxu0 %v2191
        %4061 = vmatprep.subr.bf16.mxu0 %v2168
        %4062 = vmatpush1.bf16.msra.mxu0 %v2167
        %4063 = vmatprep.subr.bf16.mxu0 %v2144
        %4064 = vmatpush1.bf16.msra.mxu0 %v2143
        %4065 = vmatprep.subr.bf16.mxu0 %v2120
        %4066 = vmatpush1.bf16.msra.mxu0 %v2119
        %4067 = vmatprep.subr.bf16.mxu0 %v2096
        %4068 = vmatpush1.bf16.msra.mxu0 %v2095
        %4069 = vmatprep.subr.bf16.mxu0 %v2072
        %4070 = vmatpush1.bf16.msra.mxu0 %v2071
        %4071 = vmatprep.subr.bf16.mxu0 %v2432
        %4072 = vmatpush2.bf16.msra.mxu0 %v2431
        %4073 = vmatprep.subr.bf16.mxu0 %v2408
        %4074 = vmatpush2.bf16.msra.mxu0 %v2407
        %4075 = vmatprep.subr.bf16.mxu0 %v2384
        %4076 = vmatpush2.bf16.msra.mxu0 %v2383
        %4077 = vmatprep.subr.bf16.mxu0 %v2360
        %4078 = vmatpush2.bf16.msra.mxu0 %v2359
        %4079 = vmatprep.subr.bf16.mxu0 %v2336
        %4080 = vmatpush2.bf16.msra.mxu0 %v2335
        %4081 = vmatprep.subr.bf16.mxu0 %v2312
        %4082 = vmatpush2.bf16.msra.mxu0 %v2311
        %4083 = vmatprep.subr.bf16.mxu0 %v2288
        %4084 = vmatpush2.bf16.msra.mxu0 %v2287
        %4085 = vmatprep.subr.bf16.mxu0 %v2264
        %4086 = vmatpush2.bf16.msra.mxu0 %v2263
        %4087 = vmatprep.mubr.bf16.mxu0 %v518
        %4088 = vmatmul.mubr.bf16.gmra.mxu0 %v517
        %v4089 = vpop.f32.mrf.mxu0
        %v4090 = vadd.f32 %v4049, %v4089
        %v4091 = vpop.f32.mrf.mxu0
        %v4092 = vadd.f32 %v4051, %v4091
        %v4093 = vpop.f32.mrf.mxu0
        %v4094 = vpop.f32.mrf.mxu0
        %4095 = vdwg.mxu0
        %4096 = vmatprep.subr.bf16.mxu0 %v2624
        %4097 = vmatpush1.bf16.msra.mxu0 %v2623
        %4098 = vmatprep.subr.bf16.mxu0 %v2600
        %4099 = vmatpush1.bf16.msra.mxu0 %v2599
        %4100 = vmatprep.subr.bf16.mxu0 %v2576
        %4101 = vmatpush1.bf16.msra.mxu0 %v2575
        %4102 = vmatprep.subr.bf16.mxu0 %v2552
        %4103 = vmatpush1.bf16.msra.mxu0 %v2551
        %4104 = vmatprep.subr.bf16.mxu0 %v2528
        %4105 = vmatpush1.bf16.msra.mxu0 %v2527
        %4106 = vmatprep.subr.bf16.mxu0 %v2504
        %4107 = vmatpush1.bf16.msra.mxu0 %v2503
        %4108 = vmatprep.subr.bf16.mxu0 %v2480
        %4109 = vmatpush1.bf16.msra.mxu0 %v2479
        %4110 = vmatprep.subr.bf16.mxu0 %v2456
        %4111 = vmatpush1.bf16.msra.mxu0 %v2455
        %4112 = vmatprep.subr.bf16.mxu0 %v2816
        %4113 = vmatpush2.bf16.msra.mxu0 %v2815
        %4114 = vmatprep.subr.bf16.mxu0 %v2792
        %4115 = vmatpush2.bf16.msra.mxu0 %v2791
        %4116 = vmatprep.subr.bf16.mxu0 %v2768
        %4117 = vmatpush2.bf16.msra.mxu0 %v2767
        %4118 = vmatprep.subr.bf16.mxu0 %v2744
        %4119 = vmatpush2.bf16.msra.mxu0 %v2743
        %4120 = vmatprep.subr.bf16.mxu0 %v2720
        %4121 = vmatpush2.bf16.msra.mxu0 %v2719
        %4122 = vmatprep.subr.bf16.mxu0 %v2696
        %4123 = vmatpush2.bf16.msra.mxu0 %v2695
        %4124 = vmatprep.subr.bf16.mxu0 %v2672
        %4125 = vmatpush2.bf16.msra.mxu0 %v2671
        %4126 = vmatprep.subr.bf16.mxu0 %v2648
        %4127 = vmatpush2.bf16.msra.mxu0 %v2647
        %4128 = vmatprep.mubr.bf16.mxu0 %v520
        %4129 = vmatmul.mubr.bf16.gmra.mxu0 %v519
        %v4130 = vpop.f32.mrf.mxu0
        %v4131 = vadd.f32 %v4090, %v4130
        %v4132 = vpop.f32.mrf.mxu0
        %v4133 = vadd.f32 %v4092, %v4132
        %v4134 = vpop.f32.mrf.mxu0
        %v4135 = vpop.f32.mrf.mxu0
        %4136 = vdwg.mxu0
        %4137 = vmatprep.subr.bf16.mxu0 %v1474
        %4138 = vmatpush1.bf16.msra.mxu0 %v1473
        %4139 = vmatprep.subr.bf16.mxu0 %v1450
        %4140 = vmatpush1.bf16.msra.mxu0 %v1449
        %4141 = vmatprep.subr.bf16.mxu0 %v1426
        %4142 = vmatpush1.bf16.msra.mxu0 %v1425
        %4143 = vmatprep.subr.bf16.mxu0 %v1402
        %4144 = vmatpush1.bf16.msra.mxu0 %v1401
        %4145 = vmatprep.subr.bf16.mxu0 %v1378
        %4146 = vmatpush1.bf16.msra.mxu0 %v1377
        %4147 = vmatprep.subr.bf16.mxu0 %v1354
        %4148 = vmatpush1.bf16.msra.mxu0 %v1353
        %4149 = vmatprep.subr.bf16.mxu0 %v1330
        %4150 = vmatpush1.bf16.msra.mxu0 %v1329
        %4151 = vmatprep.subr.bf16.mxu0 %v1306
        %4152 = vmatpush1.bf16.msra.mxu0 %v1305
        %4153 = vmatprep.subr.bf16.mxu0 %v1666
        %4154 = vmatpush2.bf16.msra.mxu0 %v1665
        %4155 = vmatprep.subr.bf16.mxu0 %v1642
        %4156 = vmatpush2.bf16.msra.mxu0 %v1641
        %4157 = vmatprep.subr.bf16.mxu0 %v1618
        %4158 = vmatpush2.bf16.msra.mxu0 %v1617
        %4159 = vmatprep.subr.bf16.mxu0 %v1594
        %4160 = vmatpush2.bf16.msra.mxu0 %v1593
        %4161 = vmatprep.subr.bf16.mxu0 %v1570
        %4162 = vmatpush2.bf16.msra.mxu0 %v1569
        %4163 = vmatprep.subr.bf16.mxu0 %v1546
        %4164 = vmatpush2.bf16.msra.mxu0 %v1545
        %4165 = vmatprep.subr.bf16.mxu0 %v1522
        %4166 = vmatpush2.bf16.msra.mxu0 %v1521
        %4167 = vmatprep.subr.bf16.mxu0 %v1498
        %4168 = vmatpush2.bf16.msra.mxu0 %v1497
        %4169 = vmatprep.mubr.bf16.mxu0 %v514
        %4170 = vmatmul.mubr.bf16.gmra.mxu0 %v513
        %v4171 = vpop.f32.mrf.mxu0
        %v4172 = vadd.f32 0.0, %v4171
        %v4173 = vpop.f32.mrf.mxu0
        %v4174 = vadd.f32 0.0, %v4173
        %v4175 = vpop.f32.mrf.mxu0
        %v4176 = vpop.f32.mrf.mxu0
        %4177 = vdwg.mxu0
        %4178 = vmatprep.subr.bf16.mxu0 %v1858
        %4179 = vmatpush1.bf16.msra.mxu0 %v1857
        %4180 = vmatprep.subr.bf16.mxu0 %v1834
        %4181 = vmatpush1.bf16.msra.mxu0 %v1833
        %4182 = vmatprep.subr.bf16.mxu0 %v1810
        %4183 = vmatpush1.bf16.msra.mxu0 %v1809
        %4184 = vmatprep.subr.bf16.mxu0 %v1786
        %4185 = vmatpush1.bf16.msra.mxu0 %v1785
        %4186 = vmatprep.subr.bf16.mxu0 %v1762
        %4187 = vmatpush1.bf16.msra.mxu0 %v1761
        %4188 = vmatprep.subr.bf16.mxu0 %v1738
        %4189 = vmatpush1.bf16.msra.mxu0 %v1737
        %4190 = vmatprep.subr.bf16.mxu0 %v1714
        %4191 = vmatpush1.bf16.msra.mxu0 %v1713
        %4192 = vmatprep.subr.bf16.mxu0 %v1690
        %4193 = vmatpush1.bf16.msra.mxu0 %v1689
        %4194 = vmatprep.subr.bf16.mxu0 %v2050
        %4195 = vmatpush2.bf16.msra.mxu0 %v2049
        %4196 = vmatprep.subr.bf16.mxu0 %v2026
        %4197 = vmatpush2.bf16.msra.mxu0 %v2025
        %4198 = vmatprep.subr.bf16.mxu0 %v2002
        %4199 = vmatpush2.bf16.msra.mxu0 %v2001
        %4200 = vmatprep.subr.bf16.mxu0 %v1978
        %4201 = vmatpush2.bf16.msra.mxu0 %v1977
        %4202 = vmatprep.subr.bf16.mxu0 %v1954
        %4203 = vmatpush2.bf16.msra.mxu0 %v1953
        %4204 = vmatprep.subr.bf16.mxu0 %v1930
        %4205 = vmatpush2.bf16.msra.mxu0 %v1929
        %4206 = vmatprep.subr.bf16.mxu0 %v1906
        %4207 = vmatpush2.bf16.msra.mxu0 %v1905
        %4208 = vmatprep.subr.bf16.mxu0 %v1882
        %4209 = vmatpush2.bf16.msra.mxu0 %v1881
        %4210 = vmatprep.mubr.bf16.mxu0 %v516
        %4211 = vmatmul.mubr.bf16.gmra.mxu0 %v515
        %v4212 = vpop.f32.mrf.mxu0
        %v4213 = vadd.f32 %v4172, %v4212
        %v4214 = vpop.f32.mrf.mxu0
        %v4215 = vadd.f32 %v4174, %v4214
        %v4216 = vpop.f32.mrf.mxu0
        %v4217 = vpop.f32.mrf.mxu0
        %4218 = vdwg.mxu0
        %4219 = vmatprep.subr.bf16.mxu0 %v2242
        %4220 = vmatpush1.bf16.msra.mxu0 %v2241
        %4221 = vmatprep.subr.bf16.mxu0 %v2218
        %4222 = vmatpush1.bf16.msra.mxu0 %v2217
        %4223 = vmatprep.subr.bf16.mxu0 %v2194
        %4224 = vmatpush1.bf16.msra.mxu0 %v2193
        %4225 = vmatprep.subr.bf16.mxu0 %v2170
        %4226 = vmatpush1.bf16.msra.mxu0 %v2169
        %4227 = vmatprep.subr.bf16.mxu0 %v2146
        %4228 = vmatpush1.bf16.msra.mxu0 %v2145
        %4229 = vmatprep.subr.bf16.mxu0 %v2122
        %4230 = vmatpush1.bf16.msra.mxu0 %v2121
        %4231 = vmatprep.subr.bf16.mxu0 %v2098
        %4232 = vmatpush1.bf16.msra.mxu0 %v2097
        %4233 = vmatprep.subr.bf16.mxu0 %v2074
        %4234 = vmatpush1.bf16.msra.mxu0 %v2073
        %4235 = vmatprep.subr.bf16.mxu0 %v2434
        %4236 = vmatpush2.bf16.msra.mxu0 %v2433
        %4237 = vmatprep.subr.bf16.mxu0 %v2410
        %4238 = vmatpush2.bf16.msra.mxu0 %v2409
        %4239 = vmatprep.subr.bf16.mxu0 %v2386
        %4240 = vmatpush2.bf16.msra.mxu0 %v2385
        %4241 = vmatprep.subr.bf16.mxu0 %v2362
        %4242 = vmatpush2.bf16.msra.mxu0 %v2361
        %4243 = vmatprep.subr.bf16.mxu0 %v2338
        %4244 = vmatpush2.bf16.msra.mxu0 %v2337
        %4245 = vmatprep.subr.bf16.mxu0 %v2314
        %4246 = vmatpush2.bf16.msra.mxu0 %v2313
        %4247 = vmatprep.subr.bf16.mxu0 %v2290
        %4248 = vmatpush2.bf16.msra.mxu0 %v2289
        %4249 = vmatprep.subr.bf16.mxu0 %v2266
        %4250 = vmatpush2.bf16.msra.mxu0 %v2265
        %4251 = vmatprep.mubr.bf16.mxu0 %v518
        %4252 = vmatmul.mubr.bf16.gmra.mxu0 %v517
        %v4253 = vpop.f32.mrf.mxu0
        %v4254 = vadd.f32 %v4213, %v4253
        %v4255 = vpop.f32.mrf.mxu0
        %v4256 = vadd.f32 %v4215, %v4255
        %v4257 = vpop.f32.mrf.mxu0
        %v4258 = vpop.f32.mrf.mxu0
        %4259 = vdwg.mxu0
        %4260 = vmatprep.subr.bf16.mxu0 %v2626
        %4261 = vmatpush1.bf16.msra.mxu0 %v2625
        %4262 = vmatprep.subr.bf16.mxu0 %v2602
        %4263 = vmatpush1.bf16.msra.mxu0 %v2601
        %4264 = vmatprep.subr.bf16.mxu0 %v2578
        %4265 = vmatpush1.bf16.msra.mxu0 %v2577
        %4266 = vmatprep.subr.bf16.mxu0 %v2554
        %4267 = vmatpush1.bf16.msra.mxu0 %v2553
        %4268 = vmatprep.subr.bf16.mxu0 %v2530
        %4269 = vmatpush1.bf16.msra.mxu0 %v2529
        %4270 = vmatprep.subr.bf16.mxu0 %v2506
        %4271 = vmatpush1.bf16.msra.mxu0 %v2505
        %4272 = vmatprep.subr.bf16.mxu0 %v2482
        %4273 = vmatpush1.bf16.msra.mxu0 %v2481
        %4274 = vmatprep.subr.bf16.mxu0 %v2458
        %4275 = vmatpush1.bf16.msra.mxu0 %v2457
        %4276 = vmatprep.subr.bf16.mxu0 %v2818
        %4277 = vmatpush2.bf16.msra.mxu0 %v2817
        %4278 = vmatprep.subr.bf16.mxu0 %v2794
        %4279 = vmatpush2.bf16.msra.mxu0 %v2793
        %4280 = vmatprep.subr.bf16.mxu0 %v2770
        %4281 = vmatpush2.bf16.msra.mxu0 %v2769
        %4282 = vmatprep.subr.bf16.mxu0 %v2746
        %4283 = vmatpush2.bf16.msra.mxu0 %v2745
        %4284 = vmatprep.subr.bf16.mxu0 %v2722
        %4285 = vmatpush2.bf16.msra.mxu0 %v2721
        %4286 = vmatprep.subr.bf16.mxu0 %v2698
        %4287 = vmatpush2.bf16.msra.mxu0 %v2697
        %4288 = vmatprep.subr.bf16.mxu0 %v2674
        %4289 = vmatpush2.bf16.msra.mxu0 %v2673
        %4290 = vmatprep.subr.bf16.mxu0 %v2650
        %4291 = vmatpush2.bf16.msra.mxu0 %v2649
        %4292 = vmatprep.mubr.bf16.mxu0 %v520
        %4293 = vmatmul.mubr.bf16.gmra.mxu0 %v519
        %v4294 = vpop.f32.mrf.mxu0
        %v4295 = vadd.f32 %v4254, %v4294
        %v4296 = vpop.f32.mrf.mxu0
        %v4297 = vadd.f32 %v4256, %v4296
        %v4298 = vpop.f32.mrf.mxu0
        %v4299 = vpop.f32.mrf.mxu0
        %4300 = vdwg.mxu0
        %4301 = vmatprep.subr.bf16.mxu0 %v1476
        %4302 = vmatpush1.bf16.msra.mxu0 %v1475
        %4303 = vmatprep.subr.bf16.mxu0 %v1452
        %4304 = vmatpush1.bf16.msra.mxu0 %v1451
        %4305 = vmatprep.subr.bf16.mxu0 %v1428
        %4306 = vmatpush1.bf16.msra.mxu0 %v1427
        %4307 = vmatprep.subr.bf16.mxu0 %v1404
        %4308 = vmatpush1.bf16.msra.mxu0 %v1403
        %4309 = vmatprep.subr.bf16.mxu0 %v1380
        %4310 = vmatpush1.bf16.msra.mxu0 %v1379
        %4311 = vmatprep.subr.bf16.mxu0 %v1356
        %4312 = vmatpush1.bf16.msra.mxu0 %v1355
        %4313 = vmatprep.subr.bf16.mxu0 %v1332
        %4314 = vmatpush1.bf16.msra.mxu0 %v1331
        %4315 = vmatprep.subr.bf16.mxu0 %v1308
        %4316 = vmatpush1.bf16.msra.mxu0 %v1307
        %4317 = vmatprep.subr.bf16.mxu0 %v1668
        %4318 = vmatpush2.bf16.msra.mxu0 %v1667
        %4319 = vmatprep.subr.bf16.mxu0 %v1644
        %4320 = vmatpush2.bf16.msra.mxu0 %v1643
        %4321 = vmatprep.subr.bf16.mxu0 %v1620
        %4322 = vmatpush2.bf16.msra.mxu0 %v1619
        %4323 = vmatprep.subr.bf16.mxu0 %v1596
        %4324 = vmatpush2.bf16.msra.mxu0 %v1595
        %4325 = vmatprep.subr.bf16.mxu0 %v1572
        %4326 = vmatpush2.bf16.msra.mxu0 %v1571
        %4327 = vmatprep.subr.bf16.mxu0 %v1548
        %4328 = vmatpush2.bf16.msra.mxu0 %v1547
        %4329 = vmatprep.subr.bf16.mxu0 %v1524
        %4330 = vmatpush2.bf16.msra.mxu0 %v1523
        %4331 = vmatprep.subr.bf16.mxu0 %v1500
        %4332 = vmatpush2.bf16.msra.mxu0 %v1499
        %4333 = vmatprep.mubr.bf16.mxu0 %v514
        %4334 = vmatmul.mubr.bf16.gmra.mxu0 %v513
        %v4335 = vpop.f32.mrf.mxu0
        %v4336 = vadd.f32 0.0, %v4335
        %v4337 = vpop.f32.mrf.mxu0
        %v4338 = vadd.f32 0.0, %v4337
        %v4339 = vpop.f32.mrf.mxu0
        %v4340 = vpop.f32.mrf.mxu0
        %4341 = vdwg.mxu0
        %4342 = vmatprep.subr.bf16.mxu0 %v1860
        %4343 = vmatpush1.bf16.msra.mxu0 %v1859
        %4344 = vmatprep.subr.bf16.mxu0 %v1836
        %4345 = vmatpush1.bf16.msra.mxu0 %v1835
        %4346 = vmatprep.subr.bf16.mxu0 %v1812
        %4347 = vmatpush1.bf16.msra.mxu0 %v1811
        %4348 = vmatprep.subr.bf16.mxu0 %v1788
        %4349 = vmatpush1.bf16.msra.mxu0 %v1787
        %4350 = vmatprep.subr.bf16.mxu0 %v1764
        %4351 = vmatpush1.bf16.msra.mxu0 %v1763
        %4352 = vmatprep.subr.bf16.mxu0 %v1740
        %4353 = vmatpush1.bf16.msra.mxu0 %v1739
        %4354 = vmatprep.subr.bf16.mxu0 %v1716
        %4355 = vmatpush1.bf16.msra.mxu0 %v1715
        %4356 = vmatprep.subr.bf16.mxu0 %v1692
        %4357 = vmatpush1.bf16.msra.mxu0 %v1691
        %4358 = vmatprep.subr.bf16.mxu0 %v2052
        %4359 = vmatpush2.bf16.msra.mxu0 %v2051
        %4360 = vmatprep.subr.bf16.mxu0 %v2028
        %4361 = vmatpush2.bf16.msra.mxu0 %v2027
        %4362 = vmatprep.subr.bf16.mxu0 %v2004
        %4363 = vmatpush2.bf16.msra.mxu0 %v2003
        %4364 = vmatprep.subr.bf16.mxu0 %v1980
        %4365 = vmatpush2.bf16.msra.mxu0 %v1979
        %4366 = vmatprep.subr.bf16.mxu0 %v1956
        %4367 = vmatpush2.bf16.msra.mxu0 %v1955
        %4368 = vmatprep.subr.bf16.mxu0 %v1932
        %4369 = vmatpush2.bf16.msra.mxu0 %v1931
        %4370 = vmatprep.subr.bf16.mxu0 %v1908
        %4371 = vmatpush2.bf16.msra.mxu0 %v1907
        %4372 = vmatprep.subr.bf16.mxu0 %v1884
        %4373 = vmatpush2.bf16.msra.mxu0 %v1883
        %4374 = vmatprep.mubr.bf16.mxu0 %v516
        %4375 = vmatmul.mubr.bf16.gmra.mxu0 %v515
        %v4376 = vpop.f32.mrf.mxu0
        %v4377 = vadd.f32 %v4336, %v4376
        %v4378 = vpop.f32.mrf.mxu0
        %v4379 = vadd.f32 %v4338, %v4378
        %v4380 = vpop.f32.mrf.mxu0
        %v4381 = vpop.f32.mrf.mxu0
        %4382 = vdwg.mxu0
        %4383 = vmatprep.subr.bf16.mxu0 %v2244
        %4384 = vmatpush1.bf16.msra.mxu0 %v2243
        %4385 = vmatprep.subr.bf16.mxu0 %v2220
        %4386 = vmatpush1.bf16.msra.mxu0 %v2219
        %4387 = vmatprep.subr.bf16.mxu0 %v2196
        %4388 = vmatpush1.bf16.msra.mxu0 %v2195
        %4389 = vmatprep.subr.bf16.mxu0 %v2172
        %4390 = vmatpush1.bf16.msra.mxu0 %v2171
        %4391 = vmatprep.subr.bf16.mxu0 %v2148
        %4392 = vmatpush1.bf16.msra.mxu0 %v2147
        %4393 = vmatprep.subr.bf16.mxu0 %v2124
        %4394 = vmatpush1.bf16.msra.mxu0 %v2123
        %4395 = vmatprep.subr.bf16.mxu0 %v2100
        %4396 = vmatpush1.bf16.msra.mxu0 %v2099
        %4397 = vmatprep.subr.bf16.mxu0 %v2076
        %4398 = vmatpush1.bf16.msra.mxu0 %v2075
        %4399 = vmatprep.subr.bf16.mxu0 %v2436
        %4400 = vmatpush2.bf16.msra.mxu0 %v2435
        %4401 = vmatprep.subr.bf16.mxu0 %v2412
        %4402 = vmatpush2.bf16.msra.mxu0 %v2411
        %4403 = vmatprep.subr.bf16.mxu0 %v2388
        %4404 = vmatpush2.bf16.msra.mxu0 %v2387
        %4405 = vmatprep.subr.bf16.mxu0 %v2364
        %4406 = vmatpush2.bf16.msra.mxu0 %v2363
        %4407 = vmatprep.subr.bf16.mxu0 %v2340
        %4408 = vmatpush2.bf16.msra.mxu0 %v2339
        %4409 = vmatprep.subr.bf16.mxu0 %v2316
        %4410 = vmatpush2.bf16.msra.mxu0 %v2315
        %4411 = vmatprep.subr.bf16.mxu0 %v2292
        %4412 = vmatpush2.bf16.msra.mxu0 %v2291
        %4413 = vmatprep.subr.bf16.mxu0 %v2268
        %4414 = vmatpush2.bf16.msra.mxu0 %v2267
        %4415 = vmatprep.mubr.bf16.mxu0 %v518
        %4416 = vmatmul.mubr.bf16.gmra.mxu0 %v517
        %v4417 = vpop.f32.mrf.mxu0
        %v4418 = vadd.f32 %v4377, %v4417
        %v4419 = vpop.f32.mrf.mxu0
        %v4420 = vadd.f32 %v4379, %v4419
        %v4421 = vpop.f32.mrf.mxu0
        %v4422 = vpop.f32.mrf.mxu0
        %4423 = vdwg.mxu0
        %4424 = vmatprep.subr.bf16.mxu0 %v2628
        %4425 = vmatpush1.bf16.msra.mxu0 %v2627
        %4426 = vmatprep.subr.bf16.mxu0 %v2604
        %4427 = vmatpush1.bf16.msra.mxu0 %v2603
        %4428 = vmatprep.subr.bf16.mxu0 %v2580
        %4429 = vmatpush1.bf16.msra.mxu0 %v2579
        %4430 = vmatprep.subr.bf16.mxu0 %v2556
        %4431 = vmatpush1.bf16.msra.mxu0 %v2555
        %4432 = vmatprep.subr.bf16.mxu0 %v2532
        %4433 = vmatpush1.bf16.msra.mxu0 %v2531
        %4434 = vmatprep.subr.bf16.mxu0 %v2508
        %4435 = vmatpush1.bf16.msra.mxu0 %v2507
        %4436 = vmatprep.subr.bf16.mxu0 %v2484
        %4437 = vmatpush1.bf16.msra.mxu0 %v2483
        %4438 = vmatprep.subr.bf16.mxu0 %v2460
        %4439 = vmatpush1.bf16.msra.mxu0 %v2459
        %4440 = vmatprep.subr.bf16.mxu0 %v2820
        %4441 = vmatpush2.bf16.msra.mxu0 %v2819
        %4442 = vmatprep.subr.bf16.mxu0 %v2796
        %4443 = vmatpush2.bf16.msra.mxu0 %v2795
        %4444 = vmatprep.subr.bf16.mxu0 %v2772
        %4445 = vmatpush2.bf16.msra.mxu0 %v2771
        %4446 = vmatprep.subr.bf16.mxu0 %v2748
        %4447 = vmatpush2.bf16.msra.mxu0 %v2747
        %4448 = vmatprep.subr.bf16.mxu0 %v2724
        %4449 = vmatpush2.bf16.msra.mxu0 %v2723
        %4450 = vmatprep.subr.bf16.mxu0 %v2700
        %4451 = vmatpush2.bf16.msra.mxu0 %v2699
        %4452 = vmatprep.subr.bf16.mxu0 %v2676
        %4453 = vmatpush2.bf16.msra.mxu0 %v2675
        %4454 = vmatprep.subr.bf16.mxu0 %v2652
        %4455 = vmatpush2.bf16.msra.mxu0 %v2651
        %4456 = vmatprep.mubr.bf16.mxu0 %v520
        %4457 = vmatmul.mubr.bf16.gmra.mxu0 %v519
        %v4458 = vpop.f32.mrf.mxu0
        %v4459 = vadd.f32 %v4418, %v4458
        %v4460 = vpop.f32.mrf.mxu0
        %v4461 = vadd.f32 %v4420, %v4460
        %v4462 = vpop.f32.mrf.mxu0
        %v4463 = vpop.f32.mrf.mxu0
        %4464 = vdwg.mxu0
        %4465 = vmatprep.subr.bf16.mxu0 %v1478
        %4466 = vmatpush1.bf16.msra.mxu0 %v1477
        %4467 = vmatprep.subr.bf16.mxu0 %v1454
        %4468 = vmatpush1.bf16.msra.mxu0 %v1453
        %4469 = vmatprep.subr.bf16.mxu0 %v1430
        %4470 = vmatpush1.bf16.msra.mxu0 %v1429
        %4471 = vmatprep.subr.bf16.mxu0 %v1406
        %4472 = vmatpush1.bf16.msra.mxu0 %v1405
        %4473 = vmatprep.subr.bf16.mxu0 %v1382
        %4474 = vmatpush1.bf16.msra.mxu0 %v1381
        %4475 = vmatprep.subr.bf16.mxu0 %v1358
        %4476 = vmatpush1.bf16.msra.mxu0 %v1357
        %4477 = vmatprep.subr.bf16.mxu0 %v1334
        %4478 = vmatpush1.bf16.msra.mxu0 %v1333
        %4479 = vmatprep.subr.bf16.mxu0 %v1310
        %4480 = vmatpush1.bf16.msra.mxu0 %v1309
        %4481 = vmatprep.subr.bf16.mxu0 %v1670
        %4482 = vmatpush2.bf16.msra.mxu0 %v1669
        %4483 = vmatprep.subr.bf16.mxu0 %v1646
        %4484 = vmatpush2.bf16.msra.mxu0 %v1645
        %4485 = vmatprep.subr.bf16.mxu0 %v1622
        %4486 = vmatpush2.bf16.msra.mxu0 %v1621
        %4487 = vmatprep.subr.bf16.mxu0 %v1598
        %4488 = vmatpush2.bf16.msra.mxu0 %v1597
        %4489 = vmatprep.subr.bf16.mxu0 %v1574
        %4490 = vmatpush2.bf16.msra.mxu0 %v1573
        %4491 = vmatprep.subr.bf16.mxu0 %v1550
        %4492 = vmatpush2.bf16.msra.mxu0 %v1549
        %4493 = vmatprep.subr.bf16.mxu0 %v1526
        %4494 = vmatpush2.bf16.msra.mxu0 %v1525
        %4495 = vmatprep.subr.bf16.mxu0 %v1502
        %4496 = vmatpush2.bf16.msra.mxu0 %v1501
        %4497 = vmatprep.mubr.bf16.mxu0 %v514
        %4498 = vmatmul.mubr.bf16.gmra.mxu0 %v513
        %v4499 = vpop.f32.mrf.mxu0
        %v4500 = vadd.f32 0.0, %v4499
        %v4501 = vpop.f32.mrf.mxu0
        %v4502 = vadd.f32 0.0, %v4501
        %v4503 = vpop.f32.mrf.mxu0
        %v4504 = vpop.f32.mrf.mxu0
        %4505 = vdwg.mxu0
        %4506 = vmatprep.subr.bf16.mxu0 %v1862
        %4507 = vmatpush1.bf16.msra.mxu0 %v1861
        %4508 = vmatprep.subr.bf16.mxu0 %v1838
        %4509 = vmatpush1.bf16.msra.mxu0 %v1837
        %4510 = vmatprep.subr.bf16.mxu0 %v1814
        %4511 = vmatpush1.bf16.msra.mxu0 %v1813
        %4512 = vmatprep.subr.bf16.mxu0 %v1790
        %4513 = vmatpush1.bf16.msra.mxu0 %v1789
        %4514 = vmatprep.subr.bf16.mxu0 %v1766
        %4515 = vmatpush1.bf16.msra.mxu0 %v1765
        %4516 = vmatprep.subr.bf16.mxu0 %v1742
        %4517 = vmatpush1.bf16.msra.mxu0 %v1741
        %4518 = vmatprep.subr.bf16.mxu0 %v1718
        %4519 = vmatpush1.bf16.msra.mxu0 %v1717
        %4520 = vmatprep.subr.bf16.mxu0 %v1694
        %4521 = vmatpush1.bf16.msra.mxu0 %v1693
        %4522 = vmatprep.subr.bf16.mxu0 %v2054
        %4523 = vmatpush2.bf16.msra.mxu0 %v2053
        %4524 = vmatprep.subr.bf16.mxu0 %v2030
        %4525 = vmatpush2.bf16.msra.mxu0 %v2029
        %4526 = vmatprep.subr.bf16.mxu0 %v2006
        %4527 = vmatpush2.bf16.msra.mxu0 %v2005
        %4528 = vmatprep.subr.bf16.mxu0 %v1982
        %4529 = vmatpush2.bf16.msra.mxu0 %v1981
        %4530 = vmatprep.subr.bf16.mxu0 %v1958
        %4531 = vmatpush2.bf16.msra.mxu0 %v1957
        %4532 = vmatprep.subr.bf16.mxu0 %v1934
        %4533 = vmatpush2.bf16.msra.mxu0 %v1933
        %4534 = vmatprep.subr.bf16.mxu0 %v1910
        %4535 = vmatpush2.bf16.msra.mxu0 %v1909
        %4536 = vmatprep.subr.bf16.mxu0 %v1886
        %4537 = vmatpush2.bf16.msra.mxu0 %v1885
        %4538 = vmatprep.mubr.bf16.mxu0 %v516
        %4539 = vmatmul.mubr.bf16.gmra.mxu0 %v515
        %v4540 = vpop.f32.mrf.mxu0
        %v4541 = vadd.f32 %v4500, %v4540
        %v4542 = vpop.f32.mrf.mxu0
        %v4543 = vadd.f32 %v4502, %v4542
        %v4544 = vpop.f32.mrf.mxu0
        %v4545 = vpop.f32.mrf.mxu0
        %4546 = vdwg.mxu0
        %4547 = vmatprep.subr.bf16.mxu0 %v2246
        %4548 = vmatpush1.bf16.msra.mxu0 %v2245
        %4549 = vmatprep.subr.bf16.mxu0 %v2222
        %4550 = vmatpush1.bf16.msra.mxu0 %v2221
        %4551 = vmatprep.subr.bf16.mxu0 %v2198
        %4552 = vmatpush1.bf16.msra.mxu0 %v2197
        %4553 = vmatprep.subr.bf16.mxu0 %v2174
        %4554 = vmatpush1.bf16.msra.mxu0 %v2173
        %4555 = vmatprep.subr.bf16.mxu0 %v2150
        %4556 = vmatpush1.bf16.msra.mxu0 %v2149
        %4557 = vmatprep.subr.bf16.mxu0 %v2126
        %4558 = vmatpush1.bf16.msra.mxu0 %v2125
        %4559 = vmatprep.subr.bf16.mxu0 %v2102
        %4560 = vmatpush1.bf16.msra.mxu0 %v2101
        %4561 = vmatprep.subr.bf16.mxu0 %v2078
        %4562 = vmatpush1.bf16.msra.mxu0 %v2077
        %4563 = vmatprep.subr.bf16.mxu0 %v2438
        %4564 = vmatpush2.bf16.msra.mxu0 %v2437
        %4565 = vmatprep.subr.bf16.mxu0 %v2414
        %4566 = vmatpush2.bf16.msra.mxu0 %v2413
        %4567 = vmatprep.subr.bf16.mxu0 %v2390
        %4568 = vmatpush2.bf16.msra.mxu0 %v2389
        %4569 = vmatprep.subr.bf16.mxu0 %v2366
        %4570 = vmatpush2.bf16.msra.mxu0 %v2365
        %4571 = vmatprep.subr.bf16.mxu0 %v2342
        %4572 = vmatpush2.bf16.msra.mxu0 %v2341
        %4573 = vmatprep.subr.bf16.mxu0 %v2318
        %4574 = vmatpush2.bf16.msra.mxu0 %v2317
        %4575 = vmatprep.subr.bf16.mxu0 %v2294
        %4576 = vmatpush2.bf16.msra.mxu0 %v2293
        %4577 = vmatprep.subr.bf16.mxu0 %v2270
        %4578 = vmatpush2.bf16.msra.mxu0 %v2269
        %4579 = vmatprep.mubr.bf16.mxu0 %v518
        %4580 = vmatmul.mubr.bf16.gmra.mxu0 %v517
        %v4581 = vpop.f32.mrf.mxu0
        %v4582 = vadd.f32 %v4541, %v4581
        %v4583 = vpop.f32.mrf.mxu0
        %v4584 = vadd.f32 %v4543, %v4583
        %v4585 = vpop.f32.mrf.mxu0
        %v4586 = vpop.f32.mrf.mxu0
        %4587 = vdwg.mxu0
        %4588 = vmatprep.subr.bf16.mxu0 %v2630
        %4589 = vmatpush1.bf16.msra.mxu0 %v2629
        %4590 = vmatprep.subr.bf16.mxu0 %v2606
        %4591 = vmatpush1.bf16.msra.mxu0 %v2605
        %4592 = vmatprep.subr.bf16.mxu0 %v2582
        %4593 = vmatpush1.bf16.msra.mxu0 %v2581
        %4594 = vmatprep.subr.bf16.mxu0 %v2558
        %4595 = vmatpush1.bf16.msra.mxu0 %v2557
        %4596 = vmatprep.subr.bf16.mxu0 %v2534
        %4597 = vmatpush1.bf16.msra.mxu0 %v2533
        %4598 = vmatprep.subr.bf16.mxu0 %v2510
        %4599 = vmatpush1.bf16.msra.mxu0 %v2509
        %4600 = vmatprep.subr.bf16.mxu0 %v2486
        %4601 = vmatpush1.bf16.msra.mxu0 %v2485
        %4602 = vmatprep.subr.bf16.mxu0 %v2462
        %4603 = vmatpush1.bf16.msra.mxu0 %v2461
        %4604 = vmatprep.subr.bf16.mxu0 %v2822
        %4605 = vmatpush2.bf16.msra.mxu0 %v2821
        %4606 = vmatprep.subr.bf16.mxu0 %v2798
        %4607 = vmatpush2.bf16.msra.mxu0 %v2797
        %4608 = vmatprep.subr.bf16.mxu0 %v2774
        %4609 = vmatpush2.bf16.msra.mxu0 %v2773
        %4610 = vmatprep.subr.bf16.mxu0 %v2750
        %4611 = vmatpush2.bf16.msra.mxu0 %v2749
        %4612 = vmatprep.subr.bf16.mxu0 %v2726
        %4613 = vmatpush2.bf16.msra.mxu0 %v2725
        %4614 = vmatprep.subr.bf16.mxu0 %v2702
        %4615 = vmatpush2.bf16.msra.mxu0 %v2701
        %4616 = vmatprep.subr.bf16.mxu0 %v2678
        %4617 = vmatpush2.bf16.msra.mxu0 %v2677
        %4618 = vmatprep.subr.bf16.mxu0 %v2654
        %4619 = vmatpush2.bf16.msra.mxu0 %v2653
        %4620 = vmatprep.mubr.bf16.mxu0 %v520
        %4621 = vmatmul.mubr.bf16.gmra.mxu0 %v519
        %v4622 = vpop.f32.mrf.mxu0
        %v4623 = vadd.f32 %v4582, %v4622
        %v4624 = vpop.f32.mrf.mxu0
        %v4625 = vadd.f32 %v4584, %v4624
        %v4626 = vpop.f32.mrf.mxu0
        %v4627 = vpop.f32.mrf.mxu0
        %4628 = vdwg.mxu0
        %4629 = vmatprep.subr.bf16.mxu0 %v1480
        %4630 = vmatpush1.bf16.msra.mxu0 %v1479
        %4631 = vmatprep.subr.bf16.mxu0 %v1456
        %4632 = vmatpush1.bf16.msra.mxu0 %v1455
        %4633 = vmatprep.subr.bf16.mxu0 %v1432
        %4634 = vmatpush1.bf16.msra.mxu0 %v1431
        %4635 = vmatprep.subr.bf16.mxu0 %v1408
        %4636 = vmatpush1.bf16.msra.mxu0 %v1407
        %4637 = vmatprep.subr.bf16.mxu0 %v1384
        %4638 = vmatpush1.bf16.msra.mxu0 %v1383
        %4639 = vmatprep.subr.bf16.mxu0 %v1360
        %4640 = vmatpush1.bf16.msra.mxu0 %v1359
        %4641 = vmatprep.subr.bf16.mxu0 %v1336
        %4642 = vmatpush1.bf16.msra.mxu0 %v1335
        %4643 = vmatprep.subr.bf16.mxu0 %v1312
        %4644 = vmatpush1.bf16.msra.mxu0 %v1311
        %4645 = vmatprep.subr.bf16.mxu0 %v1672
        %4646 = vmatpush2.bf16.msra.mxu0 %v1671
        %4647 = vmatprep.subr.bf16.mxu0 %v1648
        %4648 = vmatpush2.bf16.msra.mxu0 %v1647
        %4649 = vmatprep.subr.bf16.mxu0 %v1624
        %4650 = vmatpush2.bf16.msra.mxu0 %v1623
        %4651 = vmatprep.subr.bf16.mxu0 %v1600
        %4652 = vmatpush2.bf16.msra.mxu0 %v1599
        %4653 = vmatprep.subr.bf16.mxu0 %v1576
        %4654 = vmatpush2.bf16.msra.mxu0 %v1575
        %4655 = vmatprep.subr.bf16.mxu0 %v1552
        %4656 = vmatpush2.bf16.msra.mxu0 %v1551
        %4657 = vmatprep.subr.bf16.mxu0 %v1528
        %4658 = vmatpush2.bf16.msra.mxu0 %v1527
        %4659 = vmatprep.subr.bf16.mxu0 %v1504
        %4660 = vmatpush2.bf16.msra.mxu0 %v1503
        %4661 = vmatprep.mubr.bf16.mxu0 %v514
        %4662 = vmatmul.mubr.bf16.gmra.mxu0 %v513
        %v4663 = vpop.f32.mrf.mxu0
        %v4664 = vadd.f32 0.0, %v4663
        %v4665 = vpop.f32.mrf.mxu0
        %v4666 = vadd.f32 0.0, %v4665
        %v4667 = vpop.f32.mrf.mxu0
        %v4668 = vpop.f32.mrf.mxu0
        %4669 = vdwg.mxu0
        %4670 = vmatprep.subr.bf16.mxu0 %v1864
        %4671 = vmatpush1.bf16.msra.mxu0 %v1863
        %4672 = vmatprep.subr.bf16.mxu0 %v1840
        %4673 = vmatpush1.bf16.msra.mxu0 %v1839
        %4674 = vmatprep.subr.bf16.mxu0 %v1816
        %4675 = vmatpush1.bf16.msra.mxu0 %v1815
        %4676 = vmatprep.subr.bf16.mxu0 %v1792
        %4677 = vmatpush1.bf16.msra.mxu0 %v1791
        %4678 = vmatprep.subr.bf16.mxu0 %v1768
        %4679 = vmatpush1.bf16.msra.mxu0 %v1767
        %4680 = vmatprep.subr.bf16.mxu0 %v1744
        %4681 = vmatpush1.bf16.msra.mxu0 %v1743
        %4682 = vmatprep.subr.bf16.mxu0 %v1720
        %4683 = vmatpush1.bf16.msra.mxu0 %v1719
        %4684 = vmatprep.subr.bf16.mxu0 %v1696
        %4685 = vmatpush1.bf16.msra.mxu0 %v1695
        %4686 = vmatprep.subr.bf16.mxu0 %v2056
        %4687 = vmatpush2.bf16.msra.mxu0 %v2055
        %4688 = vmatprep.subr.bf16.mxu0 %v2032
        %4689 = vmatpush2.bf16.msra.mxu0 %v2031
        %4690 = vmatprep.subr.bf16.mxu0 %v2008
        %4691 = vmatpush2.bf16.msra.mxu0 %v2007
        %4692 = vmatprep.subr.bf16.mxu0 %v1984
        %4693 = vmatpush2.bf16.msra.mxu0 %v1983
        %4694 = vmatprep.subr.bf16.mxu0 %v1960
        %4695 = vmatpush2.bf16.msra.mxu0 %v1959
        %4696 = vmatprep.subr.bf16.mxu0 %v1936
        %4697 = vmatpush2.bf16.msra.mxu0 %v1935
        %4698 = vmatprep.subr.bf16.mxu0 %v1912
        %4699 = vmatpush2.bf16.msra.mxu0 %v1911
        %4700 = vmatprep.subr.bf16.mxu0 %v1888
        %4701 = vmatpush2.bf16.msra.mxu0 %v1887
        %4702 = vmatprep.mubr.bf16.mxu0 %v516
        %4703 = vmatmul.mubr.bf16.gmra.mxu0 %v515
        %v4704 = vpop.f32.mrf.mxu0
        %v4705 = vadd.f32 %v4664, %v4704
        %v4706 = vpop.f32.mrf.mxu0
        %v4707 = vadd.f32 %v4666, %v4706
        %v4708 = vpop.f32.mrf.mxu0
        %v4709 = vpop.f32.mrf.mxu0
        %4710 = vdwg.mxu0
        %4711 = vmatprep.subr.bf16.mxu0 %v2248
        %4712 = vmatpush1.bf16.msra.mxu0 %v2247
        %4713 = vmatprep.subr.bf16.mxu0 %v2224
        %4714 = vmatpush1.bf16.msra.mxu0 %v2223
        %4715 = vmatprep.subr.bf16.mxu0 %v2200
        %4716 = vmatpush1.bf16.msra.mxu0 %v2199
        %4717 = vmatprep.subr.bf16.mxu0 %v2176
        %4718 = vmatpush1.bf16.msra.mxu0 %v2175
        %4719 = vmatprep.subr.bf16.mxu0 %v2152
        %4720 = vmatpush1.bf16.msra.mxu0 %v2151
        %4721 = vmatprep.subr.bf16.mxu0 %v2128
        %4722 = vmatpush1.bf16.msra.mxu0 %v2127
        %4723 = vmatprep.subr.bf16.mxu0 %v2104
        %4724 = vmatpush1.bf16.msra.mxu0 %v2103
        %4725 = vmatprep.subr.bf16.mxu0 %v2080
        %4726 = vmatpush1.bf16.msra.mxu0 %v2079
        %4727 = vmatprep.subr.bf16.mxu0 %v2440
        %4728 = vmatpush2.bf16.msra.mxu0 %v2439
        %4729 = vmatprep.subr.bf16.mxu0 %v2416
        %4730 = vmatpush2.bf16.msra.mxu0 %v2415
        %4731 = vmatprep.subr.bf16.mxu0 %v2392
        %4732 = vmatpush2.bf16.msra.mxu0 %v2391
        %4733 = vmatprep.subr.bf16.mxu0 %v2368
        %4734 = vmatpush2.bf16.msra.mxu0 %v2367
        %4735 = vmatprep.subr.bf16.mxu0 %v2344
        %4736 = vmatpush2.bf16.msra.mxu0 %v2343
        %4737 = vmatprep.subr.bf16.mxu0 %v2320
        %4738 = vmatpush2.bf16.msra.mxu0 %v2319
        %4739 = vmatprep.subr.bf16.mxu0 %v2296
        %4740 = vmatpush2.bf16.msra.mxu0 %v2295
        %4741 = vmatprep.subr.bf16.mxu0 %v2272
        %4742 = vmatpush2.bf16.msra.mxu0 %v2271
        %4743 = vmatprep.mubr.bf16.mxu0 %v518
        %4744 = vmatmul.mubr.bf16.gmra.mxu0 %v517
        %v4745 = vpop.f32.mrf.mxu0
        %v4746 = vadd.f32 %v4705, %v4745
        %v4747 = vpop.f32.mrf.mxu0
        %v4748 = vadd.f32 %v4707, %v4747
        %v4749 = vpop.f32.mrf.mxu0
        %v4750 = vpop.f32.mrf.mxu0
        %4751 = vdwg.mxu0
        %4752 = vmatprep.subr.bf16.mxu0 %v2632
        %4753 = vmatpush1.bf16.msra.mxu0 %v2631
        %4754 = vmatprep.subr.bf16.mxu0 %v2608
        %4755 = vmatpush1.bf16.msra.mxu0 %v2607
        %4756 = vmatprep.subr.bf16.mxu0 %v2584
        %4757 = vmatpush1.bf16.msra.mxu0 %v2583
        %4758 = vmatprep.subr.bf16.mxu0 %v2560
        %4759 = vmatpush1.bf16.msra.mxu0 %v2559
        %4760 = vmatprep.subr.bf16.mxu0 %v2536
        %4761 = vmatpush1.bf16.msra.mxu0 %v2535
        %4762 = vmatprep.subr.bf16.mxu0 %v2512
        %4763 = vmatpush1.bf16.msra.mxu0 %v2511
        %4764 = vmatprep.subr.bf16.mxu0 %v2488
        %4765 = vmatpush1.bf16.msra.mxu0 %v2487
        %4766 = vmatprep.subr.bf16.mxu0 %v2464
        %4767 = vmatpush1.bf16.msra.mxu0 %v2463
        %4768 = vmatprep.subr.bf16.mxu0 %v2824
        %4769 = vmatpush2.bf16.msra.mxu0 %v2823
        %4770 = vmatprep.subr.bf16.mxu0 %v2800
        %4771 = vmatpush2.bf16.msra.mxu0 %v2799
        %4772 = vmatprep.subr.bf16.mxu0 %v2776
        %4773 = vmatpush2.bf16.msra.mxu0 %v2775
        %4774 = vmatprep.subr.bf16.mxu0 %v2752
        %4775 = vmatpush2.bf16.msra.mxu0 %v2751
        %4776 = vmatprep.subr.bf16.mxu0 %v2728
        %4777 = vmatpush2.bf16.msra.mxu0 %v2727
        %4778 = vmatprep.subr.bf16.mxu0 %v2704
        %4779 = vmatpush2.bf16.msra.mxu0 %v2703
        %4780 = vmatprep.subr.bf16.mxu0 %v2680
        %4781 = vmatpush2.bf16.msra.mxu0 %v2679
        %4782 = vmatprep.subr.bf16.mxu0 %v2656
        %4783 = vmatpush2.bf16.msra.mxu0 %v2655
        %4784 = vmatprep.mubr.bf16.mxu0 %v520
        %4785 = vmatmul.mubr.bf16.gmra.mxu0 %v519
        %v4786 = vpop.f32.mrf.mxu0
        %v4787 = vadd.f32 %v4746, %v4786
        %v4788 = vpop.f32.mrf.mxu0
        %v4789 = vadd.f32 %v4748, %v4788
        %v4790 = vpop.f32.mrf.mxu0
        %v4791 = vpop.f32.mrf.mxu0
        %4792 = vdwg.mxu0
        %v4796 = vlaneseq
        %v4797 = vshrl.u32 %v4796, 7
        %v4798 = vsub.s32 0, %v4797
        %v4799 = vrot.slane %v467, %v4798
        %v4800 = vlaneseq
        %v4801 = vshrl.u32 %v4800, 7
        %v4802 = vsub.s32 1, %v4801
        %v4803 = vrot.slane %v467, %v4802
        %v4804 = vlaneseq
        %v4805 = vshrl.u32 %v4804, 7
        %v4806 = vsub.s32 2, %v4805
        %v4807 = vrot.slane %v467, %v4806
        %v4808 = vlaneseq
        %v4809 = vshrl.u32 %v4808, 7
        %v4810 = vsub.s32 3, %v4809
        %v4811 = vrot.slane %v467, %v4810
        %v4812 = vlaneseq
        %v4813 = vshrl.u32 %v4812, 7
        %v4814 = vsub.s32 4, %v4813
        %v4815 = vrot.slane %v467, %v4814
        %v4816 = vlaneseq
        %v4817 = vshrl.u32 %v4816, 7
        %v4818 = vsub.s32 5, %v4817
        %v4819 = vrot.slane %v467, %v4818
        %v4820 = vlaneseq
        %v4821 = vshrl.u32 %v4820, 7
        %v4822 = vsub.s32 6, %v4821
        %v4823 = vrot.slane %v467, %v4822
        %v4824 = vlaneseq
        %v4825 = vshrl.u32 %v4824, 7
        %v4826 = vsub.s32 7, %v4825
        %v4827 = vrot.slane %v467, %v4826
        %v4828 = vlaneseq
        %v4829 = vshrl.u32 %v4828, 7
        %v4830 = vsub.s32 0, %v4829
        %v4831 = vrot.slane %v469, %v4830
        %v4832 = vlaneseq
        %v4833 = vshrl.u32 %v4832, 7
        %v4834 = vsub.s32 1, %v4833
        %v4835 = vrot.slane %v469, %v4834
        %v4836 = vlaneseq
        %v4837 = vshrl.u32 %v4836, 7
        %v4838 = vsub.s32 2, %v4837
        %v4839 = vrot.slane %v469, %v4838
        %v4840 = vlaneseq
        %v4841 = vshrl.u32 %v4840, 7
        %v4842 = vsub.s32 3, %v4841
        %v4843 = vrot.slane %v469, %v4842
        %v4844 = vlaneseq
        %v4845 = vshrl.u32 %v4844, 7
        %v4846 = vsub.s32 4, %v4845
        %v4847 = vrot.slane %v469, %v4846
        %v4848 = vlaneseq
        %v4849 = vshrl.u32 %v4848, 7
        %v4850 = vsub.s32 5, %v4849
        %v4851 = vrot.slane %v469, %v4850
        %v4852 = vlaneseq
        %v4853 = vshrl.u32 %v4852, 7
        %v4854 = vsub.s32 6, %v4853
        %v4855 = vrot.slane %v469, %v4854
        %v4856 = vlaneseq
        %v4857 = vshrl.u32 %v4856, 7
        %v4858 = vsub.s32 7, %v4857
        %v4859 = vrot.slane %v469, %v4858
        %v4860 = vlaneseq
        %v4861 = vshrl.u32 %v4860, 7
        %v4862 = vsub.s32 0, %v4861
        %v4863 = vrot.slane %v471, %v4862
        %v4864 = vlaneseq
        %v4865 = vshrl.u32 %v4864, 7
        %v4866 = vsub.s32 1, %v4865
        %v4867 = vrot.slane %v471, %v4866
        %v4868 = vlaneseq
        %v4869 = vshrl.u32 %v4868, 7
        %v4870 = vsub.s32 2, %v4869
        %v4871 = vrot.slane %v471, %v4870
        %v4872 = vlaneseq
        %v4873 = vshrl.u32 %v4872, 7
        %v4874 = vsub.s32 3, %v4873
        %v4875 = vrot.slane %v471, %v4874
        %v4876 = vlaneseq
        %v4877 = vshrl.u32 %v4876, 7
        %v4878 = vsub.s32 4, %v4877
        %v4879 = vrot.slane %v471, %v4878
        %v4880 = vlaneseq
        %v4881 = vshrl.u32 %v4880, 7
        %v4882 = vsub.s32 5, %v4881
        %v4883 = vrot.slane %v471, %v4882
        %v4884 = vlaneseq
        %v4885 = vshrl.u32 %v4884, 7
        %v4886 = vsub.s32 6, %v4885
        %v4887 = vrot.slane %v471, %v4886
        %v4888 = vlaneseq
        %v4889 = vshrl.u32 %v4888, 7
        %v4890 = vsub.s32 7, %v4889
        %v4891 = vrot.slane %v471, %v4890
        %v4916 = vmul.f32 %v2983, %v4799
        %v4917 = vmul.f32 %v2985, %v4803
        %v4918 = vmul.f32 %v3147, %v4807
        %v4919 = vmul.f32 %v3149, %v4811
        %v4920 = vmul.f32 %v3311, %v4815
        %v4921 = vmul.f32 %v3313, %v4819
        %v4922 = vmul.f32 %v3475, %v4823
        %v4923 = vmul.f32 %v3477, %v4827
        %v4924 = vmul.f32 %v3639, %v4831
        %v4925 = vmul.f32 %v3641, %v4835
        %v4926 = vmul.f32 %v3803, %v4839
        %v4927 = vmul.f32 %v3805, %v4843
        %v4928 = vmul.f32 %v3967, %v4847
        %v4929 = vmul.f32 %v3969, %v4851
        %v4930 = vmul.f32 %v4131, %v4855
        %v4931 = vmul.f32 %v4133, %v4859
        %v4932 = vmul.f32 %v4295, %v4863
        %v4933 = vmul.f32 %v4297, %v4867
        %v4934 = vmul.f32 %v4459, %v4871
        %v4935 = vmul.f32 %v4461, %v4875
        %v4936 = vmul.f32 %v4623, %v4879
        %v4937 = vmul.f32 %v4625, %v4883
        %v4938 = vmul.f32 %v4787, %v4887
        %v4939 = vmul.f32 %v4789, %v4891
        %v4943 = vlaneseq
        %v4944 = vshrl.u32 %v4943, 7
        %v4945 = vsub.s32 0, %v4944
        %v4946 = vrot.slane %v455, %v4945
        %v4947 = vlaneseq
        %v4948 = vshrl.u32 %v4947, 7
        %v4949 = vsub.s32 1, %v4948
        %v4950 = vrot.slane %v455, %v4949
        %v4951 = vlaneseq
        %v4952 = vshrl.u32 %v4951, 7
        %v4953 = vsub.s32 2, %v4952
        %v4954 = vrot.slane %v455, %v4953
        %v4955 = vlaneseq
        %v4956 = vshrl.u32 %v4955, 7
        %v4957 = vsub.s32 3, %v4956
        %v4958 = vrot.slane %v455, %v4957
        %v4959 = vlaneseq
        %v4960 = vshrl.u32 %v4959, 7
        %v4961 = vsub.s32 4, %v4960
        %v4962 = vrot.slane %v455, %v4961
        %v4963 = vlaneseq
        %v4964 = vshrl.u32 %v4963, 7
        %v4965 = vsub.s32 5, %v4964
        %v4966 = vrot.slane %v455, %v4965
        %v4967 = vlaneseq
        %v4968 = vshrl.u32 %v4967, 7
        %v4969 = vsub.s32 6, %v4968
        %v4970 = vrot.slane %v455, %v4969
        %v4971 = vlaneseq
        %v4972 = vshrl.u32 %v4971, 7
        %v4973 = vsub.s32 7, %v4972
        %v4974 = vrot.slane %v455, %v4973
        %v4975 = vlaneseq
        %v4976 = vshrl.u32 %v4975, 7
        %v4977 = vsub.s32 0, %v4976
        %v4978 = vrot.slane %v457, %v4977
        %v4979 = vlaneseq
        %v4980 = vshrl.u32 %v4979, 7
        %v4981 = vsub.s32 1, %v4980
        %v4982 = vrot.slane %v457, %v4981
        %v4983 = vlaneseq
        %v4984 = vshrl.u32 %v4983, 7
        %v4985 = vsub.s32 2, %v4984
        %v4986 = vrot.slane %v457, %v4985
        %v4987 = vlaneseq
        %v4988 = vshrl.u32 %v4987, 7
        %v4989 = vsub.s32 3, %v4988
        %v4990 = vrot.slane %v457, %v4989
        %v4991 = vlaneseq
        %v4992 = vshrl.u32 %v4991, 7
        %v4993 = vsub.s32 4, %v4992
        %v4994 = vrot.slane %v457, %v4993
        %v4995 = vlaneseq
        %v4996 = vshrl.u32 %v4995, 7
        %v4997 = vsub.s32 5, %v4996
        %v4998 = vrot.slane %v457, %v4997
        %v4999 = vlaneseq
        %v5000 = vshrl.u32 %v4999, 7
        %v5001 = vsub.s32 6, %v5000
        %v5002 = vrot.slane %v457, %v5001
        %v5003 = vlaneseq
        %v5004 = vshrl.u32 %v5003, 7
        %v5005 = vsub.s32 7, %v5004
        %v5006 = vrot.slane %v457, %v5005
        %v5007 = vlaneseq
        %v5008 = vshrl.u32 %v5007, 7
        %v5009 = vsub.s32 0, %v5008
        %v5010 = vrot.slane %v459, %v5009
        %v5011 = vlaneseq
        %v5012 = vshrl.u32 %v5011, 7
        %v5013 = vsub.s32 1, %v5012
        %v5014 = vrot.slane %v459, %v5013
        %v5015 = vlaneseq
        %v5016 = vshrl.u32 %v5015, 7
        %v5017 = vsub.s32 2, %v5016
        %v5018 = vrot.slane %v459, %v5017
        %v5019 = vlaneseq
        %v5020 = vshrl.u32 %v5019, 7
        %v5021 = vsub.s32 3, %v5020
        %v5022 = vrot.slane %v459, %v5021
        %v5023 = vlaneseq
        %v5024 = vshrl.u32 %v5023, 7
        %v5025 = vsub.s32 4, %v5024
        %v5026 = vrot.slane %v459, %v5025
        %v5027 = vlaneseq
        %v5028 = vshrl.u32 %v5027, 7
        %v5029 = vsub.s32 5, %v5028
        %v5030 = vrot.slane %v459, %v5029
        %v5031 = vlaneseq
        %v5032 = vshrl.u32 %v5031, 7
        %v5033 = vsub.s32 6, %v5032
        %v5034 = vrot.slane %v459, %v5033
        %v5035 = vlaneseq
        %v5036 = vshrl.u32 %v5035, 7
        %v5037 = vsub.s32 7, %v5036
        %v5038 = vrot.slane %v459, %v5037
        %v5063 = vadd.f32 %v4916, %v4946
        %v5064 = vadd.f32 %v4917, %v4950
        %v5065 = vadd.f32 %v4918, %v4954
        %v5066 = vadd.f32 %v4919, %v4958
        %v5067 = vadd.f32 %v4920, %v4962
        %v5068 = vadd.f32 %v4921, %v4966
        %v5069 = vadd.f32 %v4922, %v4970
        %v5070 = vadd.f32 %v4923, %v4974
        %v5071 = vadd.f32 %v4924, %v4978
        %v5072 = vadd.f32 %v4925, %v4982
        %v5073 = vadd.f32 %v4926, %v4986
        %v5074 = vadd.f32 %v4927, %v4990
        %v5075 = vadd.f32 %v4928, %v4994
        %v5076 = vadd.f32 %v4929, %v4998
        %v5077 = vadd.f32 %v4930, %v5002
        %v5078 = vadd.f32 %v4931, %v5006
        %v5079 = vadd.f32 %v4932, %v5010
        %v5080 = vadd.f32 %v4933, %v5014
        %v5081 = vadd.f32 %v4934, %v5018
        %v5082 = vadd.f32 %v4935, %v5022
        %v5083 = vadd.f32 %v4936, %v5026
        %v5084 = vadd.f32 %v4937, %v5030
        %v5085 = vadd.f32 %v4938, %v5034
        %v5086 = vadd.f32 %v4939, %v5038
        %v5088 = vlaneseq
        %v5089 = vshrl.u32 %v5088, 7
        %v5090 = vsub.s32 0, %v5089
        %v5091 = vrot.slane %v448, %v5090
        %v5092 = vlaneseq
        %v5093 = vshrl.u32 %v5092, 7
        %v5094 = vsub.s32 1, %v5093
        %v5095 = vrot.slane %v448, %v5094
        %v5096 = vlaneseq
        %v5097 = vshrl.u32 %v5096, 7
        %v5098 = vsub.s32 2, %v5097
        %v5099 = vrot.slane %v448, %v5098
        %v5100 = vlaneseq
        %v5101 = vshrl.u32 %v5100, 7
        %v5102 = vsub.s32 3, %v5101
        %v5103 = vrot.slane %v448, %v5102
        %v5104 = vlaneseq
        %v5105 = vshrl.u32 %v5104, 7
        %v5106 = vsub.s32 4, %v5105
        %v5107 = vrot.slane %v448, %v5106
        %v5108 = vlaneseq
        %v5109 = vshrl.u32 %v5108, 7
        %v5110 = vsub.s32 5, %v5109
        %v5111 = vrot.slane %v448, %v5110
        %v5112 = vlaneseq
        %v5113 = vshrl.u32 %v5112, 7
        %v5114 = vsub.s32 6, %v5113
        %v5115 = vrot.slane %v448, %v5114
        %v5116 = vlaneseq
        %v5117 = vshrl.u32 %v5116, 7
        %v5118 = vsub.s32 7, %v5117
        %v5119 = vrot.slane %v448, %v5118
        %v5128 = vpack.c.bf16 %v5091, %v5091
        %v5129 = vpack.c.bf16 %v5095, %v5095
        %v5130 = vpack.c.bf16 %v5099, %v5099
        %v5131 = vpack.c.bf16 %v5103, %v5103
        %v5132 = vpack.c.bf16 %v5107, %v5107
        %v5133 = vpack.c.bf16 %v5111, %v5111
        %v5134 = vpack.c.bf16 %v5115, %v5115
        %v5135 = vpack.c.bf16 %v5119, %v5119
        %v5136 = vld [vmem:[%s366] sm:$0xff]
        %v5137 = vld [vmem:[%s366 + $0x8] sm:$0xff]
        %v5138 = vld [vmem:[%s366 + $0x10] sm:$0xff]
        %v5139 = vld [vmem:[%s366 + $0x18] sm:$0xff]
        %v5140 = vld [vmem:[%s366 + $0x20] sm:$0xff]
        %v5141 = vld [vmem:[%s366 + $0x28] sm:$0xff]
        %v5142 = vld [vmem:[%s366 + $0x30] sm:$0xff]
        %v5143 = vld [vmem:[%s366 + $0x38] sm:$0xff]
        %v5144 = vld [vmem:[%s366 + $0x40] sm:$0xff]
        %v5145 = vld [vmem:[%s366 + $0x48] sm:$0xff]
        %v5146 = vld [vmem:[%s366 + $0x50] sm:$0xff]
        %v5147 = vld [vmem:[%s366 + $0x58] sm:$0xff]
        %v5148 = vld [vmem:[%s366 + $0x60] sm:$0xff]
        %v5149 = vld [vmem:[%s366 + $0x68] sm:$0xff]
        %v5150 = vld [vmem:[%s366 + $0x70] sm:$0xff]
        %v5151 = vld [vmem:[%s366 + $0x78] sm:$0xff]
        %v5152 = vld [vmem:[%s366 + $0x80] sm:$0xff]
        %v5153 = vld [vmem:[%s366 + $0x88] sm:$0xff]
        %v5154 = vld [vmem:[%s366 + $0x90] sm:$0xff]
        %v5155 = vld [vmem:[%s366 + $0x98] sm:$0xff]
        %v5156 = vld [vmem:[%s366 + $0xa0] sm:$0xff]
        %v5157 = vld [vmem:[%s366 + $0xa8] sm:$0xff]
        %v5158 = vld [vmem:[%s366 + $0xb0] sm:$0xff]
        %v5159 = vld [vmem:[%s366 + $0xb8] sm:$0xff]
        %v5160 = vld [vmem:[%s366 + $0xc0] sm:$0xff]
        %v5161 = vld [vmem:[%s366 + $0xc8] sm:$0xff]
        %v5162 = vld [vmem:[%s366 + $0xd0] sm:$0xff]
        %v5163 = vld [vmem:[%s366 + $0xd8] sm:$0xff]
        %v5164 = vld [vmem:[%s366 + $0xe0] sm:$0xff]
        %v5165 = vld [vmem:[%s366 + $0xe8] sm:$0xff]
        %v5166 = vld [vmem:[%s366 + $0xf0] sm:$0xff]
        %v5167 = vld [vmem:[%s366 + $0xf8] sm:$0xff]
        %v5168 = vld [vmem:[%s366 + $0x100] sm:$0xff]
        %v5169 = vld [vmem:[%s366 + $0x108] sm:$0xff]
        %v5170 = vld [vmem:[%s366 + $0x110] sm:$0xff]
        %v5171 = vld [vmem:[%s366 + $0x118] sm:$0xff]
        %v5172 = vld [vmem:[%s366 + $0x120] sm:$0xff]
        %v5173 = vld [vmem:[%s366 + $0x128] sm:$0xff]
        %v5174 = vld [vmem:[%s366 + $0x130] sm:$0xff]
        %v5175 = vld [vmem:[%s366 + $0x138] sm:$0xff]
        %v5176 = vld [vmem:[%s366 + $0x140] sm:$0xff]
        %v5177 = vld [vmem:[%s366 + $0x148] sm:$0xff]
        %v5178 = vld [vmem:[%s366 + $0x150] sm:$0xff]
        %v5179 = vld [vmem:[%s366 + $0x158] sm:$0xff]
        %v5180 = vld [vmem:[%s366 + $0x160] sm:$0xff]
        %v5181 = vld [vmem:[%s366 + $0x168] sm:$0xff]
        %v5182 = vld [vmem:[%s366 + $0x170] sm:$0xff]
        %v5183 = vld [vmem:[%s366 + $0x178] sm:$0xff]
        %v5184 = vld [vmem:[%s366 + $0x180] sm:$0xff]
        %v5185 = vld [vmem:[%s366 + $0x188] sm:$0xff]
        %v5186 = vld [vmem:[%s366 + $0x190] sm:$0xff]
        %v5187 = vld [vmem:[%s366 + $0x198] sm:$0xff]
        %v5188 = vld [vmem:[%s366 + $0x1a0] sm:$0xff]
        %v5189 = vld [vmem:[%s366 + $0x1a8] sm:$0xff]
        %v5190 = vld [vmem:[%s366 + $0x1b0] sm:$0xff]
        %v5191 = vld [vmem:[%s366 + $0x1b8] sm:$0xff]
        %v5192 = vld [vmem:[%s366 + $0x1c0] sm:$0xff]
        %v5193 = vld [vmem:[%s366 + $0x1c8] sm:$0xff]
        %v5194 = vld [vmem:[%s366 + $0x1d0] sm:$0xff]
        %v5195 = vld [vmem:[%s366 + $0x1d8] sm:$0xff]
        %v5196 = vld [vmem:[%s366 + $0x1e0] sm:$0xff]
        %v5197 = vld [vmem:[%s366 + $0x1e8] sm:$0xff]
        %v5198 = vld [vmem:[%s366 + $0x1f0] sm:$0xff]
        %v5199 = vld [vmem:[%s366 + $0x1f8] sm:$0xff]
        %v5200 = vld [vmem:[%s366 + $0x200] sm:$0xff]
        %v5201 = vld [vmem:[%s366 + $0x208] sm:$0xff]
        %v5202 = vld [vmem:[%s366 + $0x210] sm:$0xff]
        %v5203 = vld [vmem:[%s366 + $0x218] sm:$0xff]
        %v5204 = vld [vmem:[%s366 + $0x220] sm:$0xff]
        %v5205 = vld [vmem:[%s366 + $0x228] sm:$0xff]
        %v5206 = vld [vmem:[%s366 + $0x230] sm:$0xff]
        %v5207 = vld [vmem:[%s366 + $0x238] sm:$0xff]
        %v5208 = vld [vmem:[%s366 + $0x240] sm:$0xff]
        %v5209 = vld [vmem:[%s366 + $0x248] sm:$0xff]
        %v5210 = vld [vmem:[%s366 + $0x250] sm:$0xff]
        %v5211 = vld [vmem:[%s366 + $0x258] sm:$0xff]
        %v5212 = vld [vmem:[%s366 + $0x260] sm:$0xff]
        %v5213 = vld [vmem:[%s366 + $0x268] sm:$0xff]
        %v5214 = vld [vmem:[%s366 + $0x270] sm:$0xff]
        %v5215 = vld [vmem:[%s366 + $0x278] sm:$0xff]
        %v5216 = vld [vmem:[%s366 + $0x280] sm:$0xff]
        %v5217 = vld [vmem:[%s366 + $0x288] sm:$0xff]
        %v5218 = vld [vmem:[%s366 + $0x290] sm:$0xff]
        %v5219 = vld [vmem:[%s366 + $0x298] sm:$0xff]
        %v5220 = vld [vmem:[%s366 + $0x2a0] sm:$0xff]
        %v5221 = vld [vmem:[%s366 + $0x2a8] sm:$0xff]
        %v5222 = vld [vmem:[%s366 + $0x2b0] sm:$0xff]
        %v5223 = vld [vmem:[%s366 + $0x2b8] sm:$0xff]
        %v5224 = vld [vmem:[%s366 + $0x2c0] sm:$0xff]
        %v5225 = vld [vmem:[%s366 + $0x2c8] sm:$0xff]
        %v5226 = vld [vmem:[%s366 + $0x2d0] sm:$0xff]
        %v5227 = vld [vmem:[%s366 + $0x2d8] sm:$0xff]
        %v5228 = vld [vmem:[%s366 + $0x2e0] sm:$0xff]
        %v5229 = vld [vmem:[%s366 + $0x2e8] sm:$0xff]
        %v5230 = vld [vmem:[%s366 + $0x2f0] sm:$0xff]
        %v5231 = vld [vmem:[%s366 + $0x2f8] sm:$0xff]
        %v5232 = vld [vmem:[%s366 + $0x300] sm:$0xff]
        %v5233 = vld [vmem:[%s366 + $0x308] sm:$0xff]
        %v5234 = vld [vmem:[%s366 + $0x310] sm:$0xff]
        %v5235 = vld [vmem:[%s366 + $0x318] sm:$0xff]
        %v5236 = vld [vmem:[%s366 + $0x320] sm:$0xff]
        %v5237 = vld [vmem:[%s366 + $0x328] sm:$0xff]
        %v5238 = vld [vmem:[%s366 + $0x330] sm:$0xff]
        %v5239 = vld [vmem:[%s366 + $0x338] sm:$0xff]
        %v5240 = vld [vmem:[%s366 + $0x340] sm:$0xff]
        %v5241 = vld [vmem:[%s366 + $0x348] sm:$0xff]
        %v5242 = vld [vmem:[%s366 + $0x350] sm:$0xff]
        %v5243 = vld [vmem:[%s366 + $0x358] sm:$0xff]
        %v5244 = vld [vmem:[%s366 + $0x360] sm:$0xff]
        %v5245 = vld [vmem:[%s366 + $0x368] sm:$0xff]
        %v5246 = vld [vmem:[%s366 + $0x370] sm:$0xff]
        %v5247 = vld [vmem:[%s366 + $0x378] sm:$0xff]
        %v5248 = vld [vmem:[%s366 + $0x380] sm:$0xff]
        %v5249 = vld [vmem:[%s366 + $0x388] sm:$0xff]
        %v5250 = vld [vmem:[%s366 + $0x390] sm:$0xff]
        %v5251 = vld [vmem:[%s366 + $0x398] sm:$0xff]
        %v5252 = vld [vmem:[%s366 + $0x3a0] sm:$0xff]
        %v5253 = vld [vmem:[%s366 + $0x3a8] sm:$0xff]
        %v5254 = vld [vmem:[%s366 + $0x3b0] sm:$0xff]
        %v5255 = vld [vmem:[%s366 + $0x3b8] sm:$0xff]
        %v5256 = vld [vmem:[%s366 + $0x3c0] sm:$0xff]
        %v5257 = vld [vmem:[%s366 + $0x3c8] sm:$0xff]
        %v5258 = vld [vmem:[%s366 + $0x3d0] sm:$0xff]
        %v5259 = vld [vmem:[%s366 + $0x3d8] sm:$0xff]
        %v5260 = vld [vmem:[%s366 + $0x3e0] sm:$0xff]
        %v5261 = vld [vmem:[%s366 + $0x3e8] sm:$0xff]
        %v5262 = vld [vmem:[%s366 + $0x3f0] sm:$0xff]
        %v5263 = vld [vmem:[%s366 + $0x3f8] sm:$0xff]
        %v5264 = vld [vmem:[%s366 + $0x400] sm:$0xff]
        %v5265 = vld [vmem:[%s366 + $0x408] sm:$0xff]
        %v5266 = vld [vmem:[%s366 + $0x410] sm:$0xff]
        %v5267 = vld [vmem:[%s366 + $0x418] sm:$0xff]
        %v5268 = vld [vmem:[%s366 + $0x420] sm:$0xff]
        %v5269 = vld [vmem:[%s366 + $0x428] sm:$0xff]
        %v5270 = vld [vmem:[%s366 + $0x430] sm:$0xff]
        %v5271 = vld [vmem:[%s366 + $0x438] sm:$0xff]
        %v5272 = vld [vmem:[%s366 + $0x440] sm:$0xff]
        %v5273 = vld [vmem:[%s366 + $0x448] sm:$0xff]
        %v5274 = vld [vmem:[%s366 + $0x450] sm:$0xff]
        %v5275 = vld [vmem:[%s366 + $0x458] sm:$0xff]
        %v5276 = vld [vmem:[%s366 + $0x460] sm:$0xff]
        %v5277 = vld [vmem:[%s366 + $0x468] sm:$0xff]
        %v5278 = vld [vmem:[%s366 + $0x470] sm:$0xff]
        %v5279 = vld [vmem:[%s366 + $0x478] sm:$0xff]
        %v5280 = vld [vmem:[%s366 + $0x480] sm:$0xff]
        %v5281 = vld [vmem:[%s366 + $0x488] sm:$0xff]
        %v5282 = vld [vmem:[%s366 + $0x490] sm:$0xff]
        %v5283 = vld [vmem:[%s366 + $0x498] sm:$0xff]
        %v5284 = vld [vmem:[%s366 + $0x4a0] sm:$0xff]
        %v5285 = vld [vmem:[%s366 + $0x4a8] sm:$0xff]
        %v5286 = vld [vmem:[%s366 + $0x4b0] sm:$0xff]
        %v5287 = vld [vmem:[%s366 + $0x4b8] sm:$0xff]
        %v5288 = vld [vmem:[%s366 + $0x4c0] sm:$0xff]
        %v5289 = vld [vmem:[%s366 + $0x4c8] sm:$0xff]
        %v5290 = vld [vmem:[%s366 + $0x4d0] sm:$0xff]
        %v5291 = vld [vmem:[%s366 + $0x4d8] sm:$0xff]
        %v5292 = vld [vmem:[%s366 + $0x4e0] sm:$0xff]
        %v5293 = vld [vmem:[%s366 + $0x4e8] sm:$0xff]
        %v5294 = vld [vmem:[%s366 + $0x4f0] sm:$0xff]
        %v5295 = vld [vmem:[%s366 + $0x4f8] sm:$0xff]
        %v5296 = vld [vmem:[%s366 + $0x500] sm:$0xff]
        %v5297 = vld [vmem:[%s366 + $0x508] sm:$0xff]
        %v5298 = vld [vmem:[%s366 + $0x510] sm:$0xff]
        %v5299 = vld [vmem:[%s366 + $0x518] sm:$0xff]
        %v5300 = vld [vmem:[%s366 + $0x520] sm:$0xff]
        %v5301 = vld [vmem:[%s366 + $0x528] sm:$0xff]
        %v5302 = vld [vmem:[%s366 + $0x530] sm:$0xff]
        %v5303 = vld [vmem:[%s366 + $0x538] sm:$0xff]
        %v5304 = vld [vmem:[%s366 + $0x540] sm:$0xff]
        %v5305 = vld [vmem:[%s366 + $0x548] sm:$0xff]
        %v5306 = vld [vmem:[%s366 + $0x550] sm:$0xff]
        %v5307 = vld [vmem:[%s366 + $0x558] sm:$0xff]
        %v5308 = vld [vmem:[%s366 + $0x560] sm:$0xff]
        %v5309 = vld [vmem:[%s366 + $0x568] sm:$0xff]
        %v5310 = vld [vmem:[%s366 + $0x570] sm:$0xff]
        %v5311 = vld [vmem:[%s366 + $0x578] sm:$0xff]
        %v5312 = vld [vmem:[%s366 + $0x580] sm:$0xff]
        %v5313 = vld [vmem:[%s366 + $0x588] sm:$0xff]
        %v5314 = vld [vmem:[%s366 + $0x590] sm:$0xff]
        %v5315 = vld [vmem:[%s366 + $0x598] sm:$0xff]
        %v5316 = vld [vmem:[%s366 + $0x5a0] sm:$0xff]
        %v5317 = vld [vmem:[%s366 + $0x5a8] sm:$0xff]
        %v5318 = vld [vmem:[%s366 + $0x5b0] sm:$0xff]
        %v5319 = vld [vmem:[%s366 + $0x5b8] sm:$0xff]
        %v5320 = vld [vmem:[%s366 + $0x5c0] sm:$0xff]
        %v5321 = vld [vmem:[%s366 + $0x5c8] sm:$0xff]
        %v5322 = vld [vmem:[%s366 + $0x5d0] sm:$0xff]
        %v5323 = vld [vmem:[%s366 + $0x5d8] sm:$0xff]
        %v5324 = vld [vmem:[%s366 + $0x5e0] sm:$0xff]
        %v5325 = vld [vmem:[%s366 + $0x5e8] sm:$0xff]
        %v5326 = vld [vmem:[%s366 + $0x5f0] sm:$0xff]
        %v5327 = vld [vmem:[%s366 + $0x5f8] sm:$0xff]
        %v5328 = vld [vmem:[%s366 + $0x600] sm:$0xff]
        %v5329 = vld [vmem:[%s366 + $0x608] sm:$0xff]
        %v5330 = vld [vmem:[%s366 + $0x610] sm:$0xff]
        %v5331 = vld [vmem:[%s366 + $0x618] sm:$0xff]
        %v5332 = vld [vmem:[%s366 + $0x620] sm:$0xff]
        %v5333 = vld [vmem:[%s366 + $0x628] sm:$0xff]
        %v5334 = vld [vmem:[%s366 + $0x630] sm:$0xff]
        %v5335 = vld [vmem:[%s366 + $0x638] sm:$0xff]
        %v5336 = vld [vmem:[%s366 + $0x640] sm:$0xff]
        %v5337 = vld [vmem:[%s366 + $0x648] sm:$0xff]
        %v5338 = vld [vmem:[%s366 + $0x650] sm:$0xff]
        %v5339 = vld [vmem:[%s366 + $0x658] sm:$0xff]
        %v5340 = vld [vmem:[%s366 + $0x660] sm:$0xff]
        %v5341 = vld [vmem:[%s366 + $0x668] sm:$0xff]
        %v5342 = vld [vmem:[%s366 + $0x670] sm:$0xff]
        %v5343 = vld [vmem:[%s366 + $0x678] sm:$0xff]
        %v5344 = vld [vmem:[%s366 + $0x680] sm:$0xff]
        %v5345 = vld [vmem:[%s366 + $0x688] sm:$0xff]
        %v5346 = vld [vmem:[%s366 + $0x690] sm:$0xff]
        %v5347 = vld [vmem:[%s366 + $0x698] sm:$0xff]
        %v5348 = vld [vmem:[%s366 + $0x6a0] sm:$0xff]
        %v5349 = vld [vmem:[%s366 + $0x6a8] sm:$0xff]
        %v5350 = vld [vmem:[%s366 + $0x6b0] sm:$0xff]
        %v5351 = vld [vmem:[%s366 + $0x6b8] sm:$0xff]
        %v5352 = vld [vmem:[%s366 + $0x6c0] sm:$0xff]
        %v5353 = vld [vmem:[%s366 + $0x6c8] sm:$0xff]
        %v5354 = vld [vmem:[%s366 + $0x6d0] sm:$0xff]
        %v5355 = vld [vmem:[%s366 + $0x6d8] sm:$0xff]
        %v5356 = vld [vmem:[%s366 + $0x6e0] sm:$0xff]
        %v5357 = vld [vmem:[%s366 + $0x6e8] sm:$0xff]
        %v5358 = vld [vmem:[%s366 + $0x6f0] sm:$0xff]
        %v5359 = vld [vmem:[%s366 + $0x6f8] sm:$0xff]
        %v5360 = vld [vmem:[%s366 + $0x700] sm:$0xff]
        %v5361 = vld [vmem:[%s366 + $0x708] sm:$0xff]
        %v5362 = vld [vmem:[%s366 + $0x710] sm:$0xff]
        %v5363 = vld [vmem:[%s366 + $0x718] sm:$0xff]
        %v5364 = vld [vmem:[%s366 + $0x720] sm:$0xff]
        %v5365 = vld [vmem:[%s366 + $0x728] sm:$0xff]
        %v5366 = vld [vmem:[%s366 + $0x730] sm:$0xff]
        %v5367 = vld [vmem:[%s366 + $0x738] sm:$0xff]
        %v5368 = vld [vmem:[%s366 + $0x740] sm:$0xff]
        %v5369 = vld [vmem:[%s366 + $0x748] sm:$0xff]
        %v5370 = vld [vmem:[%s366 + $0x750] sm:$0xff]
        %v5371 = vld [vmem:[%s366 + $0x758] sm:$0xff]
        %v5372 = vld [vmem:[%s366 + $0x760] sm:$0xff]
        %v5373 = vld [vmem:[%s366 + $0x768] sm:$0xff]
        %v5374 = vld [vmem:[%s366 + $0x770] sm:$0xff]
        %v5375 = vld [vmem:[%s366 + $0x778] sm:$0xff]
        %v5376 = vld [vmem:[%s366 + $0x780] sm:$0xff]
        %v5377 = vld [vmem:[%s366 + $0x788] sm:$0xff]
        %v5378 = vld [vmem:[%s366 + $0x790] sm:$0xff]
        %v5379 = vld [vmem:[%s366 + $0x798] sm:$0xff]
        %v5380 = vld [vmem:[%s366 + $0x7a0] sm:$0xff]
        %v5381 = vld [vmem:[%s366 + $0x7a8] sm:$0xff]
        %v5382 = vld [vmem:[%s366 + $0x7b0] sm:$0xff]
        %v5383 = vld [vmem:[%s366 + $0x7b8] sm:$0xff]
        %v5384 = vld [vmem:[%s366 + $0x7c0] sm:$0xff]
        %v5385 = vld [vmem:[%s366 + $0x7c8] sm:$0xff]
        %v5386 = vld [vmem:[%s366 + $0x7d0] sm:$0xff]
        %v5387 = vld [vmem:[%s366 + $0x7d8] sm:$0xff]
        %v5388 = vld [vmem:[%s366 + $0x7e0] sm:$0xff]
        %v5389 = vld [vmem:[%s366 + $0x7e8] sm:$0xff]
        %v5390 = vld [vmem:[%s366 + $0x7f0] sm:$0xff]
        %v5391 = vld [vmem:[%s366 + $0x7f8] sm:$0xff]
        %v5392 = vld [vmem:[%s366 + $0x800] sm:$0xff]
        %v5393 = vld [vmem:[%s366 + $0x808] sm:$0xff]
        %v5394 = vld [vmem:[%s366 + $0x810] sm:$0xff]
        %v5395 = vld [vmem:[%s366 + $0x818] sm:$0xff]
        %v5396 = vld [vmem:[%s366 + $0x820] sm:$0xff]
        %v5397 = vld [vmem:[%s366 + $0x828] sm:$0xff]
        %v5398 = vld [vmem:[%s366 + $0x830] sm:$0xff]
        %v5399 = vld [vmem:[%s366 + $0x838] sm:$0xff]
        %v5400 = vld [vmem:[%s366 + $0x840] sm:$0xff]
        %v5401 = vld [vmem:[%s366 + $0x848] sm:$0xff]
        %v5402 = vld [vmem:[%s366 + $0x850] sm:$0xff]
        %v5403 = vld [vmem:[%s366 + $0x858] sm:$0xff]
        %v5404 = vld [vmem:[%s366 + $0x860] sm:$0xff]
        %v5405 = vld [vmem:[%s366 + $0x868] sm:$0xff]
        %v5406 = vld [vmem:[%s366 + $0x870] sm:$0xff]
        %v5407 = vld [vmem:[%s366 + $0x878] sm:$0xff]
        %v5408 = vld [vmem:[%s366 + $0x880] sm:$0xff]
        %v5409 = vld [vmem:[%s366 + $0x888] sm:$0xff]
        %v5410 = vld [vmem:[%s366 + $0x890] sm:$0xff]
        %v5411 = vld [vmem:[%s366 + $0x898] sm:$0xff]
        %v5412 = vld [vmem:[%s366 + $0x8a0] sm:$0xff]
        %v5413 = vld [vmem:[%s366 + $0x8a8] sm:$0xff]
        %v5414 = vld [vmem:[%s366 + $0x8b0] sm:$0xff]
        %v5415 = vld [vmem:[%s366 + $0x8b8] sm:$0xff]
        %v5416 = vld [vmem:[%s366 + $0x8c0] sm:$0xff]
        %v5417 = vld [vmem:[%s366 + $0x8c8] sm:$0xff]
        %v5418 = vld [vmem:[%s366 + $0x8d0] sm:$0xff]
        %v5419 = vld [vmem:[%s366 + $0x8d8] sm:$0xff]
        %v5420 = vld [vmem:[%s366 + $0x8e0] sm:$0xff]
        %v5421 = vld [vmem:[%s366 + $0x8e8] sm:$0xff]
        %v5422 = vld [vmem:[%s366 + $0x8f0] sm:$0xff]
        %v5423 = vld [vmem:[%s366 + $0x8f8] sm:$0xff]
        %v5424 = vld [vmem:[%s366 + $0x900] sm:$0xff]
        %v5425 = vld [vmem:[%s366 + $0x908] sm:$0xff]
        %v5426 = vld [vmem:[%s366 + $0x910] sm:$0xff]
        %v5427 = vld [vmem:[%s366 + $0x918] sm:$0xff]
        %v5428 = vld [vmem:[%s366 + $0x920] sm:$0xff]
        %v5429 = vld [vmem:[%s366 + $0x928] sm:$0xff]
        %v5430 = vld [vmem:[%s366 + $0x930] sm:$0xff]
        %v5431 = vld [vmem:[%s366 + $0x938] sm:$0xff]
        %v5432 = vld [vmem:[%s366 + $0x940] sm:$0xff]
        %v5433 = vld [vmem:[%s366 + $0x948] sm:$0xff]
        %v5434 = vld [vmem:[%s366 + $0x950] sm:$0xff]
        %v5435 = vld [vmem:[%s366 + $0x958] sm:$0xff]
        %v5436 = vld [vmem:[%s366 + $0x960] sm:$0xff]
        %v5437 = vld [vmem:[%s366 + $0x968] sm:$0xff]
        %v5438 = vld [vmem:[%s366 + $0x970] sm:$0xff]
        %v5439 = vld [vmem:[%s366 + $0x978] sm:$0xff]
        %v5440 = vld [vmem:[%s366 + $0x980] sm:$0xff]
        %v5441 = vld [vmem:[%s366 + $0x988] sm:$0xff]
        %v5442 = vld [vmem:[%s366 + $0x990] sm:$0xff]
        %v5443 = vld [vmem:[%s366 + $0x998] sm:$0xff]
        %v5444 = vld [vmem:[%s366 + $0x9a0] sm:$0xff]
        %v5445 = vld [vmem:[%s366 + $0x9a8] sm:$0xff]
        %v5446 = vld [vmem:[%s366 + $0x9b0] sm:$0xff]
        %v5447 = vld [vmem:[%s366 + $0x9b8] sm:$0xff]
        %v5448 = vld [vmem:[%s366 + $0x9c0] sm:$0xff]
        %v5449 = vld [vmem:[%s366 + $0x9c8] sm:$0xff]
        %v5450 = vld [vmem:[%s366 + $0x9d0] sm:$0xff]
        %v5451 = vld [vmem:[%s366 + $0x9d8] sm:$0xff]
        %v5452 = vld [vmem:[%s366 + $0x9e0] sm:$0xff]
        %v5453 = vld [vmem:[%s366 + $0x9e8] sm:$0xff]
        %v5454 = vld [vmem:[%s366 + $0x9f0] sm:$0xff]
        %v5455 = vld [vmem:[%s366 + $0x9f8] sm:$0xff]
        %v5456 = vld [vmem:[%s366 + $0xa00] sm:$0xff]
        %v5457 = vld [vmem:[%s366 + $0xa08] sm:$0xff]
        %v5458 = vld [vmem:[%s366 + $0xa10] sm:$0xff]
        %v5459 = vld [vmem:[%s366 + $0xa18] sm:$0xff]
        %v5460 = vld [vmem:[%s366 + $0xa20] sm:$0xff]
        %v5461 = vld [vmem:[%s366 + $0xa28] sm:$0xff]
        %v5462 = vld [vmem:[%s366 + $0xa30] sm:$0xff]
        %v5463 = vld [vmem:[%s366 + $0xa38] sm:$0xff]
        %v5464 = vld [vmem:[%s366 + $0xa40] sm:$0xff]
        %v5465 = vld [vmem:[%s366 + $0xa48] sm:$0xff]
        %v5466 = vld [vmem:[%s366 + $0xa50] sm:$0xff]
        %v5467 = vld [vmem:[%s366 + $0xa58] sm:$0xff]
        %v5468 = vld [vmem:[%s366 + $0xa60] sm:$0xff]
        %v5469 = vld [vmem:[%s366 + $0xa68] sm:$0xff]
        %v5470 = vld [vmem:[%s366 + $0xa70] sm:$0xff]
        %v5471 = vld [vmem:[%s366 + $0xa78] sm:$0xff]
        %v5472 = vld [vmem:[%s366 + $0xa80] sm:$0xff]
        %v5473 = vld [vmem:[%s366 + $0xa88] sm:$0xff]
        %v5474 = vld [vmem:[%s366 + $0xa90] sm:$0xff]
        %v5475 = vld [vmem:[%s366 + $0xa98] sm:$0xff]
        %v5476 = vld [vmem:[%s366 + $0xaa0] sm:$0xff]
        %v5477 = vld [vmem:[%s366 + $0xaa8] sm:$0xff]
        %v5478 = vld [vmem:[%s366 + $0xab0] sm:$0xff]
        %v5479 = vld [vmem:[%s366 + $0xab8] sm:$0xff]
        %v5480 = vld [vmem:[%s366 + $0xac0] sm:$0xff]
        %v5481 = vld [vmem:[%s366 + $0xac8] sm:$0xff]
        %v5482 = vld [vmem:[%s366 + $0xad0] sm:$0xff]
        %v5483 = vld [vmem:[%s366 + $0xad8] sm:$0xff]
        %v5484 = vld [vmem:[%s366 + $0xae0] sm:$0xff]
        %v5485 = vld [vmem:[%s366 + $0xae8] sm:$0xff]
        %v5486 = vld [vmem:[%s366 + $0xaf0] sm:$0xff]
        %v5487 = vld [vmem:[%s366 + $0xaf8] sm:$0xff]
        %v5488 = vld [vmem:[%s366 + $0xb00] sm:$0xff]
        %v5489 = vld [vmem:[%s366 + $0xb08] sm:$0xff]
        %v5490 = vld [vmem:[%s366 + $0xb10] sm:$0xff]
        %v5491 = vld [vmem:[%s366 + $0xb18] sm:$0xff]
        %v5492 = vld [vmem:[%s366 + $0xb20] sm:$0xff]
        %v5493 = vld [vmem:[%s366 + $0xb28] sm:$0xff]
        %v5494 = vld [vmem:[%s366 + $0xb30] sm:$0xff]
        %v5495 = vld [vmem:[%s366 + $0xb38] sm:$0xff]
        %v5496 = vld [vmem:[%s366 + $0xb40] sm:$0xff]
        %v5497 = vld [vmem:[%s366 + $0xb48] sm:$0xff]
        %v5498 = vld [vmem:[%s366 + $0xb50] sm:$0xff]
        %v5499 = vld [vmem:[%s366 + $0xb58] sm:$0xff]
        %v5500 = vld [vmem:[%s366 + $0xb60] sm:$0xff]
        %v5501 = vld [vmem:[%s366 + $0xb68] sm:$0xff]
        %v5502 = vld [vmem:[%s366 + $0xb70] sm:$0xff]
        %v5503 = vld [vmem:[%s366 + $0xb78] sm:$0xff]
        %v5504 = vld [vmem:[%s366 + $0xb80] sm:$0xff]
        %v5505 = vld [vmem:[%s366 + $0xb88] sm:$0xff]
        %v5506 = vld [vmem:[%s366 + $0xb90] sm:$0xff]
        %v5507 = vld [vmem:[%s366 + $0xb98] sm:$0xff]
        %v5508 = vld [vmem:[%s366 + $0xba0] sm:$0xff]
        %v5509 = vld [vmem:[%s366 + $0xba8] sm:$0xff]
        %v5510 = vld [vmem:[%s366 + $0xbb0] sm:$0xff]
        %v5511 = vld [vmem:[%s366 + $0xbb8] sm:$0xff]
        %v5512 = vld [vmem:[%s366 + $0xbc0] sm:$0xff]
        %v5513 = vld [vmem:[%s366 + $0xbc8] sm:$0xff]
        %v5514 = vld [vmem:[%s366 + $0xbd0] sm:$0xff]
        %v5515 = vld [vmem:[%s366 + $0xbd8] sm:$0xff]
        %v5516 = vld [vmem:[%s366 + $0xbe0] sm:$0xff]
        %v5517 = vld [vmem:[%s366 + $0xbe8] sm:$0xff]
        %v5518 = vld [vmem:[%s366 + $0xbf0] sm:$0xff]
        %v5519 = vld [vmem:[%s366 + $0xbf8] sm:$0xff]
        %v5520 = vld [vmem:[%s366 + $0xc00] sm:$0xff]
        %v5521 = vld [vmem:[%s366 + $0xc08] sm:$0xff]
        %v5522 = vld [vmem:[%s366 + $0xc10] sm:$0xff]
        %v5523 = vld [vmem:[%s366 + $0xc18] sm:$0xff]
        %v5524 = vld [vmem:[%s366 + $0xc20] sm:$0xff]
        %v5525 = vld [vmem:[%s366 + $0xc28] sm:$0xff]
        %v5526 = vld [vmem:[%s366 + $0xc30] sm:$0xff]
        %v5527 = vld [vmem:[%s366 + $0xc38] sm:$0xff]
        %v5528 = vld [vmem:[%s366 + $0xc40] sm:$0xff]
        %v5529 = vld [vmem:[%s366 + $0xc48] sm:$0xff]
        %v5530 = vld [vmem:[%s366 + $0xc50] sm:$0xff]
        %v5531 = vld [vmem:[%s366 + $0xc58] sm:$0xff]
        %v5532 = vld [vmem:[%s366 + $0xc60] sm:$0xff]
        %v5533 = vld [vmem:[%s366 + $0xc68] sm:$0xff]
        %v5534 = vld [vmem:[%s366 + $0xc70] sm:$0xff]
        %v5535 = vld [vmem:[%s366 + $0xc78] sm:$0xff]
        %v5536 = vld [vmem:[%s366 + $0xc80] sm:$0xff]
        %v5537 = vld [vmem:[%s366 + $0xc88] sm:$0xff]
        %v5538 = vld [vmem:[%s366 + $0xc90] sm:$0xff]
        %v5539 = vld [vmem:[%s366 + $0xc98] sm:$0xff]
        %v5540 = vld [vmem:[%s366 + $0xca0] sm:$0xff]
        %v5541 = vld [vmem:[%s366 + $0xca8] sm:$0xff]
        %v5542 = vld [vmem:[%s366 + $0xcb0] sm:$0xff]
        %v5543 = vld [vmem:[%s366 + $0xcb8] sm:$0xff]
        %v5544 = vld [vmem:[%s366 + $0xcc0] sm:$0xff]
        %v5545 = vld [vmem:[%s366 + $0xcc8] sm:$0xff]
        %v5546 = vld [vmem:[%s366 + $0xcd0] sm:$0xff]
        %v5547 = vld [vmem:[%s366 + $0xcd8] sm:$0xff]
        %v5548 = vld [vmem:[%s366 + $0xce0] sm:$0xff]
        %v5549 = vld [vmem:[%s366 + $0xce8] sm:$0xff]
        %v5550 = vld [vmem:[%s366 + $0xcf0] sm:$0xff]
        %v5551 = vld [vmem:[%s366 + $0xcf8] sm:$0xff]
        %v5552 = vld [vmem:[%s366 + $0xd00] sm:$0xff]
        %v5553 = vld [vmem:[%s366 + $0xd08] sm:$0xff]
        %v5554 = vld [vmem:[%s366 + $0xd10] sm:$0xff]
        %v5555 = vld [vmem:[%s366 + $0xd18] sm:$0xff]
        %v5556 = vld [vmem:[%s366 + $0xd20] sm:$0xff]
        %v5557 = vld [vmem:[%s366 + $0xd28] sm:$0xff]
        %v5558 = vld [vmem:[%s366 + $0xd30] sm:$0xff]
        %v5559 = vld [vmem:[%s366 + $0xd38] sm:$0xff]
        %v5560 = vld [vmem:[%s366 + $0xd40] sm:$0xff]
        %v5561 = vld [vmem:[%s366 + $0xd48] sm:$0xff]
        %v5562 = vld [vmem:[%s366 + $0xd50] sm:$0xff]
        %v5563 = vld [vmem:[%s366 + $0xd58] sm:$0xff]
        %v5564 = vld [vmem:[%s366 + $0xd60] sm:$0xff]
        %v5565 = vld [vmem:[%s366 + $0xd68] sm:$0xff]
        %v5566 = vld [vmem:[%s366 + $0xd70] sm:$0xff]
        %v5567 = vld [vmem:[%s366 + $0xd78] sm:$0xff]
        %v5568 = vld [vmem:[%s366 + $0xd80] sm:$0xff]
        %v5569 = vld [vmem:[%s366 + $0xd88] sm:$0xff]
        %v5570 = vld [vmem:[%s366 + $0xd90] sm:$0xff]
        %v5571 = vld [vmem:[%s366 + $0xd98] sm:$0xff]
        %v5572 = vld [vmem:[%s366 + $0xda0] sm:$0xff]
        %v5573 = vld [vmem:[%s366 + $0xda8] sm:$0xff]
        %v5574 = vld [vmem:[%s366 + $0xdb0] sm:$0xff]
        %v5575 = vld [vmem:[%s366 + $0xdb8] sm:$0xff]
        %v5576 = vld [vmem:[%s366 + $0xdc0] sm:$0xff]
        %v5577 = vld [vmem:[%s366 + $0xdc8] sm:$0xff]
        %v5578 = vld [vmem:[%s366 + $0xdd0] sm:$0xff]
        %v5579 = vld [vmem:[%s366 + $0xdd8] sm:$0xff]
        %v5580 = vld [vmem:[%s366 + $0xde0] sm:$0xff]
        %v5581 = vld [vmem:[%s366 + $0xde8] sm:$0xff]
        %v5582 = vld [vmem:[%s366 + $0xdf0] sm:$0xff]
        %v5583 = vld [vmem:[%s366 + $0xdf8] sm:$0xff]
        %v5584 = vld [vmem:[%s366 + $0xe00] sm:$0xff]
        %v5585 = vld [vmem:[%s366 + $0xe08] sm:$0xff]
        %v5586 = vld [vmem:[%s366 + $0xe10] sm:$0xff]
        %v5587 = vld [vmem:[%s366 + $0xe18] sm:$0xff]
        %v5588 = vld [vmem:[%s366 + $0xe20] sm:$0xff]
        %v5589 = vld [vmem:[%s366 + $0xe28] sm:$0xff]
        %v5590 = vld [vmem:[%s366 + $0xe30] sm:$0xff]
        %v5591 = vld [vmem:[%s366 + $0xe38] sm:$0xff]
        %v5592 = vld [vmem:[%s366 + $0xe40] sm:$0xff]
        %v5593 = vld [vmem:[%s366 + $0xe48] sm:$0xff]
        %v5594 = vld [vmem:[%s366 + $0xe50] sm:$0xff]
        %v5595 = vld [vmem:[%s366 + $0xe58] sm:$0xff]
        %v5596 = vld [vmem:[%s366 + $0xe60] sm:$0xff]
        %v5597 = vld [vmem:[%s366 + $0xe68] sm:$0xff]
        %v5598 = vld [vmem:[%s366 + $0xe70] sm:$0xff]
        %v5599 = vld [vmem:[%s366 + $0xe78] sm:$0xff]
        %v5600 = vld [vmem:[%s366 + $0xe80] sm:$0xff]
        %v5601 = vld [vmem:[%s366 + $0xe88] sm:$0xff]
        %v5602 = vld [vmem:[%s366 + $0xe90] sm:$0xff]
        %v5603 = vld [vmem:[%s366 + $0xe98] sm:$0xff]
        %v5604 = vld [vmem:[%s366 + $0xea0] sm:$0xff]
        %v5605 = vld [vmem:[%s366 + $0xea8] sm:$0xff]
        %v5606 = vld [vmem:[%s366 + $0xeb0] sm:$0xff]
        %v5607 = vld [vmem:[%s366 + $0xeb8] sm:$0xff]
        %v5608 = vld [vmem:[%s366 + $0xec0] sm:$0xff]
        %v5609 = vld [vmem:[%s366 + $0xec8] sm:$0xff]
        %v5610 = vld [vmem:[%s366 + $0xed0] sm:$0xff]
        %v5611 = vld [vmem:[%s366 + $0xed8] sm:$0xff]
        %v5612 = vld [vmem:[%s366 + $0xee0] sm:$0xff]
        %v5613 = vld [vmem:[%s366 + $0xee8] sm:$0xff]
        %v5614 = vld [vmem:[%s366 + $0xef0] sm:$0xff]
        %v5615 = vld [vmem:[%s366 + $0xef8] sm:$0xff]
        %v5616 = vld [vmem:[%s366 + $0xf00] sm:$0xff]
        %v5617 = vld [vmem:[%s366 + $0xf08] sm:$0xff]
        %v5618 = vld [vmem:[%s366 + $0xf10] sm:$0xff]
        %v5619 = vld [vmem:[%s366 + $0xf18] sm:$0xff]
        %v5620 = vld [vmem:[%s366 + $0xf20] sm:$0xff]
        %v5621 = vld [vmem:[%s366 + $0xf28] sm:$0xff]
        %v5622 = vld [vmem:[%s366 + $0xf30] sm:$0xff]
        %v5623 = vld [vmem:[%s366 + $0xf38] sm:$0xff]
        %v5624 = vld [vmem:[%s366 + $0xf40] sm:$0xff]
        %v5625 = vld [vmem:[%s366 + $0xf48] sm:$0xff]
        %v5626 = vld [vmem:[%s366 + $0xf50] sm:$0xff]
        %v5627 = vld [vmem:[%s366 + $0xf58] sm:$0xff]
        %v5628 = vld [vmem:[%s366 + $0xf60] sm:$0xff]
        %v5629 = vld [vmem:[%s366 + $0xf68] sm:$0xff]
        %v5630 = vld [vmem:[%s366 + $0xf70] sm:$0xff]
        %v5631 = vld [vmem:[%s366 + $0xf78] sm:$0xff]
        %v5632 = vld [vmem:[%s366 + $0xf80] sm:$0xff]
        %v5633 = vld [vmem:[%s366 + $0xf88] sm:$0xff]
        %v5634 = vld [vmem:[%s366 + $0xf90] sm:$0xff]
        %v5635 = vld [vmem:[%s366 + $0xf98] sm:$0xff]
        %v5636 = vld [vmem:[%s366 + $0xfa0] sm:$0xff]
        %v5637 = vld [vmem:[%s366 + $0xfa8] sm:$0xff]
        %v5638 = vld [vmem:[%s366 + $0xfb0] sm:$0xff]
        %v5639 = vld [vmem:[%s366 + $0xfb8] sm:$0xff]
        %v5640 = vld [vmem:[%s366 + $0xfc0] sm:$0xff]
        %v5641 = vld [vmem:[%s366 + $0xfc8] sm:$0xff]
        %v5642 = vld [vmem:[%s366 + $0xfd0] sm:$0xff]
        %v5643 = vld [vmem:[%s366 + $0xfd8] sm:$0xff]
        %v5644 = vld [vmem:[%s366 + $0xfe0] sm:$0xff]
        %v5645 = vld [vmem:[%s366 + $0xfe8] sm:$0xff]
        %v5646 = vld [vmem:[%s366 + $0xff0] sm:$0xff]
        %v5647 = vld [vmem:[%s366 + $0xff8] sm:$0xff]
        %v5648 = vld [vmem:[%s366 + $0x1000] sm:$0xff]
        %v5649 = vld [vmem:[%s366 + $0x1008] sm:$0xff]
        %v5650 = vld [vmem:[%s366 + $0x1010] sm:$0xff]
        %v5651 = vld [vmem:[%s366 + $0x1018] sm:$0xff]
        %v5652 = vld [vmem:[%s366 + $0x1020] sm:$0xff]
        %v5653 = vld [vmem:[%s366 + $0x1028] sm:$0xff]
        %v5654 = vld [vmem:[%s366 + $0x1030] sm:$0xff]
        %v5655 = vld [vmem:[%s366 + $0x1038] sm:$0xff]
        %v5656 = vld [vmem:[%s366 + $0x1040] sm:$0xff]
        %v5657 = vld [vmem:[%s366 + $0x1048] sm:$0xff]
        %v5658 = vld [vmem:[%s366 + $0x1050] sm:$0xff]
        %v5659 = vld [vmem:[%s366 + $0x1058] sm:$0xff]
        %v5660 = vld [vmem:[%s366 + $0x1060] sm:$0xff]
        %v5661 = vld [vmem:[%s366 + $0x1068] sm:$0xff]
        %v5662 = vld [vmem:[%s366 + $0x1070] sm:$0xff]
        %v5663 = vld [vmem:[%s366 + $0x1078] sm:$0xff]
        %v5664 = vld [vmem:[%s366 + $0x1080] sm:$0xff]
        %v5665 = vld [vmem:[%s366 + $0x1088] sm:$0xff]
        %v5666 = vld [vmem:[%s366 + $0x1090] sm:$0xff]
        %v5667 = vld [vmem:[%s366 + $0x1098] sm:$0xff]
        %v5668 = vld [vmem:[%s366 + $0x10a0] sm:$0xff]
        %v5669 = vld [vmem:[%s366 + $0x10a8] sm:$0xff]
        %v5670 = vld [vmem:[%s366 + $0x10b0] sm:$0xff]
        %v5671 = vld [vmem:[%s366 + $0x10b8] sm:$0xff]
        %v5672 = vld [vmem:[%s366 + $0x10c0] sm:$0xff]
        %v5673 = vld [vmem:[%s366 + $0x10c8] sm:$0xff]
        %v5674 = vld [vmem:[%s366 + $0x10d0] sm:$0xff]
        %v5675 = vld [vmem:[%s366 + $0x10d8] sm:$0xff]
        %v5676 = vld [vmem:[%s366 + $0x10e0] sm:$0xff]
        %v5677 = vld [vmem:[%s366 + $0x10e8] sm:$0xff]
        %v5678 = vld [vmem:[%s366 + $0x10f0] sm:$0xff]
        %v5679 = vld [vmem:[%s366 + $0x10f8] sm:$0xff]
        %v5680 = vld [vmem:[%s366 + $0x1100] sm:$0xff]
        %v5681 = vld [vmem:[%s366 + $0x1108] sm:$0xff]
        %v5682 = vld [vmem:[%s366 + $0x1110] sm:$0xff]
        %v5683 = vld [vmem:[%s366 + $0x1118] sm:$0xff]
        %v5684 = vld [vmem:[%s366 + $0x1120] sm:$0xff]
        %v5685 = vld [vmem:[%s366 + $0x1128] sm:$0xff]
        %v5686 = vld [vmem:[%s366 + $0x1130] sm:$0xff]
        %v5687 = vld [vmem:[%s366 + $0x1138] sm:$0xff]
        %v5688 = vld [vmem:[%s366 + $0x1140] sm:$0xff]
        %v5689 = vld [vmem:[%s366 + $0x1148] sm:$0xff]
        %v5690 = vld [vmem:[%s366 + $0x1150] sm:$0xff]
        %v5691 = vld [vmem:[%s366 + $0x1158] sm:$0xff]
        %v5692 = vld [vmem:[%s366 + $0x1160] sm:$0xff]
        %v5693 = vld [vmem:[%s366 + $0x1168] sm:$0xff]
        %v5694 = vld [vmem:[%s366 + $0x1170] sm:$0xff]
        %v5695 = vld [vmem:[%s366 + $0x1178] sm:$0xff]
        %v5696 = vld [vmem:[%s366 + $0x1180] sm:$0xff]
        %v5697 = vld [vmem:[%s366 + $0x1188] sm:$0xff]
        %v5698 = vld [vmem:[%s366 + $0x1190] sm:$0xff]
        %v5699 = vld [vmem:[%s366 + $0x1198] sm:$0xff]
        %v5700 = vld [vmem:[%s366 + $0x11a0] sm:$0xff]
        %v5701 = vld [vmem:[%s366 + $0x11a8] sm:$0xff]
        %v5702 = vld [vmem:[%s366 + $0x11b0] sm:$0xff]
        %v5703 = vld [vmem:[%s366 + $0x11b8] sm:$0xff]
        %v5704 = vld [vmem:[%s366 + $0x11c0] sm:$0xff]
        %v5705 = vld [vmem:[%s366 + $0x11c8] sm:$0xff]
        %v5706 = vld [vmem:[%s366 + $0x11d0] sm:$0xff]
        %v5707 = vld [vmem:[%s366 + $0x11d8] sm:$0xff]
        %v5708 = vld [vmem:[%s366 + $0x11e0] sm:$0xff]
        %v5709 = vld [vmem:[%s366 + $0x11e8] sm:$0xff]
        %v5710 = vld [vmem:[%s366 + $0x11f0] sm:$0xff]
        %v5711 = vld [vmem:[%s366 + $0x11f8] sm:$0xff]
        %v5712 = vld [vmem:[%s366 + $0x1200] sm:$0xff]
        %v5713 = vld [vmem:[%s366 + $0x1208] sm:$0xff]
        %v5714 = vld [vmem:[%s366 + $0x1210] sm:$0xff]
        %v5715 = vld [vmem:[%s366 + $0x1218] sm:$0xff]
        %v5716 = vld [vmem:[%s366 + $0x1220] sm:$0xff]
        %v5717 = vld [vmem:[%s366 + $0x1228] sm:$0xff]
        %v5718 = vld [vmem:[%s366 + $0x1230] sm:$0xff]
        %v5719 = vld [vmem:[%s366 + $0x1238] sm:$0xff]
        %v5720 = vld [vmem:[%s366 + $0x1240] sm:$0xff]
        %v5721 = vld [vmem:[%s366 + $0x1248] sm:$0xff]
        %v5722 = vld [vmem:[%s366 + $0x1250] sm:$0xff]
        %v5723 = vld [vmem:[%s366 + $0x1258] sm:$0xff]
        %v5724 = vld [vmem:[%s366 + $0x1260] sm:$0xff]
        %v5725 = vld [vmem:[%s366 + $0x1268] sm:$0xff]
        %v5726 = vld [vmem:[%s366 + $0x1270] sm:$0xff]
        %v5727 = vld [vmem:[%s366 + $0x1278] sm:$0xff]
        %v5728 = vld [vmem:[%s366 + $0x1280] sm:$0xff]
        %v5729 = vld [vmem:[%s366 + $0x1288] sm:$0xff]
        %v5730 = vld [vmem:[%s366 + $0x1290] sm:$0xff]
        %v5731 = vld [vmem:[%s366 + $0x1298] sm:$0xff]
        %v5732 = vld [vmem:[%s366 + $0x12a0] sm:$0xff]
        %v5733 = vld [vmem:[%s366 + $0x12a8] sm:$0xff]
        %v5734 = vld [vmem:[%s366 + $0x12b0] sm:$0xff]
        %v5735 = vld [vmem:[%s366 + $0x12b8] sm:$0xff]
        %v5736 = vld [vmem:[%s366 + $0x12c0] sm:$0xff]
        %v5737 = vld [vmem:[%s366 + $0x12c8] sm:$0xff]
        %v5738 = vld [vmem:[%s366 + $0x12d0] sm:$0xff]
        %v5739 = vld [vmem:[%s366 + $0x12d8] sm:$0xff]
        %v5740 = vld [vmem:[%s366 + $0x12e0] sm:$0xff]
        %v5741 = vld [vmem:[%s366 + $0x12e8] sm:$0xff]
        %v5742 = vld [vmem:[%s366 + $0x12f0] sm:$0xff]
        %v5743 = vld [vmem:[%s366 + $0x12f8] sm:$0xff]
        %v5744 = vld [vmem:[%s366 + $0x1300] sm:$0xff]
        %v5745 = vld [vmem:[%s366 + $0x1308] sm:$0xff]
        %v5746 = vld [vmem:[%s366 + $0x1310] sm:$0xff]
        %v5747 = vld [vmem:[%s366 + $0x1318] sm:$0xff]
        %v5748 = vld [vmem:[%s366 + $0x1320] sm:$0xff]
        %v5749 = vld [vmem:[%s366 + $0x1328] sm:$0xff]
        %v5750 = vld [vmem:[%s366 + $0x1330] sm:$0xff]
        %v5751 = vld [vmem:[%s366 + $0x1338] sm:$0xff]
        %v5752 = vld [vmem:[%s366 + $0x1340] sm:$0xff]
        %v5753 = vld [vmem:[%s366 + $0x1348] sm:$0xff]
        %v5754 = vld [vmem:[%s366 + $0x1350] sm:$0xff]
        %v5755 = vld [vmem:[%s366 + $0x1358] sm:$0xff]
        %v5756 = vld [vmem:[%s366 + $0x1360] sm:$0xff]
        %v5757 = vld [vmem:[%s366 + $0x1368] sm:$0xff]
        %v5758 = vld [vmem:[%s366 + $0x1370] sm:$0xff]
        %v5759 = vld [vmem:[%s366 + $0x1378] sm:$0xff]
        %v5760 = vld [vmem:[%s366 + $0x1380] sm:$0xff]
        %v5761 = vld [vmem:[%s366 + $0x1388] sm:$0xff]
        %v5762 = vld [vmem:[%s366 + $0x1390] sm:$0xff]
        %v5763 = vld [vmem:[%s366 + $0x1398] sm:$0xff]
        %v5764 = vld [vmem:[%s366 + $0x13a0] sm:$0xff]
        %v5765 = vld [vmem:[%s366 + $0x13a8] sm:$0xff]
        %v5766 = vld [vmem:[%s366 + $0x13b0] sm:$0xff]
        %v5767 = vld [vmem:[%s366 + $0x13b8] sm:$0xff]
        %v5768 = vld [vmem:[%s366 + $0x13c0] sm:$0xff]
        %v5769 = vld [vmem:[%s366 + $0x13c8] sm:$0xff]
        %v5770 = vld [vmem:[%s366 + $0x13d0] sm:$0xff]
        %v5771 = vld [vmem:[%s366 + $0x13d8] sm:$0xff]
        %v5772 = vld [vmem:[%s366 + $0x13e0] sm:$0xff]
        %v5773 = vld [vmem:[%s366 + $0x13e8] sm:$0xff]
        %v5774 = vld [vmem:[%s366 + $0x13f0] sm:$0xff]
        %v5775 = vld [vmem:[%s366 + $0x13f8] sm:$0xff]
        %v5776 = vld [vmem:[%s366 + $0x1400] sm:$0xff]
        %v5777 = vld [vmem:[%s366 + $0x1408] sm:$0xff]
        %v5778 = vld [vmem:[%s366 + $0x1410] sm:$0xff]
        %v5779 = vld [vmem:[%s366 + $0x1418] sm:$0xff]
        %v5780 = vld [vmem:[%s366 + $0x1420] sm:$0xff]
        %v5781 = vld [vmem:[%s366 + $0x1428] sm:$0xff]
        %v5782 = vld [vmem:[%s366 + $0x1430] sm:$0xff]
        %v5783 = vld [vmem:[%s366 + $0x1438] sm:$0xff]
        %v5784 = vld [vmem:[%s366 + $0x1440] sm:$0xff]
        %v5785 = vld [vmem:[%s366 + $0x1448] sm:$0xff]
        %v5786 = vld [vmem:[%s366 + $0x1450] sm:$0xff]
        %v5787 = vld [vmem:[%s366 + $0x1458] sm:$0xff]
        %v5788 = vld [vmem:[%s366 + $0x1460] sm:$0xff]
        %v5789 = vld [vmem:[%s366 + $0x1468] sm:$0xff]
        %v5790 = vld [vmem:[%s366 + $0x1470] sm:$0xff]
        %v5791 = vld [vmem:[%s366 + $0x1478] sm:$0xff]
        %v5792 = vld [vmem:[%s366 + $0x1480] sm:$0xff]
        %v5793 = vld [vmem:[%s366 + $0x1488] sm:$0xff]
        %v5794 = vld [vmem:[%s366 + $0x1490] sm:$0xff]
        %v5795 = vld [vmem:[%s366 + $0x1498] sm:$0xff]
        %v5796 = vld [vmem:[%s366 + $0x14a0] sm:$0xff]
        %v5797 = vld [vmem:[%s366 + $0x14a8] sm:$0xff]
        %v5798 = vld [vmem:[%s366 + $0x14b0] sm:$0xff]
        %v5799 = vld [vmem:[%s366 + $0x14b8] sm:$0xff]
        %v5800 = vld [vmem:[%s366 + $0x14c0] sm:$0xff]
        %v5801 = vld [vmem:[%s366 + $0x14c8] sm:$0xff]
        %v5802 = vld [vmem:[%s366 + $0x14d0] sm:$0xff]
        %v5803 = vld [vmem:[%s366 + $0x14d8] sm:$0xff]
        %v5804 = vld [vmem:[%s366 + $0x14e0] sm:$0xff]
        %v5805 = vld [vmem:[%s366 + $0x14e8] sm:$0xff]
        %v5806 = vld [vmem:[%s366 + $0x14f0] sm:$0xff]
        %v5807 = vld [vmem:[%s366 + $0x14f8] sm:$0xff]
        %v5808 = vld [vmem:[%s366 + $0x1500] sm:$0xff]
        %v5809 = vld [vmem:[%s366 + $0x1508] sm:$0xff]
        %v5810 = vld [vmem:[%s366 + $0x1510] sm:$0xff]
        %v5811 = vld [vmem:[%s366 + $0x1518] sm:$0xff]
        %v5812 = vld [vmem:[%s366 + $0x1520] sm:$0xff]
        %v5813 = vld [vmem:[%s366 + $0x1528] sm:$0xff]
        %v5814 = vld [vmem:[%s366 + $0x1530] sm:$0xff]
        %v5815 = vld [vmem:[%s366 + $0x1538] sm:$0xff]
        %v5816 = vld [vmem:[%s366 + $0x1540] sm:$0xff]
        %v5817 = vld [vmem:[%s366 + $0x1548] sm:$0xff]
        %v5818 = vld [vmem:[%s366 + $0x1550] sm:$0xff]
        %v5819 = vld [vmem:[%s366 + $0x1558] sm:$0xff]
        %v5820 = vld [vmem:[%s366 + $0x1560] sm:$0xff]
        %v5821 = vld [vmem:[%s366 + $0x1568] sm:$0xff]
        %v5822 = vld [vmem:[%s366 + $0x1570] sm:$0xff]
        %v5823 = vld [vmem:[%s366 + $0x1578] sm:$0xff]
        %v5824 = vld [vmem:[%s366 + $0x1580] sm:$0xff]
        %v5825 = vld [vmem:[%s366 + $0x1588] sm:$0xff]
        %v5826 = vld [vmem:[%s366 + $0x1590] sm:$0xff]
        %v5827 = vld [vmem:[%s366 + $0x1598] sm:$0xff]
        %v5828 = vld [vmem:[%s366 + $0x15a0] sm:$0xff]
        %v5829 = vld [vmem:[%s366 + $0x15a8] sm:$0xff]
        %v5830 = vld [vmem:[%s366 + $0x15b0] sm:$0xff]
        %v5831 = vld [vmem:[%s366 + $0x15b8] sm:$0xff]
        %v5832 = vld [vmem:[%s366 + $0x15c0] sm:$0xff]
        %v5833 = vld [vmem:[%s366 + $0x15c8] sm:$0xff]
        %v5834 = vld [vmem:[%s366 + $0x15d0] sm:$0xff]
        %v5835 = vld [vmem:[%s366 + $0x15d8] sm:$0xff]
        %v5836 = vld [vmem:[%s366 + $0x15e0] sm:$0xff]
        %v5837 = vld [vmem:[%s366 + $0x15e8] sm:$0xff]
        %v5838 = vld [vmem:[%s366 + $0x15f0] sm:$0xff]
        %v5839 = vld [vmem:[%s366 + $0x15f8] sm:$0xff]
        %v5840 = vld [vmem:[%s366 + $0x1600] sm:$0xff]
        %v5841 = vld [vmem:[%s366 + $0x1608] sm:$0xff]
        %v5842 = vld [vmem:[%s366 + $0x1610] sm:$0xff]
        %v5843 = vld [vmem:[%s366 + $0x1618] sm:$0xff]
        %v5844 = vld [vmem:[%s366 + $0x1620] sm:$0xff]
        %v5845 = vld [vmem:[%s366 + $0x1628] sm:$0xff]
        %v5846 = vld [vmem:[%s366 + $0x1630] sm:$0xff]
        %v5847 = vld [vmem:[%s366 + $0x1638] sm:$0xff]
        %v5848 = vld [vmem:[%s366 + $0x1640] sm:$0xff]
        %v5849 = vld [vmem:[%s366 + $0x1648] sm:$0xff]
        %v5850 = vld [vmem:[%s366 + $0x1650] sm:$0xff]
        %v5851 = vld [vmem:[%s366 + $0x1658] sm:$0xff]
        %v5852 = vld [vmem:[%s366 + $0x1660] sm:$0xff]
        %v5853 = vld [vmem:[%s366 + $0x1668] sm:$0xff]
        %v5854 = vld [vmem:[%s366 + $0x1670] sm:$0xff]
        %v5855 = vld [vmem:[%s366 + $0x1678] sm:$0xff]
        %v5856 = vld [vmem:[%s366 + $0x1680] sm:$0xff]
        %v5857 = vld [vmem:[%s366 + $0x1688] sm:$0xff]
        %v5858 = vld [vmem:[%s366 + $0x1690] sm:$0xff]
        %v5859 = vld [vmem:[%s366 + $0x1698] sm:$0xff]
        %v5860 = vld [vmem:[%s366 + $0x16a0] sm:$0xff]
        %v5861 = vld [vmem:[%s366 + $0x16a8] sm:$0xff]
        %v5862 = vld [vmem:[%s366 + $0x16b0] sm:$0xff]
        %v5863 = vld [vmem:[%s366 + $0x16b8] sm:$0xff]
        %v5864 = vld [vmem:[%s366 + $0x16c0] sm:$0xff]
        %v5865 = vld [vmem:[%s366 + $0x16c8] sm:$0xff]
        %v5866 = vld [vmem:[%s366 + $0x16d0] sm:$0xff]
        %v5867 = vld [vmem:[%s366 + $0x16d8] sm:$0xff]
        %v5868 = vld [vmem:[%s366 + $0x16e0] sm:$0xff]
        %v5869 = vld [vmem:[%s366 + $0x16e8] sm:$0xff]
        %v5870 = vld [vmem:[%s366 + $0x16f0] sm:$0xff]
        %v5871 = vld [vmem:[%s366 + $0x16f8] sm:$0xff]
        %v5872 = vld [vmem:[%s366 + $0x1700] sm:$0xff]
        %v5873 = vld [vmem:[%s366 + $0x1708] sm:$0xff]
        %v5874 = vld [vmem:[%s366 + $0x1710] sm:$0xff]
        %v5875 = vld [vmem:[%s366 + $0x1718] sm:$0xff]
        %v5876 = vld [vmem:[%s366 + $0x1720] sm:$0xff]
        %v5877 = vld [vmem:[%s366 + $0x1728] sm:$0xff]
        %v5878 = vld [vmem:[%s366 + $0x1730] sm:$0xff]
        %v5879 = vld [vmem:[%s366 + $0x1738] sm:$0xff]
        %v5880 = vld [vmem:[%s366 + $0x1740] sm:$0xff]
        %v5881 = vld [vmem:[%s366 + $0x1748] sm:$0xff]
        %v5882 = vld [vmem:[%s366 + $0x1750] sm:$0xff]
        %v5883 = vld [vmem:[%s366 + $0x1758] sm:$0xff]
        %v5884 = vld [vmem:[%s366 + $0x1760] sm:$0xff]
        %v5885 = vld [vmem:[%s366 + $0x1768] sm:$0xff]
        %v5886 = vld [vmem:[%s366 + $0x1770] sm:$0xff]
        %v5887 = vld [vmem:[%s366 + $0x1778] sm:$0xff]
        %v5888 = vld [vmem:[%s366 + $0x1780] sm:$0xff]
        %v5889 = vld [vmem:[%s366 + $0x1788] sm:$0xff]
        %v5890 = vld [vmem:[%s366 + $0x1790] sm:$0xff]
        %v5891 = vld [vmem:[%s366 + $0x1798] sm:$0xff]
        %v5892 = vld [vmem:[%s366 + $0x17a0] sm:$0xff]
        %v5893 = vld [vmem:[%s366 + $0x17a8] sm:$0xff]
        %v5894 = vld [vmem:[%s366 + $0x17b0] sm:$0xff]
        %v5895 = vld [vmem:[%s366 + $0x17b8] sm:$0xff]
        %v5896 = vld [vmem:[%s366 + $0x17c0] sm:$0xff]
        %v5897 = vld [vmem:[%s366 + $0x17c8] sm:$0xff]
        %v5898 = vld [vmem:[%s366 + $0x17d0] sm:$0xff]
        %v5899 = vld [vmem:[%s366 + $0x17d8] sm:$0xff]
        %v5900 = vld [vmem:[%s366 + $0x17e0] sm:$0xff]
        %v5901 = vld [vmem:[%s366 + $0x17e8] sm:$0xff]
        %v5902 = vld [vmem:[%s366 + $0x17f0] sm:$0xff]
        %v5903 = vld [vmem:[%s366 + $0x17f8] sm:$0xff]
        %v5904 = vunpack.c.l.s8.bf16 %v5136
        %v5905 = vunpack.c.l.s8.bf16 %v5137
        %v5906 = vunpack.c.l.s8.bf16 %v5138
        %v5907 = vunpack.c.l.s8.bf16 %v5139
        %v5908 = vunpack.c.l.s8.bf16 %v5140
        %v5909 = vunpack.c.l.s8.bf16 %v5141
        %v5910 = vunpack.c.l.s8.bf16 %v5142
        %v5911 = vunpack.c.l.s8.bf16 %v5143
        %v5912 = vunpack.c.l.s8.bf16 %v5144
        %v5913 = vunpack.c.l.s8.bf16 %v5145
        %v5914 = vunpack.c.l.s8.bf16 %v5146
        %v5915 = vunpack.c.l.s8.bf16 %v5147
        %v5916 = vunpack.c.l.s8.bf16 %v5148
        %v5917 = vunpack.c.l.s8.bf16 %v5149
        %v5918 = vunpack.c.l.s8.bf16 %v5150
        %v5919 = vunpack.c.l.s8.bf16 %v5151
        %v5920 = vunpack.c.l.s8.bf16 %v5152
        %v5921 = vunpack.c.l.s8.bf16 %v5153
        %v5922 = vunpack.c.l.s8.bf16 %v5154
        %v5923 = vunpack.c.l.s8.bf16 %v5155
        %v5924 = vunpack.c.l.s8.bf16 %v5156
        %v5925 = vunpack.c.l.s8.bf16 %v5157
        %v5926 = vunpack.c.l.s8.bf16 %v5158
        %v5927 = vunpack.c.l.s8.bf16 %v5159
        %v5928 = vunpack.c.h.s8.bf16 %v5136
        %v5929 = vunpack.c.h.s8.bf16 %v5137
        %v5930 = vunpack.c.h.s8.bf16 %v5138
        %v5931 = vunpack.c.h.s8.bf16 %v5139
        %v5932 = vunpack.c.h.s8.bf16 %v5140
        %v5933 = vunpack.c.h.s8.bf16 %v5141
        %v5934 = vunpack.c.h.s8.bf16 %v5142
        %v5935 = vunpack.c.h.s8.bf16 %v5143
        %v5936 = vunpack.c.h.s8.bf16 %v5144
        %v5937 = vunpack.c.h.s8.bf16 %v5145
        %v5938 = vunpack.c.h.s8.bf16 %v5146
        %v5939 = vunpack.c.h.s8.bf16 %v5147
        %v5940 = vunpack.c.h.s8.bf16 %v5148
        %v5941 = vunpack.c.h.s8.bf16 %v5149
        %v5942 = vunpack.c.h.s8.bf16 %v5150
        %v5943 = vunpack.c.h.s8.bf16 %v5151
        %v5944 = vunpack.c.h.s8.bf16 %v5152
        %v5945 = vunpack.c.h.s8.bf16 %v5153
        %v5946 = vunpack.c.h.s8.bf16 %v5154
        %v5947 = vunpack.c.h.s8.bf16 %v5155
        %v5948 = vunpack.c.h.s8.bf16 %v5156
        %v5949 = vunpack.c.h.s8.bf16 %v5157
        %v5950 = vunpack.c.h.s8.bf16 %v5158
        %v5951 = vunpack.c.h.s8.bf16 %v5159
        %v5952 = vunpack.c.l.s8.bf16 %v5160
        %v5953 = vunpack.c.l.s8.bf16 %v5161
        %v5954 = vunpack.c.l.s8.bf16 %v5162
        %v5955 = vunpack.c.l.s8.bf16 %v5163
        %v5956 = vunpack.c.l.s8.bf16 %v5164
        %v5957 = vunpack.c.l.s8.bf16 %v5165
        %v5958 = vunpack.c.l.s8.bf16 %v5166
        %v5959 = vunpack.c.l.s8.bf16 %v5167
        %v5960 = vunpack.c.l.s8.bf16 %v5168
        %v5961 = vunpack.c.l.s8.bf16 %v5169
        %v5962 = vunpack.c.l.s8.bf16 %v5170
        %v5963 = vunpack.c.l.s8.bf16 %v5171
        %v5964 = vunpack.c.l.s8.bf16 %v5172
        %v5965 = vunpack.c.l.s8.bf16 %v5173
        %v5966 = vunpack.c.l.s8.bf16 %v5174
        %v5967 = vunpack.c.l.s8.bf16 %v5175
        %v5968 = vunpack.c.l.s8.bf16 %v5176
        %v5969 = vunpack.c.l.s8.bf16 %v5177
        %v5970 = vunpack.c.l.s8.bf16 %v5178
        %v5971 = vunpack.c.l.s8.bf16 %v5179
        %v5972 = vunpack.c.l.s8.bf16 %v5180
        %v5973 = vunpack.c.l.s8.bf16 %v5181
        %v5974 = vunpack.c.l.s8.bf16 %v5182
        %v5975 = vunpack.c.l.s8.bf16 %v5183
        %v5976 = vunpack.c.h.s8.bf16 %v5160
        %v5977 = vunpack.c.h.s8.bf16 %v5161
        %v5978 = vunpack.c.h.s8.bf16 %v5162
        %v5979 = vunpack.c.h.s8.bf16 %v5163
        %v5980 = vunpack.c.h.s8.bf16 %v5164
        %v5981 = vunpack.c.h.s8.bf16 %v5165
        %v5982 = vunpack.c.h.s8.bf16 %v5166
        %v5983 = vunpack.c.h.s8.bf16 %v5167
        %v5984 = vunpack.c.h.s8.bf16 %v5168
        %v5985 = vunpack.c.h.s8.bf16 %v5169
        %v5986 = vunpack.c.h.s8.bf16 %v5170
        %v5987 = vunpack.c.h.s8.bf16 %v5171
        %v5988 = vunpack.c.h.s8.bf16 %v5172
        %v5989 = vunpack.c.h.s8.bf16 %v5173
        %v5990 = vunpack.c.h.s8.bf16 %v5174
        %v5991 = vunpack.c.h.s8.bf16 %v5175
        %v5992 = vunpack.c.h.s8.bf16 %v5176
        %v5993 = vunpack.c.h.s8.bf16 %v5177
        %v5994 = vunpack.c.h.s8.bf16 %v5178
        %v5995 = vunpack.c.h.s8.bf16 %v5179
        %v5996 = vunpack.c.h.s8.bf16 %v5180
        %v5997 = vunpack.c.h.s8.bf16 %v5181
        %v5998 = vunpack.c.h.s8.bf16 %v5182
        %v5999 = vunpack.c.h.s8.bf16 %v5183
        %v6000 = vunpack.c.l.s8.bf16 %v5184
        %v6001 = vunpack.c.l.s8.bf16 %v5185
        %v6002 = vunpack.c.l.s8.bf16 %v5186
        %v6003 = vunpack.c.l.s8.bf16 %v5187
        %v6004 = vunpack.c.l.s8.bf16 %v5188
        %v6005 = vunpack.c.l.s8.bf16 %v5189
        %v6006 = vunpack.c.l.s8.bf16 %v5190
        %v6007 = vunpack.c.l.s8.bf16 %v5191
        %v6008 = vunpack.c.l.s8.bf16 %v5192
        %v6009 = vunpack.c.l.s8.bf16 %v5193
        %v6010 = vunpack.c.l.s8.bf16 %v5194
        %v6011 = vunpack.c.l.s8.bf16 %v5195
        %v6012 = vunpack.c.l.s8.bf16 %v5196
        %v6013 = vunpack.c.l.s8.bf16 %v5197
        %v6014 = vunpack.c.l.s8.bf16 %v5198
        %v6015 = vunpack.c.l.s8.bf16 %v5199
        %v6016 = vunpack.c.l.s8.bf16 %v5200
        %v6017 = vunpack.c.l.s8.bf16 %v5201
        %v6018 = vunpack.c.l.s8.bf16 %v5202
        %v6019 = vunpack.c.l.s8.bf16 %v5203
        %v6020 = vunpack.c.l.s8.bf16 %v5204
        %v6021 = vunpack.c.l.s8.bf16 %v5205
        %v6022 = vunpack.c.l.s8.bf16 %v5206
        %v6023 = vunpack.c.l.s8.bf16 %v5207
        %v6024 = vunpack.c.h.s8.bf16 %v5184
        %v6025 = vunpack.c.h.s8.bf16 %v5185
        %v6026 = vunpack.c.h.s8.bf16 %v5186
        %v6027 = vunpack.c.h.s8.bf16 %v5187
        %v6028 = vunpack.c.h.s8.bf16 %v5188
        %v6029 = vunpack.c.h.s8.bf16 %v5189
        %v6030 = vunpack.c.h.s8.bf16 %v5190
        %v6031 = vunpack.c.h.s8.bf16 %v5191
        %v6032 = vunpack.c.h.s8.bf16 %v5192
        %v6033 = vunpack.c.h.s8.bf16 %v5193
        %v6034 = vunpack.c.h.s8.bf16 %v5194
        %v6035 = vunpack.c.h.s8.bf16 %v5195
        %v6036 = vunpack.c.h.s8.bf16 %v5196
        %v6037 = vunpack.c.h.s8.bf16 %v5197
        %v6038 = vunpack.c.h.s8.bf16 %v5198
        %v6039 = vunpack.c.h.s8.bf16 %v5199
        %v6040 = vunpack.c.h.s8.bf16 %v5200
        %v6041 = vunpack.c.h.s8.bf16 %v5201
        %v6042 = vunpack.c.h.s8.bf16 %v5202
        %v6043 = vunpack.c.h.s8.bf16 %v5203
        %v6044 = vunpack.c.h.s8.bf16 %v5204
        %v6045 = vunpack.c.h.s8.bf16 %v5205
        %v6046 = vunpack.c.h.s8.bf16 %v5206
        %v6047 = vunpack.c.h.s8.bf16 %v5207
        %v6048 = vunpack.c.l.s8.bf16 %v5208
        %v6049 = vunpack.c.l.s8.bf16 %v5209
        %v6050 = vunpack.c.l.s8.bf16 %v5210
        %v6051 = vunpack.c.l.s8.bf16 %v5211
        %v6052 = vunpack.c.l.s8.bf16 %v5212
        %v6053 = vunpack.c.l.s8.bf16 %v5213
        %v6054 = vunpack.c.l.s8.bf16 %v5214
        %v6055 = vunpack.c.l.s8.bf16 %v5215
        %v6056 = vunpack.c.l.s8.bf16 %v5216
        %v6057 = vunpack.c.l.s8.bf16 %v5217
        %v6058 = vunpack.c.l.s8.bf16 %v5218
        %v6059 = vunpack.c.l.s8.bf16 %v5219
        %v6060 = vunpack.c.l.s8.bf16 %v5220
        %v6061 = vunpack.c.l.s8.bf16 %v5221
        %v6062 = vunpack.c.l.s8.bf16 %v5222
        %v6063 = vunpack.c.l.s8.bf16 %v5223
        %v6064 = vunpack.c.l.s8.bf16 %v5224
        %v6065 = vunpack.c.l.s8.bf16 %v5225
        %v6066 = vunpack.c.l.s8.bf16 %v5226
        %v6067 = vunpack.c.l.s8.bf16 %v5227
        %v6068 = vunpack.c.l.s8.bf16 %v5228
        %v6069 = vunpack.c.l.s8.bf16 %v5229
        %v6070 = vunpack.c.l.s8.bf16 %v5230
        %v6071 = vunpack.c.l.s8.bf16 %v5231
        %v6072 = vunpack.c.h.s8.bf16 %v5208
        %v6073 = vunpack.c.h.s8.bf16 %v5209
        %v6074 = vunpack.c.h.s8.bf16 %v5210
        %v6075 = vunpack.c.h.s8.bf16 %v5211
        %v6076 = vunpack.c.h.s8.bf16 %v5212
        %v6077 = vunpack.c.h.s8.bf16 %v5213
        %v6078 = vunpack.c.h.s8.bf16 %v5214
        %v6079 = vunpack.c.h.s8.bf16 %v5215
        %v6080 = vunpack.c.h.s8.bf16 %v5216
        %v6081 = vunpack.c.h.s8.bf16 %v5217
        %v6082 = vunpack.c.h.s8.bf16 %v5218
        %v6083 = vunpack.c.h.s8.bf16 %v5219
        %v6084 = vunpack.c.h.s8.bf16 %v5220
        %v6085 = vunpack.c.h.s8.bf16 %v5221
        %v6086 = vunpack.c.h.s8.bf16 %v5222
        %v6087 = vunpack.c.h.s8.bf16 %v5223
        %v6088 = vunpack.c.h.s8.bf16 %v5224
        %v6089 = vunpack.c.h.s8.bf16 %v5225
        %v6090 = vunpack.c.h.s8.bf16 %v5226
        %v6091 = vunpack.c.h.s8.bf16 %v5227
        %v6092 = vunpack.c.h.s8.bf16 %v5228
        %v6093 = vunpack.c.h.s8.bf16 %v5229
        %v6094 = vunpack.c.h.s8.bf16 %v5230
        %v6095 = vunpack.c.h.s8.bf16 %v5231
        %v6096 = vunpack.c.l.s8.bf16 %v5232
        %v6097 = vunpack.c.l.s8.bf16 %v5233
        %v6098 = vunpack.c.l.s8.bf16 %v5234
        %v6099 = vunpack.c.l.s8.bf16 %v5235
        %v6100 = vunpack.c.l.s8.bf16 %v5236
        %v6101 = vunpack.c.l.s8.bf16 %v5237
        %v6102 = vunpack.c.l.s8.bf16 %v5238
        %v6103 = vunpack.c.l.s8.bf16 %v5239
        %v6104 = vunpack.c.l.s8.bf16 %v5240
        %v6105 = vunpack.c.l.s8.bf16 %v5241
        %v6106 = vunpack.c.l.s8.bf16 %v5242
        %v6107 = vunpack.c.l.s8.bf16 %v5243
        %v6108 = vunpack.c.l.s8.bf16 %v5244
        %v6109 = vunpack.c.l.s8.bf16 %v5245
        %v6110 = vunpack.c.l.s8.bf16 %v5246
        %v6111 = vunpack.c.l.s8.bf16 %v5247
        %v6112 = vunpack.c.l.s8.bf16 %v5248
        %v6113 = vunpack.c.l.s8.bf16 %v5249
        %v6114 = vunpack.c.l.s8.bf16 %v5250
        %v6115 = vunpack.c.l.s8.bf16 %v5251
        %v6116 = vunpack.c.l.s8.bf16 %v5252
        %v6117 = vunpack.c.l.s8.bf16 %v5253
        %v6118 = vunpack.c.l.s8.bf16 %v5254
        %v6119 = vunpack.c.l.s8.bf16 %v5255
        %v6120 = vunpack.c.h.s8.bf16 %v5232
        %v6121 = vunpack.c.h.s8.bf16 %v5233
        %v6122 = vunpack.c.h.s8.bf16 %v5234
        %v6123 = vunpack.c.h.s8.bf16 %v5235
        %v6124 = vunpack.c.h.s8.bf16 %v5236
        %v6125 = vunpack.c.h.s8.bf16 %v5237
        %v6126 = vunpack.c.h.s8.bf16 %v5238
        %v6127 = vunpack.c.h.s8.bf16 %v5239
        %v6128 = vunpack.c.h.s8.bf16 %v5240
        %v6129 = vunpack.c.h.s8.bf16 %v5241
        %v6130 = vunpack.c.h.s8.bf16 %v5242
        %v6131 = vunpack.c.h.s8.bf16 %v5243
        %v6132 = vunpack.c.h.s8.bf16 %v5244
        %v6133 = vunpack.c.h.s8.bf16 %v5245
        %v6134 = vunpack.c.h.s8.bf16 %v5246
        %v6135 = vunpack.c.h.s8.bf16 %v5247
        %v6136 = vunpack.c.h.s8.bf16 %v5248
        %v6137 = vunpack.c.h.s8.bf16 %v5249
        %v6138 = vunpack.c.h.s8.bf16 %v5250
        %v6139 = vunpack.c.h.s8.bf16 %v5251
        %v6140 = vunpack.c.h.s8.bf16 %v5252
        %v6141 = vunpack.c.h.s8.bf16 %v5253
        %v6142 = vunpack.c.h.s8.bf16 %v5254
        %v6143 = vunpack.c.h.s8.bf16 %v5255
        %v6144 = vunpack.c.l.s8.bf16 %v5256
        %v6145 = vunpack.c.l.s8.bf16 %v5257
        %v6146 = vunpack.c.l.s8.bf16 %v5258
        %v6147 = vunpack.c.l.s8.bf16 %v5259
        %v6148 = vunpack.c.l.s8.bf16 %v5260
        %v6149 = vunpack.c.l.s8.bf16 %v5261
        %v6150 = vunpack.c.l.s8.bf16 %v5262
        %v6151 = vunpack.c.l.s8.bf16 %v5263
        %v6152 = vunpack.c.l.s8.bf16 %v5264
        %v6153 = vunpack.c.l.s8.bf16 %v5265
        %v6154 = vunpack.c.l.s8.bf16 %v5266
        %v6155 = vunpack.c.l.s8.bf16 %v5267
        %v6156 = vunpack.c.l.s8.bf16 %v5268
        %v6157 = vunpack.c.l.s8.bf16 %v5269
        %v6158 = vunpack.c.l.s8.bf16 %v5270
        %v6159 = vunpack.c.l.s8.bf16 %v5271
        %v6160 = vunpack.c.l.s8.bf16 %v5272
        %v6161 = vunpack.c.l.s8.bf16 %v5273
        %v6162 = vunpack.c.l.s8.bf16 %v5274
        %v6163 = vunpack.c.l.s8.bf16 %v5275
        %v6164 = vunpack.c.l.s8.bf16 %v5276
        %v6165 = vunpack.c.l.s8.bf16 %v5277
        %v6166 = vunpack.c.l.s8.bf16 %v5278
        %v6167 = vunpack.c.l.s8.bf16 %v5279
        %v6168 = vunpack.c.h.s8.bf16 %v5256
        %v6169 = vunpack.c.h.s8.bf16 %v5257
        %v6170 = vunpack.c.h.s8.bf16 %v5258
        %v6171 = vunpack.c.h.s8.bf16 %v5259
        %v6172 = vunpack.c.h.s8.bf16 %v5260
        %v6173 = vunpack.c.h.s8.bf16 %v5261
        %v6174 = vunpack.c.h.s8.bf16 %v5262
        %v6175 = vunpack.c.h.s8.bf16 %v5263
        %v6176 = vunpack.c.h.s8.bf16 %v5264
        %v6177 = vunpack.c.h.s8.bf16 %v5265
        %v6178 = vunpack.c.h.s8.bf16 %v5266
        %v6179 = vunpack.c.h.s8.bf16 %v5267
        %v6180 = vunpack.c.h.s8.bf16 %v5268
        %v6181 = vunpack.c.h.s8.bf16 %v5269
        %v6182 = vunpack.c.h.s8.bf16 %v5270
        %v6183 = vunpack.c.h.s8.bf16 %v5271
        %v6184 = vunpack.c.h.s8.bf16 %v5272
        %v6185 = vunpack.c.h.s8.bf16 %v5273
        %v6186 = vunpack.c.h.s8.bf16 %v5274
        %v6187 = vunpack.c.h.s8.bf16 %v5275
        %v6188 = vunpack.c.h.s8.bf16 %v5276
        %v6189 = vunpack.c.h.s8.bf16 %v5277
        %v6190 = vunpack.c.h.s8.bf16 %v5278
        %v6191 = vunpack.c.h.s8.bf16 %v5279
        %v6192 = vunpack.c.l.s8.bf16 %v5280
        %v6193 = vunpack.c.l.s8.bf16 %v5281
        %v6194 = vunpack.c.l.s8.bf16 %v5282
        %v6195 = vunpack.c.l.s8.bf16 %v5283
        %v6196 = vunpack.c.l.s8.bf16 %v5284
        %v6197 = vunpack.c.l.s8.bf16 %v5285
        %v6198 = vunpack.c.l.s8.bf16 %v5286
        %v6199 = vunpack.c.l.s8.bf16 %v5287
        %v6200 = vunpack.c.l.s8.bf16 %v5288
        %v6201 = vunpack.c.l.s8.bf16 %v5289
        %v6202 = vunpack.c.l.s8.bf16 %v5290
        %v6203 = vunpack.c.l.s8.bf16 %v5291
        %v6204 = vunpack.c.l.s8.bf16 %v5292
        %v6205 = vunpack.c.l.s8.bf16 %v5293
        %v6206 = vunpack.c.l.s8.bf16 %v5294
        %v6207 = vunpack.c.l.s8.bf16 %v5295
        %v6208 = vunpack.c.l.s8.bf16 %v5296
        %v6209 = vunpack.c.l.s8.bf16 %v5297
        %v6210 = vunpack.c.l.s8.bf16 %v5298
        %v6211 = vunpack.c.l.s8.bf16 %v5299
        %v6212 = vunpack.c.l.s8.bf16 %v5300
        %v6213 = vunpack.c.l.s8.bf16 %v5301
        %v6214 = vunpack.c.l.s8.bf16 %v5302
        %v6215 = vunpack.c.l.s8.bf16 %v5303
        %v6216 = vunpack.c.h.s8.bf16 %v5280
        %v6217 = vunpack.c.h.s8.bf16 %v5281
        %v6218 = vunpack.c.h.s8.bf16 %v5282
        %v6219 = vunpack.c.h.s8.bf16 %v5283
        %v6220 = vunpack.c.h.s8.bf16 %v5284
        %v6221 = vunpack.c.h.s8.bf16 %v5285
        %v6222 = vunpack.c.h.s8.bf16 %v5286
        %v6223 = vunpack.c.h.s8.bf16 %v5287
        %v6224 = vunpack.c.h.s8.bf16 %v5288
        %v6225 = vunpack.c.h.s8.bf16 %v5289
        %v6226 = vunpack.c.h.s8.bf16 %v5290
        %v6227 = vunpack.c.h.s8.bf16 %v5291
        %v6228 = vunpack.c.h.s8.bf16 %v5292
        %v6229 = vunpack.c.h.s8.bf16 %v5293
        %v6230 = vunpack.c.h.s8.bf16 %v5294
        %v6231 = vunpack.c.h.s8.bf16 %v5295
        %v6232 = vunpack.c.h.s8.bf16 %v5296
        %v6233 = vunpack.c.h.s8.bf16 %v5297
        %v6234 = vunpack.c.h.s8.bf16 %v5298
        %v6235 = vunpack.c.h.s8.bf16 %v5299
        %v6236 = vunpack.c.h.s8.bf16 %v5300
        %v6237 = vunpack.c.h.s8.bf16 %v5301
        %v6238 = vunpack.c.h.s8.bf16 %v5302
        %v6239 = vunpack.c.h.s8.bf16 %v5303
        %v6240 = vunpack.c.l.s8.bf16 %v5304
        %v6241 = vunpack.c.l.s8.bf16 %v5305
        %v6242 = vunpack.c.l.s8.bf16 %v5306
        %v6243 = vunpack.c.l.s8.bf16 %v5307
        %v6244 = vunpack.c.l.s8.bf16 %v5308
        %v6245 = vunpack.c.l.s8.bf16 %v5309
        %v6246 = vunpack.c.l.s8.bf16 %v5310
        %v6247 = vunpack.c.l.s8.bf16 %v5311
        %v6248 = vunpack.c.l.s8.bf16 %v5312
        %v6249 = vunpack.c.l.s8.bf16 %v5313
        %v6250 = vunpack.c.l.s8.bf16 %v5314
        %v6251 = vunpack.c.l.s8.bf16 %v5315
        %v6252 = vunpack.c.l.s8.bf16 %v5316
        %v6253 = vunpack.c.l.s8.bf16 %v5317
        %v6254 = vunpack.c.l.s8.bf16 %v5318
        %v6255 = vunpack.c.l.s8.bf16 %v5319
        %v6256 = vunpack.c.l.s8.bf16 %v5320
        %v6257 = vunpack.c.l.s8.bf16 %v5321
        %v6258 = vunpack.c.l.s8.bf16 %v5322
        %v6259 = vunpack.c.l.s8.bf16 %v5323
        %v6260 = vunpack.c.l.s8.bf16 %v5324
        %v6261 = vunpack.c.l.s8.bf16 %v5325
        %v6262 = vunpack.c.l.s8.bf16 %v5326
        %v6263 = vunpack.c.l.s8.bf16 %v5327
        %v6264 = vunpack.c.h.s8.bf16 %v5304
        %v6265 = vunpack.c.h.s8.bf16 %v5305
        %v6266 = vunpack.c.h.s8.bf16 %v5306
        %v6267 = vunpack.c.h.s8.bf16 %v5307
        %v6268 = vunpack.c.h.s8.bf16 %v5308
        %v6269 = vunpack.c.h.s8.bf16 %v5309
        %v6270 = vunpack.c.h.s8.bf16 %v5310
        %v6271 = vunpack.c.h.s8.bf16 %v5311
        %v6272 = vunpack.c.h.s8.bf16 %v5312
        %v6273 = vunpack.c.h.s8.bf16 %v5313
        %v6274 = vunpack.c.h.s8.bf16 %v5314
        %v6275 = vunpack.c.h.s8.bf16 %v5315
        %v6276 = vunpack.c.h.s8.bf16 %v5316
        %v6277 = vunpack.c.h.s8.bf16 %v5317
        %v6278 = vunpack.c.h.s8.bf16 %v5318
        %v6279 = vunpack.c.h.s8.bf16 %v5319
        %v6280 = vunpack.c.h.s8.bf16 %v5320
        %v6281 = vunpack.c.h.s8.bf16 %v5321
        %v6282 = vunpack.c.h.s8.bf16 %v5322
        %v6283 = vunpack.c.h.s8.bf16 %v5323
        %v6284 = vunpack.c.h.s8.bf16 %v5324
        %v6285 = vunpack.c.h.s8.bf16 %v5325
        %v6286 = vunpack.c.h.s8.bf16 %v5326
        %v6287 = vunpack.c.h.s8.bf16 %v5327
        %v6288 = vunpack.c.l.s8.bf16 %v5328
        %v6289 = vunpack.c.l.s8.bf16 %v5329
        %v6290 = vunpack.c.l.s8.bf16 %v5330
        %v6291 = vunpack.c.l.s8.bf16 %v5331
        %v6292 = vunpack.c.l.s8.bf16 %v5332
        %v6293 = vunpack.c.l.s8.bf16 %v5333
        %v6294 = vunpack.c.l.s8.bf16 %v5334
        %v6295 = vunpack.c.l.s8.bf16 %v5335
        %v6296 = vunpack.c.l.s8.bf16 %v5336
        %v6297 = vunpack.c.l.s8.bf16 %v5337
        %v6298 = vunpack.c.l.s8.bf16 %v5338
        %v6299 = vunpack.c.l.s8.bf16 %v5339
        %v6300 = vunpack.c.l.s8.bf16 %v5340
        %v6301 = vunpack.c.l.s8.bf16 %v5341
        %v6302 = vunpack.c.l.s8.bf16 %v5342
        %v6303 = vunpack.c.l.s8.bf16 %v5343
        %v6304 = vunpack.c.l.s8.bf16 %v5344
        %v6305 = vunpack.c.l.s8.bf16 %v5345
        %v6306 = vunpack.c.l.s8.bf16 %v5346
        %v6307 = vunpack.c.l.s8.bf16 %v5347
        %v6308 = vunpack.c.l.s8.bf16 %v5348
        %v6309 = vunpack.c.l.s8.bf16 %v5349
        %v6310 = vunpack.c.l.s8.bf16 %v5350
        %v6311 = vunpack.c.l.s8.bf16 %v5351
        %v6312 = vunpack.c.h.s8.bf16 %v5328
        %v6313 = vunpack.c.h.s8.bf16 %v5329
        %v6314 = vunpack.c.h.s8.bf16 %v5330
        %v6315 = vunpack.c.h.s8.bf16 %v5331
        %v6316 = vunpack.c.h.s8.bf16 %v5332
        %v6317 = vunpack.c.h.s8.bf16 %v5333
        %v6318 = vunpack.c.h.s8.bf16 %v5334
        %v6319 = vunpack.c.h.s8.bf16 %v5335
        %v6320 = vunpack.c.h.s8.bf16 %v5336
        %v6321 = vunpack.c.h.s8.bf16 %v5337
        %v6322 = vunpack.c.h.s8.bf16 %v5338
        %v6323 = vunpack.c.h.s8.bf16 %v5339
        %v6324 = vunpack.c.h.s8.bf16 %v5340
        %v6325 = vunpack.c.h.s8.bf16 %v5341
        %v6326 = vunpack.c.h.s8.bf16 %v5342
        %v6327 = vunpack.c.h.s8.bf16 %v5343
        %v6328 = vunpack.c.h.s8.bf16 %v5344
        %v6329 = vunpack.c.h.s8.bf16 %v5345
        %v6330 = vunpack.c.h.s8.bf16 %v5346
        %v6331 = vunpack.c.h.s8.bf16 %v5347
        %v6332 = vunpack.c.h.s8.bf16 %v5348
        %v6333 = vunpack.c.h.s8.bf16 %v5349
        %v6334 = vunpack.c.h.s8.bf16 %v5350
        %v6335 = vunpack.c.h.s8.bf16 %v5351
        %v6336 = vunpack.c.l.s8.bf16 %v5352
        %v6337 = vunpack.c.l.s8.bf16 %v5353
        %v6338 = vunpack.c.l.s8.bf16 %v5354
        %v6339 = vunpack.c.l.s8.bf16 %v5355
        %v6340 = vunpack.c.l.s8.bf16 %v5356
        %v6341 = vunpack.c.l.s8.bf16 %v5357
        %v6342 = vunpack.c.l.s8.bf16 %v5358
        %v6343 = vunpack.c.l.s8.bf16 %v5359
        %v6344 = vunpack.c.l.s8.bf16 %v5360
        %v6345 = vunpack.c.l.s8.bf16 %v5361
        %v6346 = vunpack.c.l.s8.bf16 %v5362
        %v6347 = vunpack.c.l.s8.bf16 %v5363
        %v6348 = vunpack.c.l.s8.bf16 %v5364
        %v6349 = vunpack.c.l.s8.bf16 %v5365
        %v6350 = vunpack.c.l.s8.bf16 %v5366
        %v6351 = vunpack.c.l.s8.bf16 %v5367
        %v6352 = vunpack.c.l.s8.bf16 %v5368
        %v6353 = vunpack.c.l.s8.bf16 %v5369
        %v6354 = vunpack.c.l.s8.bf16 %v5370
        %v6355 = vunpack.c.l.s8.bf16 %v5371
        %v6356 = vunpack.c.l.s8.bf16 %v5372
        %v6357 = vunpack.c.l.s8.bf16 %v5373
        %v6358 = vunpack.c.l.s8.bf16 %v5374
        %v6359 = vunpack.c.l.s8.bf16 %v5375
        %v6360 = vunpack.c.h.s8.bf16 %v5352
        %v6361 = vunpack.c.h.s8.bf16 %v5353
        %v6362 = vunpack.c.h.s8.bf16 %v5354
        %v6363 = vunpack.c.h.s8.bf16 %v5355
        %v6364 = vunpack.c.h.s8.bf16 %v5356
        %v6365 = vunpack.c.h.s8.bf16 %v5357
        %v6366 = vunpack.c.h.s8.bf16 %v5358
        %v6367 = vunpack.c.h.s8.bf16 %v5359
        %v6368 = vunpack.c.h.s8.bf16 %v5360
        %v6369 = vunpack.c.h.s8.bf16 %v5361
        %v6370 = vunpack.c.h.s8.bf16 %v5362
        %v6371 = vunpack.c.h.s8.bf16 %v5363
        %v6372 = vunpack.c.h.s8.bf16 %v5364
        %v6373 = vunpack.c.h.s8.bf16 %v5365
        %v6374 = vunpack.c.h.s8.bf16 %v5366
        %v6375 = vunpack.c.h.s8.bf16 %v5367
        %v6376 = vunpack.c.h.s8.bf16 %v5368
        %v6377 = vunpack.c.h.s8.bf16 %v5369
        %v6378 = vunpack.c.h.s8.bf16 %v5370
        %v6379 = vunpack.c.h.s8.bf16 %v5371
        %v6380 = vunpack.c.h.s8.bf16 %v5372
        %v6381 = vunpack.c.h.s8.bf16 %v5373
        %v6382 = vunpack.c.h.s8.bf16 %v5374
        %v6383 = vunpack.c.h.s8.bf16 %v5375
        %v6384 = vunpack.c.l.s8.bf16 %v5376
        %v6385 = vunpack.c.l.s8.bf16 %v5377
        %v6386 = vunpack.c.l.s8.bf16 %v5378
        %v6387 = vunpack.c.l.s8.bf16 %v5379
        %v6388 = vunpack.c.l.s8.bf16 %v5380
        %v6389 = vunpack.c.l.s8.bf16 %v5381
        %v6390 = vunpack.c.l.s8.bf16 %v5382
        %v6391 = vunpack.c.l.s8.bf16 %v5383
        %v6392 = vunpack.c.l.s8.bf16 %v5384
        %v6393 = vunpack.c.l.s8.bf16 %v5385
        %v6394 = vunpack.c.l.s8.bf16 %v5386
        %v6395 = vunpack.c.l.s8.bf16 %v5387
        %v6396 = vunpack.c.l.s8.bf16 %v5388
        %v6397 = vunpack.c.l.s8.bf16 %v5389
        %v6398 = vunpack.c.l.s8.bf16 %v5390
        %v6399 = vunpack.c.l.s8.bf16 %v5391
        %v6400 = vunpack.c.l.s8.bf16 %v5392
        %v6401 = vunpack.c.l.s8.bf16 %v5393
        %v6402 = vunpack.c.l.s8.bf16 %v5394
        %v6403 = vunpack.c.l.s8.bf16 %v5395
        %v6404 = vunpack.c.l.s8.bf16 %v5396
        %v6405 = vunpack.c.l.s8.bf16 %v5397
        %v6406 = vunpack.c.l.s8.bf16 %v5398
        %v6407 = vunpack.c.l.s8.bf16 %v5399
        %v6408 = vunpack.c.h.s8.bf16 %v5376
        %v6409 = vunpack.c.h.s8.bf16 %v5377
        %v6410 = vunpack.c.h.s8.bf16 %v5378
        %v6411 = vunpack.c.h.s8.bf16 %v5379
        %v6412 = vunpack.c.h.s8.bf16 %v5380
        %v6413 = vunpack.c.h.s8.bf16 %v5381
        %v6414 = vunpack.c.h.s8.bf16 %v5382
        %v6415 = vunpack.c.h.s8.bf16 %v5383
        %v6416 = vunpack.c.h.s8.bf16 %v5384
        %v6417 = vunpack.c.h.s8.bf16 %v5385
        %v6418 = vunpack.c.h.s8.bf16 %v5386
        %v6419 = vunpack.c.h.s8.bf16 %v5387
        %v6420 = vunpack.c.h.s8.bf16 %v5388
        %v6421 = vunpack.c.h.s8.bf16 %v5389
        %v6422 = vunpack.c.h.s8.bf16 %v5390
        %v6423 = vunpack.c.h.s8.bf16 %v5391
        %v6424 = vunpack.c.h.s8.bf16 %v5392
        %v6425 = vunpack.c.h.s8.bf16 %v5393
        %v6426 = vunpack.c.h.s8.bf16 %v5394
        %v6427 = vunpack.c.h.s8.bf16 %v5395
        %v6428 = vunpack.c.h.s8.bf16 %v5396
        %v6429 = vunpack.c.h.s8.bf16 %v5397
        %v6430 = vunpack.c.h.s8.bf16 %v5398
        %v6431 = vunpack.c.h.s8.bf16 %v5399
        %v6432 = vunpack.c.l.s8.bf16 %v5400
        %v6433 = vunpack.c.l.s8.bf16 %v5401
        %v6434 = vunpack.c.l.s8.bf16 %v5402
        %v6435 = vunpack.c.l.s8.bf16 %v5403
        %v6436 = vunpack.c.l.s8.bf16 %v5404
        %v6437 = vunpack.c.l.s8.bf16 %v5405
        %v6438 = vunpack.c.l.s8.bf16 %v5406
        %v6439 = vunpack.c.l.s8.bf16 %v5407
        %v6440 = vunpack.c.l.s8.bf16 %v5408
        %v6441 = vunpack.c.l.s8.bf16 %v5409
        %v6442 = vunpack.c.l.s8.bf16 %v5410
        %v6443 = vunpack.c.l.s8.bf16 %v5411
        %v6444 = vunpack.c.l.s8.bf16 %v5412
        %v6445 = vunpack.c.l.s8.bf16 %v5413
        %v6446 = vunpack.c.l.s8.bf16 %v5414
        %v6447 = vunpack.c.l.s8.bf16 %v5415
        %v6448 = vunpack.c.l.s8.bf16 %v5416
        %v6449 = vunpack.c.l.s8.bf16 %v5417
        %v6450 = vunpack.c.l.s8.bf16 %v5418
        %v6451 = vunpack.c.l.s8.bf16 %v5419
        %v6452 = vunpack.c.l.s8.bf16 %v5420
        %v6453 = vunpack.c.l.s8.bf16 %v5421
        %v6454 = vunpack.c.l.s8.bf16 %v5422
        %v6455 = vunpack.c.l.s8.bf16 %v5423
        %v6456 = vunpack.c.h.s8.bf16 %v5400
        %v6457 = vunpack.c.h.s8.bf16 %v5401
        %v6458 = vunpack.c.h.s8.bf16 %v5402
        %v6459 = vunpack.c.h.s8.bf16 %v5403
        %v6460 = vunpack.c.h.s8.bf16 %v5404
        %v6461 = vunpack.c.h.s8.bf16 %v5405
        %v6462 = vunpack.c.h.s8.bf16 %v5406
        %v6463 = vunpack.c.h.s8.bf16 %v5407
        %v6464 = vunpack.c.h.s8.bf16 %v5408
        %v6465 = vunpack.c.h.s8.bf16 %v5409
        %v6466 = vunpack.c.h.s8.bf16 %v5410
        %v6467 = vunpack.c.h.s8.bf16 %v5411
        %v6468 = vunpack.c.h.s8.bf16 %v5412
        %v6469 = vunpack.c.h.s8.bf16 %v5413
        %v6470 = vunpack.c.h.s8.bf16 %v5414
        %v6471 = vunpack.c.h.s8.bf16 %v5415
        %v6472 = vunpack.c.h.s8.bf16 %v5416
        %v6473 = vunpack.c.h.s8.bf16 %v5417
        %v6474 = vunpack.c.h.s8.bf16 %v5418
        %v6475 = vunpack.c.h.s8.bf16 %v5419
        %v6476 = vunpack.c.h.s8.bf16 %v5420
        %v6477 = vunpack.c.h.s8.bf16 %v5421
        %v6478 = vunpack.c.h.s8.bf16 %v5422
        %v6479 = vunpack.c.h.s8.bf16 %v5423
        %v6480 = vunpack.c.l.s8.bf16 %v5424
        %v6481 = vunpack.c.l.s8.bf16 %v5425
        %v6482 = vunpack.c.l.s8.bf16 %v5426
        %v6483 = vunpack.c.l.s8.bf16 %v5427
        %v6484 = vunpack.c.l.s8.bf16 %v5428
        %v6485 = vunpack.c.l.s8.bf16 %v5429
        %v6486 = vunpack.c.l.s8.bf16 %v5430
        %v6487 = vunpack.c.l.s8.bf16 %v5431
        %v6488 = vunpack.c.l.s8.bf16 %v5432
        %v6489 = vunpack.c.l.s8.bf16 %v5433
        %v6490 = vunpack.c.l.s8.bf16 %v5434
        %v6491 = vunpack.c.l.s8.bf16 %v5435
        %v6492 = vunpack.c.l.s8.bf16 %v5436
        %v6493 = vunpack.c.l.s8.bf16 %v5437
        %v6494 = vunpack.c.l.s8.bf16 %v5438
        %v6495 = vunpack.c.l.s8.bf16 %v5439
        %v6496 = vunpack.c.l.s8.bf16 %v5440
        %v6497 = vunpack.c.l.s8.bf16 %v5441
        %v6498 = vunpack.c.l.s8.bf16 %v5442
        %v6499 = vunpack.c.l.s8.bf16 %v5443
        %v6500 = vunpack.c.l.s8.bf16 %v5444
        %v6501 = vunpack.c.l.s8.bf16 %v5445
        %v6502 = vunpack.c.l.s8.bf16 %v5446
        %v6503 = vunpack.c.l.s8.bf16 %v5447
        %v6504 = vunpack.c.h.s8.bf16 %v5424
        %v6505 = vunpack.c.h.s8.bf16 %v5425
        %v6506 = vunpack.c.h.s8.bf16 %v5426
        %v6507 = vunpack.c.h.s8.bf16 %v5427
        %v6508 = vunpack.c.h.s8.bf16 %v5428
        %v6509 = vunpack.c.h.s8.bf16 %v5429
        %v6510 = vunpack.c.h.s8.bf16 %v5430
        %v6511 = vunpack.c.h.s8.bf16 %v5431
        %v6512 = vunpack.c.h.s8.bf16 %v5432
        %v6513 = vunpack.c.h.s8.bf16 %v5433
        %v6514 = vunpack.c.h.s8.bf16 %v5434
        %v6515 = vunpack.c.h.s8.bf16 %v5435
        %v6516 = vunpack.c.h.s8.bf16 %v5436
        %v6517 = vunpack.c.h.s8.bf16 %v5437
        %v6518 = vunpack.c.h.s8.bf16 %v5438
        %v6519 = vunpack.c.h.s8.bf16 %v5439
        %v6520 = vunpack.c.h.s8.bf16 %v5440
        %v6521 = vunpack.c.h.s8.bf16 %v5441
        %v6522 = vunpack.c.h.s8.bf16 %v5442
        %v6523 = vunpack.c.h.s8.bf16 %v5443
        %v6524 = vunpack.c.h.s8.bf16 %v5444
        %v6525 = vunpack.c.h.s8.bf16 %v5445
        %v6526 = vunpack.c.h.s8.bf16 %v5446
        %v6527 = vunpack.c.h.s8.bf16 %v5447
        %v6528 = vunpack.c.l.s8.bf16 %v5448
        %v6529 = vunpack.c.l.s8.bf16 %v5449
        %v6530 = vunpack.c.l.s8.bf16 %v5450
        %v6531 = vunpack.c.l.s8.bf16 %v5451
        %v6532 = vunpack.c.l.s8.bf16 %v5452
        %v6533 = vunpack.c.l.s8.bf16 %v5453
        %v6534 = vunpack.c.l.s8.bf16 %v5454
        %v6535 = vunpack.c.l.s8.bf16 %v5455
        %v6536 = vunpack.c.l.s8.bf16 %v5456
        %v6537 = vunpack.c.l.s8.bf16 %v5457
        %v6538 = vunpack.c.l.s8.bf16 %v5458
        %v6539 = vunpack.c.l.s8.bf16 %v5459
        %v6540 = vunpack.c.l.s8.bf16 %v5460
        %v6541 = vunpack.c.l.s8.bf16 %v5461
        %v6542 = vunpack.c.l.s8.bf16 %v5462
        %v6543 = vunpack.c.l.s8.bf16 %v5463
        %v6544 = vunpack.c.l.s8.bf16 %v5464
        %v6545 = vunpack.c.l.s8.bf16 %v5465
        %v6546 = vunpack.c.l.s8.bf16 %v5466
        %v6547 = vunpack.c.l.s8.bf16 %v5467
        %v6548 = vunpack.c.l.s8.bf16 %v5468
        %v6549 = vunpack.c.l.s8.bf16 %v5469
        %v6550 = vunpack.c.l.s8.bf16 %v5470
        %v6551 = vunpack.c.l.s8.bf16 %v5471
        %v6552 = vunpack.c.h.s8.bf16 %v5448
        %v6553 = vunpack.c.h.s8.bf16 %v5449
        %v6554 = vunpack.c.h.s8.bf16 %v5450
        %v6555 = vunpack.c.h.s8.bf16 %v5451
        %v6556 = vunpack.c.h.s8.bf16 %v5452
        %v6557 = vunpack.c.h.s8.bf16 %v5453
        %v6558 = vunpack.c.h.s8.bf16 %v5454
        %v6559 = vunpack.c.h.s8.bf16 %v5455
        %v6560 = vunpack.c.h.s8.bf16 %v5456
        %v6561 = vunpack.c.h.s8.bf16 %v5457
        %v6562 = vunpack.c.h.s8.bf16 %v5458
        %v6563 = vunpack.c.h.s8.bf16 %v5459
        %v6564 = vunpack.c.h.s8.bf16 %v5460
        %v6565 = vunpack.c.h.s8.bf16 %v5461
        %v6566 = vunpack.c.h.s8.bf16 %v5462
        %v6567 = vunpack.c.h.s8.bf16 %v5463
        %v6568 = vunpack.c.h.s8.bf16 %v5464
        %v6569 = vunpack.c.h.s8.bf16 %v5465
        %v6570 = vunpack.c.h.s8.bf16 %v5466
        %v6571 = vunpack.c.h.s8.bf16 %v5467
        %v6572 = vunpack.c.h.s8.bf16 %v5468
        %v6573 = vunpack.c.h.s8.bf16 %v5469
        %v6574 = vunpack.c.h.s8.bf16 %v5470
        %v6575 = vunpack.c.h.s8.bf16 %v5471
        %v6576 = vunpack.c.l.s8.bf16 %v5472
        %v6577 = vunpack.c.l.s8.bf16 %v5473
        %v6578 = vunpack.c.l.s8.bf16 %v5474
        %v6579 = vunpack.c.l.s8.bf16 %v5475
        %v6580 = vunpack.c.l.s8.bf16 %v5476
        %v6581 = vunpack.c.l.s8.bf16 %v5477
        %v6582 = vunpack.c.l.s8.bf16 %v5478
        %v6583 = vunpack.c.l.s8.bf16 %v5479
        %v6584 = vunpack.c.l.s8.bf16 %v5480
        %v6585 = vunpack.c.l.s8.bf16 %v5481
        %v6586 = vunpack.c.l.s8.bf16 %v5482
        %v6587 = vunpack.c.l.s8.bf16 %v5483
        %v6588 = vunpack.c.l.s8.bf16 %v5484
        %v6589 = vunpack.c.l.s8.bf16 %v5485
        %v6590 = vunpack.c.l.s8.bf16 %v5486
        %v6591 = vunpack.c.l.s8.bf16 %v5487
        %v6592 = vunpack.c.l.s8.bf16 %v5488
        %v6593 = vunpack.c.l.s8.bf16 %v5489
        %v6594 = vunpack.c.l.s8.bf16 %v5490
        %v6595 = vunpack.c.l.s8.bf16 %v5491
        %v6596 = vunpack.c.l.s8.bf16 %v5492
        %v6597 = vunpack.c.l.s8.bf16 %v5493
        %v6598 = vunpack.c.l.s8.bf16 %v5494
        %v6599 = vunpack.c.l.s8.bf16 %v5495
        %v6600 = vunpack.c.h.s8.bf16 %v5472
        %v6601 = vunpack.c.h.s8.bf16 %v5473
        %v6602 = vunpack.c.h.s8.bf16 %v5474
        %v6603 = vunpack.c.h.s8.bf16 %v5475
        %v6604 = vunpack.c.h.s8.bf16 %v5476
        %v6605 = vunpack.c.h.s8.bf16 %v5477
        %v6606 = vunpack.c.h.s8.bf16 %v5478
        %v6607 = vunpack.c.h.s8.bf16 %v5479
        %v6608 = vunpack.c.h.s8.bf16 %v5480
        %v6609 = vunpack.c.h.s8.bf16 %v5481
        %v6610 = vunpack.c.h.s8.bf16 %v5482
        %v6611 = vunpack.c.h.s8.bf16 %v5483
        %v6612 = vunpack.c.h.s8.bf16 %v5484
        %v6613 = vunpack.c.h.s8.bf16 %v5485
        %v6614 = vunpack.c.h.s8.bf16 %v5486
        %v6615 = vunpack.c.h.s8.bf16 %v5487
        %v6616 = vunpack.c.h.s8.bf16 %v5488
        %v6617 = vunpack.c.h.s8.bf16 %v5489
        %v6618 = vunpack.c.h.s8.bf16 %v5490
        %v6619 = vunpack.c.h.s8.bf16 %v5491
        %v6620 = vunpack.c.h.s8.bf16 %v5492
        %v6621 = vunpack.c.h.s8.bf16 %v5493
        %v6622 = vunpack.c.h.s8.bf16 %v5494
        %v6623 = vunpack.c.h.s8.bf16 %v5495
        %v6624 = vunpack.c.l.s8.bf16 %v5496
        %v6625 = vunpack.c.l.s8.bf16 %v5497
        %v6626 = vunpack.c.l.s8.bf16 %v5498
        %v6627 = vunpack.c.l.s8.bf16 %v5499
        %v6628 = vunpack.c.l.s8.bf16 %v5500
        %v6629 = vunpack.c.l.s8.bf16 %v5501
        %v6630 = vunpack.c.l.s8.bf16 %v5502
        %v6631 = vunpack.c.l.s8.bf16 %v5503
        %v6632 = vunpack.c.l.s8.bf16 %v5504
        %v6633 = vunpack.c.l.s8.bf16 %v5505
        %v6634 = vunpack.c.l.s8.bf16 %v5506
        %v6635 = vunpack.c.l.s8.bf16 %v5507
        %v6636 = vunpack.c.l.s8.bf16 %v5508
        %v6637 = vunpack.c.l.s8.bf16 %v5509
        %v6638 = vunpack.c.l.s8.bf16 %v5510
        %v6639 = vunpack.c.l.s8.bf16 %v5511
        %v6640 = vunpack.c.l.s8.bf16 %v5512
        %v6641 = vunpack.c.l.s8.bf16 %v5513
        %v6642 = vunpack.c.l.s8.bf16 %v5514
        %v6643 = vunpack.c.l.s8.bf16 %v5515
        %v6644 = vunpack.c.l.s8.bf16 %v5516
        %v6645 = vunpack.c.l.s8.bf16 %v5517
        %v6646 = vunpack.c.l.s8.bf16 %v5518
        %v6647 = vunpack.c.l.s8.bf16 %v5519
        %v6648 = vunpack.c.h.s8.bf16 %v5496
        %v6649 = vunpack.c.h.s8.bf16 %v5497
        %v6650 = vunpack.c.h.s8.bf16 %v5498
        %v6651 = vunpack.c.h.s8.bf16 %v5499
        %v6652 = vunpack.c.h.s8.bf16 %v5500
        %v6653 = vunpack.c.h.s8.bf16 %v5501
        %v6654 = vunpack.c.h.s8.bf16 %v5502
        %v6655 = vunpack.c.h.s8.bf16 %v5503
        %v6656 = vunpack.c.h.s8.bf16 %v5504
        %v6657 = vunpack.c.h.s8.bf16 %v5505
        %v6658 = vunpack.c.h.s8.bf16 %v5506
        %v6659 = vunpack.c.h.s8.bf16 %v5507
        %v6660 = vunpack.c.h.s8.bf16 %v5508
        %v6661 = vunpack.c.h.s8.bf16 %v5509
        %v6662 = vunpack.c.h.s8.bf16 %v5510
        %v6663 = vunpack.c.h.s8.bf16 %v5511
        %v6664 = vunpack.c.h.s8.bf16 %v5512
        %v6665 = vunpack.c.h.s8.bf16 %v5513
        %v6666 = vunpack.c.h.s8.bf16 %v5514
        %v6667 = vunpack.c.h.s8.bf16 %v5515
        %v6668 = vunpack.c.h.s8.bf16 %v5516
        %v6669 = vunpack.c.h.s8.bf16 %v5517
        %v6670 = vunpack.c.h.s8.bf16 %v5518
        %v6671 = vunpack.c.h.s8.bf16 %v5519
        %v6672 = vunpack.c.l.s8.bf16 %v5520
        %v6673 = vunpack.c.l.s8.bf16 %v5521
        %v6674 = vunpack.c.l.s8.bf16 %v5522
        %v6675 = vunpack.c.l.s8.bf16 %v5523
        %v6676 = vunpack.c.l.s8.bf16 %v5524
        %v6677 = vunpack.c.l.s8.bf16 %v5525
        %v6678 = vunpack.c.l.s8.bf16 %v5526
        %v6679 = vunpack.c.l.s8.bf16 %v5527
        %v6680 = vunpack.c.l.s8.bf16 %v5528
        %v6681 = vunpack.c.l.s8.bf16 %v5529
        %v6682 = vunpack.c.l.s8.bf16 %v5530
        %v6683 = vunpack.c.l.s8.bf16 %v5531
        %v6684 = vunpack.c.l.s8.bf16 %v5532
        %v6685 = vunpack.c.l.s8.bf16 %v5533
        %v6686 = vunpack.c.l.s8.bf16 %v5534
        %v6687 = vunpack.c.l.s8.bf16 %v5535
        %v6688 = vunpack.c.l.s8.bf16 %v5536
        %v6689 = vunpack.c.l.s8.bf16 %v5537
        %v6690 = vunpack.c.l.s8.bf16 %v5538
        %v6691 = vunpack.c.l.s8.bf16 %v5539
        %v6692 = vunpack.c.l.s8.bf16 %v5540
        %v6693 = vunpack.c.l.s8.bf16 %v5541
        %v6694 = vunpack.c.l.s8.bf16 %v5542
        %v6695 = vunpack.c.l.s8.bf16 %v5543
        %v6696 = vunpack.c.h.s8.bf16 %v5520
        %v6697 = vunpack.c.h.s8.bf16 %v5521
        %v6698 = vunpack.c.h.s8.bf16 %v5522
        %v6699 = vunpack.c.h.s8.bf16 %v5523
        %v6700 = vunpack.c.h.s8.bf16 %v5524
        %v6701 = vunpack.c.h.s8.bf16 %v5525
        %v6702 = vunpack.c.h.s8.bf16 %v5526
        %v6703 = vunpack.c.h.s8.bf16 %v5527
        %v6704 = vunpack.c.h.s8.bf16 %v5528
        %v6705 = vunpack.c.h.s8.bf16 %v5529
        %v6706 = vunpack.c.h.s8.bf16 %v5530
        %v6707 = vunpack.c.h.s8.bf16 %v5531
        %v6708 = vunpack.c.h.s8.bf16 %v5532
        %v6709 = vunpack.c.h.s8.bf16 %v5533
        %v6710 = vunpack.c.h.s8.bf16 %v5534
        %v6711 = vunpack.c.h.s8.bf16 %v5535
        %v6712 = vunpack.c.h.s8.bf16 %v5536
        %v6713 = vunpack.c.h.s8.bf16 %v5537
        %v6714 = vunpack.c.h.s8.bf16 %v5538
        %v6715 = vunpack.c.h.s8.bf16 %v5539
        %v6716 = vunpack.c.h.s8.bf16 %v5540
        %v6717 = vunpack.c.h.s8.bf16 %v5541
        %v6718 = vunpack.c.h.s8.bf16 %v5542
        %v6719 = vunpack.c.h.s8.bf16 %v5543
        %v6720 = vunpack.c.l.s8.bf16 %v5544
        %v6721 = vunpack.c.l.s8.bf16 %v5545
        %v6722 = vunpack.c.l.s8.bf16 %v5546
        %v6723 = vunpack.c.l.s8.bf16 %v5547
        %v6724 = vunpack.c.l.s8.bf16 %v5548
        %v6725 = vunpack.c.l.s8.bf16 %v5549
        %v6726 = vunpack.c.l.s8.bf16 %v5550
        %v6727 = vunpack.c.l.s8.bf16 %v5551
        %v6728 = vunpack.c.l.s8.bf16 %v5552
        %v6729 = vunpack.c.l.s8.bf16 %v5553
        %v6730 = vunpack.c.l.s8.bf16 %v5554
        %v6731 = vunpack.c.l.s8.bf16 %v5555
        %v6732 = vunpack.c.l.s8.bf16 %v5556
        %v6733 = vunpack.c.l.s8.bf16 %v5557
        %v6734 = vunpack.c.l.s8.bf16 %v5558
        %v6735 = vunpack.c.l.s8.bf16 %v5559
        %v6736 = vunpack.c.l.s8.bf16 %v5560
        %v6737 = vunpack.c.l.s8.bf16 %v5561
        %v6738 = vunpack.c.l.s8.bf16 %v5562
        %v6739 = vunpack.c.l.s8.bf16 %v5563
        %v6740 = vunpack.c.l.s8.bf16 %v5564
        %v6741 = vunpack.c.l.s8.bf16 %v5565
        %v6742 = vunpack.c.l.s8.bf16 %v5566
        %v6743 = vunpack.c.l.s8.bf16 %v5567
        %v6744 = vunpack.c.h.s8.bf16 %v5544
        %v6745 = vunpack.c.h.s8.bf16 %v5545
        %v6746 = vunpack.c.h.s8.bf16 %v5546
        %v6747 = vunpack.c.h.s8.bf16 %v5547
        %v6748 = vunpack.c.h.s8.bf16 %v5548
        %v6749 = vunpack.c.h.s8.bf16 %v5549
        %v6750 = vunpack.c.h.s8.bf16 %v5550
        %v6751 = vunpack.c.h.s8.bf16 %v5551
        %v6752 = vunpack.c.h.s8.bf16 %v5552
        %v6753 = vunpack.c.h.s8.bf16 %v5553
        %v6754 = vunpack.c.h.s8.bf16 %v5554
        %v6755 = vunpack.c.h.s8.bf16 %v5555
        %v6756 = vunpack.c.h.s8.bf16 %v5556
        %v6757 = vunpack.c.h.s8.bf16 %v5557
        %v6758 = vunpack.c.h.s8.bf16 %v5558
        %v6759 = vunpack.c.h.s8.bf16 %v5559
        %v6760 = vunpack.c.h.s8.bf16 %v5560
        %v6761 = vunpack.c.h.s8.bf16 %v5561
        %v6762 = vunpack.c.h.s8.bf16 %v5562
        %v6763 = vunpack.c.h.s8.bf16 %v5563
        %v6764 = vunpack.c.h.s8.bf16 %v5564
        %v6765 = vunpack.c.h.s8.bf16 %v5565
        %v6766 = vunpack.c.h.s8.bf16 %v5566
        %v6767 = vunpack.c.h.s8.bf16 %v5567
        %v6768 = vunpack.c.l.s8.bf16 %v5568
        %v6769 = vunpack.c.l.s8.bf16 %v5569
        %v6770 = vunpack.c.l.s8.bf16 %v5570
        %v6771 = vunpack.c.l.s8.bf16 %v5571
        %v6772 = vunpack.c.l.s8.bf16 %v5572
        %v6773 = vunpack.c.l.s8.bf16 %v5573
        %v6774 = vunpack.c.l.s8.bf16 %v5574
        %v6775 = vunpack.c.l.s8.bf16 %v5575
        %v6776 = vunpack.c.l.s8.bf16 %v5576
        %v6777 = vunpack.c.l.s8.bf16 %v5577
        %v6778 = vunpack.c.l.s8.bf16 %v5578
        %v6779 = vunpack.c.l.s8.bf16 %v5579
        %v6780 = vunpack.c.l.s8.bf16 %v5580
        %v6781 = vunpack.c.l.s8.bf16 %v5581
        %v6782 = vunpack.c.l.s8.bf16 %v5582
        %v6783 = vunpack.c.l.s8.bf16 %v5583
        %v6784 = vunpack.c.l.s8.bf16 %v5584
        %v6785 = vunpack.c.l.s8.bf16 %v5585
        %v6786 = vunpack.c.l.s8.bf16 %v5586
        %v6787 = vunpack.c.l.s8.bf16 %v5587
        %v6788 = vunpack.c.l.s8.bf16 %v5588
        %v6789 = vunpack.c.l.s8.bf16 %v5589
        %v6790 = vunpack.c.l.s8.bf16 %v5590
        %v6791 = vunpack.c.l.s8.bf16 %v5591
        %v6792 = vunpack.c.h.s8.bf16 %v5568
        %v6793 = vunpack.c.h.s8.bf16 %v5569
        %v6794 = vunpack.c.h.s8.bf16 %v5570
        %v6795 = vunpack.c.h.s8.bf16 %v5571
        %v6796 = vunpack.c.h.s8.bf16 %v5572
        %v6797 = vunpack.c.h.s8.bf16 %v5573
        %v6798 = vunpack.c.h.s8.bf16 %v5574
        %v6799 = vunpack.c.h.s8.bf16 %v5575
        %v6800 = vunpack.c.h.s8.bf16 %v5576
        %v6801 = vunpack.c.h.s8.bf16 %v5577
        %v6802 = vunpack.c.h.s8.bf16 %v5578
        %v6803 = vunpack.c.h.s8.bf16 %v5579
        %v6804 = vunpack.c.h.s8.bf16 %v5580
        %v6805 = vunpack.c.h.s8.bf16 %v5581
        %v6806 = vunpack.c.h.s8.bf16 %v5582
        %v6807 = vunpack.c.h.s8.bf16 %v5583
        %v6808 = vunpack.c.h.s8.bf16 %v5584
        %v6809 = vunpack.c.h.s8.bf16 %v5585
        %v6810 = vunpack.c.h.s8.bf16 %v5586
        %v6811 = vunpack.c.h.s8.bf16 %v5587
        %v6812 = vunpack.c.h.s8.bf16 %v5588
        %v6813 = vunpack.c.h.s8.bf16 %v5589
        %v6814 = vunpack.c.h.s8.bf16 %v5590
        %v6815 = vunpack.c.h.s8.bf16 %v5591
        %v6816 = vunpack.c.l.s8.bf16 %v5592
        %v6817 = vunpack.c.l.s8.bf16 %v5593
        %v6818 = vunpack.c.l.s8.bf16 %v5594
        %v6819 = vunpack.c.l.s8.bf16 %v5595
        %v6820 = vunpack.c.l.s8.bf16 %v5596
        %v6821 = vunpack.c.l.s8.bf16 %v5597
        %v6822 = vunpack.c.l.s8.bf16 %v5598
        %v6823 = vunpack.c.l.s8.bf16 %v5599
        %v6824 = vunpack.c.l.s8.bf16 %v5600
        %v6825 = vunpack.c.l.s8.bf16 %v5601
        %v6826 = vunpack.c.l.s8.bf16 %v5602
        %v6827 = vunpack.c.l.s8.bf16 %v5603
        %v6828 = vunpack.c.l.s8.bf16 %v5604
        %v6829 = vunpack.c.l.s8.bf16 %v5605
        %v6830 = vunpack.c.l.s8.bf16 %v5606
        %v6831 = vunpack.c.l.s8.bf16 %v5607
        %v6832 = vunpack.c.l.s8.bf16 %v5608
        %v6833 = vunpack.c.l.s8.bf16 %v5609
        %v6834 = vunpack.c.l.s8.bf16 %v5610
        %v6835 = vunpack.c.l.s8.bf16 %v5611
        %v6836 = vunpack.c.l.s8.bf16 %v5612
        %v6837 = vunpack.c.l.s8.bf16 %v5613
        %v6838 = vunpack.c.l.s8.bf16 %v5614
        %v6839 = vunpack.c.l.s8.bf16 %v5615
        %v6840 = vunpack.c.h.s8.bf16 %v5592
        %v6841 = vunpack.c.h.s8.bf16 %v5593
        %v6842 = vunpack.c.h.s8.bf16 %v5594
        %v6843 = vunpack.c.h.s8.bf16 %v5595
        %v6844 = vunpack.c.h.s8.bf16 %v5596
        %v6845 = vunpack.c.h.s8.bf16 %v5597
        %v6846 = vunpack.c.h.s8.bf16 %v5598
        %v6847 = vunpack.c.h.s8.bf16 %v5599
        %v6848 = vunpack.c.h.s8.bf16 %v5600
        %v6849 = vunpack.c.h.s8.bf16 %v5601
        %v6850 = vunpack.c.h.s8.bf16 %v5602
        %v6851 = vunpack.c.h.s8.bf16 %v5603
        %v6852 = vunpack.c.h.s8.bf16 %v5604
        %v6853 = vunpack.c.h.s8.bf16 %v5605
        %v6854 = vunpack.c.h.s8.bf16 %v5606
        %v6855 = vunpack.c.h.s8.bf16 %v5607
        %v6856 = vunpack.c.h.s8.bf16 %v5608
        %v6857 = vunpack.c.h.s8.bf16 %v5609
        %v6858 = vunpack.c.h.s8.bf16 %v5610
        %v6859 = vunpack.c.h.s8.bf16 %v5611
        %v6860 = vunpack.c.h.s8.bf16 %v5612
        %v6861 = vunpack.c.h.s8.bf16 %v5613
        %v6862 = vunpack.c.h.s8.bf16 %v5614
        %v6863 = vunpack.c.h.s8.bf16 %v5615
        %v6864 = vunpack.c.l.s8.bf16 %v5616
        %v6865 = vunpack.c.l.s8.bf16 %v5617
        %v6866 = vunpack.c.l.s8.bf16 %v5618
        %v6867 = vunpack.c.l.s8.bf16 %v5619
        %v6868 = vunpack.c.l.s8.bf16 %v5620
        %v6869 = vunpack.c.l.s8.bf16 %v5621
        %v6870 = vunpack.c.l.s8.bf16 %v5622
        %v6871 = vunpack.c.l.s8.bf16 %v5623
        %v6872 = vunpack.c.l.s8.bf16 %v5624
        %v6873 = vunpack.c.l.s8.bf16 %v5625
        %v6874 = vunpack.c.l.s8.bf16 %v5626
        %v6875 = vunpack.c.l.s8.bf16 %v5627
        %v6876 = vunpack.c.l.s8.bf16 %v5628
        %v6877 = vunpack.c.l.s8.bf16 %v5629
        %v6878 = vunpack.c.l.s8.bf16 %v5630
        %v6879 = vunpack.c.l.s8.bf16 %v5631
        %v6880 = vunpack.c.l.s8.bf16 %v5632
        %v6881 = vunpack.c.l.s8.bf16 %v5633
        %v6882 = vunpack.c.l.s8.bf16 %v5634
        %v6883 = vunpack.c.l.s8.bf16 %v5635
        %v6884 = vunpack.c.l.s8.bf16 %v5636
        %v6885 = vunpack.c.l.s8.bf16 %v5637
        %v6886 = vunpack.c.l.s8.bf16 %v5638
        %v6887 = vunpack.c.l.s8.bf16 %v5639
        %v6888 = vunpack.c.h.s8.bf16 %v5616
        %v6889 = vunpack.c.h.s8.bf16 %v5617
        %v6890 = vunpack.c.h.s8.bf16 %v5618
        %v6891 = vunpack.c.h.s8.bf16 %v5619
        %v6892 = vunpack.c.h.s8.bf16 %v5620
        %v6893 = vunpack.c.h.s8.bf16 %v5621
        %v6894 = vunpack.c.h.s8.bf16 %v5622
        %v6895 = vunpack.c.h.s8.bf16 %v5623
        %v6896 = vunpack.c.h.s8.bf16 %v5624
        %v6897 = vunpack.c.h.s8.bf16 %v5625
        %v6898 = vunpack.c.h.s8.bf16 %v5626
        %v6899 = vunpack.c.h.s8.bf16 %v5627
        %v6900 = vunpack.c.h.s8.bf16 %v5628
        %v6901 = vunpack.c.h.s8.bf16 %v5629
        %v6902 = vunpack.c.h.s8.bf16 %v5630
        %v6903 = vunpack.c.h.s8.bf16 %v5631
        %v6904 = vunpack.c.h.s8.bf16 %v5632
        %v6905 = vunpack.c.h.s8.bf16 %v5633
        %v6906 = vunpack.c.h.s8.bf16 %v5634
        %v6907 = vunpack.c.h.s8.bf16 %v5635
        %v6908 = vunpack.c.h.s8.bf16 %v5636
        %v6909 = vunpack.c.h.s8.bf16 %v5637
        %v6910 = vunpack.c.h.s8.bf16 %v5638
        %v6911 = vunpack.c.h.s8.bf16 %v5639
        %v6912 = vunpack.c.l.s8.bf16 %v5640
        %v6913 = vunpack.c.l.s8.bf16 %v5641
        %v6914 = vunpack.c.l.s8.bf16 %v5642
        %v6915 = vunpack.c.l.s8.bf16 %v5643
        %v6916 = vunpack.c.l.s8.bf16 %v5644
        %v6917 = vunpack.c.l.s8.bf16 %v5645
        %v6918 = vunpack.c.l.s8.bf16 %v5646
        %v6919 = vunpack.c.l.s8.bf16 %v5647
        %v6920 = vunpack.c.l.s8.bf16 %v5648
        %v6921 = vunpack.c.l.s8.bf16 %v5649
        %v6922 = vunpack.c.l.s8.bf16 %v5650
        %v6923 = vunpack.c.l.s8.bf16 %v5651
        %v6924 = vunpack.c.l.s8.bf16 %v5652
        %v6925 = vunpack.c.l.s8.bf16 %v5653
        %v6926 = vunpack.c.l.s8.bf16 %v5654
        %v6927 = vunpack.c.l.s8.bf16 %v5655
        %v6928 = vunpack.c.l.s8.bf16 %v5656
        %v6929 = vunpack.c.l.s8.bf16 %v5657
        %v6930 = vunpack.c.l.s8.bf16 %v5658
        %v6931 = vunpack.c.l.s8.bf16 %v5659
        %v6932 = vunpack.c.l.s8.bf16 %v5660
        %v6933 = vunpack.c.l.s8.bf16 %v5661
        %v6934 = vunpack.c.l.s8.bf16 %v5662
        %v6935 = vunpack.c.l.s8.bf16 %v5663
        %v6936 = vunpack.c.h.s8.bf16 %v5640
        %v6937 = vunpack.c.h.s8.bf16 %v5641
        %v6938 = vunpack.c.h.s8.bf16 %v5642
        %v6939 = vunpack.c.h.s8.bf16 %v5643
        %v6940 = vunpack.c.h.s8.bf16 %v5644
        %v6941 = vunpack.c.h.s8.bf16 %v5645
        %v6942 = vunpack.c.h.s8.bf16 %v5646
        %v6943 = vunpack.c.h.s8.bf16 %v5647
        %v6944 = vunpack.c.h.s8.bf16 %v5648
        %v6945 = vunpack.c.h.s8.bf16 %v5649
        %v6946 = vunpack.c.h.s8.bf16 %v5650
        %v6947 = vunpack.c.h.s8.bf16 %v5651
        %v6948 = vunpack.c.h.s8.bf16 %v5652
        %v6949 = vunpack.c.h.s8.bf16 %v5653
        %v6950 = vunpack.c.h.s8.bf16 %v5654
        %v6951 = vunpack.c.h.s8.bf16 %v5655
        %v6952 = vunpack.c.h.s8.bf16 %v5656
        %v6953 = vunpack.c.h.s8.bf16 %v5657
        %v6954 = vunpack.c.h.s8.bf16 %v5658
        %v6955 = vunpack.c.h.s8.bf16 %v5659
        %v6956 = vunpack.c.h.s8.bf16 %v5660
        %v6957 = vunpack.c.h.s8.bf16 %v5661
        %v6958 = vunpack.c.h.s8.bf16 %v5662
        %v6959 = vunpack.c.h.s8.bf16 %v5663
        %v6960 = vunpack.c.l.s8.bf16 %v5664
        %v6961 = vunpack.c.l.s8.bf16 %v5665
        %v6962 = vunpack.c.l.s8.bf16 %v5666
        %v6963 = vunpack.c.l.s8.bf16 %v5667
        %v6964 = vunpack.c.l.s8.bf16 %v5668
        %v6965 = vunpack.c.l.s8.bf16 %v5669
        %v6966 = vunpack.c.l.s8.bf16 %v5670
        %v6967 = vunpack.c.l.s8.bf16 %v5671
        %v6968 = vunpack.c.l.s8.bf16 %v5672
        %v6969 = vunpack.c.l.s8.bf16 %v5673
        %v6970 = vunpack.c.l.s8.bf16 %v5674
        %v6971 = vunpack.c.l.s8.bf16 %v5675
        %v6972 = vunpack.c.l.s8.bf16 %v5676
        %v6973 = vunpack.c.l.s8.bf16 %v5677
        %v6974 = vunpack.c.l.s8.bf16 %v5678
        %v6975 = vunpack.c.l.s8.bf16 %v5679
        %v6976 = vunpack.c.l.s8.bf16 %v5680
        %v6977 = vunpack.c.l.s8.bf16 %v5681
        %v6978 = vunpack.c.l.s8.bf16 %v5682
        %v6979 = vunpack.c.l.s8.bf16 %v5683
        %v6980 = vunpack.c.l.s8.bf16 %v5684
        %v6981 = vunpack.c.l.s8.bf16 %v5685
        %v6982 = vunpack.c.l.s8.bf16 %v5686
        %v6983 = vunpack.c.l.s8.bf16 %v5687
        %v6984 = vunpack.c.h.s8.bf16 %v5664
        %v6985 = vunpack.c.h.s8.bf16 %v5665
        %v6986 = vunpack.c.h.s8.bf16 %v5666
        %v6987 = vunpack.c.h.s8.bf16 %v5667
        %v6988 = vunpack.c.h.s8.bf16 %v5668
        %v6989 = vunpack.c.h.s8.bf16 %v5669
        %v6990 = vunpack.c.h.s8.bf16 %v5670
        %v6991 = vunpack.c.h.s8.bf16 %v5671
        %v6992 = vunpack.c.h.s8.bf16 %v5672
        %v6993 = vunpack.c.h.s8.bf16 %v5673
        %v6994 = vunpack.c.h.s8.bf16 %v5674
        %v6995 = vunpack.c.h.s8.bf16 %v5675
        %v6996 = vunpack.c.h.s8.bf16 %v5676
        %v6997 = vunpack.c.h.s8.bf16 %v5677
        %v6998 = vunpack.c.h.s8.bf16 %v5678
        %v6999 = vunpack.c.h.s8.bf16 %v5679
        %v7000 = vunpack.c.h.s8.bf16 %v5680
        %v7001 = vunpack.c.h.s8.bf16 %v5681
        %v7002 = vunpack.c.h.s8.bf16 %v5682
        %v7003 = vunpack.c.h.s8.bf16 %v5683
        %v7004 = vunpack.c.h.s8.bf16 %v5684
        %v7005 = vunpack.c.h.s8.bf16 %v5685
        %v7006 = vunpack.c.h.s8.bf16 %v5686
        %v7007 = vunpack.c.h.s8.bf16 %v5687
        %v7008 = vunpack.c.l.s8.bf16 %v5688
        %v7009 = vunpack.c.l.s8.bf16 %v5689
        %v7010 = vunpack.c.l.s8.bf16 %v5690
        %v7011 = vunpack.c.l.s8.bf16 %v5691
        %v7012 = vunpack.c.l.s8.bf16 %v5692
        %v7013 = vunpack.c.l.s8.bf16 %v5693
        %v7014 = vunpack.c.l.s8.bf16 %v5694
        %v7015 = vunpack.c.l.s8.bf16 %v5695
        %v7016 = vunpack.c.l.s8.bf16 %v5696
        %v7017 = vunpack.c.l.s8.bf16 %v5697
        %v7018 = vunpack.c.l.s8.bf16 %v5698
        %v7019 = vunpack.c.l.s8.bf16 %v5699
        %v7020 = vunpack.c.l.s8.bf16 %v5700
        %v7021 = vunpack.c.l.s8.bf16 %v5701
        %v7022 = vunpack.c.l.s8.bf16 %v5702
        %v7023 = vunpack.c.l.s8.bf16 %v5703
        %v7024 = vunpack.c.l.s8.bf16 %v5704
        %v7025 = vunpack.c.l.s8.bf16 %v5705
        %v7026 = vunpack.c.l.s8.bf16 %v5706
        %v7027 = vunpack.c.l.s8.bf16 %v5707
        %v7028 = vunpack.c.l.s8.bf16 %v5708
        %v7029 = vunpack.c.l.s8.bf16 %v5709
        %v7030 = vunpack.c.l.s8.bf16 %v5710
        %v7031 = vunpack.c.l.s8.bf16 %v5711
        %v7032 = vunpack.c.h.s8.bf16 %v5688
        %v7033 = vunpack.c.h.s8.bf16 %v5689
        %v7034 = vunpack.c.h.s8.bf16 %v5690
        %v7035 = vunpack.c.h.s8.bf16 %v5691
        %v7036 = vunpack.c.h.s8.bf16 %v5692
        %v7037 = vunpack.c.h.s8.bf16 %v5693
        %v7038 = vunpack.c.h.s8.bf16 %v5694
        %v7039 = vunpack.c.h.s8.bf16 %v5695
        %v7040 = vunpack.c.h.s8.bf16 %v5696
        %v7041 = vunpack.c.h.s8.bf16 %v5697
        %v7042 = vunpack.c.h.s8.bf16 %v5698
        %v7043 = vunpack.c.h.s8.bf16 %v5699
        %v7044 = vunpack.c.h.s8.bf16 %v5700
        %v7045 = vunpack.c.h.s8.bf16 %v5701
        %v7046 = vunpack.c.h.s8.bf16 %v5702
        %v7047 = vunpack.c.h.s8.bf16 %v5703
        %v7048 = vunpack.c.h.s8.bf16 %v5704
        %v7049 = vunpack.c.h.s8.bf16 %v5705
        %v7050 = vunpack.c.h.s8.bf16 %v5706
        %v7051 = vunpack.c.h.s8.bf16 %v5707
        %v7052 = vunpack.c.h.s8.bf16 %v5708
        %v7053 = vunpack.c.h.s8.bf16 %v5709
        %v7054 = vunpack.c.h.s8.bf16 %v5710
        %v7055 = vunpack.c.h.s8.bf16 %v5711
        %v7056 = vunpack.c.l.s8.bf16 %v5712
        %v7057 = vunpack.c.l.s8.bf16 %v5713
        %v7058 = vunpack.c.l.s8.bf16 %v5714
        %v7059 = vunpack.c.l.s8.bf16 %v5715
        %v7060 = vunpack.c.l.s8.bf16 %v5716
        %v7061 = vunpack.c.l.s8.bf16 %v5717
        %v7062 = vunpack.c.l.s8.bf16 %v5718
        %v7063 = vunpack.c.l.s8.bf16 %v5719
        %v7064 = vunpack.c.l.s8.bf16 %v5720
        %v7065 = vunpack.c.l.s8.bf16 %v5721
        %v7066 = vunpack.c.l.s8.bf16 %v5722
        %v7067 = vunpack.c.l.s8.bf16 %v5723
        %v7068 = vunpack.c.l.s8.bf16 %v5724
        %v7069 = vunpack.c.l.s8.bf16 %v5725
        %v7070 = vunpack.c.l.s8.bf16 %v5726
        %v7071 = vunpack.c.l.s8.bf16 %v5727
        %v7072 = vunpack.c.l.s8.bf16 %v5728
        %v7073 = vunpack.c.l.s8.bf16 %v5729
        %v7074 = vunpack.c.l.s8.bf16 %v5730
        %v7075 = vunpack.c.l.s8.bf16 %v5731
        %v7076 = vunpack.c.l.s8.bf16 %v5732
        %v7077 = vunpack.c.l.s8.bf16 %v5733
        %v7078 = vunpack.c.l.s8.bf16 %v5734
        %v7079 = vunpack.c.l.s8.bf16 %v5735
        %v7080 = vunpack.c.h.s8.bf16 %v5712
        %v7081 = vunpack.c.h.s8.bf16 %v5713
        %v7082 = vunpack.c.h.s8.bf16 %v5714
        %v7083 = vunpack.c.h.s8.bf16 %v5715
        %v7084 = vunpack.c.h.s8.bf16 %v5716
        %v7085 = vunpack.c.h.s8.bf16 %v5717
        %v7086 = vunpack.c.h.s8.bf16 %v5718
        %v7087 = vunpack.c.h.s8.bf16 %v5719
        %v7088 = vunpack.c.h.s8.bf16 %v5720
        %v7089 = vunpack.c.h.s8.bf16 %v5721
        %v7090 = vunpack.c.h.s8.bf16 %v5722
        %v7091 = vunpack.c.h.s8.bf16 %v5723
        %v7092 = vunpack.c.h.s8.bf16 %v5724
        %v7093 = vunpack.c.h.s8.bf16 %v5725
        %v7094 = vunpack.c.h.s8.bf16 %v5726
        %v7095 = vunpack.c.h.s8.bf16 %v5727
        %v7096 = vunpack.c.h.s8.bf16 %v5728
        %v7097 = vunpack.c.h.s8.bf16 %v5729
        %v7098 = vunpack.c.h.s8.bf16 %v5730
        %v7099 = vunpack.c.h.s8.bf16 %v5731
        %v7100 = vunpack.c.h.s8.bf16 %v5732
        %v7101 = vunpack.c.h.s8.bf16 %v5733
        %v7102 = vunpack.c.h.s8.bf16 %v5734
        %v7103 = vunpack.c.h.s8.bf16 %v5735
        %v7104 = vunpack.c.l.s8.bf16 %v5736
        %v7105 = vunpack.c.l.s8.bf16 %v5737
        %v7106 = vunpack.c.l.s8.bf16 %v5738
        %v7107 = vunpack.c.l.s8.bf16 %v5739
        %v7108 = vunpack.c.l.s8.bf16 %v5740
        %v7109 = vunpack.c.l.s8.bf16 %v5741
        %v7110 = vunpack.c.l.s8.bf16 %v5742
        %v7111 = vunpack.c.l.s8.bf16 %v5743
        %v7112 = vunpack.c.l.s8.bf16 %v5744
        %v7113 = vunpack.c.l.s8.bf16 %v5745
        %v7114 = vunpack.c.l.s8.bf16 %v5746
        %v7115 = vunpack.c.l.s8.bf16 %v5747
        %v7116 = vunpack.c.l.s8.bf16 %v5748
        %v7117 = vunpack.c.l.s8.bf16 %v5749
        %v7118 = vunpack.c.l.s8.bf16 %v5750
        %v7119 = vunpack.c.l.s8.bf16 %v5751
        %v7120 = vunpack.c.l.s8.bf16 %v5752
        %v7121 = vunpack.c.l.s8.bf16 %v5753
        %v7122 = vunpack.c.l.s8.bf16 %v5754
        %v7123 = vunpack.c.l.s8.bf16 %v5755
        %v7124 = vunpack.c.l.s8.bf16 %v5756
        %v7125 = vunpack.c.l.s8.bf16 %v5757
        %v7126 = vunpack.c.l.s8.bf16 %v5758
        %v7127 = vunpack.c.l.s8.bf16 %v5759
        %v7128 = vunpack.c.h.s8.bf16 %v5736
        %v7129 = vunpack.c.h.s8.bf16 %v5737
        %v7130 = vunpack.c.h.s8.bf16 %v5738
        %v7131 = vunpack.c.h.s8.bf16 %v5739
        %v7132 = vunpack.c.h.s8.bf16 %v5740
        %v7133 = vunpack.c.h.s8.bf16 %v5741
        %v7134 = vunpack.c.h.s8.bf16 %v5742
        %v7135 = vunpack.c.h.s8.bf16 %v5743
        %v7136 = vunpack.c.h.s8.bf16 %v5744
        %v7137 = vunpack.c.h.s8.bf16 %v5745
        %v7138 = vunpack.c.h.s8.bf16 %v5746
        %v7139 = vunpack.c.h.s8.bf16 %v5747
        %v7140 = vunpack.c.h.s8.bf16 %v5748
        %v7141 = vunpack.c.h.s8.bf16 %v5749
        %v7142 = vunpack.c.h.s8.bf16 %v5750
        %v7143 = vunpack.c.h.s8.bf16 %v5751
        %v7144 = vunpack.c.h.s8.bf16 %v5752
        %v7145 = vunpack.c.h.s8.bf16 %v5753
        %v7146 = vunpack.c.h.s8.bf16 %v5754
        %v7147 = vunpack.c.h.s8.bf16 %v5755
        %v7148 = vunpack.c.h.s8.bf16 %v5756
        %v7149 = vunpack.c.h.s8.bf16 %v5757
        %v7150 = vunpack.c.h.s8.bf16 %v5758
        %v7151 = vunpack.c.h.s8.bf16 %v5759
        %v7152 = vunpack.c.l.s8.bf16 %v5760
        %v7153 = vunpack.c.l.s8.bf16 %v5761
        %v7154 = vunpack.c.l.s8.bf16 %v5762
        %v7155 = vunpack.c.l.s8.bf16 %v5763
        %v7156 = vunpack.c.l.s8.bf16 %v5764
        %v7157 = vunpack.c.l.s8.bf16 %v5765
        %v7158 = vunpack.c.l.s8.bf16 %v5766
        %v7159 = vunpack.c.l.s8.bf16 %v5767
        %v7160 = vunpack.c.l.s8.bf16 %v5768
        %v7161 = vunpack.c.l.s8.bf16 %v5769
        %v7162 = vunpack.c.l.s8.bf16 %v5770
        %v7163 = vunpack.c.l.s8.bf16 %v5771
        %v7164 = vunpack.c.l.s8.bf16 %v5772
        %v7165 = vunpack.c.l.s8.bf16 %v5773
        %v7166 = vunpack.c.l.s8.bf16 %v5774
        %v7167 = vunpack.c.l.s8.bf16 %v5775
        %v7168 = vunpack.c.l.s8.bf16 %v5776
        %v7169 = vunpack.c.l.s8.bf16 %v5777
        %v7170 = vunpack.c.l.s8.bf16 %v5778
        %v7171 = vunpack.c.l.s8.bf16 %v5779
        %v7172 = vunpack.c.l.s8.bf16 %v5780
        %v7173 = vunpack.c.l.s8.bf16 %v5781
        %v7174 = vunpack.c.l.s8.bf16 %v5782
        %v7175 = vunpack.c.l.s8.bf16 %v5783
        %v7176 = vunpack.c.h.s8.bf16 %v5760
        %v7177 = vunpack.c.h.s8.bf16 %v5761
        %v7178 = vunpack.c.h.s8.bf16 %v5762
        %v7179 = vunpack.c.h.s8.bf16 %v5763
        %v7180 = vunpack.c.h.s8.bf16 %v5764
        %v7181 = vunpack.c.h.s8.bf16 %v5765
        %v7182 = vunpack.c.h.s8.bf16 %v5766
        %v7183 = vunpack.c.h.s8.bf16 %v5767
        %v7184 = vunpack.c.h.s8.bf16 %v5768
        %v7185 = vunpack.c.h.s8.bf16 %v5769
        %v7186 = vunpack.c.h.s8.bf16 %v5770
        %v7187 = vunpack.c.h.s8.bf16 %v5771
        %v7188 = vunpack.c.h.s8.bf16 %v5772
        %v7189 = vunpack.c.h.s8.bf16 %v5773
        %v7190 = vunpack.c.h.s8.bf16 %v5774
        %v7191 = vunpack.c.h.s8.bf16 %v5775
        %v7192 = vunpack.c.h.s8.bf16 %v5776
        %v7193 = vunpack.c.h.s8.bf16 %v5777
        %v7194 = vunpack.c.h.s8.bf16 %v5778
        %v7195 = vunpack.c.h.s8.bf16 %v5779
        %v7196 = vunpack.c.h.s8.bf16 %v5780
        %v7197 = vunpack.c.h.s8.bf16 %v5781
        %v7198 = vunpack.c.h.s8.bf16 %v5782
        %v7199 = vunpack.c.h.s8.bf16 %v5783
        %v7200 = vunpack.c.l.s8.bf16 %v5784
        %v7201 = vunpack.c.l.s8.bf16 %v5785
        %v7202 = vunpack.c.l.s8.bf16 %v5786
        %v7203 = vunpack.c.l.s8.bf16 %v5787
        %v7204 = vunpack.c.l.s8.bf16 %v5788
        %v7205 = vunpack.c.l.s8.bf16 %v5789
        %v7206 = vunpack.c.l.s8.bf16 %v5790
        %v7207 = vunpack.c.l.s8.bf16 %v5791
        %v7208 = vunpack.c.l.s8.bf16 %v5792
        %v7209 = vunpack.c.l.s8.bf16 %v5793
        %v7210 = vunpack.c.l.s8.bf16 %v5794
        %v7211 = vunpack.c.l.s8.bf16 %v5795
        %v7212 = vunpack.c.l.s8.bf16 %v5796
        %v7213 = vunpack.c.l.s8.bf16 %v5797
        %v7214 = vunpack.c.l.s8.bf16 %v5798
        %v7215 = vunpack.c.l.s8.bf16 %v5799
        %v7216 = vunpack.c.l.s8.bf16 %v5800
        %v7217 = vunpack.c.l.s8.bf16 %v5801
        %v7218 = vunpack.c.l.s8.bf16 %v5802
        %v7219 = vunpack.c.l.s8.bf16 %v5803
        %v7220 = vunpack.c.l.s8.bf16 %v5804
        %v7221 = vunpack.c.l.s8.bf16 %v5805
        %v7222 = vunpack.c.l.s8.bf16 %v5806
        %v7223 = vunpack.c.l.s8.bf16 %v5807
        %v7224 = vunpack.c.h.s8.bf16 %v5784
        %v7225 = vunpack.c.h.s8.bf16 %v5785
        %v7226 = vunpack.c.h.s8.bf16 %v5786
        %v7227 = vunpack.c.h.s8.bf16 %v5787
        %v7228 = vunpack.c.h.s8.bf16 %v5788
        %v7229 = vunpack.c.h.s8.bf16 %v5789
        %v7230 = vunpack.c.h.s8.bf16 %v5790
        %v7231 = vunpack.c.h.s8.bf16 %v5791
        %v7232 = vunpack.c.h.s8.bf16 %v5792
        %v7233 = vunpack.c.h.s8.bf16 %v5793
        %v7234 = vunpack.c.h.s8.bf16 %v5794
        %v7235 = vunpack.c.h.s8.bf16 %v5795
        %v7236 = vunpack.c.h.s8.bf16 %v5796
        %v7237 = vunpack.c.h.s8.bf16 %v5797
        %v7238 = vunpack.c.h.s8.bf16 %v5798
        %v7239 = vunpack.c.h.s8.bf16 %v5799
        %v7240 = vunpack.c.h.s8.bf16 %v5800
        %v7241 = vunpack.c.h.s8.bf16 %v5801
        %v7242 = vunpack.c.h.s8.bf16 %v5802
        %v7243 = vunpack.c.h.s8.bf16 %v5803
        %v7244 = vunpack.c.h.s8.bf16 %v5804
        %v7245 = vunpack.c.h.s8.bf16 %v5805
        %v7246 = vunpack.c.h.s8.bf16 %v5806
        %v7247 = vunpack.c.h.s8.bf16 %v5807
        %v7248 = vunpack.c.l.s8.bf16 %v5808
        %v7249 = vunpack.c.l.s8.bf16 %v5809
        %v7250 = vunpack.c.l.s8.bf16 %v5810
        %v7251 = vunpack.c.l.s8.bf16 %v5811
        %v7252 = vunpack.c.l.s8.bf16 %v5812
        %v7253 = vunpack.c.l.s8.bf16 %v5813
        %v7254 = vunpack.c.l.s8.bf16 %v5814
        %v7255 = vunpack.c.l.s8.bf16 %v5815
        %v7256 = vunpack.c.l.s8.bf16 %v5816
        %v7257 = vunpack.c.l.s8.bf16 %v5817
        %v7258 = vunpack.c.l.s8.bf16 %v5818
        %v7259 = vunpack.c.l.s8.bf16 %v5819
        %v7260 = vunpack.c.l.s8.bf16 %v5820
        %v7261 = vunpack.c.l.s8.bf16 %v5821
        %v7262 = vunpack.c.l.s8.bf16 %v5822
        %v7263 = vunpack.c.l.s8.bf16 %v5823
        %v7264 = vunpack.c.l.s8.bf16 %v5824
        %v7265 = vunpack.c.l.s8.bf16 %v5825
        %v7266 = vunpack.c.l.s8.bf16 %v5826
        %v7267 = vunpack.c.l.s8.bf16 %v5827
        %v7268 = vunpack.c.l.s8.bf16 %v5828
        %v7269 = vunpack.c.l.s8.bf16 %v5829
        %v7270 = vunpack.c.l.s8.bf16 %v5830
        %v7271 = vunpack.c.l.s8.bf16 %v5831
        %v7272 = vunpack.c.h.s8.bf16 %v5808
        %v7273 = vunpack.c.h.s8.bf16 %v5809
        %v7274 = vunpack.c.h.s8.bf16 %v5810
        %v7275 = vunpack.c.h.s8.bf16 %v5811
        %v7276 = vunpack.c.h.s8.bf16 %v5812
        %v7277 = vunpack.c.h.s8.bf16 %v5813
        %v7278 = vunpack.c.h.s8.bf16 %v5814
        %v7279 = vunpack.c.h.s8.bf16 %v5815
        %v7280 = vunpack.c.h.s8.bf16 %v5816
        %v7281 = vunpack.c.h.s8.bf16 %v5817
        %v7282 = vunpack.c.h.s8.bf16 %v5818
        %v7283 = vunpack.c.h.s8.bf16 %v5819
        %v7284 = vunpack.c.h.s8.bf16 %v5820
        %v7285 = vunpack.c.h.s8.bf16 %v5821
        %v7286 = vunpack.c.h.s8.bf16 %v5822
        %v7287 = vunpack.c.h.s8.bf16 %v5823
        %v7288 = vunpack.c.h.s8.bf16 %v5824
        %v7289 = vunpack.c.h.s8.bf16 %v5825
        %v7290 = vunpack.c.h.s8.bf16 %v5826
        %v7291 = vunpack.c.h.s8.bf16 %v5827
        %v7292 = vunpack.c.h.s8.bf16 %v5828
        %v7293 = vunpack.c.h.s8.bf16 %v5829
        %v7294 = vunpack.c.h.s8.bf16 %v5830
        %v7295 = vunpack.c.h.s8.bf16 %v5831
        %v7296 = vunpack.c.l.s8.bf16 %v5832
        %v7297 = vunpack.c.l.s8.bf16 %v5833
        %v7298 = vunpack.c.l.s8.bf16 %v5834
        %v7299 = vunpack.c.l.s8.bf16 %v5835
        %v7300 = vunpack.c.l.s8.bf16 %v5836
        %v7301 = vunpack.c.l.s8.bf16 %v5837
        %v7302 = vunpack.c.l.s8.bf16 %v5838
        %v7303 = vunpack.c.l.s8.bf16 %v5839
        %v7304 = vunpack.c.l.s8.bf16 %v5840
        %v7305 = vunpack.c.l.s8.bf16 %v5841
        %v7306 = vunpack.c.l.s8.bf16 %v5842
        %v7307 = vunpack.c.l.s8.bf16 %v5843
        %v7308 = vunpack.c.l.s8.bf16 %v5844
        %v7309 = vunpack.c.l.s8.bf16 %v5845
        %v7310 = vunpack.c.l.s8.bf16 %v5846
        %v7311 = vunpack.c.l.s8.bf16 %v5847
        %v7312 = vunpack.c.l.s8.bf16 %v5848
        %v7313 = vunpack.c.l.s8.bf16 %v5849
        %v7314 = vunpack.c.l.s8.bf16 %v5850
        %v7315 = vunpack.c.l.s8.bf16 %v5851
        %v7316 = vunpack.c.l.s8.bf16 %v5852
        %v7317 = vunpack.c.l.s8.bf16 %v5853
        %v7318 = vunpack.c.l.s8.bf16 %v5854
        %v7319 = vunpack.c.l.s8.bf16 %v5855
        %v7320 = vunpack.c.h.s8.bf16 %v5832
        %v7321 = vunpack.c.h.s8.bf16 %v5833
        %v7322 = vunpack.c.h.s8.bf16 %v5834
        %v7323 = vunpack.c.h.s8.bf16 %v5835
        %v7324 = vunpack.c.h.s8.bf16 %v5836
        %v7325 = vunpack.c.h.s8.bf16 %v5837
        %v7326 = vunpack.c.h.s8.bf16 %v5838
        %v7327 = vunpack.c.h.s8.bf16 %v5839
        %v7328 = vunpack.c.h.s8.bf16 %v5840
        %v7329 = vunpack.c.h.s8.bf16 %v5841
        %v7330 = vunpack.c.h.s8.bf16 %v5842
        %v7331 = vunpack.c.h.s8.bf16 %v5843
        %v7332 = vunpack.c.h.s8.bf16 %v5844
        %v7333 = vunpack.c.h.s8.bf16 %v5845
        %v7334 = vunpack.c.h.s8.bf16 %v5846
        %v7335 = vunpack.c.h.s8.bf16 %v5847
        %v7336 = vunpack.c.h.s8.bf16 %v5848
        %v7337 = vunpack.c.h.s8.bf16 %v5849
        %v7338 = vunpack.c.h.s8.bf16 %v5850
        %v7339 = vunpack.c.h.s8.bf16 %v5851
        %v7340 = vunpack.c.h.s8.bf16 %v5852
        %v7341 = vunpack.c.h.s8.bf16 %v5853
        %v7342 = vunpack.c.h.s8.bf16 %v5854
        %v7343 = vunpack.c.h.s8.bf16 %v5855
        %v7344 = vunpack.c.l.s8.bf16 %v5856
        %v7345 = vunpack.c.l.s8.bf16 %v5857
        %v7346 = vunpack.c.l.s8.bf16 %v5858
        %v7347 = vunpack.c.l.s8.bf16 %v5859
        %v7348 = vunpack.c.l.s8.bf16 %v5860
        %v7349 = vunpack.c.l.s8.bf16 %v5861
        %v7350 = vunpack.c.l.s8.bf16 %v5862
        %v7351 = vunpack.c.l.s8.bf16 %v5863
        %v7352 = vunpack.c.l.s8.bf16 %v5864
        %v7353 = vunpack.c.l.s8.bf16 %v5865
        %v7354 = vunpack.c.l.s8.bf16 %v5866
        %v7355 = vunpack.c.l.s8.bf16 %v5867
        %v7356 = vunpack.c.l.s8.bf16 %v5868
        %v7357 = vunpack.c.l.s8.bf16 %v5869
        %v7358 = vunpack.c.l.s8.bf16 %v5870
        %v7359 = vunpack.c.l.s8.bf16 %v5871
        %v7360 = vunpack.c.l.s8.bf16 %v5872
        %v7361 = vunpack.c.l.s8.bf16 %v5873
        %v7362 = vunpack.c.l.s8.bf16 %v5874
        %v7363 = vunpack.c.l.s8.bf16 %v5875
        %v7364 = vunpack.c.l.s8.bf16 %v5876
        %v7365 = vunpack.c.l.s8.bf16 %v5877
        %v7366 = vunpack.c.l.s8.bf16 %v5878
        %v7367 = vunpack.c.l.s8.bf16 %v5879
        %v7368 = vunpack.c.h.s8.bf16 %v5856
        %v7369 = vunpack.c.h.s8.bf16 %v5857
        %v7370 = vunpack.c.h.s8.bf16 %v5858
        %v7371 = vunpack.c.h.s8.bf16 %v5859
        %v7372 = vunpack.c.h.s8.bf16 %v5860
        %v7373 = vunpack.c.h.s8.bf16 %v5861
        %v7374 = vunpack.c.h.s8.bf16 %v5862
        %v7375 = vunpack.c.h.s8.bf16 %v5863
        %v7376 = vunpack.c.h.s8.bf16 %v5864
        %v7377 = vunpack.c.h.s8.bf16 %v5865
        %v7378 = vunpack.c.h.s8.bf16 %v5866
        %v7379 = vunpack.c.h.s8.bf16 %v5867
        %v7380 = vunpack.c.h.s8.bf16 %v5868
        %v7381 = vunpack.c.h.s8.bf16 %v5869
        %v7382 = vunpack.c.h.s8.bf16 %v5870
        %v7383 = vunpack.c.h.s8.bf16 %v5871
        %v7384 = vunpack.c.h.s8.bf16 %v5872
        %v7385 = vunpack.c.h.s8.bf16 %v5873
        %v7386 = vunpack.c.h.s8.bf16 %v5874
        %v7387 = vunpack.c.h.s8.bf16 %v5875
        %v7388 = vunpack.c.h.s8.bf16 %v5876
        %v7389 = vunpack.c.h.s8.bf16 %v5877
        %v7390 = vunpack.c.h.s8.bf16 %v5878
        %v7391 = vunpack.c.h.s8.bf16 %v5879
        %v7392 = vunpack.c.l.s8.bf16 %v5880
        %v7393 = vunpack.c.l.s8.bf16 %v5881
        %v7394 = vunpack.c.l.s8.bf16 %v5882
        %v7395 = vunpack.c.l.s8.bf16 %v5883
        %v7396 = vunpack.c.l.s8.bf16 %v5884
        %v7397 = vunpack.c.l.s8.bf16 %v5885
        %v7398 = vunpack.c.l.s8.bf16 %v5886
        %v7399 = vunpack.c.l.s8.bf16 %v5887
        %v7400 = vunpack.c.l.s8.bf16 %v5888
        %v7401 = vunpack.c.l.s8.bf16 %v5889
        %v7402 = vunpack.c.l.s8.bf16 %v5890
        %v7403 = vunpack.c.l.s8.bf16 %v5891
        %v7404 = vunpack.c.l.s8.bf16 %v5892
        %v7405 = vunpack.c.l.s8.bf16 %v5893
        %v7406 = vunpack.c.l.s8.bf16 %v5894
        %v7407 = vunpack.c.l.s8.bf16 %v5895
        %v7408 = vunpack.c.l.s8.bf16 %v5896
        %v7409 = vunpack.c.l.s8.bf16 %v5897
        %v7410 = vunpack.c.l.s8.bf16 %v5898
        %v7411 = vunpack.c.l.s8.bf16 %v5899
        %v7412 = vunpack.c.l.s8.bf16 %v5900
        %v7413 = vunpack.c.l.s8.bf16 %v5901
        %v7414 = vunpack.c.l.s8.bf16 %v5902
        %v7415 = vunpack.c.l.s8.bf16 %v5903
        %v7416 = vunpack.c.h.s8.bf16 %v5880
        %v7417 = vunpack.c.h.s8.bf16 %v5881
        %v7418 = vunpack.c.h.s8.bf16 %v5882
        %v7419 = vunpack.c.h.s8.bf16 %v5883
        %v7420 = vunpack.c.h.s8.bf16 %v5884
        %v7421 = vunpack.c.h.s8.bf16 %v5885
        %v7422 = vunpack.c.h.s8.bf16 %v5886
        %v7423 = vunpack.c.h.s8.bf16 %v5887
        %v7424 = vunpack.c.h.s8.bf16 %v5888
        %v7425 = vunpack.c.h.s8.bf16 %v5889
        %v7426 = vunpack.c.h.s8.bf16 %v5890
        %v7427 = vunpack.c.h.s8.bf16 %v5891
        %v7428 = vunpack.c.h.s8.bf16 %v5892
        %v7429 = vunpack.c.h.s8.bf16 %v5893
        %v7430 = vunpack.c.h.s8.bf16 %v5894
        %v7431 = vunpack.c.h.s8.bf16 %v5895
        %v7432 = vunpack.c.h.s8.bf16 %v5896
        %v7433 = vunpack.c.h.s8.bf16 %v5897
        %v7434 = vunpack.c.h.s8.bf16 %v5898
        %v7435 = vunpack.c.h.s8.bf16 %v5899
        %v7436 = vunpack.c.h.s8.bf16 %v5900
        %v7437 = vunpack.c.h.s8.bf16 %v5901
        %v7438 = vunpack.c.h.s8.bf16 %v5902
        %v7439 = vunpack.c.h.s8.bf16 %v5903
        %7440 = vmatprep.subr.bf16.mxu0 %v6073
        %7441 = vmatpush1.bf16.msra.mxu0 %v6072
        %7442 = vmatprep.subr.bf16.mxu0 %v6049
        %7443 = vmatpush1.bf16.msra.mxu0 %v6048
        %7444 = vmatprep.subr.bf16.mxu0 %v6025
        %7445 = vmatpush1.bf16.msra.mxu0 %v6024
        %7446 = vmatprep.subr.bf16.mxu0 %v6001
        %7447 = vmatpush1.bf16.msra.mxu0 %v6000
        %7448 = vmatprep.subr.bf16.mxu0 %v5977
        %7449 = vmatpush1.bf16.msra.mxu0 %v5976
        %7450 = vmatprep.subr.bf16.mxu0 %v5953
        %7451 = vmatpush1.bf16.msra.mxu0 %v5952
        %7452 = vmatprep.subr.bf16.mxu0 %v5929
        %7453 = vmatpush1.bf16.msra.mxu0 %v5928
        %7454 = vmatprep.subr.bf16.mxu0 %v5905
        %7455 = vmatpush1.bf16.msra.mxu0 %v5904
        %7456 = vmatprep.subr.bf16.mxu0 %v6265
        %7457 = vmatpush2.bf16.msra.mxu0 %v6264
        %7458 = vmatprep.subr.bf16.mxu0 %v6241
        %7459 = vmatpush2.bf16.msra.mxu0 %v6240
        %7460 = vmatprep.subr.bf16.mxu0 %v6217
        %7461 = vmatpush2.bf16.msra.mxu0 %v6216
        %7462 = vmatprep.subr.bf16.mxu0 %v6193
        %7463 = vmatpush2.bf16.msra.mxu0 %v6192
        %7464 = vmatprep.subr.bf16.mxu0 %v6169
        %7465 = vmatpush2.bf16.msra.mxu0 %v6168
        %7466 = vmatprep.subr.bf16.mxu0 %v6145
        %7467 = vmatpush2.bf16.msra.mxu0 %v6144
        %7468 = vmatprep.subr.bf16.mxu0 %v6121
        %7469 = vmatpush2.bf16.msra.mxu0 %v6120
        %7470 = vmatprep.subr.bf16.mxu0 %v6097
        %7471 = vmatpush2.bf16.msra.mxu0 %v6096
        %7472 = vmatprep.mubr.bf16.mxu0 %v5129
        %7473 = vmatmul.mubr.bf16.gmra.mxu0 %v5128
        %v7474 = vpop.f32.mrf.mxu0
        %v7475 = vadd.f32 0.0, %v7474
        %v7476 = vpop.f32.mrf.mxu0
        %v7477 = vadd.f32 0.0, %v7476
        %v7478 = vpop.f32.mrf.mxu0
        %v7479 = vpop.f32.mrf.mxu0
        %7480 = vdwg.mxu0
        %7481 = vmatprep.subr.bf16.mxu0 %v6457
        %7482 = vmatpush1.bf16.msra.mxu0 %v6456
        %7483 = vmatprep.subr.bf16.mxu0 %v6433
        %7484 = vmatpush1.bf16.msra.mxu0 %v6432
        %7485 = vmatprep.subr.bf16.mxu0 %v6409
        %7486 = vmatpush1.bf16.msra.mxu0 %v6408
        %7487 = vmatprep.subr.bf16.mxu0 %v6385
        %7488 = vmatpush1.bf16.msra.mxu0 %v6384
        %7489 = vmatprep.subr.bf16.mxu0 %v6361
        %7490 = vmatpush1.bf16.msra.mxu0 %v6360
        %7491 = vmatprep.subr.bf16.mxu0 %v6337
        %7492 = vmatpush1.bf16.msra.mxu0 %v6336
        %7493 = vmatprep.subr.bf16.mxu0 %v6313
        %7494 = vmatpush1.bf16.msra.mxu0 %v6312
        %7495 = vmatprep.subr.bf16.mxu0 %v6289
        %7496 = vmatpush1.bf16.msra.mxu0 %v6288
        %7497 = vmatprep.subr.bf16.mxu0 %v6649
        %7498 = vmatpush2.bf16.msra.mxu0 %v6648
        %7499 = vmatprep.subr.bf16.mxu0 %v6625
        %7500 = vmatpush2.bf16.msra.mxu0 %v6624
        %7501 = vmatprep.subr.bf16.mxu0 %v6601
        %7502 = vmatpush2.bf16.msra.mxu0 %v6600
        %7503 = vmatprep.subr.bf16.mxu0 %v6577
        %7504 = vmatpush2.bf16.msra.mxu0 %v6576
        %7505 = vmatprep.subr.bf16.mxu0 %v6553
        %7506 = vmatpush2.bf16.msra.mxu0 %v6552
        %7507 = vmatprep.subr.bf16.mxu0 %v6529
        %7508 = vmatpush2.bf16.msra.mxu0 %v6528
        %7509 = vmatprep.subr.bf16.mxu0 %v6505
        %7510 = vmatpush2.bf16.msra.mxu0 %v6504
        %7511 = vmatprep.subr.bf16.mxu0 %v6481
        %7512 = vmatpush2.bf16.msra.mxu0 %v6480
        %7513 = vmatprep.mubr.bf16.mxu0 %v5131
        %7514 = vmatmul.mubr.bf16.gmra.mxu0 %v5130
        %v7515 = vpop.f32.mrf.mxu0
        %v7516 = vadd.f32 %v7475, %v7515
        %v7517 = vpop.f32.mrf.mxu0
        %v7518 = vadd.f32 %v7477, %v7517
        %v7519 = vpop.f32.mrf.mxu0
        %v7520 = vpop.f32.mrf.mxu0
        %7521 = vdwg.mxu0
        %7522 = vmatprep.subr.bf16.mxu0 %v6841
        %7523 = vmatpush1.bf16.msra.mxu0 %v6840
        %7524 = vmatprep.subr.bf16.mxu0 %v6817
        %7525 = vmatpush1.bf16.msra.mxu0 %v6816
        %7526 = vmatprep.subr.bf16.mxu0 %v6793
        %7527 = vmatpush1.bf16.msra.mxu0 %v6792
        %7528 = vmatprep.subr.bf16.mxu0 %v6769
        %7529 = vmatpush1.bf16.msra.mxu0 %v6768
        %7530 = vmatprep.subr.bf16.mxu0 %v6745
        %7531 = vmatpush1.bf16.msra.mxu0 %v6744
        %7532 = vmatprep.subr.bf16.mxu0 %v6721
        %7533 = vmatpush1.bf16.msra.mxu0 %v6720
        %7534 = vmatprep.subr.bf16.mxu0 %v6697
        %7535 = vmatpush1.bf16.msra.mxu0 %v6696
        %7536 = vmatprep.subr.bf16.mxu0 %v6673
        %7537 = vmatpush1.bf16.msra.mxu0 %v6672
        %7538 = vmatprep.subr.bf16.mxu0 %v7033
        %7539 = vmatpush2.bf16.msra.mxu0 %v7032
        %7540 = vmatprep.subr.bf16.mxu0 %v7009
        %7541 = vmatpush2.bf16.msra.mxu0 %v7008
        %7542 = vmatprep.subr.bf16.mxu0 %v6985
        %7543 = vmatpush2.bf16.msra.mxu0 %v6984
        %7544 = vmatprep.subr.bf16.mxu0 %v6961
        %7545 = vmatpush2.bf16.msra.mxu0 %v6960
        %7546 = vmatprep.subr.bf16.mxu0 %v6937
        %7547 = vmatpush2.bf16.msra.mxu0 %v6936
        %7548 = vmatprep.subr.bf16.mxu0 %v6913
        %7549 = vmatpush2.bf16.msra.mxu0 %v6912
        %7550 = vmatprep.subr.bf16.mxu0 %v6889
        %7551 = vmatpush2.bf16.msra.mxu0 %v6888
        %7552 = vmatprep.subr.bf16.mxu0 %v6865
        %7553 = vmatpush2.bf16.msra.mxu0 %v6864
        %7554 = vmatprep.mubr.bf16.mxu0 %v5133
        %7555 = vmatmul.mubr.bf16.gmra.mxu0 %v5132
        %v7556 = vpop.f32.mrf.mxu0
        %v7557 = vadd.f32 %v7516, %v7556
        %v7558 = vpop.f32.mrf.mxu0
        %v7559 = vadd.f32 %v7518, %v7558
        %v7560 = vpop.f32.mrf.mxu0
        %v7561 = vpop.f32.mrf.mxu0
        %7562 = vdwg.mxu0
        %7563 = vmatprep.subr.bf16.mxu0 %v7225
        %7564 = vmatpush1.bf16.msra.mxu0 %v7224
        %7565 = vmatprep.subr.bf16.mxu0 %v7201
        %7566 = vmatpush1.bf16.msra.mxu0 %v7200
        %7567 = vmatprep.subr.bf16.mxu0 %v7177
        %7568 = vmatpush1.bf16.msra.mxu0 %v7176
        %7569 = vmatprep.subr.bf16.mxu0 %v7153
        %7570 = vmatpush1.bf16.msra.mxu0 %v7152
        %7571 = vmatprep.subr.bf16.mxu0 %v7129
        %7572 = vmatpush1.bf16.msra.mxu0 %v7128
        %7573 = vmatprep.subr.bf16.mxu0 %v7105
        %7574 = vmatpush1.bf16.msra.mxu0 %v7104
        %7575 = vmatprep.subr.bf16.mxu0 %v7081
        %7576 = vmatpush1.bf16.msra.mxu0 %v7080
        %7577 = vmatprep.subr.bf16.mxu0 %v7057
        %7578 = vmatpush1.bf16.msra.mxu0 %v7056
        %7579 = vmatprep.subr.bf16.mxu0 %v7417
        %7580 = vmatpush2.bf16.msra.mxu0 %v7416
        %7581 = vmatprep.subr.bf16.mxu0 %v7393
        %7582 = vmatpush2.bf16.msra.mxu0 %v7392
        %7583 = vmatprep.subr.bf16.mxu0 %v7369
        %7584 = vmatpush2.bf16.msra.mxu0 %v7368
        %7585 = vmatprep.subr.bf16.mxu0 %v7345
        %7586 = vmatpush2.bf16.msra.mxu0 %v7344
        %7587 = vmatprep.subr.bf16.mxu0 %v7321
        %7588 = vmatpush2.bf16.msra.mxu0 %v7320
        %7589 = vmatprep.subr.bf16.mxu0 %v7297
        %7590 = vmatpush2.bf16.msra.mxu0 %v7296
        %7591 = vmatprep.subr.bf16.mxu0 %v7273
        %7592 = vmatpush2.bf16.msra.mxu0 %v7272
        %7593 = vmatprep.subr.bf16.mxu0 %v7249
        %7594 = vmatpush2.bf16.msra.mxu0 %v7248
        %7595 = vmatprep.mubr.bf16.mxu0 %v5135
        %7596 = vmatmul.mubr.bf16.gmra.mxu0 %v5134
        %v7597 = vpop.f32.mrf.mxu0
        %v7598 = vadd.f32 %v7557, %v7597
        %v7599 = vpop.f32.mrf.mxu0
        %v7600 = vadd.f32 %v7559, %v7599
        %v7601 = vpop.f32.mrf.mxu0
        %v7602 = vpop.f32.mrf.mxu0
        %7603 = vdwg.mxu0
        %7604 = vmatprep.subr.bf16.mxu0 %v6075
        %7605 = vmatpush1.bf16.msra.mxu0 %v6074
        %7606 = vmatprep.subr.bf16.mxu0 %v6051
        %7607 = vmatpush1.bf16.msra.mxu0 %v6050
        %7608 = vmatprep.subr.bf16.mxu0 %v6027
        %7609 = vmatpush1.bf16.msra.mxu0 %v6026
        %7610 = vmatprep.subr.bf16.mxu0 %v6003
        %7611 = vmatpush1.bf16.msra.mxu0 %v6002
        %7612 = vmatprep.subr.bf16.mxu0 %v5979
        %7613 = vmatpush1.bf16.msra.mxu0 %v5978
        %7614 = vmatprep.subr.bf16.mxu0 %v5955
        %7615 = vmatpush1.bf16.msra.mxu0 %v5954
        %7616 = vmatprep.subr.bf16.mxu0 %v5931
        %7617 = vmatpush1.bf16.msra.mxu0 %v5930
        %7618 = vmatprep.subr.bf16.mxu0 %v5907
        %7619 = vmatpush1.bf16.msra.mxu0 %v5906
        %7620 = vmatprep.subr.bf16.mxu0 %v6267
        %7621 = vmatpush2.bf16.msra.mxu0 %v6266
        %7622 = vmatprep.subr.bf16.mxu0 %v6243
        %7623 = vmatpush2.bf16.msra.mxu0 %v6242
        %7624 = vmatprep.subr.bf16.mxu0 %v6219
        %7625 = vmatpush2.bf16.msra.mxu0 %v6218
        %7626 = vmatprep.subr.bf16.mxu0 %v6195
        %7627 = vmatpush2.bf16.msra.mxu0 %v6194
        %7628 = vmatprep.subr.bf16.mxu0 %v6171
        %7629 = vmatpush2.bf16.msra.mxu0 %v6170
        %7630 = vmatprep.subr.bf16.mxu0 %v6147
        %7631 = vmatpush2.bf16.msra.mxu0 %v6146
        %7632 = vmatprep.subr.bf16.mxu0 %v6123
        %7633 = vmatpush2.bf16.msra.mxu0 %v6122
        %7634 = vmatprep.subr.bf16.mxu0 %v6099
        %7635 = vmatpush2.bf16.msra.mxu0 %v6098
        %7636 = vmatprep.mubr.bf16.mxu0 %v5129
        %7637 = vmatmul.mubr.bf16.gmra.mxu0 %v5128
        %v7638 = vpop.f32.mrf.mxu0
        %v7639 = vadd.f32 0.0, %v7638
        %v7640 = vpop.f32.mrf.mxu0
        %v7641 = vadd.f32 0.0, %v7640
        %v7642 = vpop.f32.mrf.mxu0
        %v7643 = vpop.f32.mrf.mxu0
        %7644 = vdwg.mxu0
        %7645 = vmatprep.subr.bf16.mxu0 %v6459
        %7646 = vmatpush1.bf16.msra.mxu0 %v6458
        %7647 = vmatprep.subr.bf16.mxu0 %v6435
        %7648 = vmatpush1.bf16.msra.mxu0 %v6434
        %7649 = vmatprep.subr.bf16.mxu0 %v6411
        %7650 = vmatpush1.bf16.msra.mxu0 %v6410
        %7651 = vmatprep.subr.bf16.mxu0 %v6387
        %7652 = vmatpush1.bf16.msra.mxu0 %v6386
        %7653 = vmatprep.subr.bf16.mxu0 %v6363
        %7654 = vmatpush1.bf16.msra.mxu0 %v6362
        %7655 = vmatprep.subr.bf16.mxu0 %v6339
        %7656 = vmatpush1.bf16.msra.mxu0 %v6338
        %7657 = vmatprep.subr.bf16.mxu0 %v6315
        %7658 = vmatpush1.bf16.msra.mxu0 %v6314
        %7659 = vmatprep.subr.bf16.mxu0 %v6291
        %7660 = vmatpush1.bf16.msra.mxu0 %v6290
        %7661 = vmatprep.subr.bf16.mxu0 %v6651
        %7662 = vmatpush2.bf16.msra.mxu0 %v6650
        %7663 = vmatprep.subr.bf16.mxu0 %v6627
        %7664 = vmatpush2.bf16.msra.mxu0 %v6626
        %7665 = vmatprep.subr.bf16.mxu0 %v6603
        %7666 = vmatpush2.bf16.msra.mxu0 %v6602
        %7667 = vmatprep.subr.bf16.mxu0 %v6579
        %7668 = vmatpush2.bf16.msra.mxu0 %v6578
        %7669 = vmatprep.subr.bf16.mxu0 %v6555
        %7670 = vmatpush2.bf16.msra.mxu0 %v6554
        %7671 = vmatprep.subr.bf16.mxu0 %v6531
        %7672 = vmatpush2.bf16.msra.mxu0 %v6530
        %7673 = vmatprep.subr.bf16.mxu0 %v6507
        %7674 = vmatpush2.bf16.msra.mxu0 %v6506
        %7675 = vmatprep.subr.bf16.mxu0 %v6483
        %7676 = vmatpush2.bf16.msra.mxu0 %v6482
        %7677 = vmatprep.mubr.bf16.mxu0 %v5131
        %7678 = vmatmul.mubr.bf16.gmra.mxu0 %v5130
        %v7679 = vpop.f32.mrf.mxu0
        %v7680 = vadd.f32 %v7639, %v7679
        %v7681 = vpop.f32.mrf.mxu0
        %v7682 = vadd.f32 %v7641, %v7681
        %v7683 = vpop.f32.mrf.mxu0
        %v7684 = vpop.f32.mrf.mxu0
        %7685 = vdwg.mxu0
        %7686 = vmatprep.subr.bf16.mxu0 %v6843
        %7687 = vmatpush1.bf16.msra.mxu0 %v6842
        %7688 = vmatprep.subr.bf16.mxu0 %v6819
        %7689 = vmatpush1.bf16.msra.mxu0 %v6818
        %7690 = vmatprep.subr.bf16.mxu0 %v6795
        %7691 = vmatpush1.bf16.msra.mxu0 %v6794
        %7692 = vmatprep.subr.bf16.mxu0 %v6771
        %7693 = vmatpush1.bf16.msra.mxu0 %v6770
        %7694 = vmatprep.subr.bf16.mxu0 %v6747
        %7695 = vmatpush1.bf16.msra.mxu0 %v6746
        %7696 = vmatprep.subr.bf16.mxu0 %v6723
        %7697 = vmatpush1.bf16.msra.mxu0 %v6722
        %7698 = vmatprep.subr.bf16.mxu0 %v6699
        %7699 = vmatpush1.bf16.msra.mxu0 %v6698
        %7700 = vmatprep.subr.bf16.mxu0 %v6675
        %7701 = vmatpush1.bf16.msra.mxu0 %v6674
        %7702 = vmatprep.subr.bf16.mxu0 %v7035
        %7703 = vmatpush2.bf16.msra.mxu0 %v7034
        %7704 = vmatprep.subr.bf16.mxu0 %v7011
        %7705 = vmatpush2.bf16.msra.mxu0 %v7010
        %7706 = vmatprep.subr.bf16.mxu0 %v6987
        %7707 = vmatpush2.bf16.msra.mxu0 %v6986
        %7708 = vmatprep.subr.bf16.mxu0 %v6963
        %7709 = vmatpush2.bf16.msra.mxu0 %v6962
        %7710 = vmatprep.subr.bf16.mxu0 %v6939
        %7711 = vmatpush2.bf16.msra.mxu0 %v6938
        %7712 = vmatprep.subr.bf16.mxu0 %v6915
        %7713 = vmatpush2.bf16.msra.mxu0 %v6914
        %7714 = vmatprep.subr.bf16.mxu0 %v6891
        %7715 = vmatpush2.bf16.msra.mxu0 %v6890
        %7716 = vmatprep.subr.bf16.mxu0 %v6867
        %7717 = vmatpush2.bf16.msra.mxu0 %v6866
        %7718 = vmatprep.mubr.bf16.mxu0 %v5133
        %7719 = vmatmul.mubr.bf16.gmra.mxu0 %v5132
        %v7720 = vpop.f32.mrf.mxu0
        %v7721 = vadd.f32 %v7680, %v7720
        %v7722 = vpop.f32.mrf.mxu0
        %v7723 = vadd.f32 %v7682, %v7722
        %v7724 = vpop.f32.mrf.mxu0
        %v7725 = vpop.f32.mrf.mxu0
        %7726 = vdwg.mxu0
        %7727 = vmatprep.subr.bf16.mxu0 %v7227
        %7728 = vmatpush1.bf16.msra.mxu0 %v7226
        %7729 = vmatprep.subr.bf16.mxu0 %v7203
        %7730 = vmatpush1.bf16.msra.mxu0 %v7202
        %7731 = vmatprep.subr.bf16.mxu0 %v7179
        %7732 = vmatpush1.bf16.msra.mxu0 %v7178
        %7733 = vmatprep.subr.bf16.mxu0 %v7155
        %7734 = vmatpush1.bf16.msra.mxu0 %v7154
        %7735 = vmatprep.subr.bf16.mxu0 %v7131
        %7736 = vmatpush1.bf16.msra.mxu0 %v7130
        %7737 = vmatprep.subr.bf16.mxu0 %v7107
        %7738 = vmatpush1.bf16.msra.mxu0 %v7106
        %7739 = vmatprep.subr.bf16.mxu0 %v7083
        %7740 = vmatpush1.bf16.msra.mxu0 %v7082
        %7741 = vmatprep.subr.bf16.mxu0 %v7059
        %7742 = vmatpush1.bf16.msra.mxu0 %v7058
        %7743 = vmatprep.subr.bf16.mxu0 %v7419
        %7744 = vmatpush2.bf16.msra.mxu0 %v7418
        %7745 = vmatprep.subr.bf16.mxu0 %v7395
        %7746 = vmatpush2.bf16.msra.mxu0 %v7394
        %7747 = vmatprep.subr.bf16.mxu0 %v7371
        %7748 = vmatpush2.bf16.msra.mxu0 %v7370
        %7749 = vmatprep.subr.bf16.mxu0 %v7347
        %7750 = vmatpush2.bf16.msra.mxu0 %v7346
        %7751 = vmatprep.subr.bf16.mxu0 %v7323
        %7752 = vmatpush2.bf16.msra.mxu0 %v7322
        %7753 = vmatprep.subr.bf16.mxu0 %v7299
        %7754 = vmatpush2.bf16.msra.mxu0 %v7298
        %7755 = vmatprep.subr.bf16.mxu0 %v7275
        %7756 = vmatpush2.bf16.msra.mxu0 %v7274
        %7757 = vmatprep.subr.bf16.mxu0 %v7251
        %7758 = vmatpush2.bf16.msra.mxu0 %v7250
        %7759 = vmatprep.mubr.bf16.mxu0 %v5135
        %7760 = vmatmul.mubr.bf16.gmra.mxu0 %v5134
        %v7761 = vpop.f32.mrf.mxu0
        %v7762 = vadd.f32 %v7721, %v7761
        %v7763 = vpop.f32.mrf.mxu0
        %v7764 = vadd.f32 %v7723, %v7763
        %v7765 = vpop.f32.mrf.mxu0
        %v7766 = vpop.f32.mrf.mxu0
        %7767 = vdwg.mxu0
        %7768 = vmatprep.subr.bf16.mxu0 %v6077
        %7769 = vmatpush1.bf16.msra.mxu0 %v6076
        %7770 = vmatprep.subr.bf16.mxu0 %v6053
        %7771 = vmatpush1.bf16.msra.mxu0 %v6052
        %7772 = vmatprep.subr.bf16.mxu0 %v6029
        %7773 = vmatpush1.bf16.msra.mxu0 %v6028
        %7774 = vmatprep.subr.bf16.mxu0 %v6005
        %7775 = vmatpush1.bf16.msra.mxu0 %v6004
        %7776 = vmatprep.subr.bf16.mxu0 %v5981
        %7777 = vmatpush1.bf16.msra.mxu0 %v5980
        %7778 = vmatprep.subr.bf16.mxu0 %v5957
        %7779 = vmatpush1.bf16.msra.mxu0 %v5956
        %7780 = vmatprep.subr.bf16.mxu0 %v5933
        %7781 = vmatpush1.bf16.msra.mxu0 %v5932
        %7782 = vmatprep.subr.bf16.mxu0 %v5909
        %7783 = vmatpush1.bf16.msra.mxu0 %v5908
        %7784 = vmatprep.subr.bf16.mxu0 %v6269
        %7785 = vmatpush2.bf16.msra.mxu0 %v6268
        %7786 = vmatprep.subr.bf16.mxu0 %v6245
        %7787 = vmatpush2.bf16.msra.mxu0 %v6244
        %7788 = vmatprep.subr.bf16.mxu0 %v6221
        %7789 = vmatpush2.bf16.msra.mxu0 %v6220
        %7790 = vmatprep.subr.bf16.mxu0 %v6197
        %7791 = vmatpush2.bf16.msra.mxu0 %v6196
        %7792 = vmatprep.subr.bf16.mxu0 %v6173
        %7793 = vmatpush2.bf16.msra.mxu0 %v6172
        %7794 = vmatprep.subr.bf16.mxu0 %v6149
        %7795 = vmatpush2.bf16.msra.mxu0 %v6148
        %7796 = vmatprep.subr.bf16.mxu0 %v6125
        %7797 = vmatpush2.bf16.msra.mxu0 %v6124
        %7798 = vmatprep.subr.bf16.mxu0 %v6101
        %7799 = vmatpush2.bf16.msra.mxu0 %v6100
        %7800 = vmatprep.mubr.bf16.mxu0 %v5129
        %7801 = vmatmul.mubr.bf16.gmra.mxu0 %v5128
        %v7802 = vpop.f32.mrf.mxu0
        %v7803 = vadd.f32 0.0, %v7802
        %v7804 = vpop.f32.mrf.mxu0
        %v7805 = vadd.f32 0.0, %v7804
        %v7806 = vpop.f32.mrf.mxu0
        %v7807 = vpop.f32.mrf.mxu0
        %7808 = vdwg.mxu0
        %7809 = vmatprep.subr.bf16.mxu0 %v6461
        %7810 = vmatpush1.bf16.msra.mxu0 %v6460
        %7811 = vmatprep.subr.bf16.mxu0 %v6437
        %7812 = vmatpush1.bf16.msra.mxu0 %v6436
        %7813 = vmatprep.subr.bf16.mxu0 %v6413
        %7814 = vmatpush1.bf16.msra.mxu0 %v6412
        %7815 = vmatprep.subr.bf16.mxu0 %v6389
        %7816 = vmatpush1.bf16.msra.mxu0 %v6388
        %7817 = vmatprep.subr.bf16.mxu0 %v6365
        %7818 = vmatpush1.bf16.msra.mxu0 %v6364
        %7819 = vmatprep.subr.bf16.mxu0 %v6341
        %7820 = vmatpush1.bf16.msra.mxu0 %v6340
        %7821 = vmatprep.subr.bf16.mxu0 %v6317
        %7822 = vmatpush1.bf16.msra.mxu0 %v6316
        %7823 = vmatprep.subr.bf16.mxu0 %v6293
        %7824 = vmatpush1.bf16.msra.mxu0 %v6292
        %7825 = vmatprep.subr.bf16.mxu0 %v6653
        %7826 = vmatpush2.bf16.msra.mxu0 %v6652
        %7827 = vmatprep.subr.bf16.mxu0 %v6629
        %7828 = vmatpush2.bf16.msra.mxu0 %v6628
        %7829 = vmatprep.subr.bf16.mxu0 %v6605
        %7830 = vmatpush2.bf16.msra.mxu0 %v6604
        %7831 = vmatprep.subr.bf16.mxu0 %v6581
        %7832 = vmatpush2.bf16.msra.mxu0 %v6580
        %7833 = vmatprep.subr.bf16.mxu0 %v6557
        %7834 = vmatpush2.bf16.msra.mxu0 %v6556
        %7835 = vmatprep.subr.bf16.mxu0 %v6533
        %7836 = vmatpush2.bf16.msra.mxu0 %v6532
        %7837 = vmatprep.subr.bf16.mxu0 %v6509
        %7838 = vmatpush2.bf16.msra.mxu0 %v6508
        %7839 = vmatprep.subr.bf16.mxu0 %v6485
        %7840 = vmatpush2.bf16.msra.mxu0 %v6484
        %7841 = vmatprep.mubr.bf16.mxu0 %v5131
        %7842 = vmatmul.mubr.bf16.gmra.mxu0 %v5130
        %v7843 = vpop.f32.mrf.mxu0
        %v7844 = vadd.f32 %v7803, %v7843
        %v7845 = vpop.f32.mrf.mxu0
        %v7846 = vadd.f32 %v7805, %v7845
        %v7847 = vpop.f32.mrf.mxu0
        %v7848 = vpop.f32.mrf.mxu0
        %7849 = vdwg.mxu0
        %7850 = vmatprep.subr.bf16.mxu0 %v6845
        %7851 = vmatpush1.bf16.msra.mxu0 %v6844
        %7852 = vmatprep.subr.bf16.mxu0 %v6821
        %7853 = vmatpush1.bf16.msra.mxu0 %v6820
        %7854 = vmatprep.subr.bf16.mxu0 %v6797
        %7855 = vmatpush1.bf16.msra.mxu0 %v6796
        %7856 = vmatprep.subr.bf16.mxu0 %v6773
        %7857 = vmatpush1.bf16.msra.mxu0 %v6772
        %7858 = vmatprep.subr.bf16.mxu0 %v6749
        %7859 = vmatpush1.bf16.msra.mxu0 %v6748
        %7860 = vmatprep.subr.bf16.mxu0 %v6725
        %7861 = vmatpush1.bf16.msra.mxu0 %v6724
        %7862 = vmatprep.subr.bf16.mxu0 %v6701
        %7863 = vmatpush1.bf16.msra.mxu0 %v6700
        %7864 = vmatprep.subr.bf16.mxu0 %v6677
        %7865 = vmatpush1.bf16.msra.mxu0 %v6676
        %7866 = vmatprep.subr.bf16.mxu0 %v7037
        %7867 = vmatpush2.bf16.msra.mxu0 %v7036
        %7868 = vmatprep.subr.bf16.mxu0 %v7013
        %7869 = vmatpush2.bf16.msra.mxu0 %v7012
        %7870 = vmatprep.subr.bf16.mxu0 %v6989
        %7871 = vmatpush2.bf16.msra.mxu0 %v6988
        %7872 = vmatprep.subr.bf16.mxu0 %v6965
        %7873 = vmatpush2.bf16.msra.mxu0 %v6964
        %7874 = vmatprep.subr.bf16.mxu0 %v6941
        %7875 = vmatpush2.bf16.msra.mxu0 %v6940
        %7876 = vmatprep.subr.bf16.mxu0 %v6917
        %7877 = vmatpush2.bf16.msra.mxu0 %v6916
        %7878 = vmatprep.subr.bf16.mxu0 %v6893
        %7879 = vmatpush2.bf16.msra.mxu0 %v6892
        %7880 = vmatprep.subr.bf16.mxu0 %v6869
        %7881 = vmatpush2.bf16.msra.mxu0 %v6868
        %7882 = vmatprep.mubr.bf16.mxu0 %v5133
        %7883 = vmatmul.mubr.bf16.gmra.mxu0 %v5132
        %v7884 = vpop.f32.mrf.mxu0
        %v7885 = vadd.f32 %v7844, %v7884
        %v7886 = vpop.f32.mrf.mxu0
        %v7887 = vadd.f32 %v7846, %v7886
        %v7888 = vpop.f32.mrf.mxu0
        %v7889 = vpop.f32.mrf.mxu0
        %7890 = vdwg.mxu0
        %7891 = vmatprep.subr.bf16.mxu0 %v7229
        %7892 = vmatpush1.bf16.msra.mxu0 %v7228
        %7893 = vmatprep.subr.bf16.mxu0 %v7205
        %7894 = vmatpush1.bf16.msra.mxu0 %v7204
        %7895 = vmatprep.subr.bf16.mxu0 %v7181
        %7896 = vmatpush1.bf16.msra.mxu0 %v7180
        %7897 = vmatprep.subr.bf16.mxu0 %v7157
        %7898 = vmatpush1.bf16.msra.mxu0 %v7156
        %7899 = vmatprep.subr.bf16.mxu0 %v7133
        %7900 = vmatpush1.bf16.msra.mxu0 %v7132
        %7901 = vmatprep.subr.bf16.mxu0 %v7109
        %7902 = vmatpush1.bf16.msra.mxu0 %v7108
        %7903 = vmatprep.subr.bf16.mxu0 %v7085
        %7904 = vmatpush1.bf16.msra.mxu0 %v7084
        %7905 = vmatprep.subr.bf16.mxu0 %v7061
        %7906 = vmatpush1.bf16.msra.mxu0 %v7060
        %7907 = vmatprep.subr.bf16.mxu0 %v7421
        %7908 = vmatpush2.bf16.msra.mxu0 %v7420
        %7909 = vmatprep.subr.bf16.mxu0 %v7397
        %7910 = vmatpush2.bf16.msra.mxu0 %v7396
        %7911 = vmatprep.subr.bf16.mxu0 %v7373
        %7912 = vmatpush2.bf16.msra.mxu0 %v7372
        %7913 = vmatprep.subr.bf16.mxu0 %v7349
        %7914 = vmatpush2.bf16.msra.mxu0 %v7348
        %7915 = vmatprep.subr.bf16.mxu0 %v7325
        %7916 = vmatpush2.bf16.msra.mxu0 %v7324
        %7917 = vmatprep.subr.bf16.mxu0 %v7301
        %7918 = vmatpush2.bf16.msra.mxu0 %v7300
        %7919 = vmatprep.subr.bf16.mxu0 %v7277
        %7920 = vmatpush2.bf16.msra.mxu0 %v7276
        %7921 = vmatprep.subr.bf16.mxu0 %v7253
        %7922 = vmatpush2.bf16.msra.mxu0 %v7252
        %7923 = vmatprep.mubr.bf16.mxu0 %v5135
        %7924 = vmatmul.mubr.bf16.gmra.mxu0 %v5134
        %v7925 = vpop.f32.mrf.mxu0
        %v7926 = vadd.f32 %v7885, %v7925
        %v7927 = vpop.f32.mrf.mxu0
        %v7928 = vadd.f32 %v7887, %v7927
        %v7929 = vpop.f32.mrf.mxu0
        %v7930 = vpop.f32.mrf.mxu0
        %7931 = vdwg.mxu0
        %7932 = vmatprep.subr.bf16.mxu0 %v6079
        %7933 = vmatpush1.bf16.msra.mxu0 %v6078
        %7934 = vmatprep.subr.bf16.mxu0 %v6055
        %7935 = vmatpush1.bf16.msra.mxu0 %v6054
        %7936 = vmatprep.subr.bf16.mxu0 %v6031
        %7937 = vmatpush1.bf16.msra.mxu0 %v6030
        %7938 = vmatprep.subr.bf16.mxu0 %v6007
        %7939 = vmatpush1.bf16.msra.mxu0 %v6006
        %7940 = vmatprep.subr.bf16.mxu0 %v5983
        %7941 = vmatpush1.bf16.msra.mxu0 %v5982
        %7942 = vmatprep.subr.bf16.mxu0 %v5959
        %7943 = vmatpush1.bf16.msra.mxu0 %v5958
        %7944 = vmatprep.subr.bf16.mxu0 %v5935
        %7945 = vmatpush1.bf16.msra.mxu0 %v5934
        %7946 = vmatprep.subr.bf16.mxu0 %v5911
        %7947 = vmatpush1.bf16.msra.mxu0 %v5910
        %7948 = vmatprep.subr.bf16.mxu0 %v6271
        %7949 = vmatpush2.bf16.msra.mxu0 %v6270
        %7950 = vmatprep.subr.bf16.mxu0 %v6247
        %7951 = vmatpush2.bf16.msra.mxu0 %v6246
        %7952 = vmatprep.subr.bf16.mxu0 %v6223
        %7953 = vmatpush2.bf16.msra.mxu0 %v6222
        %7954 = vmatprep.subr.bf16.mxu0 %v6199
        %7955 = vmatpush2.bf16.msra.mxu0 %v6198
        %7956 = vmatprep.subr.bf16.mxu0 %v6175
        %7957 = vmatpush2.bf16.msra.mxu0 %v6174
        %7958 = vmatprep.subr.bf16.mxu0 %v6151
        %7959 = vmatpush2.bf16.msra.mxu0 %v6150
        %7960 = vmatprep.subr.bf16.mxu0 %v6127
        %7961 = vmatpush2.bf16.msra.mxu0 %v6126
        %7962 = vmatprep.subr.bf16.mxu0 %v6103
        %7963 = vmatpush2.bf16.msra.mxu0 %v6102
        %7964 = vmatprep.mubr.bf16.mxu0 %v5129
        %7965 = vmatmul.mubr.bf16.gmra.mxu0 %v5128
        %v7966 = vpop.f32.mrf.mxu0
        %v7967 = vadd.f32 0.0, %v7966
        %v7968 = vpop.f32.mrf.mxu0
        %v7969 = vadd.f32 0.0, %v7968
        %v7970 = vpop.f32.mrf.mxu0
        %v7971 = vpop.f32.mrf.mxu0
        %7972 = vdwg.mxu0
        %7973 = vmatprep.subr.bf16.mxu0 %v6463
        %7974 = vmatpush1.bf16.msra.mxu0 %v6462
        %7975 = vmatprep.subr.bf16.mxu0 %v6439
        %7976 = vmatpush1.bf16.msra.mxu0 %v6438
        %7977 = vmatprep.subr.bf16.mxu0 %v6415
        %7978 = vmatpush1.bf16.msra.mxu0 %v6414
        %7979 = vmatprep.subr.bf16.mxu0 %v6391
        %7980 = vmatpush1.bf16.msra.mxu0 %v6390
        %7981 = vmatprep.subr.bf16.mxu0 %v6367
        %7982 = vmatpush1.bf16.msra.mxu0 %v6366
        %7983 = vmatprep.subr.bf16.mxu0 %v6343
        %7984 = vmatpush1.bf16.msra.mxu0 %v6342
        %7985 = vmatprep.subr.bf16.mxu0 %v6319
        %7986 = vmatpush1.bf16.msra.mxu0 %v6318
        %7987 = vmatprep.subr.bf16.mxu0 %v6295
        %7988 = vmatpush1.bf16.msra.mxu0 %v6294
        %7989 = vmatprep.subr.bf16.mxu0 %v6655
        %7990 = vmatpush2.bf16.msra.mxu0 %v6654
        %7991 = vmatprep.subr.bf16.mxu0 %v6631
        %7992 = vmatpush2.bf16.msra.mxu0 %v6630
        %7993 = vmatprep.subr.bf16.mxu0 %v6607
        %7994 = vmatpush2.bf16.msra.mxu0 %v6606
        %7995 = vmatprep.subr.bf16.mxu0 %v6583
        %7996 = vmatpush2.bf16.msra.mxu0 %v6582
        %7997 = vmatprep.subr.bf16.mxu0 %v6559
        %7998 = vmatpush2.bf16.msra.mxu0 %v6558
        %7999 = vmatprep.subr.bf16.mxu0 %v6535
        %8000 = vmatpush2.bf16.msra.mxu0 %v6534
        %8001 = vmatprep.subr.bf16.mxu0 %v6511
        %8002 = vmatpush2.bf16.msra.mxu0 %v6510
        %8003 = vmatprep.subr.bf16.mxu0 %v6487
        %8004 = vmatpush2.bf16.msra.mxu0 %v6486
        %8005 = vmatprep.mubr.bf16.mxu0 %v5131
        %8006 = vmatmul.mubr.bf16.gmra.mxu0 %v5130
        %v8007 = vpop.f32.mrf.mxu0
        %v8008 = vadd.f32 %v7967, %v8007
        %v8009 = vpop.f32.mrf.mxu0
        %v8010 = vadd.f32 %v7969, %v8009
        %v8011 = vpop.f32.mrf.mxu0
        %v8012 = vpop.f32.mrf.mxu0
        %8013 = vdwg.mxu0
        %8014 = vmatprep.subr.bf16.mxu0 %v6847
        %8015 = vmatpush1.bf16.msra.mxu0 %v6846
        %8016 = vmatprep.subr.bf16.mxu0 %v6823
        %8017 = vmatpush1.bf16.msra.mxu0 %v6822
        %8018 = vmatprep.subr.bf16.mxu0 %v6799
        %8019 = vmatpush1.bf16.msra.mxu0 %v6798
        %8020 = vmatprep.subr.bf16.mxu0 %v6775
        %8021 = vmatpush1.bf16.msra.mxu0 %v6774
        %8022 = vmatprep.subr.bf16.mxu0 %v6751
        %8023 = vmatpush1.bf16.msra.mxu0 %v6750
        %8024 = vmatprep.subr.bf16.mxu0 %v6727
        %8025 = vmatpush1.bf16.msra.mxu0 %v6726
        %8026 = vmatprep.subr.bf16.mxu0 %v6703
        %8027 = vmatpush1.bf16.msra.mxu0 %v6702
        %8028 = vmatprep.subr.bf16.mxu0 %v6679
        %8029 = vmatpush1.bf16.msra.mxu0 %v6678
        %8030 = vmatprep.subr.bf16.mxu0 %v7039
        %8031 = vmatpush2.bf16.msra.mxu0 %v7038
        %8032 = vmatprep.subr.bf16.mxu0 %v7015
        %8033 = vmatpush2.bf16.msra.mxu0 %v7014
        %8034 = vmatprep.subr.bf16.mxu0 %v6991
        %8035 = vmatpush2.bf16.msra.mxu0 %v6990
        %8036 = vmatprep.subr.bf16.mxu0 %v6967
        %8037 = vmatpush2.bf16.msra.mxu0 %v6966
        %8038 = vmatprep.subr.bf16.mxu0 %v6943
        %8039 = vmatpush2.bf16.msra.mxu0 %v6942
        %8040 = vmatprep.subr.bf16.mxu0 %v6919
        %8041 = vmatpush2.bf16.msra.mxu0 %v6918
        %8042 = vmatprep.subr.bf16.mxu0 %v6895
        %8043 = vmatpush2.bf16.msra.mxu0 %v6894
        %8044 = vmatprep.subr.bf16.mxu0 %v6871
        %8045 = vmatpush2.bf16.msra.mxu0 %v6870
        %8046 = vmatprep.mubr.bf16.mxu0 %v5133
        %8047 = vmatmul.mubr.bf16.gmra.mxu0 %v5132
        %v8048 = vpop.f32.mrf.mxu0
        %v8049 = vadd.f32 %v8008, %v8048
        %v8050 = vpop.f32.mrf.mxu0
        %v8051 = vadd.f32 %v8010, %v8050
        %v8052 = vpop.f32.mrf.mxu0
        %v8053 = vpop.f32.mrf.mxu0
        %8054 = vdwg.mxu0
        %8055 = vmatprep.subr.bf16.mxu0 %v7231
        %8056 = vmatpush1.bf16.msra.mxu0 %v7230
        %8057 = vmatprep.subr.bf16.mxu0 %v7207
        %8058 = vmatpush1.bf16.msra.mxu0 %v7206
        %8059 = vmatprep.subr.bf16.mxu0 %v7183
        %8060 = vmatpush1.bf16.msra.mxu0 %v7182
        %8061 = vmatprep.subr.bf16.mxu0 %v7159
        %8062 = vmatpush1.bf16.msra.mxu0 %v7158
        %8063 = vmatprep.subr.bf16.mxu0 %v7135
        %8064 = vmatpush1.bf16.msra.mxu0 %v7134
        %8065 = vmatprep.subr.bf16.mxu0 %v7111
        %8066 = vmatpush1.bf16.msra.mxu0 %v7110
        %8067 = vmatprep.subr.bf16.mxu0 %v7087
        %8068 = vmatpush1.bf16.msra.mxu0 %v7086
        %8069 = vmatprep.subr.bf16.mxu0 %v7063
        %8070 = vmatpush1.bf16.msra.mxu0 %v7062
        %8071 = vmatprep.subr.bf16.mxu0 %v7423
        %8072 = vmatpush2.bf16.msra.mxu0 %v7422
        %8073 = vmatprep.subr.bf16.mxu0 %v7399
        %8074 = vmatpush2.bf16.msra.mxu0 %v7398
        %8075 = vmatprep.subr.bf16.mxu0 %v7375
        %8076 = vmatpush2.bf16.msra.mxu0 %v7374
        %8077 = vmatprep.subr.bf16.mxu0 %v7351
        %8078 = vmatpush2.bf16.msra.mxu0 %v7350
        %8079 = vmatprep.subr.bf16.mxu0 %v7327
        %8080 = vmatpush2.bf16.msra.mxu0 %v7326
        %8081 = vmatprep.subr.bf16.mxu0 %v7303
        %8082 = vmatpush2.bf16.msra.mxu0 %v7302
        %8083 = vmatprep.subr.bf16.mxu0 %v7279
        %8084 = vmatpush2.bf16.msra.mxu0 %v7278
        %8085 = vmatprep.subr.bf16.mxu0 %v7255
        %8086 = vmatpush2.bf16.msra.mxu0 %v7254
        %8087 = vmatprep.mubr.bf16.mxu0 %v5135
        %8088 = vmatmul.mubr.bf16.gmra.mxu0 %v5134
        %v8089 = vpop.f32.mrf.mxu0
        %v8090 = vadd.f32 %v8049, %v8089
        %v8091 = vpop.f32.mrf.mxu0
        %v8092 = vadd.f32 %v8051, %v8091
        %v8093 = vpop.f32.mrf.mxu0
        %v8094 = vpop.f32.mrf.mxu0
        %8095 = vdwg.mxu0
        %8096 = vmatprep.subr.bf16.mxu0 %v6081
        %8097 = vmatpush1.bf16.msra.mxu0 %v6080
        %8098 = vmatprep.subr.bf16.mxu0 %v6057
        %8099 = vmatpush1.bf16.msra.mxu0 %v6056
        %8100 = vmatprep.subr.bf16.mxu0 %v6033
        %8101 = vmatpush1.bf16.msra.mxu0 %v6032
        %8102 = vmatprep.subr.bf16.mxu0 %v6009
        %8103 = vmatpush1.bf16.msra.mxu0 %v6008
        %8104 = vmatprep.subr.bf16.mxu0 %v5985
        %8105 = vmatpush1.bf16.msra.mxu0 %v5984
        %8106 = vmatprep.subr.bf16.mxu0 %v5961
        %8107 = vmatpush1.bf16.msra.mxu0 %v5960
        %8108 = vmatprep.subr.bf16.mxu0 %v5937
        %8109 = vmatpush1.bf16.msra.mxu0 %v5936
        %8110 = vmatprep.subr.bf16.mxu0 %v5913
        %8111 = vmatpush1.bf16.msra.mxu0 %v5912
        %8112 = vmatprep.subr.bf16.mxu0 %v6273
        %8113 = vmatpush2.bf16.msra.mxu0 %v6272
        %8114 = vmatprep.subr.bf16.mxu0 %v6249
        %8115 = vmatpush2.bf16.msra.mxu0 %v6248
        %8116 = vmatprep.subr.bf16.mxu0 %v6225
        %8117 = vmatpush2.bf16.msra.mxu0 %v6224
        %8118 = vmatprep.subr.bf16.mxu0 %v6201
        %8119 = vmatpush2.bf16.msra.mxu0 %v6200
        %8120 = vmatprep.subr.bf16.mxu0 %v6177
        %8121 = vmatpush2.bf16.msra.mxu0 %v6176
        %8122 = vmatprep.subr.bf16.mxu0 %v6153
        %8123 = vmatpush2.bf16.msra.mxu0 %v6152
        %8124 = vmatprep.subr.bf16.mxu0 %v6129
        %8125 = vmatpush2.bf16.msra.mxu0 %v6128
        %8126 = vmatprep.subr.bf16.mxu0 %v6105
        %8127 = vmatpush2.bf16.msra.mxu0 %v6104
        %8128 = vmatprep.mubr.bf16.mxu0 %v5129
        %8129 = vmatmul.mubr.bf16.gmra.mxu0 %v5128
        %v8130 = vpop.f32.mrf.mxu0
        %v8131 = vadd.f32 0.0, %v8130
        %v8132 = vpop.f32.mrf.mxu0
        %v8133 = vadd.f32 0.0, %v8132
        %v8134 = vpop.f32.mrf.mxu0
        %v8135 = vpop.f32.mrf.mxu0
        %8136 = vdwg.mxu0
        %8137 = vmatprep.subr.bf16.mxu0 %v6465
        %8138 = vmatpush1.bf16.msra.mxu0 %v6464
        %8139 = vmatprep.subr.bf16.mxu0 %v6441
        %8140 = vmatpush1.bf16.msra.mxu0 %v6440
        %8141 = vmatprep.subr.bf16.mxu0 %v6417
        %8142 = vmatpush1.bf16.msra.mxu0 %v6416
        %8143 = vmatprep.subr.bf16.mxu0 %v6393
        %8144 = vmatpush1.bf16.msra.mxu0 %v6392
        %8145 = vmatprep.subr.bf16.mxu0 %v6369
        %8146 = vmatpush1.bf16.msra.mxu0 %v6368
        %8147 = vmatprep.subr.bf16.mxu0 %v6345
        %8148 = vmatpush1.bf16.msra.mxu0 %v6344
        %8149 = vmatprep.subr.bf16.mxu0 %v6321
        %8150 = vmatpush1.bf16.msra.mxu0 %v6320
        %8151 = vmatprep.subr.bf16.mxu0 %v6297
        %8152 = vmatpush1.bf16.msra.mxu0 %v6296
        %8153 = vmatprep.subr.bf16.mxu0 %v6657
        %8154 = vmatpush2.bf16.msra.mxu0 %v6656
        %8155 = vmatprep.subr.bf16.mxu0 %v6633
        %8156 = vmatpush2.bf16.msra.mxu0 %v6632
        %8157 = vmatprep.subr.bf16.mxu0 %v6609
        %8158 = vmatpush2.bf16.msra.mxu0 %v6608
        %8159 = vmatprep.subr.bf16.mxu0 %v6585
        %8160 = vmatpush2.bf16.msra.mxu0 %v6584
        %8161 = vmatprep.subr.bf16.mxu0 %v6561
        %8162 = vmatpush2.bf16.msra.mxu0 %v6560
        %8163 = vmatprep.subr.bf16.mxu0 %v6537
        %8164 = vmatpush2.bf16.msra.mxu0 %v6536
        %8165 = vmatprep.subr.bf16.mxu0 %v6513
        %8166 = vmatpush2.bf16.msra.mxu0 %v6512
        %8167 = vmatprep.subr.bf16.mxu0 %v6489
        %8168 = vmatpush2.bf16.msra.mxu0 %v6488
        %8169 = vmatprep.mubr.bf16.mxu0 %v5131
        %8170 = vmatmul.mubr.bf16.gmra.mxu0 %v5130
        %v8171 = vpop.f32.mrf.mxu0
        %v8172 = vadd.f32 %v8131, %v8171
        %v8173 = vpop.f32.mrf.mxu0
        %v8174 = vadd.f32 %v8133, %v8173
        %v8175 = vpop.f32.mrf.mxu0
        %v8176 = vpop.f32.mrf.mxu0
        %8177 = vdwg.mxu0
        %8178 = vmatprep.subr.bf16.mxu0 %v6849
        %8179 = vmatpush1.bf16.msra.mxu0 %v6848
        %8180 = vmatprep.subr.bf16.mxu0 %v6825
        %8181 = vmatpush1.bf16.msra.mxu0 %v6824
        %8182 = vmatprep.subr.bf16.mxu0 %v6801
        %8183 = vmatpush1.bf16.msra.mxu0 %v6800
        %8184 = vmatprep.subr.bf16.mxu0 %v6777
        %8185 = vmatpush1.bf16.msra.mxu0 %v6776
        %8186 = vmatprep.subr.bf16.mxu0 %v6753
        %8187 = vmatpush1.bf16.msra.mxu0 %v6752
        %8188 = vmatprep.subr.bf16.mxu0 %v6729
        %8189 = vmatpush1.bf16.msra.mxu0 %v6728
        %8190 = vmatprep.subr.bf16.mxu0 %v6705
        %8191 = vmatpush1.bf16.msra.mxu0 %v6704
        %8192 = vmatprep.subr.bf16.mxu0 %v6681
        %8193 = vmatpush1.bf16.msra.mxu0 %v6680
        %8194 = vmatprep.subr.bf16.mxu0 %v7041
        %8195 = vmatpush2.bf16.msra.mxu0 %v7040
        %8196 = vmatprep.subr.bf16.mxu0 %v7017
        %8197 = vmatpush2.bf16.msra.mxu0 %v7016
        %8198 = vmatprep.subr.bf16.mxu0 %v6993
        %8199 = vmatpush2.bf16.msra.mxu0 %v6992
        %8200 = vmatprep.subr.bf16.mxu0 %v6969
        %8201 = vmatpush2.bf16.msra.mxu0 %v6968
        %8202 = vmatprep.subr.bf16.mxu0 %v6945
        %8203 = vmatpush2.bf16.msra.mxu0 %v6944
        %8204 = vmatprep.subr.bf16.mxu0 %v6921
        %8205 = vmatpush2.bf16.msra.mxu0 %v6920
        %8206 = vmatprep.subr.bf16.mxu0 %v6897
        %8207 = vmatpush2.bf16.msra.mxu0 %v6896
        %8208 = vmatprep.subr.bf16.mxu0 %v6873
        %8209 = vmatpush2.bf16.msra.mxu0 %v6872
        %8210 = vmatprep.mubr.bf16.mxu0 %v5133
        %8211 = vmatmul.mubr.bf16.gmra.mxu0 %v5132
        %v8212 = vpop.f32.mrf.mxu0
        %v8213 = vadd.f32 %v8172, %v8212
        %v8214 = vpop.f32.mrf.mxu0
        %v8215 = vadd.f32 %v8174, %v8214
        %v8216 = vpop.f32.mrf.mxu0
        %v8217 = vpop.f32.mrf.mxu0
        %8218 = vdwg.mxu0
        %8219 = vmatprep.subr.bf16.mxu0 %v7233
        %8220 = vmatpush1.bf16.msra.mxu0 %v7232
        %8221 = vmatprep.subr.bf16.mxu0 %v7209
        %8222 = vmatpush1.bf16.msra.mxu0 %v7208
        %8223 = vmatprep.subr.bf16.mxu0 %v7185
        %8224 = vmatpush1.bf16.msra.mxu0 %v7184
        %8225 = vmatprep.subr.bf16.mxu0 %v7161
        %8226 = vmatpush1.bf16.msra.mxu0 %v7160
        %8227 = vmatprep.subr.bf16.mxu0 %v7137
        %8228 = vmatpush1.bf16.msra.mxu0 %v7136
        %8229 = vmatprep.subr.bf16.mxu0 %v7113
        %8230 = vmatpush1.bf16.msra.mxu0 %v7112
        %8231 = vmatprep.subr.bf16.mxu0 %v7089
        %8232 = vmatpush1.bf16.msra.mxu0 %v7088
        %8233 = vmatprep.subr.bf16.mxu0 %v7065
        %8234 = vmatpush1.bf16.msra.mxu0 %v7064
        %8235 = vmatprep.subr.bf16.mxu0 %v7425
        %8236 = vmatpush2.bf16.msra.mxu0 %v7424
        %8237 = vmatprep.subr.bf16.mxu0 %v7401
        %8238 = vmatpush2.bf16.msra.mxu0 %v7400
        %8239 = vmatprep.subr.bf16.mxu0 %v7377
        %8240 = vmatpush2.bf16.msra.mxu0 %v7376
        %8241 = vmatprep.subr.bf16.mxu0 %v7353
        %8242 = vmatpush2.bf16.msra.mxu0 %v7352
        %8243 = vmatprep.subr.bf16.mxu0 %v7329
        %8244 = vmatpush2.bf16.msra.mxu0 %v7328
        %8245 = vmatprep.subr.bf16.mxu0 %v7305
        %8246 = vmatpush2.bf16.msra.mxu0 %v7304
        %8247 = vmatprep.subr.bf16.mxu0 %v7281
        %8248 = vmatpush2.bf16.msra.mxu0 %v7280
        %8249 = vmatprep.subr.bf16.mxu0 %v7257
        %8250 = vmatpush2.bf16.msra.mxu0 %v7256
        %8251 = vmatprep.mubr.bf16.mxu0 %v5135
        %8252 = vmatmul.mubr.bf16.gmra.mxu0 %v5134
        %v8253 = vpop.f32.mrf.mxu0
        %v8254 = vadd.f32 %v8213, %v8253
        %v8255 = vpop.f32.mrf.mxu0
        %v8256 = vadd.f32 %v8215, %v8255
        %v8257 = vpop.f32.mrf.mxu0
        %v8258 = vpop.f32.mrf.mxu0
        %8259 = vdwg.mxu0
        %8260 = vmatprep.subr.bf16.mxu0 %v6083
        %8261 = vmatpush1.bf16.msra.mxu0 %v6082
        %8262 = vmatprep.subr.bf16.mxu0 %v6059
        %8263 = vmatpush1.bf16.msra.mxu0 %v6058
        %8264 = vmatprep.subr.bf16.mxu0 %v6035
        %8265 = vmatpush1.bf16.msra.mxu0 %v6034
        %8266 = vmatprep.subr.bf16.mxu0 %v6011
        %8267 = vmatpush1.bf16.msra.mxu0 %v6010
        %8268 = vmatprep.subr.bf16.mxu0 %v5987
        %8269 = vmatpush1.bf16.msra.mxu0 %v5986
        %8270 = vmatprep.subr.bf16.mxu0 %v5963
        %8271 = vmatpush1.bf16.msra.mxu0 %v5962
        %8272 = vmatprep.subr.bf16.mxu0 %v5939
        %8273 = vmatpush1.bf16.msra.mxu0 %v5938
        %8274 = vmatprep.subr.bf16.mxu0 %v5915
        %8275 = vmatpush1.bf16.msra.mxu0 %v5914
        %8276 = vmatprep.subr.bf16.mxu0 %v6275
        %8277 = vmatpush2.bf16.msra.mxu0 %v6274
        %8278 = vmatprep.subr.bf16.mxu0 %v6251
        %8279 = vmatpush2.bf16.msra.mxu0 %v6250
        %8280 = vmatprep.subr.bf16.mxu0 %v6227
        %8281 = vmatpush2.bf16.msra.mxu0 %v6226
        %8282 = vmatprep.subr.bf16.mxu0 %v6203
        %8283 = vmatpush2.bf16.msra.mxu0 %v6202
        %8284 = vmatprep.subr.bf16.mxu0 %v6179
        %8285 = vmatpush2.bf16.msra.mxu0 %v6178
        %8286 = vmatprep.subr.bf16.mxu0 %v6155
        %8287 = vmatpush2.bf16.msra.mxu0 %v6154
        %8288 = vmatprep.subr.bf16.mxu0 %v6131
        %8289 = vmatpush2.bf16.msra.mxu0 %v6130
        %8290 = vmatprep.subr.bf16.mxu0 %v6107
        %8291 = vmatpush2.bf16.msra.mxu0 %v6106
        %8292 = vmatprep.mubr.bf16.mxu0 %v5129
        %8293 = vmatmul.mubr.bf16.gmra.mxu0 %v5128
        %v8294 = vpop.f32.mrf.mxu0
        %v8295 = vadd.f32 0.0, %v8294
        %v8296 = vpop.f32.mrf.mxu0
        %v8297 = vadd.f32 0.0, %v8296
        %v8298 = vpop.f32.mrf.mxu0
        %v8299 = vpop.f32.mrf.mxu0
        %8300 = vdwg.mxu0
        %8301 = vmatprep.subr.bf16.mxu0 %v6467
        %8302 = vmatpush1.bf16.msra.mxu0 %v6466
        %8303 = vmatprep.subr.bf16.mxu0 %v6443
        %8304 = vmatpush1.bf16.msra.mxu0 %v6442
        %8305 = vmatprep.subr.bf16.mxu0 %v6419
        %8306 = vmatpush1.bf16.msra.mxu0 %v6418
        %8307 = vmatprep.subr.bf16.mxu0 %v6395
        %8308 = vmatpush1.bf16.msra.mxu0 %v6394
        %8309 = vmatprep.subr.bf16.mxu0 %v6371
        %8310 = vmatpush1.bf16.msra.mxu0 %v6370
        %8311 = vmatprep.subr.bf16.mxu0 %v6347
        %8312 = vmatpush1.bf16.msra.mxu0 %v6346
        %8313 = vmatprep.subr.bf16.mxu0 %v6323
        %8314 = vmatpush1.bf16.msra.mxu0 %v6322
        %8315 = vmatprep.subr.bf16.mxu0 %v6299
        %8316 = vmatpush1.bf16.msra.mxu0 %v6298
        %8317 = vmatprep.subr.bf16.mxu0 %v6659
        %8318 = vmatpush2.bf16.msra.mxu0 %v6658
        %8319 = vmatprep.subr.bf16.mxu0 %v6635
        %8320 = vmatpush2.bf16.msra.mxu0 %v6634
        %8321 = vmatprep.subr.bf16.mxu0 %v6611
        %8322 = vmatpush2.bf16.msra.mxu0 %v6610
        %8323 = vmatprep.subr.bf16.mxu0 %v6587
        %8324 = vmatpush2.bf16.msra.mxu0 %v6586
        %8325 = vmatprep.subr.bf16.mxu0 %v6563
        %8326 = vmatpush2.bf16.msra.mxu0 %v6562
        %8327 = vmatprep.subr.bf16.mxu0 %v6539
        %8328 = vmatpush2.bf16.msra.mxu0 %v6538
        %8329 = vmatprep.subr.bf16.mxu0 %v6515
        %8330 = vmatpush2.bf16.msra.mxu0 %v6514
        %8331 = vmatprep.subr.bf16.mxu0 %v6491
        %8332 = vmatpush2.bf16.msra.mxu0 %v6490
        %8333 = vmatprep.mubr.bf16.mxu0 %v5131
        %8334 = vmatmul.mubr.bf16.gmra.mxu0 %v5130
        %v8335 = vpop.f32.mrf.mxu0
        %v8336 = vadd.f32 %v8295, %v8335
        %v8337 = vpop.f32.mrf.mxu0
        %v8338 = vadd.f32 %v8297, %v8337
        %v8339 = vpop.f32.mrf.mxu0
        %v8340 = vpop.f32.mrf.mxu0
        %8341 = vdwg.mxu0
        %8342 = vmatprep.subr.bf16.mxu0 %v6851
        %8343 = vmatpush1.bf16.msra.mxu0 %v6850
        %8344 = vmatprep.subr.bf16.mxu0 %v6827
        %8345 = vmatpush1.bf16.msra.mxu0 %v6826
        %8346 = vmatprep.subr.bf16.mxu0 %v6803
        %8347 = vmatpush1.bf16.msra.mxu0 %v6802
        %8348 = vmatprep.subr.bf16.mxu0 %v6779
        %8349 = vmatpush1.bf16.msra.mxu0 %v6778
        %8350 = vmatprep.subr.bf16.mxu0 %v6755
        %8351 = vmatpush1.bf16.msra.mxu0 %v6754
        %8352 = vmatprep.subr.bf16.mxu0 %v6731
        %8353 = vmatpush1.bf16.msra.mxu0 %v6730
        %8354 = vmatprep.subr.bf16.mxu0 %v6707
        %8355 = vmatpush1.bf16.msra.mxu0 %v6706
        %8356 = vmatprep.subr.bf16.mxu0 %v6683
        %8357 = vmatpush1.bf16.msra.mxu0 %v6682
        %8358 = vmatprep.subr.bf16.mxu0 %v7043
        %8359 = vmatpush2.bf16.msra.mxu0 %v7042
        %8360 = vmatprep.subr.bf16.mxu0 %v7019
        %8361 = vmatpush2.bf16.msra.mxu0 %v7018
        %8362 = vmatprep.subr.bf16.mxu0 %v6995
        %8363 = vmatpush2.bf16.msra.mxu0 %v6994
        %8364 = vmatprep.subr.bf16.mxu0 %v6971
        %8365 = vmatpush2.bf16.msra.mxu0 %v6970
        %8366 = vmatprep.subr.bf16.mxu0 %v6947
        %8367 = vmatpush2.bf16.msra.mxu0 %v6946
        %8368 = vmatprep.subr.bf16.mxu0 %v6923
        %8369 = vmatpush2.bf16.msra.mxu0 %v6922
        %8370 = vmatprep.subr.bf16.mxu0 %v6899
        %8371 = vmatpush2.bf16.msra.mxu0 %v6898
        %8372 = vmatprep.subr.bf16.mxu0 %v6875
        %8373 = vmatpush2.bf16.msra.mxu0 %v6874
        %8374 = vmatprep.mubr.bf16.mxu0 %v5133
        %8375 = vmatmul.mubr.bf16.gmra.mxu0 %v5132
        %v8376 = vpop.f32.mrf.mxu0
        %v8377 = vadd.f32 %v8336, %v8376
        %v8378 = vpop.f32.mrf.mxu0
        %v8379 = vadd.f32 %v8338, %v8378
        %v8380 = vpop.f32.mrf.mxu0
        %v8381 = vpop.f32.mrf.mxu0
        %8382 = vdwg.mxu0
        %8383 = vmatprep.subr.bf16.mxu0 %v7235
        %8384 = vmatpush1.bf16.msra.mxu0 %v7234
        %8385 = vmatprep.subr.bf16.mxu0 %v7211
        %8386 = vmatpush1.bf16.msra.mxu0 %v7210
        %8387 = vmatprep.subr.bf16.mxu0 %v7187
        %8388 = vmatpush1.bf16.msra.mxu0 %v7186
        %8389 = vmatprep.subr.bf16.mxu0 %v7163
        %8390 = vmatpush1.bf16.msra.mxu0 %v7162
        %8391 = vmatprep.subr.bf16.mxu0 %v7139
        %8392 = vmatpush1.bf16.msra.mxu0 %v7138
        %8393 = vmatprep.subr.bf16.mxu0 %v7115
        %8394 = vmatpush1.bf16.msra.mxu0 %v7114
        %8395 = vmatprep.subr.bf16.mxu0 %v7091
        %8396 = vmatpush1.bf16.msra.mxu0 %v7090
        %8397 = vmatprep.subr.bf16.mxu0 %v7067
        %8398 = vmatpush1.bf16.msra.mxu0 %v7066
        %8399 = vmatprep.subr.bf16.mxu0 %v7427
        %8400 = vmatpush2.bf16.msra.mxu0 %v7426
        %8401 = vmatprep.subr.bf16.mxu0 %v7403
        %8402 = vmatpush2.bf16.msra.mxu0 %v7402
        %8403 = vmatprep.subr.bf16.mxu0 %v7379
        %8404 = vmatpush2.bf16.msra.mxu0 %v7378
        %8405 = vmatprep.subr.bf16.mxu0 %v7355
        %8406 = vmatpush2.bf16.msra.mxu0 %v7354
        %8407 = vmatprep.subr.bf16.mxu0 %v7331
        %8408 = vmatpush2.bf16.msra.mxu0 %v7330
        %8409 = vmatprep.subr.bf16.mxu0 %v7307
        %8410 = vmatpush2.bf16.msra.mxu0 %v7306
        %8411 = vmatprep.subr.bf16.mxu0 %v7283
        %8412 = vmatpush2.bf16.msra.mxu0 %v7282
        %8413 = vmatprep.subr.bf16.mxu0 %v7259
        %8414 = vmatpush2.bf16.msra.mxu0 %v7258
        %8415 = vmatprep.mubr.bf16.mxu0 %v5135
        %8416 = vmatmul.mubr.bf16.gmra.mxu0 %v5134
        %v8417 = vpop.f32.mrf.mxu0
        %v8418 = vadd.f32 %v8377, %v8417
        %v8419 = vpop.f32.mrf.mxu0
        %v8420 = vadd.f32 %v8379, %v8419
        %v8421 = vpop.f32.mrf.mxu0
        %v8422 = vpop.f32.mrf.mxu0
        %8423 = vdwg.mxu0
        %8424 = vmatprep.subr.bf16.mxu0 %v6085
        %8425 = vmatpush1.bf16.msra.mxu0 %v6084
        %8426 = vmatprep.subr.bf16.mxu0 %v6061
        %8427 = vmatpush1.bf16.msra.mxu0 %v6060
        %8428 = vmatprep.subr.bf16.mxu0 %v6037
        %8429 = vmatpush1.bf16.msra.mxu0 %v6036
        %8430 = vmatprep.subr.bf16.mxu0 %v6013
        %8431 = vmatpush1.bf16.msra.mxu0 %v6012
        %8432 = vmatprep.subr.bf16.mxu0 %v5989
        %8433 = vmatpush1.bf16.msra.mxu0 %v5988
        %8434 = vmatprep.subr.bf16.mxu0 %v5965
        %8435 = vmatpush1.bf16.msra.mxu0 %v5964
        %8436 = vmatprep.subr.bf16.mxu0 %v5941
        %8437 = vmatpush1.bf16.msra.mxu0 %v5940
        %8438 = vmatprep.subr.bf16.mxu0 %v5917
        %8439 = vmatpush1.bf16.msra.mxu0 %v5916
        %8440 = vmatprep.subr.bf16.mxu0 %v6277
        %8441 = vmatpush2.bf16.msra.mxu0 %v6276
        %8442 = vmatprep.subr.bf16.mxu0 %v6253
        %8443 = vmatpush2.bf16.msra.mxu0 %v6252
        %8444 = vmatprep.subr.bf16.mxu0 %v6229
        %8445 = vmatpush2.bf16.msra.mxu0 %v6228
        %8446 = vmatprep.subr.bf16.mxu0 %v6205
        %8447 = vmatpush2.bf16.msra.mxu0 %v6204
        %8448 = vmatprep.subr.bf16.mxu0 %v6181
        %8449 = vmatpush2.bf16.msra.mxu0 %v6180
        %8450 = vmatprep.subr.bf16.mxu0 %v6157
        %8451 = vmatpush2.bf16.msra.mxu0 %v6156
        %8452 = vmatprep.subr.bf16.mxu0 %v6133
        %8453 = vmatpush2.bf16.msra.mxu0 %v6132
        %8454 = vmatprep.subr.bf16.mxu0 %v6109
        %8455 = vmatpush2.bf16.msra.mxu0 %v6108
        %8456 = vmatprep.mubr.bf16.mxu0 %v5129
        %8457 = vmatmul.mubr.bf16.gmra.mxu0 %v5128
        %v8458 = vpop.f32.mrf.mxu0
        %v8459 = vadd.f32 0.0, %v8458
        %v8460 = vpop.f32.mrf.mxu0
        %v8461 = vadd.f32 0.0, %v8460
        %v8462 = vpop.f32.mrf.mxu0
        %v8463 = vpop.f32.mrf.mxu0
        %8464 = vdwg.mxu0
        %8465 = vmatprep.subr.bf16.mxu0 %v6469
        %8466 = vmatpush1.bf16.msra.mxu0 %v6468
        %8467 = vmatprep.subr.bf16.mxu0 %v6445
        %8468 = vmatpush1.bf16.msra.mxu0 %v6444
        %8469 = vmatprep.subr.bf16.mxu0 %v6421
        %8470 = vmatpush1.bf16.msra.mxu0 %v6420
        %8471 = vmatprep.subr.bf16.mxu0 %v6397
        %8472 = vmatpush1.bf16.msra.mxu0 %v6396
        %8473 = vmatprep.subr.bf16.mxu0 %v6373
        %8474 = vmatpush1.bf16.msra.mxu0 %v6372
        %8475 = vmatprep.subr.bf16.mxu0 %v6349
        %8476 = vmatpush1.bf16.msra.mxu0 %v6348
        %8477 = vmatprep.subr.bf16.mxu0 %v6325
        %8478 = vmatpush1.bf16.msra.mxu0 %v6324
        %8479 = vmatprep.subr.bf16.mxu0 %v6301
        %8480 = vmatpush1.bf16.msra.mxu0 %v6300
        %8481 = vmatprep.subr.bf16.mxu0 %v6661
        %8482 = vmatpush2.bf16.msra.mxu0 %v6660
        %8483 = vmatprep.subr.bf16.mxu0 %v6637
        %8484 = vmatpush2.bf16.msra.mxu0 %v6636
        %8485 = vmatprep.subr.bf16.mxu0 %v6613
        %8486 = vmatpush2.bf16.msra.mxu0 %v6612
        %8487 = vmatprep.subr.bf16.mxu0 %v6589
        %8488 = vmatpush2.bf16.msra.mxu0 %v6588
        %8489 = vmatprep.subr.bf16.mxu0 %v6565
        %8490 = vmatpush2.bf16.msra.mxu0 %v6564
        %8491 = vmatprep.subr.bf16.mxu0 %v6541
        %8492 = vmatpush2.bf16.msra.mxu0 %v6540
        %8493 = vmatprep.subr.bf16.mxu0 %v6517
        %8494 = vmatpush2.bf16.msra.mxu0 %v6516
        %8495 = vmatprep.subr.bf16.mxu0 %v6493
        %8496 = vmatpush2.bf16.msra.mxu0 %v6492
        %8497 = vmatprep.mubr.bf16.mxu0 %v5131
        %8498 = vmatmul.mubr.bf16.gmra.mxu0 %v5130
        %v8499 = vpop.f32.mrf.mxu0
        %v8500 = vadd.f32 %v8459, %v8499
        %v8501 = vpop.f32.mrf.mxu0
        %v8502 = vadd.f32 %v8461, %v8501
        %v8503 = vpop.f32.mrf.mxu0
        %v8504 = vpop.f32.mrf.mxu0
        %8505 = vdwg.mxu0
        %8506 = vmatprep.subr.bf16.mxu0 %v6853
        %8507 = vmatpush1.bf16.msra.mxu0 %v6852
        %8508 = vmatprep.subr.bf16.mxu0 %v6829
        %8509 = vmatpush1.bf16.msra.mxu0 %v6828
        %8510 = vmatprep.subr.bf16.mxu0 %v6805
        %8511 = vmatpush1.bf16.msra.mxu0 %v6804
        %8512 = vmatprep.subr.bf16.mxu0 %v6781
        %8513 = vmatpush1.bf16.msra.mxu0 %v6780
        %8514 = vmatprep.subr.bf16.mxu0 %v6757
        %8515 = vmatpush1.bf16.msra.mxu0 %v6756
        %8516 = vmatprep.subr.bf16.mxu0 %v6733
        %8517 = vmatpush1.bf16.msra.mxu0 %v6732
        %8518 = vmatprep.subr.bf16.mxu0 %v6709
        %8519 = vmatpush1.bf16.msra.mxu0 %v6708
        %8520 = vmatprep.subr.bf16.mxu0 %v6685
        %8521 = vmatpush1.bf16.msra.mxu0 %v6684
        %8522 = vmatprep.subr.bf16.mxu0 %v7045
        %8523 = vmatpush2.bf16.msra.mxu0 %v7044
        %8524 = vmatprep.subr.bf16.mxu0 %v7021
        %8525 = vmatpush2.bf16.msra.mxu0 %v7020
        %8526 = vmatprep.subr.bf16.mxu0 %v6997
        %8527 = vmatpush2.bf16.msra.mxu0 %v6996
        %8528 = vmatprep.subr.bf16.mxu0 %v6973
        %8529 = vmatpush2.bf16.msra.mxu0 %v6972
        %8530 = vmatprep.subr.bf16.mxu0 %v6949
        %8531 = vmatpush2.bf16.msra.mxu0 %v6948
        %8532 = vmatprep.subr.bf16.mxu0 %v6925
        %8533 = vmatpush2.bf16.msra.mxu0 %v6924
        %8534 = vmatprep.subr.bf16.mxu0 %v6901
        %8535 = vmatpush2.bf16.msra.mxu0 %v6900
        %8536 = vmatprep.subr.bf16.mxu0 %v6877
        %8537 = vmatpush2.bf16.msra.mxu0 %v6876
        %8538 = vmatprep.mubr.bf16.mxu0 %v5133
        %8539 = vmatmul.mubr.bf16.gmra.mxu0 %v5132
        %v8540 = vpop.f32.mrf.mxu0
        %v8541 = vadd.f32 %v8500, %v8540
        %v8542 = vpop.f32.mrf.mxu0
        %v8543 = vadd.f32 %v8502, %v8542
        %v8544 = vpop.f32.mrf.mxu0
        %v8545 = vpop.f32.mrf.mxu0
        %8546 = vdwg.mxu0
        %8547 = vmatprep.subr.bf16.mxu0 %v7237
        %8548 = vmatpush1.bf16.msra.mxu0 %v7236
        %8549 = vmatprep.subr.bf16.mxu0 %v7213
        %8550 = vmatpush1.bf16.msra.mxu0 %v7212
        %8551 = vmatprep.subr.bf16.mxu0 %v7189
        %8552 = vmatpush1.bf16.msra.mxu0 %v7188
        %8553 = vmatprep.subr.bf16.mxu0 %v7165
        %8554 = vmatpush1.bf16.msra.mxu0 %v7164
        %8555 = vmatprep.subr.bf16.mxu0 %v7141
        %8556 = vmatpush1.bf16.msra.mxu0 %v7140
        %8557 = vmatprep.subr.bf16.mxu0 %v7117
        %8558 = vmatpush1.bf16.msra.mxu0 %v7116
        %8559 = vmatprep.subr.bf16.mxu0 %v7093
        %8560 = vmatpush1.bf16.msra.mxu0 %v7092
        %8561 = vmatprep.subr.bf16.mxu0 %v7069
        %8562 = vmatpush1.bf16.msra.mxu0 %v7068
        %8563 = vmatprep.subr.bf16.mxu0 %v7429
        %8564 = vmatpush2.bf16.msra.mxu0 %v7428
        %8565 = vmatprep.subr.bf16.mxu0 %v7405
        %8566 = vmatpush2.bf16.msra.mxu0 %v7404
        %8567 = vmatprep.subr.bf16.mxu0 %v7381
        %8568 = vmatpush2.bf16.msra.mxu0 %v7380
        %8569 = vmatprep.subr.bf16.mxu0 %v7357
        %8570 = vmatpush2.bf16.msra.mxu0 %v7356
        %8571 = vmatprep.subr.bf16.mxu0 %v7333
        %8572 = vmatpush2.bf16.msra.mxu0 %v7332
        %8573 = vmatprep.subr.bf16.mxu0 %v7309
        %8574 = vmatpush2.bf16.msra.mxu0 %v7308
        %8575 = vmatprep.subr.bf16.mxu0 %v7285
        %8576 = vmatpush2.bf16.msra.mxu0 %v7284
        %8577 = vmatprep.subr.bf16.mxu0 %v7261
        %8578 = vmatpush2.bf16.msra.mxu0 %v7260
        %8579 = vmatprep.mubr.bf16.mxu0 %v5135
        %8580 = vmatmul.mubr.bf16.gmra.mxu0 %v5134
        %v8581 = vpop.f32.mrf.mxu0
        %v8582 = vadd.f32 %v8541, %v8581
        %v8583 = vpop.f32.mrf.mxu0
        %v8584 = vadd.f32 %v8543, %v8583
        %v8585 = vpop.f32.mrf.mxu0
        %v8586 = vpop.f32.mrf.mxu0
        %8587 = vdwg.mxu0
        %8588 = vmatprep.subr.bf16.mxu0 %v6087
        %8589 = vmatpush1.bf16.msra.mxu0 %v6086
        %8590 = vmatprep.subr.bf16.mxu0 %v6063
        %8591 = vmatpush1.bf16.msra.mxu0 %v6062
        %8592 = vmatprep.subr.bf16.mxu0 %v6039
        %8593 = vmatpush1.bf16.msra.mxu0 %v6038
        %8594 = vmatprep.subr.bf16.mxu0 %v6015
        %8595 = vmatpush1.bf16.msra.mxu0 %v6014
        %8596 = vmatprep.subr.bf16.mxu0 %v5991
        %8597 = vmatpush1.bf16.msra.mxu0 %v5990
        %8598 = vmatprep.subr.bf16.mxu0 %v5967
        %8599 = vmatpush1.bf16.msra.mxu0 %v5966
        %8600 = vmatprep.subr.bf16.mxu0 %v5943
        %8601 = vmatpush1.bf16.msra.mxu0 %v5942
        %8602 = vmatprep.subr.bf16.mxu0 %v5919
        %8603 = vmatpush1.bf16.msra.mxu0 %v5918
        %8604 = vmatprep.subr.bf16.mxu0 %v6279
        %8605 = vmatpush2.bf16.msra.mxu0 %v6278
        %8606 = vmatprep.subr.bf16.mxu0 %v6255
        %8607 = vmatpush2.bf16.msra.mxu0 %v6254
        %8608 = vmatprep.subr.bf16.mxu0 %v6231
        %8609 = vmatpush2.bf16.msra.mxu0 %v6230
        %8610 = vmatprep.subr.bf16.mxu0 %v6207
        %8611 = vmatpush2.bf16.msra.mxu0 %v6206
        %8612 = vmatprep.subr.bf16.mxu0 %v6183
        %8613 = vmatpush2.bf16.msra.mxu0 %v6182
        %8614 = vmatprep.subr.bf16.mxu0 %v6159
        %8615 = vmatpush2.bf16.msra.mxu0 %v6158
        %8616 = vmatprep.subr.bf16.mxu0 %v6135
        %8617 = vmatpush2.bf16.msra.mxu0 %v6134
        %8618 = vmatprep.subr.bf16.mxu0 %v6111
        %8619 = vmatpush2.bf16.msra.mxu0 %v6110
        %8620 = vmatprep.mubr.bf16.mxu0 %v5129
        %8621 = vmatmul.mubr.bf16.gmra.mxu0 %v5128
        %v8622 = vpop.f32.mrf.mxu0
        %v8623 = vadd.f32 0.0, %v8622
        %v8624 = vpop.f32.mrf.mxu0
        %v8625 = vadd.f32 0.0, %v8624
        %v8626 = vpop.f32.mrf.mxu0
        %v8627 = vpop.f32.mrf.mxu0
        %8628 = vdwg.mxu0
        %8629 = vmatprep.subr.bf16.mxu0 %v6471
        %8630 = vmatpush1.bf16.msra.mxu0 %v6470
        %8631 = vmatprep.subr.bf16.mxu0 %v6447
        %8632 = vmatpush1.bf16.msra.mxu0 %v6446
        %8633 = vmatprep.subr.bf16.mxu0 %v6423
        %8634 = vmatpush1.bf16.msra.mxu0 %v6422
        %8635 = vmatprep.subr.bf16.mxu0 %v6399
        %8636 = vmatpush1.bf16.msra.mxu0 %v6398
        %8637 = vmatprep.subr.bf16.mxu0 %v6375
        %8638 = vmatpush1.bf16.msra.mxu0 %v6374
        %8639 = vmatprep.subr.bf16.mxu0 %v6351
        %8640 = vmatpush1.bf16.msra.mxu0 %v6350
        %8641 = vmatprep.subr.bf16.mxu0 %v6327
        %8642 = vmatpush1.bf16.msra.mxu0 %v6326
        %8643 = vmatprep.subr.bf16.mxu0 %v6303
        %8644 = vmatpush1.bf16.msra.mxu0 %v6302
        %8645 = vmatprep.subr.bf16.mxu0 %v6663
        %8646 = vmatpush2.bf16.msra.mxu0 %v6662
        %8647 = vmatprep.subr.bf16.mxu0 %v6639
        %8648 = vmatpush2.bf16.msra.mxu0 %v6638
        %8649 = vmatprep.subr.bf16.mxu0 %v6615
        %8650 = vmatpush2.bf16.msra.mxu0 %v6614
        %8651 = vmatprep.subr.bf16.mxu0 %v6591
        %8652 = vmatpush2.bf16.msra.mxu0 %v6590
        %8653 = vmatprep.subr.bf16.mxu0 %v6567
        %8654 = vmatpush2.bf16.msra.mxu0 %v6566
        %8655 = vmatprep.subr.bf16.mxu0 %v6543
        %8656 = vmatpush2.bf16.msra.mxu0 %v6542
        %8657 = vmatprep.subr.bf16.mxu0 %v6519
        %8658 = vmatpush2.bf16.msra.mxu0 %v6518
        %8659 = vmatprep.subr.bf16.mxu0 %v6495
        %8660 = vmatpush2.bf16.msra.mxu0 %v6494
        %8661 = vmatprep.mubr.bf16.mxu0 %v5131
        %8662 = vmatmul.mubr.bf16.gmra.mxu0 %v5130
        %v8663 = vpop.f32.mrf.mxu0
        %v8664 = vadd.f32 %v8623, %v8663
        %v8665 = vpop.f32.mrf.mxu0
        %v8666 = vadd.f32 %v8625, %v8665
        %v8667 = vpop.f32.mrf.mxu0
        %v8668 = vpop.f32.mrf.mxu0
        %8669 = vdwg.mxu0
        %8670 = vmatprep.subr.bf16.mxu0 %v6855
        %8671 = vmatpush1.bf16.msra.mxu0 %v6854
        %8672 = vmatprep.subr.bf16.mxu0 %v6831
        %8673 = vmatpush1.bf16.msra.mxu0 %v6830
        %8674 = vmatprep.subr.bf16.mxu0 %v6807
        %8675 = vmatpush1.bf16.msra.mxu0 %v6806
        %8676 = vmatprep.subr.bf16.mxu0 %v6783
        %8677 = vmatpush1.bf16.msra.mxu0 %v6782
        %8678 = vmatprep.subr.bf16.mxu0 %v6759
        %8679 = vmatpush1.bf16.msra.mxu0 %v6758
        %8680 = vmatprep.subr.bf16.mxu0 %v6735
        %8681 = vmatpush1.bf16.msra.mxu0 %v6734
        %8682 = vmatprep.subr.bf16.mxu0 %v6711
        %8683 = vmatpush1.bf16.msra.mxu0 %v6710
        %8684 = vmatprep.subr.bf16.mxu0 %v6687
        %8685 = vmatpush1.bf16.msra.mxu0 %v6686
        %8686 = vmatprep.subr.bf16.mxu0 %v7047
        %8687 = vmatpush2.bf16.msra.mxu0 %v7046
        %8688 = vmatprep.subr.bf16.mxu0 %v7023
        %8689 = vmatpush2.bf16.msra.mxu0 %v7022
        %8690 = vmatprep.subr.bf16.mxu0 %v6999
        %8691 = vmatpush2.bf16.msra.mxu0 %v6998
        %8692 = vmatprep.subr.bf16.mxu0 %v6975
        %8693 = vmatpush2.bf16.msra.mxu0 %v6974
        %8694 = vmatprep.subr.bf16.mxu0 %v6951
        %8695 = vmatpush2.bf16.msra.mxu0 %v6950
        %8696 = vmatprep.subr.bf16.mxu0 %v6927
        %8697 = vmatpush2.bf16.msra.mxu0 %v6926
        %8698 = vmatprep.subr.bf16.mxu0 %v6903
        %8699 = vmatpush2.bf16.msra.mxu0 %v6902
        %8700 = vmatprep.subr.bf16.mxu0 %v6879
        %8701 = vmatpush2.bf16.msra.mxu0 %v6878
        %8702 = vmatprep.mubr.bf16.mxu0 %v5133
        %8703 = vmatmul.mubr.bf16.gmra.mxu0 %v5132
        %v8704 = vpop.f32.mrf.mxu0
        %v8705 = vadd.f32 %v8664, %v8704
        %v8706 = vpop.f32.mrf.mxu0
        %v8707 = vadd.f32 %v8666, %v8706
        %v8708 = vpop.f32.mrf.mxu0
        %v8709 = vpop.f32.mrf.mxu0
        %8710 = vdwg.mxu0
        %8711 = vmatprep.subr.bf16.mxu0 %v7239
        %8712 = vmatpush1.bf16.msra.mxu0 %v7238
        %8713 = vmatprep.subr.bf16.mxu0 %v7215
        %8714 = vmatpush1.bf16.msra.mxu0 %v7214
        %8715 = vmatprep.subr.bf16.mxu0 %v7191
        %8716 = vmatpush1.bf16.msra.mxu0 %v7190
        %8717 = vmatprep.subr.bf16.mxu0 %v7167
        %8718 = vmatpush1.bf16.msra.mxu0 %v7166
        %8719 = vmatprep.subr.bf16.mxu0 %v7143
        %8720 = vmatpush1.bf16.msra.mxu0 %v7142
        %8721 = vmatprep.subr.bf16.mxu0 %v7119
        %8722 = vmatpush1.bf16.msra.mxu0 %v7118
        %8723 = vmatprep.subr.bf16.mxu0 %v7095
        %8724 = vmatpush1.bf16.msra.mxu0 %v7094
        %8725 = vmatprep.subr.bf16.mxu0 %v7071
        %8726 = vmatpush1.bf16.msra.mxu0 %v7070
        %8727 = vmatprep.subr.bf16.mxu0 %v7431
        %8728 = vmatpush2.bf16.msra.mxu0 %v7430
        %8729 = vmatprep.subr.bf16.mxu0 %v7407
        %8730 = vmatpush2.bf16.msra.mxu0 %v7406
        %8731 = vmatprep.subr.bf16.mxu0 %v7383
        %8732 = vmatpush2.bf16.msra.mxu0 %v7382
        %8733 = vmatprep.subr.bf16.mxu0 %v7359
        %8734 = vmatpush2.bf16.msra.mxu0 %v7358
        %8735 = vmatprep.subr.bf16.mxu0 %v7335
        %8736 = vmatpush2.bf16.msra.mxu0 %v7334
        %8737 = vmatprep.subr.bf16.mxu0 %v7311
        %8738 = vmatpush2.bf16.msra.mxu0 %v7310
        %8739 = vmatprep.subr.bf16.mxu0 %v7287
        %8740 = vmatpush2.bf16.msra.mxu0 %v7286
        %8741 = vmatprep.subr.bf16.mxu0 %v7263
        %8742 = vmatpush2.bf16.msra.mxu0 %v7262
        %8743 = vmatprep.mubr.bf16.mxu0 %v5135
        %8744 = vmatmul.mubr.bf16.gmra.mxu0 %v5134
        %v8745 = vpop.f32.mrf.mxu0
        %v8746 = vadd.f32 %v8705, %v8745
        %v8747 = vpop.f32.mrf.mxu0
        %v8748 = vadd.f32 %v8707, %v8747
        %v8749 = vpop.f32.mrf.mxu0
        %v8750 = vpop.f32.mrf.mxu0
        %8751 = vdwg.mxu0
        %8752 = vmatprep.subr.bf16.mxu0 %v6089
        %8753 = vmatpush1.bf16.msra.mxu0 %v6088
        %8754 = vmatprep.subr.bf16.mxu0 %v6065
        %8755 = vmatpush1.bf16.msra.mxu0 %v6064
        %8756 = vmatprep.subr.bf16.mxu0 %v6041
        %8757 = vmatpush1.bf16.msra.mxu0 %v6040
        %8758 = vmatprep.subr.bf16.mxu0 %v6017
        %8759 = vmatpush1.bf16.msra.mxu0 %v6016
        %8760 = vmatprep.subr.bf16.mxu0 %v5993
        %8761 = vmatpush1.bf16.msra.mxu0 %v5992
        %8762 = vmatprep.subr.bf16.mxu0 %v5969
        %8763 = vmatpush1.bf16.msra.mxu0 %v5968
        %8764 = vmatprep.subr.bf16.mxu0 %v5945
        %8765 = vmatpush1.bf16.msra.mxu0 %v5944
        %8766 = vmatprep.subr.bf16.mxu0 %v5921
        %8767 = vmatpush1.bf16.msra.mxu0 %v5920
        %8768 = vmatprep.subr.bf16.mxu0 %v6281
        %8769 = vmatpush2.bf16.msra.mxu0 %v6280
        %8770 = vmatprep.subr.bf16.mxu0 %v6257
        %8771 = vmatpush2.bf16.msra.mxu0 %v6256
        %8772 = vmatprep.subr.bf16.mxu0 %v6233
        %8773 = vmatpush2.bf16.msra.mxu0 %v6232
        %8774 = vmatprep.subr.bf16.mxu0 %v6209
        %8775 = vmatpush2.bf16.msra.mxu0 %v6208
        %8776 = vmatprep.subr.bf16.mxu0 %v6185
        %8777 = vmatpush2.bf16.msra.mxu0 %v6184
        %8778 = vmatprep.subr.bf16.mxu0 %v6161
        %8779 = vmatpush2.bf16.msra.mxu0 %v6160
        %8780 = vmatprep.subr.bf16.mxu0 %v6137
        %8781 = vmatpush2.bf16.msra.mxu0 %v6136
        %8782 = vmatprep.subr.bf16.mxu0 %v6113
        %8783 = vmatpush2.bf16.msra.mxu0 %v6112
        %8784 = vmatprep.mubr.bf16.mxu0 %v5129
        %8785 = vmatmul.mubr.bf16.gmra.mxu0 %v5128
        %v8786 = vpop.f32.mrf.mxu0
        %v8787 = vadd.f32 0.0, %v8786
        %v8788 = vpop.f32.mrf.mxu0
        %v8789 = vadd.f32 0.0, %v8788
        %v8790 = vpop.f32.mrf.mxu0
        %v8791 = vpop.f32.mrf.mxu0
        %8792 = vdwg.mxu0
        %8793 = vmatprep.subr.bf16.mxu0 %v6473
        %8794 = vmatpush1.bf16.msra.mxu0 %v6472
        %8795 = vmatprep.subr.bf16.mxu0 %v6449
        %8796 = vmatpush1.bf16.msra.mxu0 %v6448
        %8797 = vmatprep.subr.bf16.mxu0 %v6425
        %8798 = vmatpush1.bf16.msra.mxu0 %v6424
        %8799 = vmatprep.subr.bf16.mxu0 %v6401
        %8800 = vmatpush1.bf16.msra.mxu0 %v6400
        %8801 = vmatprep.subr.bf16.mxu0 %v6377
        %8802 = vmatpush1.bf16.msra.mxu0 %v6376
        %8803 = vmatprep.subr.bf16.mxu0 %v6353
        %8804 = vmatpush1.bf16.msra.mxu0 %v6352
        %8805 = vmatprep.subr.bf16.mxu0 %v6329
        %8806 = vmatpush1.bf16.msra.mxu0 %v6328
        %8807 = vmatprep.subr.bf16.mxu0 %v6305
        %8808 = vmatpush1.bf16.msra.mxu0 %v6304
        %8809 = vmatprep.subr.bf16.mxu0 %v6665
        %8810 = vmatpush2.bf16.msra.mxu0 %v6664
        %8811 = vmatprep.subr.bf16.mxu0 %v6641
        %8812 = vmatpush2.bf16.msra.mxu0 %v6640
        %8813 = vmatprep.subr.bf16.mxu0 %v6617
        %8814 = vmatpush2.bf16.msra.mxu0 %v6616
        %8815 = vmatprep.subr.bf16.mxu0 %v6593
        %8816 = vmatpush2.bf16.msra.mxu0 %v6592
        %8817 = vmatprep.subr.bf16.mxu0 %v6569
        %8818 = vmatpush2.bf16.msra.mxu0 %v6568
        %8819 = vmatprep.subr.bf16.mxu0 %v6545
        %8820 = vmatpush2.bf16.msra.mxu0 %v6544
        %8821 = vmatprep.subr.bf16.mxu0 %v6521
        %8822 = vmatpush2.bf16.msra.mxu0 %v6520
        %8823 = vmatprep.subr.bf16.mxu0 %v6497
        %8824 = vmatpush2.bf16.msra.mxu0 %v6496
        %8825 = vmatprep.mubr.bf16.mxu0 %v5131
        %8826 = vmatmul.mubr.bf16.gmra.mxu0 %v5130
        %v8827 = vpop.f32.mrf.mxu0
        %v8828 = vadd.f32 %v8787, %v8827
        %v8829 = vpop.f32.mrf.mxu0
        %v8830 = vadd.f32 %v8789, %v8829
        %v8831 = vpop.f32.mrf.mxu0
        %v8832 = vpop.f32.mrf.mxu0
        %8833 = vdwg.mxu0
        %8834 = vmatprep.subr.bf16.mxu0 %v6857
        %8835 = vmatpush1.bf16.msra.mxu0 %v6856
        %8836 = vmatprep.subr.bf16.mxu0 %v6833
        %8837 = vmatpush1.bf16.msra.mxu0 %v6832
        %8838 = vmatprep.subr.bf16.mxu0 %v6809
        %8839 = vmatpush1.bf16.msra.mxu0 %v6808
        %8840 = vmatprep.subr.bf16.mxu0 %v6785
        %8841 = vmatpush1.bf16.msra.mxu0 %v6784
        %8842 = vmatprep.subr.bf16.mxu0 %v6761
        %8843 = vmatpush1.bf16.msra.mxu0 %v6760
        %8844 = vmatprep.subr.bf16.mxu0 %v6737
        %8845 = vmatpush1.bf16.msra.mxu0 %v6736
        %8846 = vmatprep.subr.bf16.mxu0 %v6713
        %8847 = vmatpush1.bf16.msra.mxu0 %v6712
        %8848 = vmatprep.subr.bf16.mxu0 %v6689
        %8849 = vmatpush1.bf16.msra.mxu0 %v6688
        %8850 = vmatprep.subr.bf16.mxu0 %v7049
        %8851 = vmatpush2.bf16.msra.mxu0 %v7048
        %8852 = vmatprep.subr.bf16.mxu0 %v7025
        %8853 = vmatpush2.bf16.msra.mxu0 %v7024
        %8854 = vmatprep.subr.bf16.mxu0 %v7001
        %8855 = vmatpush2.bf16.msra.mxu0 %v7000
        %8856 = vmatprep.subr.bf16.mxu0 %v6977
        %8857 = vmatpush2.bf16.msra.mxu0 %v6976
        %8858 = vmatprep.subr.bf16.mxu0 %v6953
        %8859 = vmatpush2.bf16.msra.mxu0 %v6952
        %8860 = vmatprep.subr.bf16.mxu0 %v6929
        %8861 = vmatpush2.bf16.msra.mxu0 %v6928
        %8862 = vmatprep.subr.bf16.mxu0 %v6905
        %8863 = vmatpush2.bf16.msra.mxu0 %v6904
        %8864 = vmatprep.subr.bf16.mxu0 %v6881
        %8865 = vmatpush2.bf16.msra.mxu0 %v6880
        %8866 = vmatprep.mubr.bf16.mxu0 %v5133
        %8867 = vmatmul.mubr.bf16.gmra.mxu0 %v5132
        %v8868 = vpop.f32.mrf.mxu0
        %v8869 = vadd.f32 %v8828, %v8868
        %v8870 = vpop.f32.mrf.mxu0
        %v8871 = vadd.f32 %v8830, %v8870
        %v8872 = vpop.f32.mrf.mxu0
        %v8873 = vpop.f32.mrf.mxu0
        %8874 = vdwg.mxu0
        %8875 = vmatprep.subr.bf16.mxu0 %v7241
        %8876 = vmatpush1.bf16.msra.mxu0 %v7240
        %8877 = vmatprep.subr.bf16.mxu0 %v7217
        %8878 = vmatpush1.bf16.msra.mxu0 %v7216
        %8879 = vmatprep.subr.bf16.mxu0 %v7193
        %8880 = vmatpush1.bf16.msra.mxu0 %v7192
        %8881 = vmatprep.subr.bf16.mxu0 %v7169
        %8882 = vmatpush1.bf16.msra.mxu0 %v7168
        %8883 = vmatprep.subr.bf16.mxu0 %v7145
        %8884 = vmatpush1.bf16.msra.mxu0 %v7144
        %8885 = vmatprep.subr.bf16.mxu0 %v7121
        %8886 = vmatpush1.bf16.msra.mxu0 %v7120
        %8887 = vmatprep.subr.bf16.mxu0 %v7097
        %8888 = vmatpush1.bf16.msra.mxu0 %v7096
        %8889 = vmatprep.subr.bf16.mxu0 %v7073
        %8890 = vmatpush1.bf16.msra.mxu0 %v7072
        %8891 = vmatprep.subr.bf16.mxu0 %v7433
        %8892 = vmatpush2.bf16.msra.mxu0 %v7432
        %8893 = vmatprep.subr.bf16.mxu0 %v7409
        %8894 = vmatpush2.bf16.msra.mxu0 %v7408
        %8895 = vmatprep.subr.bf16.mxu0 %v7385
        %8896 = vmatpush2.bf16.msra.mxu0 %v7384
        %8897 = vmatprep.subr.bf16.mxu0 %v7361
        %8898 = vmatpush2.bf16.msra.mxu0 %v7360
        %8899 = vmatprep.subr.bf16.mxu0 %v7337
        %8900 = vmatpush2.bf16.msra.mxu0 %v7336
        %8901 = vmatprep.subr.bf16.mxu0 %v7313
        %8902 = vmatpush2.bf16.msra.mxu0 %v7312
        %8903 = vmatprep.subr.bf16.mxu0 %v7289
        %8904 = vmatpush2.bf16.msra.mxu0 %v7288
        %8905 = vmatprep.subr.bf16.mxu0 %v7265
        %8906 = vmatpush2.bf16.msra.mxu0 %v7264
        %8907 = vmatprep.mubr.bf16.mxu0 %v5135
        %8908 = vmatmul.mubr.bf16.gmra.mxu0 %v5134
        %v8909 = vpop.f32.mrf.mxu0
        %v8910 = vadd.f32 %v8869, %v8909
        %v8911 = vpop.f32.mrf.mxu0
        %v8912 = vadd.f32 %v8871, %v8911
        %v8913 = vpop.f32.mrf.mxu0
        %v8914 = vpop.f32.mrf.mxu0
        %8915 = vdwg.mxu0
        %8916 = vmatprep.subr.bf16.mxu0 %v6091
        %8917 = vmatpush1.bf16.msra.mxu0 %v6090
        %8918 = vmatprep.subr.bf16.mxu0 %v6067
        %8919 = vmatpush1.bf16.msra.mxu0 %v6066
        %8920 = vmatprep.subr.bf16.mxu0 %v6043
        %8921 = vmatpush1.bf16.msra.mxu0 %v6042
        %8922 = vmatprep.subr.bf16.mxu0 %v6019
        %8923 = vmatpush1.bf16.msra.mxu0 %v6018
        %8924 = vmatprep.subr.bf16.mxu0 %v5995
        %8925 = vmatpush1.bf16.msra.mxu0 %v5994
        %8926 = vmatprep.subr.bf16.mxu0 %v5971
        %8927 = vmatpush1.bf16.msra.mxu0 %v5970
        %8928 = vmatprep.subr.bf16.mxu0 %v5947
        %8929 = vmatpush1.bf16.msra.mxu0 %v5946
        %8930 = vmatprep.subr.bf16.mxu0 %v5923
        %8931 = vmatpush1.bf16.msra.mxu0 %v5922
        %8932 = vmatprep.subr.bf16.mxu0 %v6283
        %8933 = vmatpush2.bf16.msra.mxu0 %v6282
        %8934 = vmatprep.subr.bf16.mxu0 %v6259
        %8935 = vmatpush2.bf16.msra.mxu0 %v6258
        %8936 = vmatprep.subr.bf16.mxu0 %v6235
        %8937 = vmatpush2.bf16.msra.mxu0 %v6234
        %8938 = vmatprep.subr.bf16.mxu0 %v6211
        %8939 = vmatpush2.bf16.msra.mxu0 %v6210
        %8940 = vmatprep.subr.bf16.mxu0 %v6187
        %8941 = vmatpush2.bf16.msra.mxu0 %v6186
        %8942 = vmatprep.subr.bf16.mxu0 %v6163
        %8943 = vmatpush2.bf16.msra.mxu0 %v6162
        %8944 = vmatprep.subr.bf16.mxu0 %v6139
        %8945 = vmatpush2.bf16.msra.mxu0 %v6138
        %8946 = vmatprep.subr.bf16.mxu0 %v6115
        %8947 = vmatpush2.bf16.msra.mxu0 %v6114
        %8948 = vmatprep.mubr.bf16.mxu0 %v5129
        %8949 = vmatmul.mubr.bf16.gmra.mxu0 %v5128
        %v8950 = vpop.f32.mrf.mxu0
        %v8951 = vadd.f32 0.0, %v8950
        %v8952 = vpop.f32.mrf.mxu0
        %v8953 = vadd.f32 0.0, %v8952
        %v8954 = vpop.f32.mrf.mxu0
        %v8955 = vpop.f32.mrf.mxu0
        %8956 = vdwg.mxu0
        %8957 = vmatprep.subr.bf16.mxu0 %v6475
        %8958 = vmatpush1.bf16.msra.mxu0 %v6474
        %8959 = vmatprep.subr.bf16.mxu0 %v6451
        %8960 = vmatpush1.bf16.msra.mxu0 %v6450
        %8961 = vmatprep.subr.bf16.mxu0 %v6427
        %8962 = vmatpush1.bf16.msra.mxu0 %v6426
        %8963 = vmatprep.subr.bf16.mxu0 %v6403
        %8964 = vmatpush1.bf16.msra.mxu0 %v6402
        %8965 = vmatprep.subr.bf16.mxu0 %v6379
        %8966 = vmatpush1.bf16.msra.mxu0 %v6378
        %8967 = vmatprep.subr.bf16.mxu0 %v6355
        %8968 = vmatpush1.bf16.msra.mxu0 %v6354
        %8969 = vmatprep.subr.bf16.mxu0 %v6331
        %8970 = vmatpush1.bf16.msra.mxu0 %v6330
        %8971 = vmatprep.subr.bf16.mxu0 %v6307
        %8972 = vmatpush1.bf16.msra.mxu0 %v6306
        %8973 = vmatprep.subr.bf16.mxu0 %v6667
        %8974 = vmatpush2.bf16.msra.mxu0 %v6666
        %8975 = vmatprep.subr.bf16.mxu0 %v6643
        %8976 = vmatpush2.bf16.msra.mxu0 %v6642
        %8977 = vmatprep.subr.bf16.mxu0 %v6619
        %8978 = vmatpush2.bf16.msra.mxu0 %v6618
        %8979 = vmatprep.subr.bf16.mxu0 %v6595
        %8980 = vmatpush2.bf16.msra.mxu0 %v6594
        %8981 = vmatprep.subr.bf16.mxu0 %v6571
        %8982 = vmatpush2.bf16.msra.mxu0 %v6570
        %8983 = vmatprep.subr.bf16.mxu0 %v6547
        %8984 = vmatpush2.bf16.msra.mxu0 %v6546
        %8985 = vmatprep.subr.bf16.mxu0 %v6523
        %8986 = vmatpush2.bf16.msra.mxu0 %v6522
        %8987 = vmatprep.subr.bf16.mxu0 %v6499
        %8988 = vmatpush2.bf16.msra.mxu0 %v6498
        %8989 = vmatprep.mubr.bf16.mxu0 %v5131
        %8990 = vmatmul.mubr.bf16.gmra.mxu0 %v5130
        %v8991 = vpop.f32.mrf.mxu0
        %v8992 = vadd.f32 %v8951, %v8991
        %v8993 = vpop.f32.mrf.mxu0
        %v8994 = vadd.f32 %v8953, %v8993
        %v8995 = vpop.f32.mrf.mxu0
        %v8996 = vpop.f32.mrf.mxu0
        %8997 = vdwg.mxu0
        %8998 = vmatprep.subr.bf16.mxu0 %v6859
        %8999 = vmatpush1.bf16.msra.mxu0 %v6858
        %9000 = vmatprep.subr.bf16.mxu0 %v6835
        %9001 = vmatpush1.bf16.msra.mxu0 %v6834
        %9002 = vmatprep.subr.bf16.mxu0 %v6811
        %9003 = vmatpush1.bf16.msra.mxu0 %v6810
        %9004 = vmatprep.subr.bf16.mxu0 %v6787
        %9005 = vmatpush1.bf16.msra.mxu0 %v6786
        %9006 = vmatprep.subr.bf16.mxu0 %v6763
        %9007 = vmatpush1.bf16.msra.mxu0 %v6762
        %9008 = vmatprep.subr.bf16.mxu0 %v6739
        %9009 = vmatpush1.bf16.msra.mxu0 %v6738
        %9010 = vmatprep.subr.bf16.mxu0 %v6715
        %9011 = vmatpush1.bf16.msra.mxu0 %v6714
        %9012 = vmatprep.subr.bf16.mxu0 %v6691
        %9013 = vmatpush1.bf16.msra.mxu0 %v6690
        %9014 = vmatprep.subr.bf16.mxu0 %v7051
        %9015 = vmatpush2.bf16.msra.mxu0 %v7050
        %9016 = vmatprep.subr.bf16.mxu0 %v7027
        %9017 = vmatpush2.bf16.msra.mxu0 %v7026
        %9018 = vmatprep.subr.bf16.mxu0 %v7003
        %9019 = vmatpush2.bf16.msra.mxu0 %v7002
        %9020 = vmatprep.subr.bf16.mxu0 %v6979
        %9021 = vmatpush2.bf16.msra.mxu0 %v6978
        %9022 = vmatprep.subr.bf16.mxu0 %v6955
        %9023 = vmatpush2.bf16.msra.mxu0 %v6954
        %9024 = vmatprep.subr.bf16.mxu0 %v6931
        %9025 = vmatpush2.bf16.msra.mxu0 %v6930
        %9026 = vmatprep.subr.bf16.mxu0 %v6907
        %9027 = vmatpush2.bf16.msra.mxu0 %v6906
        %9028 = vmatprep.subr.bf16.mxu0 %v6883
        %9029 = vmatpush2.bf16.msra.mxu0 %v6882
        %9030 = vmatprep.mubr.bf16.mxu0 %v5133
        %9031 = vmatmul.mubr.bf16.gmra.mxu0 %v5132
        %v9032 = vpop.f32.mrf.mxu0
        %v9033 = vadd.f32 %v8992, %v9032
        %v9034 = vpop.f32.mrf.mxu0
        %v9035 = vadd.f32 %v8994, %v9034
        %v9036 = vpop.f32.mrf.mxu0
        %v9037 = vpop.f32.mrf.mxu0
        %9038 = vdwg.mxu0
        %9039 = vmatprep.subr.bf16.mxu0 %v7243
        %9040 = vmatpush1.bf16.msra.mxu0 %v7242
        %9041 = vmatprep.subr.bf16.mxu0 %v7219
        %9042 = vmatpush1.bf16.msra.mxu0 %v7218
        %9043 = vmatprep.subr.bf16.mxu0 %v7195
        %9044 = vmatpush1.bf16.msra.mxu0 %v7194
        %9045 = vmatprep.subr.bf16.mxu0 %v7171
        %9046 = vmatpush1.bf16.msra.mxu0 %v7170
        %9047 = vmatprep.subr.bf16.mxu0 %v7147
        %9048 = vmatpush1.bf16.msra.mxu0 %v7146
        %9049 = vmatprep.subr.bf16.mxu0 %v7123
        %9050 = vmatpush1.bf16.msra.mxu0 %v7122
        %9051 = vmatprep.subr.bf16.mxu0 %v7099
        %9052 = vmatpush1.bf16.msra.mxu0 %v7098
        %9053 = vmatprep.subr.bf16.mxu0 %v7075
        %9054 = vmatpush1.bf16.msra.mxu0 %v7074
        %9055 = vmatprep.subr.bf16.mxu0 %v7435
        %9056 = vmatpush2.bf16.msra.mxu0 %v7434
        %9057 = vmatprep.subr.bf16.mxu0 %v7411
        %9058 = vmatpush2.bf16.msra.mxu0 %v7410
        %9059 = vmatprep.subr.bf16.mxu0 %v7387
        %9060 = vmatpush2.bf16.msra.mxu0 %v7386
        %9061 = vmatprep.subr.bf16.mxu0 %v7363
        %9062 = vmatpush2.bf16.msra.mxu0 %v7362
        %9063 = vmatprep.subr.bf16.mxu0 %v7339
        %9064 = vmatpush2.bf16.msra.mxu0 %v7338
        %9065 = vmatprep.subr.bf16.mxu0 %v7315
        %9066 = vmatpush2.bf16.msra.mxu0 %v7314
        %9067 = vmatprep.subr.bf16.mxu0 %v7291
        %9068 = vmatpush2.bf16.msra.mxu0 %v7290
        %9069 = vmatprep.subr.bf16.mxu0 %v7267
        %9070 = vmatpush2.bf16.msra.mxu0 %v7266
        %9071 = vmatprep.mubr.bf16.mxu0 %v5135
        %9072 = vmatmul.mubr.bf16.gmra.mxu0 %v5134
        %v9073 = vpop.f32.mrf.mxu0
        %v9074 = vadd.f32 %v9033, %v9073
        %v9075 = vpop.f32.mrf.mxu0
        %v9076 = vadd.f32 %v9035, %v9075
        %v9077 = vpop.f32.mrf.mxu0
        %v9078 = vpop.f32.mrf.mxu0
        %9079 = vdwg.mxu0
        %9080 = vmatprep.subr.bf16.mxu0 %v6093
        %9081 = vmatpush1.bf16.msra.mxu0 %v6092
        %9082 = vmatprep.subr.bf16.mxu0 %v6069
        %9083 = vmatpush1.bf16.msra.mxu0 %v6068
        %9084 = vmatprep.subr.bf16.mxu0 %v6045
        %9085 = vmatpush1.bf16.msra.mxu0 %v6044
        %9086 = vmatprep.subr.bf16.mxu0 %v6021
        %9087 = vmatpush1.bf16.msra.mxu0 %v6020
        %9088 = vmatprep.subr.bf16.mxu0 %v5997
        %9089 = vmatpush1.bf16.msra.mxu0 %v5996
        %9090 = vmatprep.subr.bf16.mxu0 %v5973
        %9091 = vmatpush1.bf16.msra.mxu0 %v5972
        %9092 = vmatprep.subr.bf16.mxu0 %v5949
        %9093 = vmatpush1.bf16.msra.mxu0 %v5948
        %9094 = vmatprep.subr.bf16.mxu0 %v5925
        %9095 = vmatpush1.bf16.msra.mxu0 %v5924
        %9096 = vmatprep.subr.bf16.mxu0 %v6285
        %9097 = vmatpush2.bf16.msra.mxu0 %v6284
        %9098 = vmatprep.subr.bf16.mxu0 %v6261
        %9099 = vmatpush2.bf16.msra.mxu0 %v6260
        %9100 = vmatprep.subr.bf16.mxu0 %v6237
        %9101 = vmatpush2.bf16.msra.mxu0 %v6236
        %9102 = vmatprep.subr.bf16.mxu0 %v6213
        %9103 = vmatpush2.bf16.msra.mxu0 %v6212
        %9104 = vmatprep.subr.bf16.mxu0 %v6189
        %9105 = vmatpush2.bf16.msra.mxu0 %v6188
        %9106 = vmatprep.subr.bf16.mxu0 %v6165
        %9107 = vmatpush2.bf16.msra.mxu0 %v6164
        %9108 = vmatprep.subr.bf16.mxu0 %v6141
        %9109 = vmatpush2.bf16.msra.mxu0 %v6140
        %9110 = vmatprep.subr.bf16.mxu0 %v6117
        %9111 = vmatpush2.bf16.msra.mxu0 %v6116
        %9112 = vmatprep.mubr.bf16.mxu0 %v5129
        %9113 = vmatmul.mubr.bf16.gmra.mxu0 %v5128
        %v9114 = vpop.f32.mrf.mxu0
        %v9115 = vadd.f32 0.0, %v9114
        %v9116 = vpop.f32.mrf.mxu0
        %v9117 = vadd.f32 0.0, %v9116
        %v9118 = vpop.f32.mrf.mxu0
        %v9119 = vpop.f32.mrf.mxu0
        %9120 = vdwg.mxu0
        %9121 = vmatprep.subr.bf16.mxu0 %v6477
        %9122 = vmatpush1.bf16.msra.mxu0 %v6476
        %9123 = vmatprep.subr.bf16.mxu0 %v6453
        %9124 = vmatpush1.bf16.msra.mxu0 %v6452
        %9125 = vmatprep.subr.bf16.mxu0 %v6429
        %9126 = vmatpush1.bf16.msra.mxu0 %v6428
        %9127 = vmatprep.subr.bf16.mxu0 %v6405
        %9128 = vmatpush1.bf16.msra.mxu0 %v6404
        %9129 = vmatprep.subr.bf16.mxu0 %v6381
        %9130 = vmatpush1.bf16.msra.mxu0 %v6380
        %9131 = vmatprep.subr.bf16.mxu0 %v6357
        %9132 = vmatpush1.bf16.msra.mxu0 %v6356
        %9133 = vmatprep.subr.bf16.mxu0 %v6333
        %9134 = vmatpush1.bf16.msra.mxu0 %v6332
        %9135 = vmatprep.subr.bf16.mxu0 %v6309
        %9136 = vmatpush1.bf16.msra.mxu0 %v6308
        %9137 = vmatprep.subr.bf16.mxu0 %v6669
        %9138 = vmatpush2.bf16.msra.mxu0 %v6668
        %9139 = vmatprep.subr.bf16.mxu0 %v6645
        %9140 = vmatpush2.bf16.msra.mxu0 %v6644
        %9141 = vmatprep.subr.bf16.mxu0 %v6621
        %9142 = vmatpush2.bf16.msra.mxu0 %v6620
        %9143 = vmatprep.subr.bf16.mxu0 %v6597
        %9144 = vmatpush2.bf16.msra.mxu0 %v6596
        %9145 = vmatprep.subr.bf16.mxu0 %v6573
        %9146 = vmatpush2.bf16.msra.mxu0 %v6572
        %9147 = vmatprep.subr.bf16.mxu0 %v6549
        %9148 = vmatpush2.bf16.msra.mxu0 %v6548
        %9149 = vmatprep.subr.bf16.mxu0 %v6525
        %9150 = vmatpush2.bf16.msra.mxu0 %v6524
        %9151 = vmatprep.subr.bf16.mxu0 %v6501
        %9152 = vmatpush2.bf16.msra.mxu0 %v6500
        %9153 = vmatprep.mubr.bf16.mxu0 %v5131
        %9154 = vmatmul.mubr.bf16.gmra.mxu0 %v5130
        %v9155 = vpop.f32.mrf.mxu0
        %v9156 = vadd.f32 %v9115, %v9155
        %v9157 = vpop.f32.mrf.mxu0
        %v9158 = vadd.f32 %v9117, %v9157
        %v9159 = vpop.f32.mrf.mxu0
        %v9160 = vpop.f32.mrf.mxu0
        %9161 = vdwg.mxu0
        %9162 = vmatprep.subr.bf16.mxu0 %v6861
        %9163 = vmatpush1.bf16.msra.mxu0 %v6860
        %9164 = vmatprep.subr.bf16.mxu0 %v6837
        %9165 = vmatpush1.bf16.msra.mxu0 %v6836
        %9166 = vmatprep.subr.bf16.mxu0 %v6813
        %9167 = vmatpush1.bf16.msra.mxu0 %v6812
        %9168 = vmatprep.subr.bf16.mxu0 %v6789
        %9169 = vmatpush1.bf16.msra.mxu0 %v6788
        %9170 = vmatprep.subr.bf16.mxu0 %v6765
        %9171 = vmatpush1.bf16.msra.mxu0 %v6764
        %9172 = vmatprep.subr.bf16.mxu0 %v6741
        %9173 = vmatpush1.bf16.msra.mxu0 %v6740
        %9174 = vmatprep.subr.bf16.mxu0 %v6717
        %9175 = vmatpush1.bf16.msra.mxu0 %v6716
        %9176 = vmatprep.subr.bf16.mxu0 %v6693
        %9177 = vmatpush1.bf16.msra.mxu0 %v6692
        %9178 = vmatprep.subr.bf16.mxu0 %v7053
        %9179 = vmatpush2.bf16.msra.mxu0 %v7052
        %9180 = vmatprep.subr.bf16.mxu0 %v7029
        %9181 = vmatpush2.bf16.msra.mxu0 %v7028
        %9182 = vmatprep.subr.bf16.mxu0 %v7005
        %9183 = vmatpush2.bf16.msra.mxu0 %v7004
        %9184 = vmatprep.subr.bf16.mxu0 %v6981
        %9185 = vmatpush2.bf16.msra.mxu0 %v6980
        %9186 = vmatprep.subr.bf16.mxu0 %v6957
        %9187 = vmatpush2.bf16.msra.mxu0 %v6956
        %9188 = vmatprep.subr.bf16.mxu0 %v6933
        %9189 = vmatpush2.bf16.msra.mxu0 %v6932
        %9190 = vmatprep.subr.bf16.mxu0 %v6909
        %9191 = vmatpush2.bf16.msra.mxu0 %v6908
        %9192 = vmatprep.subr.bf16.mxu0 %v6885
        %9193 = vmatpush2.bf16.msra.mxu0 %v6884
        %9194 = vmatprep.mubr.bf16.mxu0 %v5133
        %9195 = vmatmul.mubr.bf16.gmra.mxu0 %v5132
        %v9196 = vpop.f32.mrf.mxu0
        %v9197 = vadd.f32 %v9156, %v9196
        %v9198 = vpop.f32.mrf.mxu0
        %v9199 = vadd.f32 %v9158, %v9198
        %v9200 = vpop.f32.mrf.mxu0
        %v9201 = vpop.f32.mrf.mxu0
        %9202 = vdwg.mxu0
        %9203 = vmatprep.subr.bf16.mxu0 %v7245
        %9204 = vmatpush1.bf16.msra.mxu0 %v7244
        %9205 = vmatprep.subr.bf16.mxu0 %v7221
        %9206 = vmatpush1.bf16.msra.mxu0 %v7220
        %9207 = vmatprep.subr.bf16.mxu0 %v7197
        %9208 = vmatpush1.bf16.msra.mxu0 %v7196
        %9209 = vmatprep.subr.bf16.mxu0 %v7173
        %9210 = vmatpush1.bf16.msra.mxu0 %v7172
        %9211 = vmatprep.subr.bf16.mxu0 %v7149
        %9212 = vmatpush1.bf16.msra.mxu0 %v7148
        %9213 = vmatprep.subr.bf16.mxu0 %v7125
        %9214 = vmatpush1.bf16.msra.mxu0 %v7124
        %9215 = vmatprep.subr.bf16.mxu0 %v7101
        %9216 = vmatpush1.bf16.msra.mxu0 %v7100
        %9217 = vmatprep.subr.bf16.mxu0 %v7077
        %9218 = vmatpush1.bf16.msra.mxu0 %v7076
        %9219 = vmatprep.subr.bf16.mxu0 %v7437
        %9220 = vmatpush2.bf16.msra.mxu0 %v7436
        %9221 = vmatprep.subr.bf16.mxu0 %v7413
        %9222 = vmatpush2.bf16.msra.mxu0 %v7412
        %9223 = vmatprep.subr.bf16.mxu0 %v7389
        %9224 = vmatpush2.bf16.msra.mxu0 %v7388
        %9225 = vmatprep.subr.bf16.mxu0 %v7365
        %9226 = vmatpush2.bf16.msra.mxu0 %v7364
        %9227 = vmatprep.subr.bf16.mxu0 %v7341
        %9228 = vmatpush2.bf16.msra.mxu0 %v7340
        %9229 = vmatprep.subr.bf16.mxu0 %v7317
        %9230 = vmatpush2.bf16.msra.mxu0 %v7316
        %9231 = vmatprep.subr.bf16.mxu0 %v7293
        %9232 = vmatpush2.bf16.msra.mxu0 %v7292
        %9233 = vmatprep.subr.bf16.mxu0 %v7269
        %9234 = vmatpush2.bf16.msra.mxu0 %v7268
        %9235 = vmatprep.mubr.bf16.mxu0 %v5135
        %9236 = vmatmul.mubr.bf16.gmra.mxu0 %v5134
        %v9237 = vpop.f32.mrf.mxu0
        %v9238 = vadd.f32 %v9197, %v9237
        %v9239 = vpop.f32.mrf.mxu0
        %v9240 = vadd.f32 %v9199, %v9239
        %v9241 = vpop.f32.mrf.mxu0
        %v9242 = vpop.f32.mrf.mxu0
        %9243 = vdwg.mxu0
        %9244 = vmatprep.subr.bf16.mxu0 %v6095
        %9245 = vmatpush1.bf16.msra.mxu0 %v6094
        %9246 = vmatprep.subr.bf16.mxu0 %v6071
        %9247 = vmatpush1.bf16.msra.mxu0 %v6070
        %9248 = vmatprep.subr.bf16.mxu0 %v6047
        %9249 = vmatpush1.bf16.msra.mxu0 %v6046
        %9250 = vmatprep.subr.bf16.mxu0 %v6023
        %9251 = vmatpush1.bf16.msra.mxu0 %v6022
        %9252 = vmatprep.subr.bf16.mxu0 %v5999
        %9253 = vmatpush1.bf16.msra.mxu0 %v5998
        %9254 = vmatprep.subr.bf16.mxu0 %v5975
        %9255 = vmatpush1.bf16.msra.mxu0 %v5974
        %9256 = vmatprep.subr.bf16.mxu0 %v5951
        %9257 = vmatpush1.bf16.msra.mxu0 %v5950
        %9258 = vmatprep.subr.bf16.mxu0 %v5927
        %9259 = vmatpush1.bf16.msra.mxu0 %v5926
        %9260 = vmatprep.subr.bf16.mxu0 %v6287
        %9261 = vmatpush2.bf16.msra.mxu0 %v6286
        %9262 = vmatprep.subr.bf16.mxu0 %v6263
        %9263 = vmatpush2.bf16.msra.mxu0 %v6262
        %9264 = vmatprep.subr.bf16.mxu0 %v6239
        %9265 = vmatpush2.bf16.msra.mxu0 %v6238
        %9266 = vmatprep.subr.bf16.mxu0 %v6215
        %9267 = vmatpush2.bf16.msra.mxu0 %v6214
        %9268 = vmatprep.subr.bf16.mxu0 %v6191
        %9269 = vmatpush2.bf16.msra.mxu0 %v6190
        %9270 = vmatprep.subr.bf16.mxu0 %v6167
        %9271 = vmatpush2.bf16.msra.mxu0 %v6166
        %9272 = vmatprep.subr.bf16.mxu0 %v6143
        %9273 = vmatpush2.bf16.msra.mxu0 %v6142
        %9274 = vmatprep.subr.bf16.mxu0 %v6119
        %9275 = vmatpush2.bf16.msra.mxu0 %v6118
        %9276 = vmatprep.mubr.bf16.mxu0 %v5129
        %9277 = vmatmul.mubr.bf16.gmra.mxu0 %v5128
        %v9278 = vpop.f32.mrf.mxu0
        %v9279 = vadd.f32 0.0, %v9278
        %v9280 = vpop.f32.mrf.mxu0
        %v9281 = vadd.f32 0.0, %v9280
        %v9282 = vpop.f32.mrf.mxu0
        %v9283 = vpop.f32.mrf.mxu0
        %9284 = vdwg.mxu0
        %9285 = vmatprep.subr.bf16.mxu0 %v6479
        %9286 = vmatpush1.bf16.msra.mxu0 %v6478
        %9287 = vmatprep.subr.bf16.mxu0 %v6455
        %9288 = vmatpush1.bf16.msra.mxu0 %v6454
        %9289 = vmatprep.subr.bf16.mxu0 %v6431
        %9290 = vmatpush1.bf16.msra.mxu0 %v6430
        %9291 = vmatprep.subr.bf16.mxu0 %v6407
        %9292 = vmatpush1.bf16.msra.mxu0 %v6406
        %9293 = vmatprep.subr.bf16.mxu0 %v6383
        %9294 = vmatpush1.bf16.msra.mxu0 %v6382
        %9295 = vmatprep.subr.bf16.mxu0 %v6359
        %9296 = vmatpush1.bf16.msra.mxu0 %v6358
        %9297 = vmatprep.subr.bf16.mxu0 %v6335
        %9298 = vmatpush1.bf16.msra.mxu0 %v6334
        %9299 = vmatprep.subr.bf16.mxu0 %v6311
        %9300 = vmatpush1.bf16.msra.mxu0 %v6310
        %9301 = vmatprep.subr.bf16.mxu0 %v6671
        %9302 = vmatpush2.bf16.msra.mxu0 %v6670
        %9303 = vmatprep.subr.bf16.mxu0 %v6647
        %9304 = vmatpush2.bf16.msra.mxu0 %v6646
        %9305 = vmatprep.subr.bf16.mxu0 %v6623
        %9306 = vmatpush2.bf16.msra.mxu0 %v6622
        %9307 = vmatprep.subr.bf16.mxu0 %v6599
        %9308 = vmatpush2.bf16.msra.mxu0 %v6598
        %9309 = vmatprep.subr.bf16.mxu0 %v6575
        %9310 = vmatpush2.bf16.msra.mxu0 %v6574
        %9311 = vmatprep.subr.bf16.mxu0 %v6551
        %9312 = vmatpush2.bf16.msra.mxu0 %v6550
        %9313 = vmatprep.subr.bf16.mxu0 %v6527
        %9314 = vmatpush2.bf16.msra.mxu0 %v6526
        %9315 = vmatprep.subr.bf16.mxu0 %v6503
        %9316 = vmatpush2.bf16.msra.mxu0 %v6502
        %9317 = vmatprep.mubr.bf16.mxu0 %v5131
        %9318 = vmatmul.mubr.bf16.gmra.mxu0 %v5130
        %v9319 = vpop.f32.mrf.mxu0
        %v9320 = vadd.f32 %v9279, %v9319
        %v9321 = vpop.f32.mrf.mxu0
        %v9322 = vadd.f32 %v9281, %v9321
        %v9323 = vpop.f32.mrf.mxu0
        %v9324 = vpop.f32.mrf.mxu0
        %9325 = vdwg.mxu0
        %9326 = vmatprep.subr.bf16.mxu0 %v6863
        %9327 = vmatpush1.bf16.msra.mxu0 %v6862
        %9328 = vmatprep.subr.bf16.mxu0 %v6839
        %9329 = vmatpush1.bf16.msra.mxu0 %v6838
        %9330 = vmatprep.subr.bf16.mxu0 %v6815
        %9331 = vmatpush1.bf16.msra.mxu0 %v6814
        %9332 = vmatprep.subr.bf16.mxu0 %v6791
        %9333 = vmatpush1.bf16.msra.mxu0 %v6790
        %9334 = vmatprep.subr.bf16.mxu0 %v6767
        %9335 = vmatpush1.bf16.msra.mxu0 %v6766
        %9336 = vmatprep.subr.bf16.mxu0 %v6743
        %9337 = vmatpush1.bf16.msra.mxu0 %v6742
        %9338 = vmatprep.subr.bf16.mxu0 %v6719
        %9339 = vmatpush1.bf16.msra.mxu0 %v6718
        %9340 = vmatprep.subr.bf16.mxu0 %v6695
        %9341 = vmatpush1.bf16.msra.mxu0 %v6694
        %9342 = vmatprep.subr.bf16.mxu0 %v7055
        %9343 = vmatpush2.bf16.msra.mxu0 %v7054
        %9344 = vmatprep.subr.bf16.mxu0 %v7031
        %9345 = vmatpush2.bf16.msra.mxu0 %v7030
        %9346 = vmatprep.subr.bf16.mxu0 %v7007
        %9347 = vmatpush2.bf16.msra.mxu0 %v7006
        %9348 = vmatprep.subr.bf16.mxu0 %v6983
        %9349 = vmatpush2.bf16.msra.mxu0 %v6982
        %9350 = vmatprep.subr.bf16.mxu0 %v6959
        %9351 = vmatpush2.bf16.msra.mxu0 %v6958
        %9352 = vmatprep.subr.bf16.mxu0 %v6935
        %9353 = vmatpush2.bf16.msra.mxu0 %v6934
        %9354 = vmatprep.subr.bf16.mxu0 %v6911
        %9355 = vmatpush2.bf16.msra.mxu0 %v6910
        %9356 = vmatprep.subr.bf16.mxu0 %v6887
        %9357 = vmatpush2.bf16.msra.mxu0 %v6886
        %9358 = vmatprep.mubr.bf16.mxu0 %v5133
        %9359 = vmatmul.mubr.bf16.gmra.mxu0 %v5132
        %v9360 = vpop.f32.mrf.mxu0
        %v9361 = vadd.f32 %v9320, %v9360
        %v9362 = vpop.f32.mrf.mxu0
        %v9363 = vadd.f32 %v9322, %v9362
        %v9364 = vpop.f32.mrf.mxu0
        %v9365 = vpop.f32.mrf.mxu0
        %9366 = vdwg.mxu0
        %9367 = vmatprep.subr.bf16.mxu0 %v7247
        %9368 = vmatpush1.bf16.msra.mxu0 %v7246
        %9369 = vmatprep.subr.bf16.mxu0 %v7223
        %9370 = vmatpush1.bf16.msra.mxu0 %v7222
        %9371 = vmatprep.subr.bf16.mxu0 %v7199
        %9372 = vmatpush1.bf16.msra.mxu0 %v7198
        %9373 = vmatprep.subr.bf16.mxu0 %v7175
        %9374 = vmatpush1.bf16.msra.mxu0 %v7174
        %9375 = vmatprep.subr.bf16.mxu0 %v7151
        %9376 = vmatpush1.bf16.msra.mxu0 %v7150
        %9377 = vmatprep.subr.bf16.mxu0 %v7127
        %9378 = vmatpush1.bf16.msra.mxu0 %v7126
        %9379 = vmatprep.subr.bf16.mxu0 %v7103
        %9380 = vmatpush1.bf16.msra.mxu0 %v7102
        %9381 = vmatprep.subr.bf16.mxu0 %v7079
        %9382 = vmatpush1.bf16.msra.mxu0 %v7078
        %9383 = vmatprep.subr.bf16.mxu0 %v7439
        %9384 = vmatpush2.bf16.msra.mxu0 %v7438
        %9385 = vmatprep.subr.bf16.mxu0 %v7415
        %9386 = vmatpush2.bf16.msra.mxu0 %v7414
        %9387 = vmatprep.subr.bf16.mxu0 %v7391
        %9388 = vmatpush2.bf16.msra.mxu0 %v7390
        %9389 = vmatprep.subr.bf16.mxu0 %v7367
        %9390 = vmatpush2.bf16.msra.mxu0 %v7366
        %9391 = vmatprep.subr.bf16.mxu0 %v7343
        %9392 = vmatpush2.bf16.msra.mxu0 %v7342
        %9393 = vmatprep.subr.bf16.mxu0 %v7319
        %9394 = vmatpush2.bf16.msra.mxu0 %v7318
        %9395 = vmatprep.subr.bf16.mxu0 %v7295
        %9396 = vmatpush2.bf16.msra.mxu0 %v7294
        %9397 = vmatprep.subr.bf16.mxu0 %v7271
        %9398 = vmatpush2.bf16.msra.mxu0 %v7270
        %9399 = vmatprep.mubr.bf16.mxu0 %v5135
        %9400 = vmatmul.mubr.bf16.gmra.mxu0 %v5134
        %v9401 = vpop.f32.mrf.mxu0
        %v9402 = vadd.f32 %v9361, %v9401
        %v9403 = vpop.f32.mrf.mxu0
        %v9404 = vadd.f32 %v9363, %v9403
        %v9405 = vpop.f32.mrf.mxu0
        %v9406 = vpop.f32.mrf.mxu0
        %9407 = vdwg.mxu0
        %v9411 = vlaneseq
        %v9412 = vshrl.u32 %v9411, 7
        %v9413 = vsub.s32 0, %v9412
        %v9414 = vrot.slane %v461, %v9413
        %v9415 = vlaneseq
        %v9416 = vshrl.u32 %v9415, 7
        %v9417 = vsub.s32 1, %v9416
        %v9418 = vrot.slane %v461, %v9417
        %v9419 = vlaneseq
        %v9420 = vshrl.u32 %v9419, 7
        %v9421 = vsub.s32 2, %v9420
        %v9422 = vrot.slane %v461, %v9421
        %v9423 = vlaneseq
        %v9424 = vshrl.u32 %v9423, 7
        %v9425 = vsub.s32 3, %v9424
        %v9426 = vrot.slane %v461, %v9425
        %v9427 = vlaneseq
        %v9428 = vshrl.u32 %v9427, 7
        %v9429 = vsub.s32 4, %v9428
        %v9430 = vrot.slane %v461, %v9429
        %v9431 = vlaneseq
        %v9432 = vshrl.u32 %v9431, 7
        %v9433 = vsub.s32 5, %v9432
        %v9434 = vrot.slane %v461, %v9433
        %v9435 = vlaneseq
        %v9436 = vshrl.u32 %v9435, 7
        %v9437 = vsub.s32 6, %v9436
        %v9438 = vrot.slane %v461, %v9437
        %v9439 = vlaneseq
        %v9440 = vshrl.u32 %v9439, 7
        %v9441 = vsub.s32 7, %v9440
        %v9442 = vrot.slane %v461, %v9441
        %v9443 = vlaneseq
        %v9444 = vshrl.u32 %v9443, 7
        %v9445 = vsub.s32 0, %v9444
        %v9446 = vrot.slane %v463, %v9445
        %v9447 = vlaneseq
        %v9448 = vshrl.u32 %v9447, 7
        %v9449 = vsub.s32 1, %v9448
        %v9450 = vrot.slane %v463, %v9449
        %v9451 = vlaneseq
        %v9452 = vshrl.u32 %v9451, 7
        %v9453 = vsub.s32 2, %v9452
        %v9454 = vrot.slane %v463, %v9453
        %v9455 = vlaneseq
        %v9456 = vshrl.u32 %v9455, 7
        %v9457 = vsub.s32 3, %v9456
        %v9458 = vrot.slane %v463, %v9457
        %v9459 = vlaneseq
        %v9460 = vshrl.u32 %v9459, 7
        %v9461 = vsub.s32 4, %v9460
        %v9462 = vrot.slane %v463, %v9461
        %v9463 = vlaneseq
        %v9464 = vshrl.u32 %v9463, 7
        %v9465 = vsub.s32 5, %v9464
        %v9466 = vrot.slane %v463, %v9465
        %v9467 = vlaneseq
        %v9468 = vshrl.u32 %v9467, 7
        %v9469 = vsub.s32 6, %v9468
        %v9470 = vrot.slane %v463, %v9469
        %v9471 = vlaneseq
        %v9472 = vshrl.u32 %v9471, 7
        %v9473 = vsub.s32 7, %v9472
        %v9474 = vrot.slane %v463, %v9473
        %v9475 = vlaneseq
        %v9476 = vshrl.u32 %v9475, 7
        %v9477 = vsub.s32 0, %v9476
        %v9478 = vrot.slane %v465, %v9477
        %v9479 = vlaneseq
        %v9480 = vshrl.u32 %v9479, 7
        %v9481 = vsub.s32 1, %v9480
        %v9482 = vrot.slane %v465, %v9481
        %v9483 = vlaneseq
        %v9484 = vshrl.u32 %v9483, 7
        %v9485 = vsub.s32 2, %v9484
        %v9486 = vrot.slane %v465, %v9485
        %v9487 = vlaneseq
        %v9488 = vshrl.u32 %v9487, 7
        %v9489 = vsub.s32 3, %v9488
        %v9490 = vrot.slane %v465, %v9489
        %v9491 = vlaneseq
        %v9492 = vshrl.u32 %v9491, 7
        %v9493 = vsub.s32 4, %v9492
        %v9494 = vrot.slane %v465, %v9493
        %v9495 = vlaneseq
        %v9496 = vshrl.u32 %v9495, 7
        %v9497 = vsub.s32 5, %v9496
        %v9498 = vrot.slane %v465, %v9497
        %v9499 = vlaneseq
        %v9500 = vshrl.u32 %v9499, 7
        %v9501 = vsub.s32 6, %v9500
        %v9502 = vrot.slane %v465, %v9501
        %v9503 = vlaneseq
        %v9504 = vshrl.u32 %v9503, 7
        %v9505 = vsub.s32 7, %v9504
        %v9506 = vrot.slane %v465, %v9505
        %v9531 = vmul.f32 %v7598, %v9414
        %v9532 = vmul.f32 %v7600, %v9418
        %v9533 = vmul.f32 %v7762, %v9422
        %v9534 = vmul.f32 %v7764, %v9426
        %v9535 = vmul.f32 %v7926, %v9430
        %v9536 = vmul.f32 %v7928, %v9434
        %v9537 = vmul.f32 %v8090, %v9438
        %v9538 = vmul.f32 %v8092, %v9442
        %v9539 = vmul.f32 %v8254, %v9446
        %v9540 = vmul.f32 %v8256, %v9450
        %v9541 = vmul.f32 %v8418, %v9454
        %v9542 = vmul.f32 %v8420, %v9458
        %v9543 = vmul.f32 %v8582, %v9462
        %v9544 = vmul.f32 %v8584, %v9466
        %v9545 = vmul.f32 %v8746, %v9470
        %v9546 = vmul.f32 %v8748, %v9474
        %v9547 = vmul.f32 %v8910, %v9478
        %v9548 = vmul.f32 %v8912, %v9482
        %v9549 = vmul.f32 %v9074, %v9486
        %v9550 = vmul.f32 %v9076, %v9490
        %v9551 = vmul.f32 %v9238, %v9494
        %v9552 = vmul.f32 %v9240, %v9498
        %v9553 = vmul.f32 %v9402, %v9502
        %v9554 = vmul.f32 %v9404, %v9506
        %v9558 = vlaneseq
        %v9559 = vshrl.u32 %v9558, 7
        %v9560 = vsub.s32 0, %v9559
        %v9561 = vrot.slane %v449, %v9560
        %v9562 = vlaneseq
        %v9563 = vshrl.u32 %v9562, 7
        %v9564 = vsub.s32 1, %v9563
        %v9565 = vrot.slane %v449, %v9564
        %v9566 = vlaneseq
        %v9567 = vshrl.u32 %v9566, 7
        %v9568 = vsub.s32 2, %v9567
        %v9569 = vrot.slane %v449, %v9568
        %v9570 = vlaneseq
        %v9571 = vshrl.u32 %v9570, 7
        %v9572 = vsub.s32 3, %v9571
        %v9573 = vrot.slane %v449, %v9572
        %v9574 = vlaneseq
        %v9575 = vshrl.u32 %v9574, 7
        %v9576 = vsub.s32 4, %v9575
        %v9577 = vrot.slane %v449, %v9576
        %v9578 = vlaneseq
        %v9579 = vshrl.u32 %v9578, 7
        %v9580 = vsub.s32 5, %v9579
        %v9581 = vrot.slane %v449, %v9580
        %v9582 = vlaneseq
        %v9583 = vshrl.u32 %v9582, 7
        %v9584 = vsub.s32 6, %v9583
        %v9585 = vrot.slane %v449, %v9584
        %v9586 = vlaneseq
        %v9587 = vshrl.u32 %v9586, 7
        %v9588 = vsub.s32 7, %v9587
        %v9589 = vrot.slane %v449, %v9588
        %v9590 = vlaneseq
        %v9591 = vshrl.u32 %v9590, 7
        %v9592 = vsub.s32 0, %v9591
        %v9593 = vrot.slane %v451, %v9592
        %v9594 = vlaneseq
        %v9595 = vshrl.u32 %v9594, 7
        %v9596 = vsub.s32 1, %v9595
        %v9597 = vrot.slane %v451, %v9596
        %v9598 = vlaneseq
        %v9599 = vshrl.u32 %v9598, 7
        %v9600 = vsub.s32 2, %v9599
        %v9601 = vrot.slane %v451, %v9600
        %v9602 = vlaneseq
        %v9603 = vshrl.u32 %v9602, 7
        %v9604 = vsub.s32 3, %v9603
        %v9605 = vrot.slane %v451, %v9604
        %v9606 = vlaneseq
        %v9607 = vshrl.u32 %v9606, 7
        %v9608 = vsub.s32 4, %v9607
        %v9609 = vrot.slane %v451, %v9608
        %v9610 = vlaneseq
        %v9611 = vshrl.u32 %v9610, 7
        %v9612 = vsub.s32 5, %v9611
        %v9613 = vrot.slane %v451, %v9612
        %v9614 = vlaneseq
        %v9615 = vshrl.u32 %v9614, 7
        %v9616 = vsub.s32 6, %v9615
        %v9617 = vrot.slane %v451, %v9616
        %v9618 = vlaneseq
        %v9619 = vshrl.u32 %v9618, 7
        %v9620 = vsub.s32 7, %v9619
        %v9621 = vrot.slane %v451, %v9620
        %v9622 = vlaneseq
        %v9623 = vshrl.u32 %v9622, 7
        %v9624 = vsub.s32 0, %v9623
        %v9625 = vrot.slane %v453, %v9624
        %v9626 = vlaneseq
        %v9627 = vshrl.u32 %v9626, 7
        %v9628 = vsub.s32 1, %v9627
        %v9629 = vrot.slane %v453, %v9628
        %v9630 = vlaneseq
        %v9631 = vshrl.u32 %v9630, 7
        %v9632 = vsub.s32 2, %v9631
        %v9633 = vrot.slane %v453, %v9632
        %v9634 = vlaneseq
        %v9635 = vshrl.u32 %v9634, 7
        %v9636 = vsub.s32 3, %v9635
        %v9637 = vrot.slane %v453, %v9636
        %v9638 = vlaneseq
        %v9639 = vshrl.u32 %v9638, 7
        %v9640 = vsub.s32 4, %v9639
        %v9641 = vrot.slane %v453, %v9640
        %v9642 = vlaneseq
        %v9643 = vshrl.u32 %v9642, 7
        %v9644 = vsub.s32 5, %v9643
        %v9645 = vrot.slane %v453, %v9644
        %v9646 = vlaneseq
        %v9647 = vshrl.u32 %v9646, 7
        %v9648 = vsub.s32 6, %v9647
        %v9649 = vrot.slane %v453, %v9648
        %v9650 = vlaneseq
        %v9651 = vshrl.u32 %v9650, 7
        %v9652 = vsub.s32 7, %v9651
        %v9653 = vrot.slane %v453, %v9652
        %v9678 = vadd.f32 %v9531, %v9561
        %v9679 = vadd.f32 %v9532, %v9565
        %v9680 = vadd.f32 %v9533, %v9569
        %v9681 = vadd.f32 %v9534, %v9573
        %v9682 = vadd.f32 %v9535, %v9577
        %v9683 = vadd.f32 %v9536, %v9581
        %v9684 = vadd.f32 %v9537, %v9585
        %v9685 = vadd.f32 %v9538, %v9589
        %v9686 = vadd.f32 %v9539, %v9593
        %v9687 = vadd.f32 %v9540, %v9597
        %v9688 = vadd.f32 %v9541, %v9601
        %v9689 = vadd.f32 %v9542, %v9605
        %v9690 = vadd.f32 %v9543, %v9609
        %v9691 = vadd.f32 %v9544, %v9613
        %v9692 = vadd.f32 %v9545, %v9617
        %v9693 = vadd.f32 %v9546, %v9621
        %v9694 = vadd.f32 %v9547, %v9625
        %v9695 = vadd.f32 %v9548, %v9629
        %v9696 = vadd.f32 %v9549, %v9633
        %v9697 = vadd.f32 %v9550, %v9637
        %v9698 = vadd.f32 %v9551, %v9641
        %v9699 = vadd.f32 %v9552, %v9645
        %v9700 = vadd.f32 %v9553, %v9649
        %v9701 = vadd.f32 %v9554, %v9653
        %v9702 = vld [vmem:[%s0] sm:$0xff]
        %v9703 = vld [vmem:[%s0 + $0x8] sm:$0xff]
        %v9704 = vld [vmem:[%s0 + $0x10] sm:$0xff]
        %s9705 = scalar_select %p442, 1, 0
        %v9706 = vstv %s9705
        %vm9707 = vcmp.eq.s32.totalorder %v9706, 1
        %v9732 = vcombine.low %v9678, %v9679
        %v9733 = vcombine.low %v9680, %v9681
        %v9734 = vcombine.low %v9682, %v9683
        %v9735 = vcombine.low %v9684, %v9685
        %v9737 = vunpack.c.l.s4 1966171168
        %v9738 = vunpack.c.0.s8 %v9737
        %v9739 = vlaneseq
        %v9740 = vshrl.u32 %v9739, 7
        %v9741 = vsub.s32 %v9738, %v9740
        %v9742 = vrot.slane %v9732, %v9741
        %v9744 = vunpack.c.l.s4 1966171168
        %v9745 = vunpack.c.0.s8 %v9744
        %v9746 = vlaneseq
        %v9747 = vshrl.u32 %v9746, 7
        %v9748 = vsub.s32 %v9745, %v9747
        %v9749 = vrot.slane %v9733, %v9748
        %v9751 = vunpack.c.l.s4 1966171168
        %v9752 = vunpack.c.0.s8 %v9751
        %v9753 = vlaneseq
        %v9754 = vshrl.u32 %v9753, 7
        %v9755 = vsub.s32 %v9752, %v9754
        %v9756 = vrot.slane %v9734, %v9755
        %v9758 = vunpack.c.l.s4 1966171168
        %v9759 = vunpack.c.0.s8 %v9758
        %v9760 = vlaneseq
        %v9761 = vshrl.u32 %v9760, 7
        %v9762 = vsub.s32 %v9759, %v9761
        %v9763 = vrot.slane %v9735, %v9762
        %v9764 = vcombine.low %v9742, %v9749
        %v9765 = vcombine.low %v9756, %v9763
        %v9767 = vunpack.c.l.s4 1966171168
        %v9768 = vunpack.c.0.s8 %v9767
        %v9769 = vlaneseq
        %v9770 = vshrl.u32 %v9769, 7
        %v9771 = vsub.s32 %v9768, %v9770
        %v9772 = vrot.slane %v9764, %v9771
        %v9774 = vunpack.c.l.s4 1966171168
        %v9775 = vunpack.c.0.s8 %v9774
        %v9776 = vlaneseq
        %v9777 = vshrl.u32 %v9776, 7
        %v9778 = vsub.s32 %v9775, %v9777
        %v9779 = vrot.slane %v9765, %v9778
        %v9780 = vcombine.low %v9772, %v9779
        %v9781 = vcombine.low %v9686, %v9687
        %v9782 = vcombine.low %v9688, %v9689
        %v9783 = vcombine.low %v9690, %v9691
        %v9784 = vcombine.low %v9692, %v9693
        %v9786 = vunpack.c.l.s4 1966171168
        %v9787 = vunpack.c.0.s8 %v9786
        %v9788 = vlaneseq
        %v9789 = vshrl.u32 %v9788, 7
        %v9790 = vsub.s32 %v9787, %v9789
        %v9791 = vrot.slane %v9781, %v9790
        %v9793 = vunpack.c.l.s4 1966171168
        %v9794 = vunpack.c.0.s8 %v9793
        %v9795 = vlaneseq
        %v9796 = vshrl.u32 %v9795, 7
        %v9797 = vsub.s32 %v9794, %v9796
        %v9798 = vrot.slane %v9782, %v9797
        %v9800 = vunpack.c.l.s4 1966171168
        %v9801 = vunpack.c.0.s8 %v9800
        %v9802 = vlaneseq
        %v9803 = vshrl.u32 %v9802, 7
        %v9804 = vsub.s32 %v9801, %v9803
        %v9805 = vrot.slane %v9783, %v9804
        %v9807 = vunpack.c.l.s4 1966171168
        %v9808 = vunpack.c.0.s8 %v9807
        %v9809 = vlaneseq
        %v9810 = vshrl.u32 %v9809, 7
        %v9811 = vsub.s32 %v9808, %v9810
        %v9812 = vrot.slane %v9784, %v9811
        %v9813 = vcombine.low %v9791, %v9798
        %v9814 = vcombine.low %v9805, %v9812
        %v9816 = vunpack.c.l.s4 1966171168
        %v9817 = vunpack.c.0.s8 %v9816
        %v9818 = vlaneseq
        %v9819 = vshrl.u32 %v9818, 7
        %v9820 = vsub.s32 %v9817, %v9819
        %v9821 = vrot.slane %v9813, %v9820
        %v9823 = vunpack.c.l.s4 1966171168
        %v9824 = vunpack.c.0.s8 %v9823
        %v9825 = vlaneseq
        %v9826 = vshrl.u32 %v9825, 7
        %v9827 = vsub.s32 %v9824, %v9826
        %v9828 = vrot.slane %v9814, %v9827
        %v9829 = vcombine.low %v9821, %v9828
        %v9830 = vcombine.low %v9694, %v9695
        %v9831 = vcombine.low %v9696, %v9697
        %v9832 = vcombine.low %v9698, %v9699
        %v9833 = vcombine.low %v9700, %v9701
        %v9835 = vunpack.c.l.s4 1966171168
        %v9836 = vunpack.c.0.s8 %v9835
        %v9837 = vlaneseq
        %v9838 = vshrl.u32 %v9837, 7
        %v9839 = vsub.s32 %v9836, %v9838
        %v9840 = vrot.slane %v9830, %v9839
        %v9842 = vunpack.c.l.s4 1966171168
        %v9843 = vunpack.c.0.s8 %v9842
        %v9844 = vlaneseq
        %v9845 = vshrl.u32 %v9844, 7
        %v9846 = vsub.s32 %v9843, %v9845
        %v9847 = vrot.slane %v9831, %v9846
        %v9849 = vunpack.c.l.s4 1966171168
        %v9850 = vunpack.c.0.s8 %v9849
        %v9851 = vlaneseq
        %v9852 = vshrl.u32 %v9851, 7
        %v9853 = vsub.s32 %v9850, %v9852
        %v9854 = vrot.slane %v9832, %v9853
        %v9856 = vunpack.c.l.s4 1966171168
        %v9857 = vunpack.c.0.s8 %v9856
        %v9858 = vlaneseq
        %v9859 = vshrl.u32 %v9858, 7
        %v9860 = vsub.s32 %v9857, %v9859
        %v9861 = vrot.slane %v9833, %v9860
        %v9862 = vcombine.low %v9840, %v9847
        %v9863 = vcombine.low %v9854, %v9861
        %v9865 = vunpack.c.l.s4 1966171168
        %v9866 = vunpack.c.0.s8 %v9865
        %v9867 = vlaneseq
        %v9868 = vshrl.u32 %v9867, 7
        %v9869 = vsub.s32 %v9866, %v9868
        %v9870 = vrot.slane %v9862, %v9869
        %v9872 = vunpack.c.l.s4 1966171168
        %v9873 = vunpack.c.0.s8 %v9872
        %v9874 = vlaneseq
        %v9875 = vshrl.u32 %v9874, 7
        %v9876 = vsub.s32 %v9873, %v9875
        %v9877 = vrot.slane %v9863, %v9876
        %v9878 = vcombine.low %v9870, %v9877
        %v9882 = vsel %vm9707, %v9702, %v9780
        %v9883 = vsel %vm9707, %v9703, %v9829
        %v9884 = vsel %vm9707, %v9704, %v9878
        %v9893 = vcombine.low %v5063, %v5064
        %v9894 = vcombine.low %v5065, %v5066
        %v9895 = vcombine.low %v5067, %v5068
        %v9896 = vcombine.low %v5069, %v5070
        %v9898 = vunpack.c.l.s4 1966171168
        %v9899 = vunpack.c.0.s8 %v9898
        %v9900 = vlaneseq
        %v9901 = vshrl.u32 %v9900, 7
        %v9902 = vsub.s32 %v9899, %v9901
        %v9903 = vrot.slane %v9893, %v9902
        %v9905 = vunpack.c.l.s4 1966171168
        %v9906 = vunpack.c.0.s8 %v9905
        %v9907 = vlaneseq
        %v9908 = vshrl.u32 %v9907, 7
        %v9909 = vsub.s32 %v9906, %v9908
        %v9910 = vrot.slane %v9894, %v9909
        %v9912 = vunpack.c.l.s4 1966171168
        %v9913 = vunpack.c.0.s8 %v9912
        %v9914 = vlaneseq
        %v9915 = vshrl.u32 %v9914, 7
        %v9916 = vsub.s32 %v9913, %v9915
        %v9917 = vrot.slane %v9895, %v9916
        %v9919 = vunpack.c.l.s4 1966171168
        %v9920 = vunpack.c.0.s8 %v9919
        %v9921 = vlaneseq
        %v9922 = vshrl.u32 %v9921, 7
        %v9923 = vsub.s32 %v9920, %v9922
        %v9924 = vrot.slane %v9896, %v9923
        %v9925 = vcombine.low %v9903, %v9910
        %v9926 = vcombine.low %v9917, %v9924
        %v9928 = vunpack.c.l.s4 1966171168
        %v9929 = vunpack.c.0.s8 %v9928
        %v9930 = vlaneseq
        %v9931 = vshrl.u32 %v9930, 7
        %v9932 = vsub.s32 %v9929, %v9931
        %v9933 = vrot.slane %v9925, %v9932
        %v9935 = vunpack.c.l.s4 1966171168
        %v9936 = vunpack.c.0.s8 %v9935
        %v9937 = vlaneseq
        %v9938 = vshrl.u32 %v9937, 7
        %v9939 = vsub.s32 %v9936, %v9938
        %v9940 = vrot.slane %v9926, %v9939
        %v9941 = vcombine.low %v9933, %v9940
        %v9943 = vadd.f32 %v9882, %v9941
        %v9944 = vxor.u32 %v9943, 2147483648
        %v9945 = vmul.f32 %v9944, 1.442695
        %v9946 = vpow.pop %v9945
        %v9947 = vadd.f32 %v9946, 1.0
        %v9948 = vrcp.pop %v9947
        %v9949 = vmul.f32 1.0, %v9948
        %v9958 = vcombine.low %v5071, %v5072
        %v9959 = vcombine.low %v5073, %v5074
        %v9960 = vcombine.low %v5075, %v5076
        %v9961 = vcombine.low %v5077, %v5078
        %v9963 = vunpack.c.l.s4 1966171168
        %v9964 = vunpack.c.0.s8 %v9963
        %v9965 = vlaneseq
        %v9966 = vshrl.u32 %v9965, 7
        %v9967 = vsub.s32 %v9964, %v9966
        %v9968 = vrot.slane %v9958, %v9967
        %v9970 = vunpack.c.l.s4 1966171168
        %v9971 = vunpack.c.0.s8 %v9970
        %v9972 = vlaneseq
        %v9973 = vshrl.u32 %v9972, 7
        %v9974 = vsub.s32 %v9971, %v9973
        %v9975 = vrot.slane %v9959, %v9974
        %v9977 = vunpack.c.l.s4 1966171168
        %v9978 = vunpack.c.0.s8 %v9977
        %v9979 = vlaneseq
        %v9980 = vshrl.u32 %v9979, 7
        %v9981 = vsub.s32 %v9978, %v9980
        %v9982 = vrot.slane %v9960, %v9981
        %v9984 = vunpack.c.l.s4 1966171168
        %v9985 = vunpack.c.0.s8 %v9984
        %v9986 = vlaneseq
        %v9987 = vshrl.u32 %v9986, 7
        %v9988 = vsub.s32 %v9985, %v9987
        %v9989 = vrot.slane %v9961, %v9988
        %v9990 = vcombine.low %v9968, %v9975
        %v9991 = vcombine.low %v9982, %v9989
        %v9993 = vunpack.c.l.s4 1966171168
        %v9994 = vunpack.c.0.s8 %v9993
        %v9995 = vlaneseq
        %v9996 = vshrl.u32 %v9995, 7
        %v9997 = vsub.s32 %v9994, %v9996
        %v9998 = vrot.slane %v9990, %v9997
        %v10000 = vunpack.c.l.s4 1966171168
        %v10001 = vunpack.c.0.s8 %v10000
        %v10002 = vlaneseq
        %v10003 = vshrl.u32 %v10002, 7
        %v10004 = vsub.s32 %v10001, %v10003
        %v10005 = vrot.slane %v9991, %v10004
        %v10006 = vcombine.low %v9998, %v10005
        %v10008 = vadd.f32 %v9883, %v10006
        %v10009 = vxor.u32 %v10008, 2147483648
        %v10010 = vmul.f32 %v10009, 1.442695
        %v10011 = vpow.pop %v10010
        %v10012 = vadd.f32 %v10011, 1.0
        %v10013 = vrcp.pop %v10012
        %v10014 = vmul.f32 1.0, %v10013
        %v10023 = vcombine.low %v5079, %v5080
        %v10024 = vcombine.low %v5081, %v5082
        %v10025 = vcombine.low %v5083, %v5084
        %v10026 = vcombine.low %v5085, %v5086
        %v10028 = vunpack.c.l.s4 1966171168
        %v10029 = vunpack.c.0.s8 %v10028
        %v10030 = vlaneseq
        %v10031 = vshrl.u32 %v10030, 7
        %v10032 = vsub.s32 %v10029, %v10031
        %v10033 = vrot.slane %v10023, %v10032
        %v10035 = vunpack.c.l.s4 1966171168
        %v10036 = vunpack.c.0.s8 %v10035
        %v10037 = vlaneseq
        %v10038 = vshrl.u32 %v10037, 7
        %v10039 = vsub.s32 %v10036, %v10038
        %v10040 = vrot.slane %v10024, %v10039
        %v10042 = vunpack.c.l.s4 1966171168
        %v10043 = vunpack.c.0.s8 %v10042
        %v10044 = vlaneseq
        %v10045 = vshrl.u32 %v10044, 7
        %v10046 = vsub.s32 %v10043, %v10045
        %v10047 = vrot.slane %v10025, %v10046
        %v10049 = vunpack.c.l.s4 1966171168
        %v10050 = vunpack.c.0.s8 %v10049
        %v10051 = vlaneseq
        %v10052 = vshrl.u32 %v10051, 7
        %v10053 = vsub.s32 %v10050, %v10052
        %v10054 = vrot.slane %v10026, %v10053
        %v10055 = vcombine.low %v10033, %v10040
        %v10056 = vcombine.low %v10047, %v10054
        %v10058 = vunpack.c.l.s4 1966171168
        %v10059 = vunpack.c.0.s8 %v10058
        %v10060 = vlaneseq
        %v10061 = vshrl.u32 %v10060, 7
        %v10062 = vsub.s32 %v10059, %v10061
        %v10063 = vrot.slane %v10055, %v10062
        %v10065 = vunpack.c.l.s4 1966171168
        %v10066 = vunpack.c.0.s8 %v10065
        %v10067 = vlaneseq
        %v10068 = vshrl.u32 %v10067, 7
        %v10069 = vsub.s32 %v10066, %v10068
        %v10070 = vrot.slane %v10056, %v10069
        %v10071 = vcombine.low %v10063, %v10070
        %v10073 = vmul.f32 %v9949, %v10071
        %v10074 = vadd.f32 %v9884, %v10073
        %v10075 = vtanh.pop %v10074
        %v10076 = vsub.f32 1.0, %v10014
        %v10077 = vmul.f32 %v10076, %v10075
        %v10078 = vmul.f32 %v10014, %v447
        %v10079 = vadd.f32 %v10077, %v10078
        %10080 = vst [vmem:[%s432] sm:$0xff] %v10079
        %10081 = vst [vmem:[#allocation2] sm:$0xff] %v10079
        %p10082 = scmp.eq.s32.totalorder %s33, 7
        // Predicated region
        $region69: #{gru_flowtron_forward.1} parent=47 // pred_check
          %p10083 = pneg %p10082
        $region70: #{gru_flowtron_forward.1} parent=47 // pred_check_branch
          %10085 = sbr.rel (%p10083) target = $region72
        $region71: #{gru_flowtron_forward.1} parent=47 // pred_region
          %v10086 = vld [vmem:[#allocation10] sm:$0xff]
          %v10087 = vmul.f32 %v10079, %v10086
          %v10089 = vlaneseq
          %v10090 = vshrl.u32 %v10089, 7
          %v10091 = vsub.s32 0, %v10090
          %v10092 = vrot.slane %v10087, %v10091
          %v10093 = vlaneseq
          %v10094 = vshrl.u32 %v10093, 7
          %v10095 = vsub.s32 1, %v10094
          %v10096 = vrot.slane %v10087, %v10095
          %v10097 = vlaneseq
          %v10098 = vshrl.u32 %v10097, 7
          %v10099 = vsub.s32 2, %v10098
          %v10100 = vrot.slane %v10087, %v10099
          %v10101 = vlaneseq
          %v10102 = vshrl.u32 %v10101, 7
          %v10103 = vsub.s32 3, %v10102
          %v10104 = vrot.slane %v10087, %v10103
          %v10105 = vlaneseq
          %v10106 = vshrl.u32 %v10105, 7
          %v10107 = vsub.s32 4, %v10106
          %v10108 = vrot.slane %v10087, %v10107
          %v10109 = vlaneseq
          %v10110 = vshrl.u32 %v10109, 7
          %v10111 = vsub.s32 5, %v10110
          %v10112 = vrot.slane %v10087, %v10111
          %v10113 = vlaneseq
          %v10114 = vshrl.u32 %v10113, 7
          %v10115 = vsub.s32 6, %v10114
          %v10116 = vrot.slane %v10087, %v10115
          %v10117 = vlaneseq
          %v10118 = vshrl.u32 %v10117, 7
          %v10119 = vsub.s32 7, %v10118
          %v10120 = vrot.slane %v10087, %v10119
          %vm10129 = vcmask 1040384
          %v10130 = vsel %vm10129, %v10092, 0.0
          %v10131 = vsel %vm10129, %v10096, 0.0
          %v10132 = vadd.f32 %v10130, %v10131
          %v10133 = vsel %vm10129, %v10100, 0.0
          %v10134 = vadd.f32 %v10132, %v10133
          %v10135 = vsel %vm10129, %v10104, 0.0
          %v10136 = vadd.f32 %v10134, %v10135
          %v10137 = vsel %vm10129, %v10108, 0.0
          %v10138 = vadd.f32 %v10136, %v10137
          %v10139 = vsel %vm10129, %v10112, 0.0
          %v10140 = vadd.f32 %v10138, %v10139
          %v10141 = vsel %vm10129, %v10116, 0.0
          %v10142 = vadd.f32 %v10140, %v10141
          %v10143 = vsel %vm10129, %v10120, 0.0
          %v10144 = vadd.f32 %v10142, %v10143
          %10145 = vadd.xlane.f32.xlu0 %v10144
          %v10146 = vpop.xlane.xlu0 %10145
          %v10147 = vld [vmem:[#allocation3] sm:$0x1]
          %v10148 = vadd.f32 %v10146, %v10147
          %vm10149 = vcmask 0
          %10150 = vst.msk [vmem:[#allocation13] sm:$0x1] %vm10149, %v10148
        $region72: #{gru_flowtron_forward.1} parent=47 // pred_fallthru
          _
        %s10151 = sand.u32 %s214, 1
        %s10152 = scalar_lea.sflag [#allocation6], %s10151
        %s10153 = sand.u32 %s214, 1
        %s10154 = smul.addr %s10153, 8
        %s10155 = scalar_lea.vmem [#allocation12], %s10154
        // Predicated region
        $region73: #{gru_flowtron_forward.1} parent=47 // pred_check
          %p10156 = pneg %p224
        $region74: #{gru_flowtron_forward.1} parent=47 // pred_check_branch
          %10158 = sbr.rel (%p10156) target = $region76
        $region75: #{gru_flowtron_forward.1} parent=47 // pred_region
          %s10160 = ssub.s32 128, 128
          %10161 = vsyncadd %s10152, %s10160
          %s10162 = smul.addr %s33, 8
          %s10163 = smul.addr %s10162, 16
          %s10164 = scalar_lea.hbm %s7, %s10163
          %s10166 = sshll.u32 %s10155, 4
          %s10167 = int_to_ptr.vmem [resolvable:$true] %s10166
          %10169 = dma.vmem_to_hbm [thread:$0]  %s10167, 128, %s10164, %s10152
        $region76: #{gru_flowtron_forward.1} parent=47 // pred_fallthru
          _
        // Predicated region
        $region77: #{gru_flowtron_forward.1} parent=47 // pred_check
          %p10170 = pneg %p245
        $region78: #{gru_flowtron_forward.1} parent=47 // pred_check_branch
          %10172 = sbr.rel (%p10170) target = $region80
        $region79: #{gru_flowtron_forward.1} parent=47 // pred_region
          %s10174 = ssub.s32 16, 16
          %10175 = vsyncadd [#allocation14], %s10174
          %s10177 = sshll.u32 [#allocation13], 4
          %s10178 = int_to_ptr.vmem [resolvable:$true] %s10177
          %10180 = dma.vmem_to_hbm [thread:$0]  %s10178, 16, %s8, [#allocation14]
        $region80: #{gru_flowtron_forward.1} parent=47 // pred_fallthru
          _
        // Predicated region
        $region81: #{gru_flowtron_forward.1} parent=47 // pred_check
          %p10181 = pneg %p245
        $region82: #{gru_flowtron_forward.1} parent=47 // pred_check_branch
          %10183 = sbr.rel (%p10181) target = $region84
        $region83: #{gru_flowtron_forward.1} parent=47 // pred_region
          %10184 = dma.done [#allocation14], 16
        $region84: #{gru_flowtron_forward.1} parent=47 // pred_fallthru
          _
      $region48: #{gru_flowtron_forward.1} parent=5 // pred_fallthru
        _
      %p10185 = scmp.le.s32.totalorder 2, %s28
      // Predicated region
      $region85: #{gru_flowtron_forward.1} parent=5 // pred_check
        %p10186 = pneg %p10185
      $region86: #{gru_flowtron_forward.1} parent=5 // pred_check_branch
        %10188 = sbr.rel (%p10186) target = $region88
      $region87: #{gru_flowtron_forward.1} parent=5 // pred_region
        %s10189 = ssub.s32 %s28, 2
        // Predicated region
        $region89: #{gru_flowtron_forward.1} parent=87 // pred_check
          %p10190 = pneg %p230
        $region90: #{gru_flowtron_forward.1} parent=87 // pred_check_branch
          %10192 = sbr.rel (%p10190) target = $region92
        $region91: #{gru_flowtron_forward.1} parent=87 // pred_region
          %s10193 = sand.u32 %s215, 1
          %s10194 = scalar_lea.sflag [#allocation6], %s10193
          %s10195 = sand.u32 %s215, 1
          %s10196 = smul.addr %s10195, 8
          %s10197 = scalar_lea.vmem [#allocation12], %s10196
          %10198 = dma.done %s10194, 128
        $region92: #{gru_flowtron_forward.1} parent=87 // pred_fallthru
          _
      $region88: #{gru_flowtron_forward.1} parent=5 // pred_fallthru
        _
    $region6: #{gru_flowtron_forward.1} parent=1 // loop_footer
      %s32 = sadd.s32 1, %s28
    $region7: #{gru_flowtron_forward.1} parent=1 // loop_footer_branch
      %27 = sbr.rel target = $region3
    $region8: #{gru_flowtron_forward.1} parent=1 // loop_exit
      _
    %10199 = vsyncpa [#allocation5], 1
    %s10200 = scalar_lea.sflag [#allocation5], 1
    %10201 = vsyncpa %s10200, 1
    %10202 = vsyncpa [#allocation8], 1
    %s10203 = scalar_lea.sflag [#allocation8], 1
    %10204 = vsyncpa %s10203, 1
    %10205 = vsyncpa [#allocation11], 1
    %10206 = vsyncpa [#allocation6], 1
    %s10207 = scalar_lea.sflag [#allocation6], 1
    %10208 = vsyncpa %s10207, 1
    %10209 = vsyncpa [#allocation14], 1

</llo_original>
